<compile_context>
chip_gen: v7x
topology: tpu7x:2x2x1
jax: 0.10.0
libtpu: 0.0.40
codegen_flags: <defaults>
</compile_context>

<pallas_src>
import math

import jax
import jax.numpy as jnp
from jax import lax
from jax.experimental import pallas as pl
from jax.experimental.pallas import tpu as pltpu


N_LIN = 18  # number of (weight, bias) linear-layer refs (9 Linear layers)


# ---------------------------------------------------------------------------
# Pallas kernel factory
# ---------------------------------------------------------------------------
def make_kernel(T, B, act_dim, h_dim, z_dim, n_layers):

    def _relu(x):
        return jnp.maximum(x, 0.0)

    def _sigmoid(x):
        # 1/(1+exp(-x)) == 0.5*(tanh(x/2)+1)  -> single EUP tanh
        return 0.5 * (jnp.tanh(0.5 * x) + 1.0)

    def _softplus(x):
        # matches torch.nn.Softplus (beta=1, threshold=20)
        return jnp.where(x > 20.0, x, jnp.log1p(jnp.exp(jnp.minimum(x, 20.0))))

    def _bf(x):
        return x.astype(jnp.bfloat16)

    def kernel(*refs):
        x_ref, eps_ref, epsf_ref, h0_ref = refs[:4]
        (xenc_w, xenc_b, actenc_w, actenc_b, h2z_w, h2z_b,
         pxh2e_w, pxh2e_b, h2p_w, h2p_b, z2pz_w, z2pz_b,
         pzh2d_w, pzh2d_b, d2a_w, d2a_b, durd_w, durd_b) = refs[4:4 + N_LIN]
        o = 4 + N_LIN
        gru_i = refs[o:o + 2 * n_layers]              # (wih_l, bih_l) per layer
        whh_blk = refs[o + 2 * n_layers]              # (L*h, L*3h) block-diag, bf16
        bhh_cat = refs[o + 2 * n_layers + 1]          # (1, L*3h) f32
        n_in = o + 2 * n_layers + 2
        act_out, durm_out, durs_out, kld_out = refs[n_in:n_in + 4]
        phix_scr = refs[n_in + 4]                     # VMEM scratch (T*B, h)

        # bf16 MXU matmul with f32 accumulation; weights are already bf16.
        def mm(a, w_ref, b_ref=None):
            out = jnp.dot(_bf(a), w_ref[...], preferred_element_type=jnp.float32)
            return out if b_ref is None else out + b_ref[...]

        # fused K=2h matmul on a lane-concatenated LHS (single push on the
        # 256-deep MXUs of v6e/v7x; neutral on v5e).
        def mm2(a, b, w_ref, b_ref):
            lhs = jnp.concatenate([_bf(a), _bf(b)], axis=-1)
            out = jnp.dot(lhs, w_ref[...], preferred_element_type=jnp.float32)
            return out + b_ref[...]

        # ----- hoisted encoder: one (T*B, din) matmul for ALL timesteps ------
        phix_scr[...] = _relu(mm(x_ref[...], xenc_w, xenc_b))        # (T*B, h)

        def step(t, carry):
            hidden, kacc = carry                      # (L*B, h) f32, (L*B, z) f32
            i0 = pl.multiple_of(t * B, B)
            phi_x = phix_scr[pl.ds(i0, B), :]         # (B, h) precomputed
            eps_t = eps_ref[t]                        # (B, z)
            h_last = hidden[(n_layers - 1) * B:, :]   # (B, h)

            # fused GRU hidden-gate matmul: depends only on the carry, issued
            # at step start, off the gi critical path.
            hcat = jnp.concatenate(
                [hidden[l * B:(l + 1) * B, :] for l in range(n_layers)], axis=-1)
            gh_all = mm(hcat, whh_blk, bhh_cat)       # (B, L*3h)

            # encoder / prior with the shared h2z matmul fused into one push
            enc = _relu(mm2(phi_x, h_last, pxh2e_w, pxh2e_b))         # (B, h)
            prior = _relu(mm(hidden, h2p_w, h2p_b))                   # (L*B, h)
            mz = mm(jnp.concatenate([enc, prior], axis=0), h2z_w, h2z_b)
            enc_mean, p_mean = mz[:B], mz[B:]                         # (B,z),(L*B,z)
            enc_std = _softplus(enc_mean)
            p_std = _softplus(p_mean)

            # elementwise KLD, one shared reciprocal, reduction deferred.
            enc_mean_r = jnp.concatenate([enc_mean] * n_layers, axis=0)
            enc_std_r = jnp.concatenate([enc_std] * n_layers, axis=0)
            diff = enc_mean_r - p_mean
            inv_p = pl.reciprocal(p_std, approx=True)
            elem = (-2.0 * jnp.log(enc_std_r * inv_p)
                    + (enc_std_r * enc_std_r + diff * diff) * (inv_p * inv_p)
                    - 1.0)
            kacc = kacc + elem

            # reparameterized sample + phi_z
            z_t = eps_t * enc_std + enc_mean
            phi_z = _relu(mm(z_t, z2pz_w, z2pz_b))

            # single-step multi-layer GRU (PyTorch gate order: r, z, n)
            new_h = []
            inp = None
            for l in range(n_layers):
                wih, bih = gru_i[2 * l], gru_i[2 * l + 1]
                h_prev = hidden[l * B:(l + 1) * B, :]
                if l == 0:
                    gi = mm2(phi_x, phi_z, wih, bih)      # K = 2h fused
                else:
                    gi = mm(inp, wih, bih)
                gh = gh_all[:, l * 3 * h_dim:(l + 1) * 3 * h_dim]
                r = _sigmoid(gi[:, 0:h_dim] + gh[:, 0:h_dim])
                zg = _sigmoid(gi[:, h_dim:2 * h_dim] + gh[:, h_dim:2 * h_dim])
                n = jnp.tanh(gi[:, 2 * h_dim:] + r * gh[:, 2 * h_dim:])
                h_new = (1.0 - zg) * n + zg * h_prev
                new_h.append(h_new)
                inp = h_new
            hidden = jnp.concatenate(new_h, axis=0)       # (L*B, h) sublane concat
            return hidden, kacc

        hidden0 = h0_ref[...]
        kacc0 = jnp.zeros((n_layers * B, z_dim), jnp.float32)
        # full unroll only while T is tiny; guard-rail for long sequences.
        unroll = True if T <= 8 else 2
        hidden, kacc = lax.fori_loop(0, T, step, (hidden0, kacc0), unroll=unroll)

        # ----- final forecast head (runs once, after the recurrence) ---------
        hL = hidden[(n_layers - 1) * B:, :]
        prior = _relu(mm(hL, h2p_w, h2p_b))
        p_mean = mm(prior, h2z_w, h2z_b)
        p_std = _softplus(p_mean)
        z_f = epsf_ref[...] * p_std + p_mean
        phi_zf = _relu(mm(z_f, z2pz_w, z2pz_b))
        dec = _relu(mm2(phi_zf, hL, pzh2d_w, pzh2d_b))
        unnorm = mm(dec, d2a_w, d2a_b)
        fut = mm(unnorm, actenc_w, actenc_b)
        dur_dec = mm2(fut, dec, durd_w, durd_b)

        act_out[...] = unnorm
        durm_out[...] = _sigmoid(dur_dec)
        durs_out[...] = _softplus(dur_dec)
        # single cross-lane reduction for the whole sequence
        kld_out[...] = jnp.zeros_like(kld_out) + 0.5 * jnp.sum(kacc)

    return kernel


# ---------------------------------------------------------------------------
# wrapper
# ---------------------------------------------------------------------------
def cvrae_forward(act, dur, params, is_weight, h0, eps_seq, eps_final, *,
                  act_dim, h_dim, z_dim, n_layers):
    B, T = act.shape
    assert len(params) == N_LIN + 4 * n_layers
    assert len(is_weight) == len(params)

    # glue: one-hot + concat duration + time-major, flattened to (T*B, din)
    one_hot = jax.nn.one_hot(act, act_dim, dtype=jnp.float32)
    x = jnp.concatenate([one_hot, dur[..., None].astype(jnp.float32)], axis=-1)
    x = jnp.transpose(x, (1, 0, 2)).reshape(T * B, act_dim + 1)

    # explicit weight/bias tags: weights -> bf16 MXU inputs, biases stay f32.
    lin = params[:N_LIN]
    lin_k = [p.astype(jnp.bfloat16) if w else p
             for p, w in zip(lin, is_weight[:N_LIN])]

    # GRU: per-layer (wih, bih) passed through; whh fused block-diagonally
    # (built once here, bf16), bhh lane-concatenated.
    gru = params[N_LIN:]
    gru_in, whh_list, bhh_list = [], [], []
    for l in range(n_layers):
        wih, whh, bih, bhh = gru[4 * l:4 * l + 4]
        gru_in += [wih.astype(jnp.bfloat16), bih]
        whh_list.append(whh)
        bhh_list.append(bhh)
    whh_blk = jax.scipy.linalg.block_diag(*whh_list).astype(jnp.bfloat16)
    bhh_cat = jnp.concatenate(bhh_list, axis=-1)

    h0_flat = h0.reshape(n_layers * B, h_dim)

    out_shape = (
        jax.ShapeDtypeStruct((B, act_dim), jnp.float32),  # unnorm_prob_pred_act
        jax.ShapeDtypeStruct((B, 1), jnp.float32),        # pred_dur_mean
        jax.ShapeDtypeStruct((B, 1), jnp.float32),        # pred_dur_std
        jax.ShapeDtypeStruct((1, 1), jnp.float32),        # kld
    )

    vmem = pl.BlockSpec(memory_space=pltpu.MemorySpace.VMEM)
    inputs = (x, eps_seq, eps_final, h0_flat, *lin_k, *gru_in, whh_blk, bhh_cat)

    # TODO(synk): on v7x, a second independent sequence could be packed with a
    # size-2 "parallel" grid axis to use the second TensorCore; single-sequence
    # forward() stays un-gridded.
    kernel = make_kernel(T, B, act_dim, h_dim, z_dim, n_layers)
    call = pl.pallas_call(
        kernel,
        out_shape=out_shape,
        in_specs=[vmem] * len(inputs),        # everything fully VMEM-resident,
        out_specs=(vmem, vmem, vmem, vmem),   # single un-gridded invocation
        scratch_shapes=[pltpu.VMEM((T * B, h_dim), jnp.float32)],  # hoisted phi_x
    )
    unnorm, dur_mean, dur_std, kld = call(*inputs)
    return unnorm, (dur_mean, dur_std), kld[0, 0]


# ---------------------------------------------------------------------------
# deterministic parameter init (shapes from CVRAE_forecasting.__init__),
# weights stored pre-transposed as (in, out), biases as (1, out), all f32.
# Returns (flat_params, is_weight_tags) — explicit tags, no shape heuristics.
# ---------------------------------------------------------------------------
def init_params(key, act_dim, h_dim, z_dim, n_layers):
    keys = iter(jax.random.split(key, 64))
    flat, tags = [], []

    def lin(in_f, out_f):
        k1, k2 = jax.random.split(next(keys))
        bound = 1.0 / math.sqrt(in_f)
        w = jax.random.uniform(k1, (in_f, out_f), jnp.float32, -bound, bound)
        b = jax.random.uniform(k2, (1, out_f), jnp.float32, -bound, bound)
        flat.extend([w, b])
        tags.extend([True, False])

    lin(act_dim + 1, h_dim)      # x_enc
    lin(act_dim, h_dim)          # act_enc
    lin(h_dim, z_dim)            # hidden_to_z
    lin(2 * h_dim, h_dim)        # phi_x_hidden_to_enc
    lin(h_dim, h_dim)            # hidden_to_prior
    lin(z_dim, h_dim)            # z_to_phi_z
    lin(2 * h_dim, h_dim)        # phi_z_hidden_to_dec
    lin(h_dim, act_dim)          # dec_to_act
    lin(2 * h_dim, 1)            # dur_decoder
    assert len(flat) == N_LIN

    # GRU: per layer weight_ih (in,3h), weight_hh (h,3h), bias_ih, bias_hh
    bound = 1.0 / math.sqrt(h_dim)
    for l in range(n_layers):
        in_size = 2 * h_dim if l == 0 else h_dim
        k1, k2, k3, k4 = jax.random.split(next(keys), 4)
        flat.append(jax.random.uniform(k1, (in_size, 3 * h_dim), jnp.float32, -bound, bound))
        flat.append(jax.random.uniform(k2, (h_dim, 3 * h_dim), jnp.float32, -bound, bound))
        flat.append(jax.random.uniform(k3, (1, 3 * h_dim), jnp.float32, -bound, bound))
        flat.append(jax.random.uniform(k4, (1, 3 * h_dim), jnp.float32, -bound, bound))
        tags.extend([True, True, False, False])
    return flat, tags


# ---------------------------------------------------------------------------
# pure-JAX f32 reference (same math / params / eps) for validation
# ---------------------------------------------------------------------------
def reference_forward(x, eps_seq, eps_final, h0, flat, n_layers, h_dim):
    (xenc_w, xenc_b, actenc_w, actenc_b, h2z_w, h2z_b,
     pxh2e_w, pxh2e_b, h2p_w, h2p_b, z2pz_w, z2pz_b,
     pzh2d_w, pzh2d_b, d2a_w, d2a_b, durd_w, durd_b) = flat[:N_LIN]
    gru = flat[N_LIN:]

    dot = lambda a, b: jnp.dot(a, b, precision=lax.Precision.HIGHEST)
    relu = lambda v: jnp.maximum(v, 0.0)
    sp = lambda v: jnp.where(v > 20.0, v, jnp.log1p(jnp.exp(jnp.minimum(v, 20.0))))
    sg = lambda v: 1.0 / (1.0 + jnp.exp(-v))
    cat = lambda a, b: jnp.concatenate([a, b], axis=-1)

    T = x.shape[0]
    hidden = h0
    kld = jnp.float32(0.0)
    for t in range(T):
        phi_x = relu(dot(x[t], xenc_w) + xenc_b)
        enc = relu(dot(cat(phi_x, hidden[-1]), pxh2e_w) + pxh2e_b)
        enc_mean = dot(enc, h2z_w) + h2z_b
        enc_std = sp(enc_mean)
        prior = relu(dot(hidden, h2p_w) + h2p_b)
        p_mean = dot(prior, h2z_w) + h2z_b
        p_std = sp(p_mean)
        elem = (2 * jnp.log(p_std) - 2 * jnp.log(enc_std)
                + (enc_std ** 2 + (enc_mean - p_mean) ** 2) / p_std ** 2 - 1.0)
        kld = kld + 0.5 * jnp.sum(elem)
        z = eps_seq[t] * enc_std + enc_mean
        phi_z = relu(dot(z, z2pz_w) + z2pz_b)
        new_h = []
        inp = cat(phi_x, phi_z)
        for l in range(n_layers):
            wih, whh, bih, bhh = gru[4 * l:4 * l + 4]
            h_prev = hidden[l]
            gi = dot(inp, wih) + bih
            gh = dot(h_prev, whh) + bhh
            r = sg(gi[:, :h_dim] + gh[:, :h_dim])
            zg = sg(gi[:, h_dim:2 * h_dim] + gh[:, h_dim:2 * h_dim])
            n = jnp.tanh(gi[:, 2 * h_dim:] + r * gh[:, 2 * h_dim:])
            h_new = (1 - zg) * n + zg * h_prev
            new_h.append(h_new)
            inp = h_new
        hidden = jnp.stack(new_h)

    hL = hidden[-1]
    prior = relu(dot(hL, h2p_w) + h2p_b)
    p_mean = dot(prior, h2z_w) + h2z_b
    p_std = sp(p_mean)
    z_f = eps_final * p_std + p_mean
    phi_zf = relu(dot(z_f, z2pz_w) + z2pz_b)
    dec = relu(dot(cat(phi_zf, hL), pzh2d_w) + pzh2d_b)
    unnorm = dot(dec, d2a_w) + d2a_b
    fut = dot(unnorm, actenc_w) + actenc_b
    dur_dec = dot(cat(fut, dec), durd_w) + durd_b
    return unnorm, sg(dur_dec), sp(dur_dec), kld


# ---------------------------------------------------------------------------
if __name__ == "__main__":
    act_dim, h_dim, z_dim, n_layers = 6, 128, 32, 2
    B, T = 8, 6

    key = jax.random.PRNGKey(0)
    k_act, k_dur, k_h0, k_eps, k_epsf, k_par = jax.random.split(key, 6)

    act = jax.random.randint(k_act, (B, T), 0, act_dim)               # integer actions
    dur = jax.random.uniform(k_dur, (B, T), jnp.float32)              # normalized durations
    h0 = jax.random.normal(k_h0, (n_layers, B, h_dim), jnp.float32)   # init_hidden randn
    eps_seq = jax.random.normal(k_eps, (T, B, z_dim), jnp.float32)    # per-step reparam eps
    eps_final = jax.random.normal(k_epsf, (B, z_dim), jnp.float32)    # final reparam eps

    params, is_weight = init_params(k_par, act_dim, h_dim, z_dim, n_layers)

    unnorm, (dur_mean, dur_std), kld = cvrae_forward(
        act, dur, params, is_weight, h0, eps_seq, eps_final,
        act_dim=act_dim, h_dim=h_dim, z_dim=z_dim, n_layers=n_layers)
    jax.block_until_ready((unnorm, dur_mean, dur_std, kld))

    # validate against the pure-JAX f32 reference (kernel uses bf16 MXU
    # inputs with f32 accumulation + approx reciprocal in the off-path KLD,
    # hence the tolerances).
    one_hot = jax.nn.one_hot(act, act_dim, dtype=jnp.float32)
    x_ref = jnp.transpose(
        jnp.concatenate([one_hot, dur[..., None]], axis=-1), (1, 0, 2))
    r_unnorm, r_mean, r_std, r_kld = reference_forward(
        x_ref, eps_seq, eps_final, h0, params, n_layers, h_dim)

    assert jnp.allclose(unnorm, r_unnorm, rtol=3e-2, atol=3e-2), "unnorm mismatch"
    assert jnp.allclose(dur_mean, r_mean, rtol=3e-2, atol=3e-2), "dur_mean mismatch"
    assert jnp.allclose(dur_std, r_std, rtol=3e-2, atol=3e-2), "dur_std mismatch"
    assert jnp.allclose(kld, r_kld, rtol=1e-1, atol=3.0), "kld mismatch"

    print("KERNEL_OK")
</pallas_src>

<mosaic_0001>
module attributes {stable_mosaic.version = 11 : i64} {
  func.func @kernel(%arg0: memref<48x7xf32, #tpu.memory_space<vmem>>, %arg1: memref<6x8x32xf32, #tpu.memory_space<vmem>>, %arg2: memref<8x32xf32, #tpu.memory_space<vmem>>, %arg3: memref<16x128xf32, #tpu.memory_space<vmem>>, %arg4: memref<7x128xbf16, #tpu.memory_space<vmem>>, %arg5: memref<1x128xf32, #tpu.memory_space<vmem>>, %arg6: memref<6x128xbf16, #tpu.memory_space<vmem>>, %arg7: memref<1x128xf32, #tpu.memory_space<vmem>>, %arg8: memref<128x32xbf16, #tpu.memory_space<vmem>>, %arg9: memref<1x32xf32, #tpu.memory_space<vmem>>, %arg10: memref<256x128xbf16, #tpu.memory_space<vmem>>, %arg11: memref<1x128xf32, #tpu.memory_space<vmem>>, %arg12: memref<128x128xbf16, #tpu.memory_space<vmem>>, %arg13: memref<1x128xf32, #tpu.memory_space<vmem>>, %arg14: memref<32x128xbf16, #tpu.memory_space<vmem>>, %arg15: memref<1x128xf32, #tpu.memory_space<vmem>>, %arg16: memref<256x128xbf16, #tpu.memory_space<vmem>>, %arg17: memref<1x128xf32, #tpu.memory_space<vmem>>, %arg18: memref<128x6xbf16, #tpu.memory_space<vmem>>, %arg19: memref<1x6xf32, #tpu.memory_space<vmem>>, %arg20: memref<256x1xbf16, #tpu.memory_space<vmem>>, %arg21: memref<1x1xf32, #tpu.memory_space<vmem>>, %arg22: memref<256x384xbf16, #tpu.memory_space<vmem>>, %arg23: memref<1x384xf32, #tpu.memory_space<vmem>>, %arg24: memref<128x384xbf16, #tpu.memory_space<vmem>>, %arg25: memref<1x384xf32, #tpu.memory_space<vmem>>, %arg26: memref<256x768xbf16, #tpu.memory_space<vmem>>, %arg27: memref<1x768xf32, #tpu.memory_space<vmem>>, %arg28: memref<8x6xf32, #tpu.memory_space<vmem>>, %arg29: memref<8x1xf32, #tpu.memory_space<vmem>>, %arg30: memref<8x1xf32, #tpu.memory_space<vmem>>, %arg31: memref<1x1xf32, #tpu.memory_space<vmem>>, %arg32: memref<48x128xf32, #tpu.memory_space<vmem>>) attributes {dimension_semantics = [], scalar_prefetch = 0 : i64, scratch_operands = 1 : i64, tpu.core_type = #tpu.core_type<tc>} {
    %c0 = arith.constant 0 : index
    %c0_0 = arith.constant 0 : index
    %0 = vector.load %arg0[%c0, %c0_0] : memref<48x7xf32, #tpu.memory_space<vmem>>, vector<48x7xf32>
    %1 = arith.truncf %0 : vector<48x7xf32> to vector<48x7xbf16>
    %c0_1 = arith.constant 0 : index
    %c0_2 = arith.constant 0 : index
    %2 = vector.load %arg4[%c0_1, %c0_2] : memref<7x128xbf16, #tpu.memory_space<vmem>>, vector<7x128xbf16>
    %cst = arith.constant dense<0.000000e+00> : vector<48x128xf32>
    %3 = tpu.matmul %1, %2, %cst {dimension_numbers = #tpu.dot_dimension_numbers<[1], [0], [0], [1], [0, 0, 1, 1], [], []>} : vector<48x7xbf16>, vector<7x128xbf16>, vector<48x128xf32> -> vector<48x128xf32>
    %c0_3 = arith.constant 0 : index
    %c0_4 = arith.constant 0 : index
    %4 = vector.load %arg5[%c0_3, %c0_4] : memref<1x128xf32, #tpu.memory_space<vmem>>, vector<1x128xf32>
    %5 = vector.broadcast %4 : vector<1x128xf32> to vector<48x128xf32>
    %6 = arith.addf %3, %5 : vector<48x128xf32>
    %cst_5 = arith.constant 0.000000e+00 : f32
    %7 = vector.broadcast %cst_5 : f32 to vector<48x128xf32>
    %8 = arith.maximumf %6, %7 : vector<48x128xf32>
    %c0_6 = arith.constant 0 : index
    %c0_7 = arith.constant 0 : index
    %9 = vector.load %arg32[%c0_6, %c0_7] : memref<48x128xf32, #tpu.memory_space<vmem>>, vector<48x128xf32>
    tpu.vector_store %arg32[%c0_6, %c0_7], %8 {strides = array<i32>} : memref<48x128xf32, #tpu.memory_space<vmem>>, vector<48x128xf32>,
    %c0_8 = arith.constant 0 : index
    %c0_9 = arith.constant 0 : index
    %10 = vector.load %arg3[%c0_8, %c0_9] : memref<16x128xf32, #tpu.memory_space<vmem>>, vector<16x128xf32>
    %cst_10 = arith.constant 0.000000e+00 : f32
    %11 = vector.broadcast %cst_10 : f32 to vector<16x32xf32>
    %c0_i32 = arith.constant 0 : i32
    %c8_i32 = arith.constant 8 : i32
    %12 = arith.muli %c0_i32, %c8_i32 : i32
    %13 = tpu.assume_multiple %12, 8 : i32
    %14 = arith.index_cast %13 : i32 to index
    %c0_11 = arith.constant 0 : index
    %15 = vector.load %arg32[%14, %c0_11] : memref<48x128xf32, #tpu.memory_space<vmem>>, vector<8x128xf32>
    %16 = arith.index_cast %c0_i32 : i32 to index
    %c0_12 = arith.constant 0 : index
    %c0_13 = arith.constant 0 : index
    %17 = vector.load %arg1[%16, %c0_12, %c0_13] : memref<6x8x32xf32, #tpu.memory_space<vmem>>, vector<1x8x32xf32>
    %18 = vector.shape_cast %17 : vector<1x8x32xf32> to vector<8x32xf32>
    %19 = vector.extract_strided_slice %10 {offsets = [8, 0], sizes = [8, 128], strides = [1, 1]} : vector<16x128xf32> to vector<8x128xf32>
    %20 = vector.extract_strided_slice %10 {offsets = [0, 0], sizes = [8, 128], strides = [1, 1]} : vector<16x128xf32> to vector<8x128xf32>
    %21 = vector.extract_strided_slice %10 {offsets = [8, 0], sizes = [8, 128], strides = [1, 1]} : vector<16x128xf32> to vector<8x128xf32>
    %22 = tpu.concatenate %20, %21 in 1 : vector<8x128xf32>, vector<8x128xf32> -> vector<8x256xf32>
    %23 = arith.truncf %22 : vector<8x256xf32> to vector<8x256xbf16>
    %c0_14 = arith.constant 0 : index
    %c0_15 = arith.constant 0 : index
    %24 = vector.load %arg26[%c0_14, %c0_15] : memref<256x768xbf16, #tpu.memory_space<vmem>>, vector<256x768xbf16>
    %cst_16 = arith.constant dense<0.000000e+00> : vector<8x768xf32>
    %25 = tpu.matmul %23, %24, %cst_16 {dimension_numbers = #tpu.dot_dimension_numbers<[1], [0], [0], [1], [0, 0, 1, 1], [], []>} : vector<8x256xbf16>, vector<256x768xbf16>, vector<8x768xf32> -> vector<8x768xf32>
    %c0_17 = arith.constant 0 : index
    %c0_18 = arith.constant 0 : index
    %26 = vector.load %arg27[%c0_17, %c0_18] : memref<1x768xf32, #tpu.memory_space<vmem>>, vector<1x768xf32>
    %27 = vector.broadcast %26 : vector<1x768xf32> to vector<8x768xf32>
    %28 = arith.addf %25, %27 : vector<8x768xf32>
    %29 = arith.truncf %15 : vector<8x128xf32> to vector<8x128xbf16>
    %30 = arith.truncf %19 : vector<8x128xf32> to vector<8x128xbf16>
    %31 = tpu.concatenate %29, %30 in 1 : vector<8x128xbf16>, vector<8x128xbf16> -> vector<8x256xbf16>
    %c0_19 = arith.constant 0 : index
    %c0_20 = arith.constant 0 : index
    %32 = vector.load %arg10[%c0_19, %c0_20] : memref<256x128xbf16, #tpu.memory_space<vmem>>, vector<256x128xbf16>
    %cst_21 = arith.constant dense<0.000000e+00> : vector<8x128xf32>
    %33 = tpu.matmul %31, %32, %cst_21 {dimension_numbers = #tpu.dot_dimension_numbers<[1], [0], [0], [1], [0, 0, 1, 1], [], []>} : vector<8x256xbf16>, vector<256x128xbf16>, vector<8x128xf32> -> vector<8x128xf32>
    %c0_22 = arith.constant 0 : index
    %c0_23 = arith.constant 0 : index
    %34 = vector.load %arg11[%c0_22, %c0_23] : memref<1x128xf32, #tpu.memory_space<vmem>>, vector<1x128xf32>
    %35 = vector.broadcast %34 : vector<1x128xf32> to vector<8x128xf32>
    %36 = arith.addf %33, %35 : vector<8x128xf32>
    %cst_24 = arith.constant 0.000000e+00 : f32
    %37 = vector.broadcast %cst_24 : f32 to vector<8x128xf32>
    %38 = arith.maximumf %36, %37 : vector<8x128xf32>
    %39 = arith.truncf %10 : vector<16x128xf32> to vector<16x128xbf16>
    %c0_25 = arith.constant 0 : index
    %c0_26 = arith.constant 0 : index
    %40 = vector.load %arg12[%c0_25, %c0_26] : memref<128x128xbf16, #tpu.memory_space<vmem>>, vector<128x128xbf16>
    %cst_27 = arith.constant dense<0.000000e+00> : vector<16x128xf32>
    %41 = tpu.matmul %39, %40, %cst_27 {dimension_numbers = #tpu.dot_dimension_numbers<[1], [0], [0], [1], [0, 0, 1, 1], [], []>} : vector<16x128xbf16>, vector<128x128xbf16>, vector<16x128xf32> -> vector<16x128xf32>
    %c0_28 = arith.constant 0 : index
    %c0_29 = arith.constant 0 : index
    %42 = vector.load %arg13[%c0_28, %c0_29] : memref<1x128xf32, #tpu.memory_space<vmem>>, vector<1x128xf32>
    %43 = vector.broadcast %42 : vector<1x128xf32> to vector<16x128xf32>
    %44 = arith.addf %41, %43 : vector<16x128xf32>
    %cst_30 = arith.constant 0.000000e+00 : f32
    %45 = vector.broadcast %cst_30 : f32 to vector<16x128xf32>
    %46 = arith.maximumf %44, %45 : vector<16x128xf32>
    %47 = tpu.concatenate %38, %46 in 0 : vector<8x128xf32>, vector<16x128xf32> -> vector<24x128xf32>
    %48 = arith.truncf %47 : vector<24x128xf32> to vector<24x128xbf16>
    %c0_31 = arith.constant 0 : index
    %c0_32 = arith.constant 0 : index
    %49 = vector.load %arg8[%c0_31, %c0_32] : memref<128x32xbf16, #tpu.memory_space<vmem>>, vector<128x32xbf16>
    %cst_33 = arith.constant dense<0.000000e+00> : vector<24x32xf32>
    %50 = tpu.matmul %48, %49, %cst_33 {dimension_numbers = #tpu.dot_dimension_numbers<[1], [0], [0], [1], [0, 0, 1, 1], [], []>} : vector<24x128xbf16>, vector<128x32xbf16>, vector<24x32xf32> -> vector<24x32xf32>
    %c0_34 = arith.constant 0 : index
    %c0_35 = arith.constant 0 : index
    %51 = vector.load %arg9[%c0_34, %c0_35] : memref<1x32xf32, #tpu.memory_space<vmem>>, vector<1x32xf32>
    %52 = vector.broadcast %51 : vector<1x32xf32> to vector<24x32xf32>
    %53 = arith.addf %50, %52 : vector<24x32xf32>
    %54 = vector.extract_strided_slice %53 {offsets = [0, 0], sizes = [8, 32], strides = [1, 1]} : vector<24x32xf32> to vector<8x32xf32>
    %55 = vector.extract_strided_slice %53 {offsets = [8, 0], sizes = [16, 32], strides = [1, 1]} : vector<24x32xf32> to vector<16x32xf32>
    %cst_36 = arith.constant 2.000000e+01 : f32
    %56 = vector.broadcast %cst_36 : f32 to vector<8x32xf32>
    %57 = arith.cmpf ogt, %54, %56 : vector<8x32xf32>
    %cst_37 = arith.constant 2.000000e+01 : f32
    %58 = vector.broadcast %cst_37 : f32 to vector<8x32xf32>
    %59 = arith.minimumf %54, %58 : vector<8x32xf32>
    %60 = math.exp %59 : vector<8x32xf32>
    %61 = math.log1p %60 : vector<8x32xf32>
    %62 = arith.select %57, %54, %61 : vector<8x32xi1>, vector<8x32xf32>
    %cst_38 = arith.constant 2.000000e+01 : f32
    %63 = vector.broadcast %cst_38 : f32 to vector<16x32xf32>
    %64 = arith.cmpf ogt, %55, %63 : vector<16x32xf32>
    %cst_39 = arith.constant 2.000000e+01 : f32
    %65 = vector.broadcast %cst_39 : f32 to vector<16x32xf32>
    %66 = arith.minimumf %55, %65 : vector<16x32xf32>
    %67 = math.exp %66 : vector<16x32xf32>
    %68 = math.log1p %67 : vector<16x32xf32>
    %69 = arith.select %64, %55, %68 : vector<16x32xi1>, vector<16x32xf32>
    %70 = tpu.concatenate %54, %54 in 0 : vector<8x32xf32>, vector<8x32xf32> -> vector<16x32xf32>
    %71 = tpu.concatenate %62, %62 in 0 : vector<8x32xf32>, vector<8x32xf32> -> vector<16x32xf32>
    %72 = arith.subf %70, %55 : vector<16x32xf32>
    %73 = tpu.reciprocal %69 {approx = true} : vector<16x32xf32> -> vector<16x32xf32>
    %74 = arith.mulf %71, %73 : vector<16x32xf32>
    %75 = math.log %74 : vector<16x32xf32>
    %cst_40 = arith.constant -2.000000e+00 : f32
    %76 = vector.broadcast %cst_40 : f32 to vector<16x32xf32>
    %77 = arith.mulf %76, %75 : vector<16x32xf32>
    %78 = arith.mulf %71, %71 : vector<16x32xf32>
    %79 = arith.mulf %72, %72 : vector<16x32xf32>
    %80 = arith.addf %78, %79 : vector<16x32xf32>
    %81 = arith.mulf %73, %73 : vector<16x32xf32>
    %82 = arith.mulf %80, %81 : vector<16x32xf32>
    %83 = arith.addf %77, %82 : vector<16x32xf32>
    %cst_41 = arith.constant 1.000000e+00 : f32
    %84 = vector.broadcast %cst_41 : f32 to vector<16x32xf32>
    %85 = arith.subf %83, %84 : vector<16x32xf32>
    %86 = arith.addf %11, %85 : vector<16x32xf32>
    %87 = arith.mulf %18, %62 : vector<8x32xf32>
    %88 = arith.addf %87, %54 : vector<8x32xf32>
    %89 = arith.truncf %88 : vector<8x32xf32> to vector<8x32xbf16>
    %c0_42 = arith.constant 0 : index
    %c0_43 = arith.constant 0 : index
    %90 = vector.load %arg14[%c0_42, %c0_43] : memref<32x128xbf16, #tpu.memory_space<vmem>>, vector<32x128xbf16>
    %cst_44 = arith.constant dense<0.000000e+00> : vector<8x128xf32>
    %91 = tpu.matmul %89, %90, %cst_44 {dimension_numbers = #tpu.dot_dimension_numbers<[1], [0], [0], [1], [0, 0, 1, 1], [], []>} : vector<8x32xbf16>, vector<32x128xbf16>, vector<8x128xf32> -> vector<8x128xf32>
    %c0_45 = arith.constant 0 : index
    %c0_46 = arith.constant 0 : index
    %92 = vector.load %arg15[%c0_45, %c0_46] : memref<1x128xf32, #tpu.memory_space<vmem>>, vector<1x128xf32>
    %93 = vector.broadcast %92 : vector<1x128xf32> to vector<8x128xf32>
    %94 = arith.addf %91, %93 : vector<8x128xf32>
    %cst_47 = arith.constant 0.000000e+00 : f32
    %95 = vector.broadcast %cst_47 : f32 to vector<8x128xf32>
    %96 = arith.maximumf %94, %95 : vector<8x128xf32>
    %97 = vector.extract_strided_slice %10 {offsets = [0, 0], sizes = [8, 128], strides = [1, 1]} : vector<16x128xf32> to vector<8x128xf32>
    %98 = arith.truncf %15 : vector<8x128xf32> to vector<8x128xbf16>
    %99 = arith.truncf %96 : vector<8x128xf32> to vector<8x128xbf16>
    %100 = tpu.concatenate %98, %99 in 1 : vector<8x128xbf16>, vector<8x128xbf16> -> vector<8x256xbf16>
    %c0_48 = arith.constant 0 : index
    %c0_49 = arith.constant 0 : index
    %101 = vector.load %arg22[%c0_48, %c0_49] : memref<256x384xbf16, #tpu.memory_space<vmem>>, vector<256x384xbf16>
    %cst_50 = arith.constant dense<0.000000e+00> : vector<8x384xf32>
    %102 = tpu.matmul %100, %101, %cst_50 {dimension_numbers = #tpu.dot_dimension_numbers<[1], [0], [0], [1], [0, 0, 1, 1], [], []>} : vector<8x256xbf16>, vector<256x384xbf16>, vector<8x384xf32> -> vector<8x384xf32>
    %c0_51 = arith.constant 0 : index
    %c0_52 = arith.constant 0 : index
    %103 = vector.load %arg23[%c0_51, %c0_52] : memref<1x384xf32, #tpu.memory_space<vmem>>, vector<1x384xf32>
    %104 = vector.broadcast %103 : vector<1x384xf32> to vector<8x384xf32>
    %105 = arith.addf %102, %104 : vector<8x384xf32>
    %106 = vector.extract_strided_slice %28 {offsets = [0, 0], sizes = [8, 384], strides = [1, 1]} : vector<8x768xf32> to vector<8x384xf32>
    %107 = vector.extract_strided_slice %105 {offsets = [0, 0], sizes = [8, 128], strides = [1, 1]} : vector<8x384xf32> to vector<8x128xf32>
    %108 = vector.extract_strided_slice %106 {offsets = [0, 0], sizes = [8, 128], strides = [1, 1]} : vector<8x384xf32> to vector<8x128xf32>
    %109 = arith.addf %107, %108 : vector<8x128xf32>
    %cst_53 = arith.constant 5.000000e-01 : f32
    %110 = vector.broadcast %cst_53 : f32 to vector<8x128xf32>
    %111 = arith.mulf %110, %109 : vector<8x128xf32>
    %112 = math.tanh %111 : vector<8x128xf32>
    %cst_54 = arith.constant 1.000000e+00 : f32
    %113 = vector.broadcast %cst_54 : f32 to vector<8x128xf32>
    %114 = arith.addf %112, %113 : vector<8x128xf32>
    %cst_55 = arith.constant 5.000000e-01 : f32
    %115 = vector.broadcast %cst_55 : f32 to vector<8x128xf32>
    %116 = arith.mulf %115, %114 : vector<8x128xf32>
    %117 = vector.extract_strided_slice %105 {offsets = [0, 128], sizes = [8, 128], strides = [1, 1]} : vector<8x384xf32> to vector<8x128xf32>
    %118 = vector.extract_strided_slice %106 {offsets = [0, 128], sizes = [8, 128], strides = [1, 1]} : vector<8x384xf32> to vector<8x128xf32>
    %119 = arith.addf %117, %118 : vector<8x128xf32>
    %cst_56 = arith.constant 5.000000e-01 : f32
    %120 = vector.broadcast %cst_56 : f32 to vector<8x128xf32>
    %121 = arith.mulf %120, %119 : vector<8x128xf32>
    %122 = math.tanh %121 : vector<8x128xf32>
    %cst_57 = arith.constant 1.000000e+00 : f32
    %123 = vector.broadcast %cst_57 : f32 to vector<8x128xf32>
    %124 = arith.addf %122, %123 : vector<8x128xf32>
    %cst_58 = arith.constant 5.000000e-01 : f32
    %125 = vector.broadcast %cst_58 : f32 to vector<8x128xf32>
    %126 = arith.mulf %125, %124 : vector<8x128xf32>
    %127 = vector.extract_strided_slice %105 {offsets = [0, 256], sizes = [8, 128], strides = [1, 1]} : vector<8x384xf32> to vector<8x128xf32>
    %128 = vector.extract_strided_slice %106 {offsets = [0, 256], sizes = [8, 128], strides = [1, 1]} : vector<8x384xf32> to vector<8x128xf32>
    %129 = arith.mulf %116, %128 : vector<8x128xf32>
    %130 = arith.addf %127, %129 : vector<8x128xf32>
    %131 = math.tanh %130 : vector<8x128xf32>
    %cst_59 = arith.constant 1.000000e+00 : f32
    %132 = vector.broadcast %cst_59 : f32 to vector<8x128xf32>
    %133 = arith.subf %132, %126 : vector<8x128xf32>
    %134 = arith.mulf %133, %131 : vector<8x128xf32>
    %135 = arith.mulf %126, %97 : vector<8x128xf32>
    %136 = arith.addf %134, %135 : vector<8x128xf32>
    %137 = vector.extract_strided_slice %10 {offsets = [8, 0], sizes = [8, 128], strides = [1, 1]} : vector<16x128xf32> to vector<8x128xf32>
    %138 = arith.truncf %136 : vector<8x128xf32> to vector<8x128xbf16>
    %c0_60 = arith.constant 0 : index
    %c0_61 = arith.constant 0 : index
    %139 = vector.load %arg24[%c0_60, %c0_61] : memref<128x384xbf16, #tpu.memory_space<vmem>>, vector<128x384xbf16>
    %cst_62 = arith.constant dense<0.000000e+00> : vector<8x384xf32>
    %140 = tpu.matmul %138, %139, %cst_62 {dimension_numbers = #tpu.dot_dimension_numbers<[1], [0], [0], [1], [0, 0, 1, 1], [], []>} : vector<8x128xbf16>, vector<128x384xbf16>, vector<8x384xf32> -> vector<8x384xf32>
    %c0_63 = arith.constant 0 : index
    %c0_64 = arith.constant 0 : index
    %141 = vector.load %arg25[%c0_63, %c0_64] : memref<1x384xf32, #tpu.memory_space<vmem>>, vector<1x384xf32>
    %142 = vector.broadcast %141 : vector<1x384xf32> to vector<8x384xf32>
    %143 = arith.addf %140, %142 : vector<8x384xf32>
    %144 = vector.extract_strided_slice %28 {offsets = [0, 384], sizes = [8, 384], strides = [1, 1]} : vector<8x768xf32> to vector<8x384xf32>
    %145 = vector.extract_strided_slice %143 {offsets = [0, 0], sizes = [8, 128], strides = [1, 1]} : vector<8x384xf32> to vector<8x128xf32>
    %146 = vector.extract_strided_slice %144 {offsets = [0, 0], sizes = [8, 128], strides = [1, 1]} : vector<8x384xf32> to vector<8x128xf32>
    %147 = arith.addf %145, %146 : vector<8x128xf32>
    %cst_65 = arith.constant 5.000000e-01 : f32
    %148 = vector.broadcast %cst_65 : f32 to vector<8x128xf32>
    %149 = arith.mulf %148, %147 : vector<8x128xf32>
    %150 = math.tanh %149 : vector<8x128xf32>
    %cst_66 = arith.constant 1.000000e+00 : f32
    %151 = vector.broadcast %cst_66 : f32 to vector<8x128xf32>
    %152 = arith.addf %150, %151 : vector<8x128xf32>
    %cst_67 = arith.constant 5.000000e-01 : f32
    %153 = vector.broadcast %cst_67 : f32 to vector<8x128xf32>
    %154 = arith.mulf %153, %152 : vector<8x128xf32>
    %155 = vector.extract_strided_slice %143 {offsets = [0, 128], sizes = [8, 128], strides = [1, 1]} : vector<8x384xf32> to vector<8x128xf32>
    %156 = vector.extract_strided_slice %144 {offsets = [0, 128], sizes = [8, 128], strides = [1, 1]} : vector<8x384xf32> to vector<8x128xf32>
    %157 = arith.addf %155, %156 : vector<8x128xf32>
    %cst_68 = arith.constant 5.000000e-01 : f32
    %158 = vector.broadcast %cst_68 : f32 to vector<8x128xf32>
    %159 = arith.mulf %158, %157 : vector<8x128xf32>
    %160 = math.tanh %159 : vector<8x128xf32>
    %cst_69 = arith.constant 1.000000e+00 : f32
    %161 = vector.broadcast %cst_69 : f32 to vector<8x128xf32>
    %162 = arith.addf %160, %161 : vector<8x128xf32>
    %cst_70 = arith.constant 5.000000e-01 : f32
    %163 = vector.broadcast %cst_70 : f32 to vector<8x128xf32>
    %164 = arith.mulf %163, %162 : vector<8x128xf32>
    %165 = vector.extract_strided_slice %143 {offsets = [0, 256], sizes = [8, 128], strides = [1, 1]} : vector<8x384xf32> to vector<8x128xf32>
    %166 = vector.extract_strided_slice %144 {offsets = [0, 256], sizes = [8, 128], strides = [1, 1]} : vector<8x384xf32> to vector<8x128xf32>
    %167 = arith.mulf %154, %166 : vector<8x128xf32>
    %168 = arith.addf %165, %167 : vector<8x128xf32>
    %169 = math.tanh %168 : vector<8x128xf32>
    %cst_71 = arith.constant 1.000000e+00 : f32
    %170 = vector.broadcast %cst_71 : f32 to vector<8x128xf32>
    %171 = arith.subf %170, %164 : vector<8x128xf32>
    %172 = arith.mulf %171, %169 : vector<8x128xf32>
    %173 = arith.mulf %164, %137 : vector<8x128xf32>
    %174 = arith.addf %172, %173 : vector<8x128xf32>
    %175 = tpu.concatenate %136, %174 in 0 : vector<8x128xf32>, vector<8x128xf32> -> vector<16x128xf32>
    %c1_i32 = arith.constant 1 : i32
    %c8_i32_72 = arith.constant 8 : i32
    %176 = arith.muli %c1_i32, %c8_i32_72 : i32
    %177 = tpu.assume_multiple %176, 8 : i32
    %178 = arith.index_cast %177 : i32 to index
    %c0_73 = arith.constant 0 : index
    %179 = vector.load %arg32[%178, %c0_73] : memref<48x128xf32, #tpu.memory_space<vmem>>, vector<8x128xf32>
    %180 = arith.index_cast %c1_i32 : i32 to index
    %c0_74 = arith.constant 0 : index
    %c0_75 = arith.constant 0 : index
    %181 = vector.load %arg1[%180, %c0_74, %c0_75] : memref<6x8x32xf32, #tpu.memory_space<vmem>>, vector<1x8x32xf32>
    %182 = vector.shape_cast %181 : vector<1x8x32xf32> to vector<8x32xf32>
    %183 = vector.extract_strided_slice %175 {offsets = [8, 0], sizes = [8, 128], strides = [1, 1]} : vector<16x128xf32> to vector<8x128xf32>
    %184 = vector.extract_strided_slice %175 {offsets = [0, 0], sizes = [8, 128], strides = [1, 1]} : vector<16x128xf32> to vector<8x128xf32>
    %185 = vector.extract_strided_slice %175 {offsets = [8, 0], sizes = [8, 128], strides = [1, 1]} : vector<16x128xf32> to vector<8x128xf32>
    %186 = tpu.concatenate %184, %185 in 1 : vector<8x128xf32>, vector<8x128xf32> -> vector<8x256xf32>
    %187 = arith.truncf %186 : vector<8x256xf32> to vector<8x256xbf16>
    %c0_76 = arith.constant 0 : index
    %c0_77 = arith.constant 0 : index
    %188 = vector.load %arg26[%c0_76, %c0_77] : memref<256x768xbf16, #tpu.memory_space<vmem>>, vector<256x768xbf16>
    %cst_78 = arith.constant dense<0.000000e+00> : vector<8x768xf32>
    %189 = tpu.matmul %187, %188, %cst_78 {dimension_numbers = #tpu.dot_dimension_numbers<[1], [0], [0], [1], [0, 0, 1, 1], [], []>} : vector<8x256xbf16>, vector<256x768xbf16>, vector<8x768xf32> -> vector<8x768xf32>
    %c0_79 = arith.constant 0 : index
    %c0_80 = arith.constant 0 : index
    %190 = vector.load %arg27[%c0_79, %c0_80] : memref<1x768xf32, #tpu.memory_space<vmem>>, vector<1x768xf32>
    %191 = vector.broadcast %190 : vector<1x768xf32> to vector<8x768xf32>
    %192 = arith.addf %189, %191 : vector<8x768xf32>
    %193 = arith.truncf %179 : vector<8x128xf32> to vector<8x128xbf16>
    %194 = arith.truncf %183 : vector<8x128xf32> to vector<8x128xbf16>
    %195 = tpu.concatenate %193, %194 in 1 : vector<8x128xbf16>, vector<8x128xbf16> -> vector<8x256xbf16>
    %c0_81 = arith.constant 0 : index
    %c0_82 = arith.constant 0 : index
    %196 = vector.load %arg10[%c0_81, %c0_82] : memref<256x128xbf16, #tpu.memory_space<vmem>>, vector<256x128xbf16>
    %cst_83 = arith.constant dense<0.000000e+00> : vector<8x128xf32>
    %197 = tpu.matmul %195, %196, %cst_83 {dimension_numbers = #tpu.dot_dimension_numbers<[1], [0], [0], [1], [0, 0, 1, 1], [], []>} : vector<8x256xbf16>, vector<256x128xbf16>, vector<8x128xf32> -> vector<8x128xf32>
    %c0_84 = arith.constant 0 : index
    %c0_85 = arith.constant 0 : index
    %198 = vector.load %arg11[%c0_84, %c0_85] : memref<1x128xf32, #tpu.memory_space<vmem>>, vector<1x128xf32>
    %199 = vector.broadcast %198 : vector<1x128xf32> to vector<8x128xf32>
    %200 = arith.addf %197, %199 : vector<8x128xf32>
    %cst_86 = arith.constant 0.000000e+00 : f32
    %201 = vector.broadcast %cst_86 : f32 to vector<8x128xf32>
    %202 = arith.maximumf %200, %201 : vector<8x128xf32>
    %203 = arith.truncf %175 : vector<16x128xf32> to vector<16x128xbf16>
    %c0_87 = arith.constant 0 : index
    %c0_88 = arith.constant 0 : index
    %204 = vector.load %arg12[%c0_87, %c0_88] : memref<128x128xbf16, #tpu.memory_space<vmem>>, vector<128x128xbf16>
    %cst_89 = arith.constant dense<0.000000e+00> : vector<16x128xf32>
    %205 = tpu.matmul %203, %204, %cst_89 {dimension_numbers = #tpu.dot_dimension_numbers<[1], [0], [0], [1], [0, 0, 1, 1], [], []>} : vector<16x128xbf16>, vector<128x128xbf16>, vector<16x128xf32> -> vector<16x128xf32>
    %c0_90 = arith.constant 0 : index
    %c0_91 = arith.constant 0 : index
    %206 = vector.load %arg13[%c0_90, %c0_91] : memref<1x128xf32, #tpu.memory_space<vmem>>, vector<1x128xf32>
    %207 = vector.broadcast %206 : vector<1x128xf32> to vector<16x128xf32>
    %208 = arith.addf %205, %207 : vector<16x128xf32>
    %cst_92 = arith.constant 0.000000e+00 : f32
    %209 = vector.broadcast %cst_92 : f32 to vector<16x128xf32>
    %210 = arith.maximumf %208, %209 : vector<16x128xf32>
    %211 = tpu.concatenate %202, %210 in 0 : vector<8x128xf32>, vector<16x128xf32> -> vector<24x128xf32>
    %212 = arith.truncf %211 : vector<24x128xf32> to vector<24x128xbf16>
    %c0_93 = arith.constant 0 : index
    %c0_94 = arith.constant 0 : index
    %213 = vector.load %arg8[%c0_93, %c0_94] : memref<128x32xbf16, #tpu.memory_space<vmem>>, vector<128x32xbf16>
    %cst_95 = arith.constant dense<0.000000e+00> : vector<24x32xf32>
    %214 = tpu.matmul %212, %213, %cst_95 {dimension_numbers = #tpu.dot_dimension_numbers<[1], [0], [0], [1], [0, 0, 1, 1], [], []>} : vector<24x128xbf16>, vector<128x32xbf16>, vector<24x32xf32> -> vector<24x32xf32>
    %c0_96 = arith.constant 0 : index
    %c0_97 = arith.constant 0 : index
    %215 = vector.load %arg9[%c0_96, %c0_97] : memref<1x32xf32, #tpu.memory_space<vmem>>, vector<1x32xf32>
    %216 = vector.broadcast %215 : vector<1x32xf32> to vector<24x32xf32>
    %217 = arith.addf %214, %216 : vector<24x32xf32>
    %218 = vector.extract_strided_slice %217 {offsets = [0, 0], sizes = [8, 32], strides = [1, 1]} : vector<24x32xf32> to vector<8x32xf32>
    %219 = vector.extract_strided_slice %217 {offsets = [8, 0], sizes = [16, 32], strides = [1, 1]} : vector<24x32xf32> to vector<16x32xf32>
    %cst_98 = arith.constant 2.000000e+01 : f32
    %220 = vector.broadcast %cst_98 : f32 to vector<8x32xf32>
    %221 = arith.cmpf ogt, %218, %220 : vector<8x32xf32>
    %cst_99 = arith.constant 2.000000e+01 : f32
    %222 = vector.broadcast %cst_99 : f32 to vector<8x32xf32>
    %223 = arith.minimumf %218, %222 : vector<8x32xf32>
    %224 = math.exp %223 : vector<8x32xf32>
    %225 = math.log1p %224 : vector<8x32xf32>
    %226 = arith.select %221, %218, %225 : vector<8x32xi1>, vector<8x32xf32>
    %cst_100 = arith.constant 2.000000e+01 : f32
    %227 = vector.broadcast %cst_100 : f32 to vector<16x32xf32>
    %228 = arith.cmpf ogt, %219, %227 : vector<16x32xf32>
    %cst_101 = arith.constant 2.000000e+01 : f32
    %229 = vector.broadcast %cst_101 : f32 to vector<16x32xf32>
    %230 = arith.minimumf %219, %229 : vector<16x32xf32>
    %231 = math.exp %230 : vector<16x32xf32>
    %232 = math.log1p %231 : vector<16x32xf32>
    %233 = arith.select %228, %219, %232 : vector<16x32xi1>, vector<16x32xf32>
    %234 = tpu.concatenate %218, %218 in 0 : vector<8x32xf32>, vector<8x32xf32> -> vector<16x32xf32>
    %235 = tpu.concatenate %226, %226 in 0 : vector<8x32xf32>, vector<8x32xf32> -> vector<16x32xf32>
    %236 = arith.subf %234, %219 : vector<16x32xf32>
    %237 = tpu.reciprocal %233 {approx = true} : vector<16x32xf32> -> vector<16x32xf32>
    %238 = arith.mulf %235, %237 : vector<16x32xf32>
    %239 = math.log %238 : vector<16x32xf32>
    %cst_102 = arith.constant -2.000000e+00 : f32
    %240 = vector.broadcast %cst_102 : f32 to vector<16x32xf32>
    %241 = arith.mulf %240, %239 : vector<16x32xf32>
    %242 = arith.mulf %235, %235 : vector<16x32xf32>
    %243 = arith.mulf %236, %236 : vector<16x32xf32>
    %244 = arith.addf %242, %243 : vector<16x32xf32>
    %245 = arith.mulf %237, %237 : vector<16x32xf32>
    %246 = arith.mulf %244, %245 : vector<16x32xf32>
    %247 = arith.addf %241, %246 : vector<16x32xf32>
    %cst_103 = arith.constant 1.000000e+00 : f32
    %248 = vector.broadcast %cst_103 : f32 to vector<16x32xf32>
    %249 = arith.subf %247, %248 : vector<16x32xf32>
    %250 = arith.addf %86, %249 : vector<16x32xf32>
    %251 = arith.mulf %182, %226 : vector<8x32xf32>
    %252 = arith.addf %251, %218 : vector<8x32xf32>
    %253 = arith.truncf %252 : vector<8x32xf32> to vector<8x32xbf16>
    %c0_104 = arith.constant 0 : index
    %c0_105 = arith.constant 0 : index
    %254 = vector.load %arg14[%c0_104, %c0_105] : memref<32x128xbf16, #tpu.memory_space<vmem>>, vector<32x128xbf16>
    %cst_106 = arith.constant dense<0.000000e+00> : vector<8x128xf32>
    %255 = tpu.matmul %253, %254, %cst_106 {dimension_numbers = #tpu.dot_dimension_numbers<[1], [0], [0], [1], [0, 0, 1, 1], [], []>} : vector<8x32xbf16>, vector<32x128xbf16>, vector<8x128xf32> -> vector<8x128xf32>
    %c0_107 = arith.constant 0 : index
    %c0_108 = arith.constant 0 : index
    %256 = vector.load %arg15[%c0_107, %c0_108] : memref<1x128xf32, #tpu.memory_space<vmem>>, vector<1x128xf32>
    %257 = vector.broadcast %256 : vector<1x128xf32> to vector<8x128xf32>
    %258 = arith.addf %255, %257 : vector<8x128xf32>
    %cst_109 = arith.constant 0.000000e+00 : f32
    %259 = vector.broadcast %cst_109 : f32 to vector<8x128xf32>
    %260 = arith.maximumf %258, %259 : vector<8x128xf32>
    %261 = vector.extract_strided_slice %175 {offsets = [0, 0], sizes = [8, 128], strides = [1, 1]} : vector<16x128xf32> to vector<8x128xf32>
    %262 = arith.truncf %179 : vector<8x128xf32> to vector<8x128xbf16>
    %263 = arith.truncf %260 : vector<8x128xf32> to vector<8x128xbf16>
    %264 = tpu.concatenate %262, %263 in 1 : vector<8x128xbf16>, vector<8x128xbf16> -> vector<8x256xbf16>
    %c0_110 = arith.constant 0 : index
    %c0_111 = arith.constant 0 : index
    %265 = vector.load %arg22[%c0_110, %c0_111] : memref<256x384xbf16, #tpu.memory_space<vmem>>, vector<256x384xbf16>
    %cst_112 = arith.constant dense<0.000000e+00> : vector<8x384xf32>
    %266 = tpu.matmul %264, %265, %cst_112 {dimension_numbers = #tpu.dot_dimension_numbers<[1], [0], [0], [1], [0, 0, 1, 1], [], []>} : vector<8x256xbf16>, vector<256x384xbf16>, vector<8x384xf32> -> vector<8x384xf32>
    %c0_113 = arith.constant 0 : index
    %c0_114 = arith.constant 0 : index
    %267 = vector.load %arg23[%c0_113, %c0_114] : memref<1x384xf32, #tpu.memory_space<vmem>>, vector<1x384xf32>
    %268 = vector.broadcast %267 : vector<1x384xf32> to vector<8x384xf32>
    %269 = arith.addf %266, %268 : vector<8x384xf32>
    %270 = vector.extract_strided_slice %192 {offsets = [0, 0], sizes = [8, 384], strides = [1, 1]} : vector<8x768xf32> to vector<8x384xf32>
    %271 = vector.extract_strided_slice %269 {offsets = [0, 0], sizes = [8, 128], strides = [1, 1]} : vector<8x384xf32> to vector<8x128xf32>
    %272 = vector.extract_strided_slice %270 {offsets = [0, 0], sizes = [8, 128], strides = [1, 1]} : vector<8x384xf32> to vector<8x128xf32>
    %273 = arith.addf %271, %272 : vector<8x128xf32>
    %cst_115 = arith.constant 5.000000e-01 : f32
    %274 = vector.broadcast %cst_115 : f32 to vector<8x128xf32>
    %275 = arith.mulf %274, %273 : vector<8x128xf32>
    %276 = math.tanh %275 : vector<8x128xf32>
    %cst_116 = arith.constant 1.000000e+00 : f32
    %277 = vector.broadcast %cst_116 : f32 to vector<8x128xf32>
    %278 = arith.addf %276, %277 : vector<8x128xf32>
    %cst_117 = arith.constant 5.000000e-01 : f32
    %279 = vector.broadcast %cst_117 : f32 to vector<8x128xf32>
    %280 = arith.mulf %279, %278 : vector<8x128xf32>
    %281 = vector.extract_strided_slice %269 {offsets = [0, 128], sizes = [8, 128], strides = [1, 1]} : vector<8x384xf32> to vector<8x128xf32>
    %282 = vector.extract_strided_slice %270 {offsets = [0, 128], sizes = [8, 128], strides = [1, 1]} : vector<8x384xf32> to vector<8x128xf32>
    %283 = arith.addf %281, %282 : vector<8x128xf32>
    %cst_118 = arith.constant 5.000000e-01 : f32
    %284 = vector.broadcast %cst_118 : f32 to vector<8x128xf32>
    %285 = arith.mulf %284, %283 : vector<8x128xf32>
    %286 = math.tanh %285 : vector<8x128xf32>
    %cst_119 = arith.constant 1.000000e+00 : f32
    %287 = vector.broadcast %cst_119 : f32 to vector<8x128xf32>
    %288 = arith.addf %286, %287 : vector<8x128xf32>
    %cst_120 = arith.constant 5.000000e-01 : f32
    %289 = vector.broadcast %cst_120 : f32 to vector<8x128xf32>
    %290 = arith.mulf %289, %288 : vector<8x128xf32>
    %291 = vector.extract_strided_slice %269 {offsets = [0, 256], sizes = [8, 128], strides = [1, 1]} : vector<8x384xf32> to vector<8x128xf32>
    %292 = vector.extract_strided_slice %270 {offsets = [0, 256], sizes = [8, 128], strides = [1, 1]} : vector<8x384xf32> to vector<8x128xf32>
    %293 = arith.mulf %280, %292 : vector<8x128xf32>
    %294 = arith.addf %291, %293 : vector<8x128xf32>
    %295 = math.tanh %294 : vector<8x128xf32>
    %cst_121 = arith.constant 1.000000e+00 : f32
    %296 = vector.broadcast %cst_121 : f32 to vector<8x128xf32>
    %297 = arith.subf %296, %290 : vector<8x128xf32>
    %298 = arith.mulf %297, %295 : vector<8x128xf32>
    %299 = arith.mulf %290, %261 : vector<8x128xf32>
    %300 = arith.addf %298, %299 : vector<8x128xf32>
    %301 = vector.extract_strided_slice %175 {offsets = [8, 0], sizes = [8, 128], strides = [1, 1]} : vector<16x128xf32> to vector<8x128xf32>
    %302 = arith.truncf %300 : vector<8x128xf32> to vector<8x128xbf16>
    %c0_122 = arith.constant 0 : index
    %c0_123 = arith.constant 0 : index
    %303 = vector.load %arg24[%c0_122, %c0_123] : memref<128x384xbf16, #tpu.memory_space<vmem>>, vector<128x384xbf16>
    %cst_124 = arith.constant dense<0.000000e+00> : vector<8x384xf32>
    %304 = tpu.matmul %302, %303, %cst_124 {dimension_numbers = #tpu.dot_dimension_numbers<[1], [0], [0], [1], [0, 0, 1, 1], [], []>} : vector<8x128xbf16>, vector<128x384xbf16>, vector<8x384xf32> -> vector<8x384xf32>
    %c0_125 = arith.constant 0 : index
    %c0_126 = arith.constant 0 : index
    %305 = vector.load %arg25[%c0_125, %c0_126] : memref<1x384xf32, #tpu.memory_space<vmem>>, vector<1x384xf32>
    %306 = vector.broadcast %305 : vector<1x384xf32> to vector<8x384xf32>
    %307 = arith.addf %304, %306 : vector<8x384xf32>
    %308 = vector.extract_strided_slice %192 {offsets = [0, 384], sizes = [8, 384], strides = [1, 1]} : vector<8x768xf32> to vector<8x384xf32>
    %309 = vector.extract_strided_slice %307 {offsets = [0, 0], sizes = [8, 128], strides = [1, 1]} : vector<8x384xf32> to vector<8x128xf32>
    %310 = vector.extract_strided_slice %308 {offsets = [0, 0], sizes = [8, 128], strides = [1, 1]} : vector<8x384xf32> to vector<8x128xf32>
    %311 = arith.addf %309, %310 : vector<8x128xf32>
    %cst_127 = arith.constant 5.000000e-01 : f32
    %312 = vector.broadcast %cst_127 : f32 to vector<8x128xf32>
    %313 = arith.mulf %312, %311 : vector<8x128xf32>
    %314 = math.tanh %313 : vector<8x128xf32>
    %cst_128 = arith.constant 1.000000e+00 : f32
    %315 = vector.broadcast %cst_128 : f32 to vector<8x128xf32>
    %316 = arith.addf %314, %315 : vector<8x128xf32>
    %cst_129 = arith.constant 5.000000e-01 : f32
    %317 = vector.broadcast %cst_129 : f32 to vector<8x128xf32>
    %318 = arith.mulf %317, %316 : vector<8x128xf32>
    %319 = vector.extract_strided_slice %307 {offsets = [0, 128], sizes = [8, 128], strides = [1, 1]} : vector<8x384xf32> to vector<8x128xf32>
    %320 = vector.extract_strided_slice %308 {offsets = [0, 128], sizes = [8, 128], strides = [1, 1]} : vector<8x384xf32> to vector<8x128xf32>
    %321 = arith.addf %319, %320 : vector<8x128xf32>
    %cst_130 = arith.constant 5.000000e-01 : f32
    %322 = vector.broadcast %cst_130 : f32 to vector<8x128xf32>
    %323 = arith.mulf %322, %321 : vector<8x128xf32>
    %324 = math.tanh %323 : vector<8x128xf32>
    %cst_131 = arith.constant 1.000000e+00 : f32
    %325 = vector.broadcast %cst_131 : f32 to vector<8x128xf32>
    %326 = arith.addf %324, %325 : vector<8x128xf32>
    %cst_132 = arith.constant 5.000000e-01 : f32
    %327 = vector.broadcast %cst_132 : f32 to vector<8x128xf32>
    %328 = arith.mulf %327, %326 : vector<8x128xf32>
    %329 = vector.extract_strided_slice %307 {offsets = [0, 256], sizes = [8, 128], strides = [1, 1]} : vector<8x384xf32> to vector<8x128xf32>
    %330 = vector.extract_strided_slice %308 {offsets = [0, 256], sizes = [8, 128], strides = [1, 1]} : vector<8x384xf32> to vector<8x128xf32>
    %331 = arith.mulf %318, %330 : vector<8x128xf32>
    %332 = arith.addf %329, %331 : vector<8x128xf32>
    %333 = math.tanh %332 : vector<8x128xf32>
    %cst_133 = arith.constant 1.000000e+00 : f32
    %334 = vector.broadcast %cst_133 : f32 to vector<8x128xf32>
    %335 = arith.subf %334, %328 : vector<8x128xf32>
    %336 = arith.mulf %335, %333 : vector<8x128xf32>
    %337 = arith.mulf %328, %301 : vector<8x128xf32>
    %338 = arith.addf %336, %337 : vector<8x128xf32>
    %339 = tpu.concatenate %300, %338 in 0 : vector<8x128xf32>, vector<8x128xf32> -> vector<16x128xf32>
    %c2_i32 = arith.constant 2 : i32
    %c8_i32_134 = arith.constant 8 : i32
    %340 = arith.muli %c2_i32, %c8_i32_134 : i32
    %341 = tpu.assume_multiple %340, 8 : i32
    %342 = arith.index_cast %341 : i32 to index
    %c0_135 = arith.constant 0 : index
    %343 = vector.load %arg32[%342, %c0_135] : memref<48x128xf32, #tpu.memory_space<vmem>>, vector<8x128xf32>
    %344 = arith.index_cast %c2_i32 : i32 to index
    %c0_136 = arith.constant 0 : index
    %c0_137 = arith.constant 0 : index
    %345 = vector.load %arg1[%344, %c0_136, %c0_137] : memref<6x8x32xf32, #tpu.memory_space<vmem>>, vector<1x8x32xf32>
    %346 = vector.shape_cast %345 : vector<1x8x32xf32> to vector<8x32xf32>
    %347 = vector.extract_strided_slice %339 {offsets = [8, 0], sizes = [8, 128], strides = [1, 1]} : vector<16x128xf32> to vector<8x128xf32>
    %348 = vector.extract_strided_slice %339 {offsets = [0, 0], sizes = [8, 128], strides = [1, 1]} : vector<16x128xf32> to vector<8x128xf32>
    %349 = vector.extract_strided_slice %339 {offsets = [8, 0], sizes = [8, 128], strides = [1, 1]} : vector<16x128xf32> to vector<8x128xf32>
    %350 = tpu.concatenate %348, %349 in 1 : vector<8x128xf32>, vector<8x128xf32> -> vector<8x256xf32>
    %351 = arith.truncf %350 : vector<8x256xf32> to vector<8x256xbf16>
    %c0_138 = arith.constant 0 : index
    %c0_139 = arith.constant 0 : index
    %352 = vector.load %arg26[%c0_138, %c0_139] : memref<256x768xbf16, #tpu.memory_space<vmem>>, vector<256x768xbf16>
    %cst_140 = arith.constant dense<0.000000e+00> : vector<8x768xf32>
    %353 = tpu.matmul %351, %352, %cst_140 {dimension_numbers = #tpu.dot_dimension_numbers<[1], [0], [0], [1], [0, 0, 1, 1], [], []>} : vector<8x256xbf16>, vector<256x768xbf16>, vector<8x768xf32> -> vector<8x768xf32>
    %c0_141 = arith.constant 0 : index
    %c0_142 = arith.constant 0 : index
    %354 = vector.load %arg27[%c0_141, %c0_142] : memref<1x768xf32, #tpu.memory_space<vmem>>, vector<1x768xf32>
    %355 = vector.broadcast %354 : vector<1x768xf32> to vector<8x768xf32>
    %356 = arith.addf %353, %355 : vector<8x768xf32>
    %357 = arith.truncf %343 : vector<8x128xf32> to vector<8x128xbf16>
    %358 = arith.truncf %347 : vector<8x128xf32> to vector<8x128xbf16>
    %359 = tpu.concatenate %357, %358 in 1 : vector<8x128xbf16>, vector<8x128xbf16> -> vector<8x256xbf16>
    %c0_143 = arith.constant 0 : index
    %c0_144 = arith.constant 0 : index
    %360 = vector.load %arg10[%c0_143, %c0_144] : memref<256x128xbf16, #tpu.memory_space<vmem>>, vector<256x128xbf16>
    %cst_145 = arith.constant dense<0.000000e+00> : vector<8x128xf32>
    %361 = tpu.matmul %359, %360, %cst_145 {dimension_numbers = #tpu.dot_dimension_numbers<[1], [0], [0], [1], [0, 0, 1, 1], [], []>} : vector<8x256xbf16>, vector<256x128xbf16>, vector<8x128xf32> -> vector<8x128xf32>
    %c0_146 = arith.constant 0 : index
    %c0_147 = arith.constant 0 : index
    %362 = vector.load %arg11[%c0_146, %c0_147] : memref<1x128xf32, #tpu.memory_space<vmem>>, vector<1x128xf32>
    %363 = vector.broadcast %362 : vector<1x128xf32> to vector<8x128xf32>
    %364 = arith.addf %361, %363 : vector<8x128xf32>
    %cst_148 = arith.constant 0.000000e+00 : f32
    %365 = vector.broadcast %cst_148 : f32 to vector<8x128xf32>
    %366 = arith.maximumf %364, %365 : vector<8x128xf32>
    %367 = arith.truncf %339 : vector<16x128xf32> to vector<16x128xbf16>
    %c0_149 = arith.constant 0 : index
    %c0_150 = arith.constant 0 : index
    %368 = vector.load %arg12[%c0_149, %c0_150] : memref<128x128xbf16, #tpu.memory_space<vmem>>, vector<128x128xbf16>
    %cst_151 = arith.constant dense<0.000000e+00> : vector<16x128xf32>
    %369 = tpu.matmul %367, %368, %cst_151 {dimension_numbers = #tpu.dot_dimension_numbers<[1], [0], [0], [1], [0, 0, 1, 1], [], []>} : vector<16x128xbf16>, vector<128x128xbf16>, vector<16x128xf32> -> vector<16x128xf32>
    %c0_152 = arith.constant 0 : index
    %c0_153 = arith.constant 0 : index
    %370 = vector.load %arg13[%c0_152, %c0_153] : memref<1x128xf32, #tpu.memory_space<vmem>>, vector<1x128xf32>
    %371 = vector.broadcast %370 : vector<1x128xf32> to vector<16x128xf32>
    %372 = arith.addf %369, %371 : vector<16x128xf32>
    %cst_154 = arith.constant 0.000000e+00 : f32
    %373 = vector.broadcast %cst_154 : f32 to vector<16x128xf32>
    %374 = arith.maximumf %372, %373 : vector<16x128xf32>
    %375 = tpu.concatenate %366, %374 in 0 : vector<8x128xf32>, vector<16x128xf32> -> vector<24x128xf32>
    %376 = arith.truncf %375 : vector<24x128xf32> to vector<24x128xbf16>
    %c0_155 = arith.constant 0 : index
    %c0_156 = arith.constant 0 : index
    %377 = vector.load %arg8[%c0_155, %c0_156] : memref<128x32xbf16, #tpu.memory_space<vmem>>, vector<128x32xbf16>
    %cst_157 = arith.constant dense<0.000000e+00> : vector<24x32xf32>
    %378 = tpu.matmul %376, %377, %cst_157 {dimension_numbers = #tpu.dot_dimension_numbers<[1], [0], [0], [1], [0, 0, 1, 1], [], []>} : vector<24x128xbf16>, vector<128x32xbf16>, vector<24x32xf32> -> vector<24x32xf32>
    %c0_158 = arith.constant 0 : index
    %c0_159 = arith.constant 0 : index
    %379 = vector.load %arg9[%c0_158, %c0_159] : memref<1x32xf32, #tpu.memory_space<vmem>>, vector<1x32xf32>
    %380 = vector.broadcast %379 : vector<1x32xf32> to vector<24x32xf32>
    %381 = arith.addf %378, %380 : vector<24x32xf32>
    %382 = vector.extract_strided_slice %381 {offsets = [0, 0], sizes = [8, 32], strides = [1, 1]} : vector<24x32xf32> to vector<8x32xf32>
    %383 = vector.extract_strided_slice %381 {offsets = [8, 0], sizes = [16, 32], strides = [1, 1]} : vector<24x32xf32> to vector<16x32xf32>
    %cst_160 = arith.constant 2.000000e+01 : f32
    %384 = vector.broadcast %cst_160 : f32 to vector<8x32xf32>
    %385 = arith.cmpf ogt, %382, %384 : vector<8x32xf32>
    %cst_161 = arith.constant 2.000000e+01 : f32
    %386 = vector.broadcast %cst_161 : f32 to vector<8x32xf32>
    %387 = arith.minimumf %382, %386 : vector<8x32xf32>
    %388 = math.exp %387 : vector<8x32xf32>
    %389 = math.log1p %388 : vector<8x32xf32>
    %390 = arith.select %385, %382, %389 : vector<8x32xi1>, vector<8x32xf32>
    %cst_162 = arith.constant 2.000000e+01 : f32
    %391 = vector.broadcast %cst_162 : f32 to vector<16x32xf32>
    %392 = arith.cmpf ogt, %383, %391 : vector<16x32xf32>
    %cst_163 = arith.constant 2.000000e+01 : f32
    %393 = vector.broadcast %cst_163 : f32 to vector<16x32xf32>
    %394 = arith.minimumf %383, %393 : vector<16x32xf32>
    %395 = math.exp %394 : vector<16x32xf32>
    %396 = math.log1p %395 : vector<16x32xf32>
    %397 = arith.select %392, %383, %396 : vector<16x32xi1>, vector<16x32xf32>
    %398 = tpu.concatenate %382, %382 in 0 : vector<8x32xf32>, vector<8x32xf32> -> vector<16x32xf32>
    %399 = tpu.concatenate %390, %390 in 0 : vector<8x32xf32>, vector<8x32xf32> -> vector<16x32xf32>
    %400 = arith.subf %398, %383 : vector<16x32xf32>
    %401 = tpu.reciprocal %397 {approx = true} : vector<16x32xf32> -> vector<16x32xf32>
    %402 = arith.mulf %399, %401 : vector<16x32xf32>
    %403 = math.log %402 : vector<16x32xf32>
    %cst_164 = arith.constant -2.000000e+00 : f32
    %404 = vector.broadcast %cst_164 : f32 to vector<16x32xf32>
    %405 = arith.mulf %404, %403 : vector<16x32xf32>
    %406 = arith.mulf %399, %399 : vector<16x32xf32>
    %407 = arith.mulf %400, %400 : vector<16x32xf32>
    %408 = arith.addf %406, %407 : vector<16x32xf32>
    %409 = arith.mulf %401, %401 : vector<16x32xf32>
    %410 = arith.mulf %408, %409 : vector<16x32xf32>
    %411 = arith.addf %405, %410 : vector<16x32xf32>
    %cst_165 = arith.constant 1.000000e+00 : f32
    %412 = vector.broadcast %cst_165 : f32 to vector<16x32xf32>
    %413 = arith.subf %411, %412 : vector<16x32xf32>
    %414 = arith.addf %250, %413 : vector<16x32xf32>
    %415 = arith.mulf %346, %390 : vector<8x32xf32>
    %416 = arith.addf %415, %382 : vector<8x32xf32>
    %417 = arith.truncf %416 : vector<8x32xf32> to vector<8x32xbf16>
    %c0_166 = arith.constant 0 : index
    %c0_167 = arith.constant 0 : index
    %418 = vector.load %arg14[%c0_166, %c0_167] : memref<32x128xbf16, #tpu.memory_space<vmem>>, vector<32x128xbf16>
    %cst_168 = arith.constant dense<0.000000e+00> : vector<8x128xf32>
    %419 = tpu.matmul %417, %418, %cst_168 {dimension_numbers = #tpu.dot_dimension_numbers<[1], [0], [0], [1], [0, 0, 1, 1], [], []>} : vector<8x32xbf16>, vector<32x128xbf16>, vector<8x128xf32> -> vector<8x128xf32>
    %c0_169 = arith.constant 0 : index
    %c0_170 = arith.constant 0 : index
    %420 = vector.load %arg15[%c0_169, %c0_170] : memref<1x128xf32, #tpu.memory_space<vmem>>, vector<1x128xf32>
    %421 = vector.broadcast %420 : vector<1x128xf32> to vector<8x128xf32>
    %422 = arith.addf %419, %421 : vector<8x128xf32>
    %cst_171 = arith.constant 0.000000e+00 : f32
    %423 = vector.broadcast %cst_171 : f32 to vector<8x128xf32>
    %424 = arith.maximumf %422, %423 : vector<8x128xf32>
    %425 = vector.extract_strided_slice %339 {offsets = [0, 0], sizes = [8, 128], strides = [1, 1]} : vector<16x128xf32> to vector<8x128xf32>
    %426 = arith.truncf %343 : vector<8x128xf32> to vector<8x128xbf16>
    %427 = arith.truncf %424 : vector<8x128xf32> to vector<8x128xbf16>
    %428 = tpu.concatenate %426, %427 in 1 : vector<8x128xbf16>, vector<8x128xbf16> -> vector<8x256xbf16>
    %c0_172 = arith.constant 0 : index
    %c0_173 = arith.constant 0 : index
    %429 = vector.load %arg22[%c0_172, %c0_173] : memref<256x384xbf16, #tpu.memory_space<vmem>>, vector<256x384xbf16>
    %cst_174 = arith.constant dense<0.000000e+00> : vector<8x384xf32>
    %430 = tpu.matmul %428, %429, %cst_174 {dimension_numbers = #tpu.dot_dimension_numbers<[1], [0], [0], [1], [0, 0, 1, 1], [], []>} : vector<8x256xbf16>, vector<256x384xbf16>, vector<8x384xf32> -> vector<8x384xf32>
    %c0_175 = arith.constant 0 : index
    %c0_176 = arith.constant 0 : index
    %431 = vector.load %arg23[%c0_175, %c0_176] : memref<1x384xf32, #tpu.memory_space<vmem>>, vector<1x384xf32>
    %432 = vector.broadcast %431 : vector<1x384xf32> to vector<8x384xf32>
    %433 = arith.addf %430, %432 : vector<8x384xf32>
    %434 = vector.extract_strided_slice %356 {offsets = [0, 0], sizes = [8, 384], strides = [1, 1]} : vector<8x768xf32> to vector<8x384xf32>
    %435 = vector.extract_strided_slice %433 {offsets = [0, 0], sizes = [8, 128], strides = [1, 1]} : vector<8x384xf32> to vector<8x128xf32>
    %436 = vector.extract_strided_slice %434 {offsets = [0, 0], sizes = [8, 128], strides = [1, 1]} : vector<8x384xf32> to vector<8x128xf32>
    %437 = arith.addf %435, %436 : vector<8x128xf32>
    %cst_177 = arith.constant 5.000000e-01 : f32
    %438 = vector.broadcast %cst_177 : f32 to vector<8x128xf32>
    %439 = arith.mulf %438, %437 : vector<8x128xf32>
    %440 = math.tanh %439 : vector<8x128xf32>
    %cst_178 = arith.constant 1.000000e+00 : f32
    %441 = vector.broadcast %cst_178 : f32 to vector<8x128xf32>
    %442 = arith.addf %440, %441 : vector<8x128xf32>
    %cst_179 = arith.constant 5.000000e-01 : f32
    %443 = vector.broadcast %cst_179 : f32 to vector<8x128xf32>
    %444 = arith.mulf %443, %442 : vector<8x128xf32>
    %445 = vector.extract_strided_slice %433 {offsets = [0, 128], sizes = [8, 128], strides = [1, 1]} : vector<8x384xf32> to vector<8x128xf32>
    %446 = vector.extract_strided_slice %434 {offsets = [0, 128], sizes = [8, 128], strides = [1, 1]} : vector<8x384xf32> to vector<8x128xf32>
    %447 = arith.addf %445, %446 : vector<8x128xf32>
    %cst_180 = arith.constant 5.000000e-01 : f32
    %448 = vector.broadcast %cst_180 : f32 to vector<8x128xf32>
    %449 = arith.mulf %448, %447 : vector<8x128xf32>
    %450 = math.tanh %449 : vector<8x128xf32>
    %cst_181 = arith.constant 1.000000e+00 : f32
    %451 = vector.broadcast %cst_181 : f32 to vector<8x128xf32>
    %452 = arith.addf %450, %451 : vector<8x128xf32>
    %cst_182 = arith.constant 5.000000e-01 : f32
    %453 = vector.broadcast %cst_182 : f32 to vector<8x128xf32>
    %454 = arith.mulf %453, %452 : vector<8x128xf32>
    %455 = vector.extract_strided_slice %433 {offsets = [0, 256], sizes = [8, 128], strides = [1, 1]} : vector<8x384xf32> to vector<8x128xf32>
    %456 = vector.extract_strided_slice %434 {offsets = [0, 256], sizes = [8, 128], strides = [1, 1]} : vector<8x384xf32> to vector<8x128xf32>
    %457 = arith.mulf %444, %456 : vector<8x128xf32>
    %458 = arith.addf %455, %457 : vector<8x128xf32>
    %459 = math.tanh %458 : vector<8x128xf32>
    %cst_183 = arith.constant 1.000000e+00 : f32
    %460 = vector.broadcast %cst_183 : f32 to vector<8x128xf32>
    %461 = arith.subf %460, %454 : vector<8x128xf32>
    %462 = arith.mulf %461, %459 : vector<8x128xf32>
    %463 = arith.mulf %454, %425 : vector<8x128xf32>
    %464 = arith.addf %462, %463 : vector<8x128xf32>
    %465 = vector.extract_strided_slice %339 {offsets = [8, 0], sizes = [8, 128], strides = [1, 1]} : vector<16x128xf32> to vector<8x128xf32>
    %466 = arith.truncf %464 : vector<8x128xf32> to vector<8x128xbf16>
    %c0_184 = arith.constant 0 : index
    %c0_185 = arith.constant 0 : index
    %467 = vector.load %arg24[%c0_184, %c0_185] : memref<128x384xbf16, #tpu.memory_space<vmem>>, vector<128x384xbf16>
    %cst_186 = arith.constant dense<0.000000e+00> : vector<8x384xf32>
    %468 = tpu.matmul %466, %467, %cst_186 {dimension_numbers = #tpu.dot_dimension_numbers<[1], [0], [0], [1], [0, 0, 1, 1], [], []>} : vector<8x128xbf16>, vector<128x384xbf16>, vector<8x384xf32> -> vector<8x384xf32>
    %c0_187 = arith.constant 0 : index
    %c0_188 = arith.constant 0 : index
    %469 = vector.load %arg25[%c0_187, %c0_188] : memref<1x384xf32, #tpu.memory_space<vmem>>, vector<1x384xf32>
    %470 = vector.broadcast %469 : vector<1x384xf32> to vector<8x384xf32>
    %471 = arith.addf %468, %470 : vector<8x384xf32>
    %472 = vector.extract_strided_slice %356 {offsets = [0, 384], sizes = [8, 384], strides = [1, 1]} : vector<8x768xf32> to vector<8x384xf32>
    %473 = vector.extract_strided_slice %471 {offsets = [0, 0], sizes = [8, 128], strides = [1, 1]} : vector<8x384xf32> to vector<8x128xf32>
    %474 = vector.extract_strided_slice %472 {offsets = [0, 0], sizes = [8, 128], strides = [1, 1]} : vector<8x384xf32> to vector<8x128xf32>
    %475 = arith.addf %473, %474 : vector<8x128xf32>
    %cst_189 = arith.constant 5.000000e-01 : f32
    %476 = vector.broadcast %cst_189 : f32 to vector<8x128xf32>
    %477 = arith.mulf %476, %475 : vector<8x128xf32>
    %478 = math.tanh %477 : vector<8x128xf32>
    %cst_190 = arith.constant 1.000000e+00 : f32
    %479 = vector.broadcast %cst_190 : f32 to vector<8x128xf32>
    %480 = arith.addf %478, %479 : vector<8x128xf32>
    %cst_191 = arith.constant 5.000000e-01 : f32
    %481 = vector.broadcast %cst_191 : f32 to vector<8x128xf32>
    %482 = arith.mulf %481, %480 : vector<8x128xf32>
    %483 = vector.extract_strided_slice %471 {offsets = [0, 128], sizes = [8, 128], strides = [1, 1]} : vector<8x384xf32> to vector<8x128xf32>
    %484 = vector.extract_strided_slice %472 {offsets = [0, 128], sizes = [8, 128], strides = [1, 1]} : vector<8x384xf32> to vector<8x128xf32>
    %485 = arith.addf %483, %484 : vector<8x128xf32>
    %cst_192 = arith.constant 5.000000e-01 : f32
    %486 = vector.broadcast %cst_192 : f32 to vector<8x128xf32>
    %487 = arith.mulf %486, %485 : vector<8x128xf32>
    %488 = math.tanh %487 : vector<8x128xf32>
    %cst_193 = arith.constant 1.000000e+00 : f32
    %489 = vector.broadcast %cst_193 : f32 to vector<8x128xf32>
    %490 = arith.addf %488, %489 : vector<8x128xf32>
    %cst_194 = arith.constant 5.000000e-01 : f32
    %491 = vector.broadcast %cst_194 : f32 to vector<8x128xf32>
    %492 = arith.mulf %491, %490 : vector<8x128xf32>
    %493 = vector.extract_strided_slice %471 {offsets = [0, 256], sizes = [8, 128], strides = [1, 1]} : vector<8x384xf32> to vector<8x128xf32>
    %494 = vector.extract_strided_slice %472 {offsets = [0, 256], sizes = [8, 128], strides = [1, 1]} : vector<8x384xf32> to vector<8x128xf32>
    %495 = arith.mulf %482, %494 : vector<8x128xf32>
    %496 = arith.addf %493, %495 : vector<8x128xf32>
    %497 = math.tanh %496 : vector<8x128xf32>
    %cst_195 = arith.constant 1.000000e+00 : f32
    %498 = vector.broadcast %cst_195 : f32 to vector<8x128xf32>
    %499 = arith.subf %498, %492 : vector<8x128xf32>
    %500 = arith.mulf %499, %497 : vector<8x128xf32>
    %501 = arith.mulf %492, %465 : vector<8x128xf32>
    %502 = arith.addf %500, %501 : vector<8x128xf32>
    %503 = tpu.concatenate %464, %502 in 0 : vector<8x128xf32>, vector<8x128xf32> -> vector<16x128xf32>
    %c3_i32 = arith.constant 3 : i32
    %c8_i32_196 = arith.constant 8 : i32
    %504 = arith.muli %c3_i32, %c8_i32_196 : i32
    %505 = tpu.assume_multiple %504, 8 : i32
    %506 = arith.index_cast %505 : i32 to index
    %c0_197 = arith.constant 0 : index
    %507 = vector.load %arg32[%506, %c0_197] : memref<48x128xf32, #tpu.memory_space<vmem>>, vector<8x128xf32>
    %508 = arith.index_cast %c3_i32 : i32 to index
    %c0_198 = arith.constant 0 : index
    %c0_199 = arith.constant 0 : index
    %509 = vector.load %arg1[%508, %c0_198, %c0_199] : memref<6x8x32xf32, #tpu.memory_space<vmem>>, vector<1x8x32xf32>
    %510 = vector.shape_cast %509 : vector<1x8x32xf32> to vector<8x32xf32>
    %511 = vector.extract_strided_slice %503 {offsets = [8, 0], sizes = [8, 128], strides = [1, 1]} : vector<16x128xf32> to vector<8x128xf32>
    %512 = vector.extract_strided_slice %503 {offsets = [0, 0], sizes = [8, 128], strides = [1, 1]} : vector<16x128xf32> to vector<8x128xf32>
    %513 = vector.extract_strided_slice %503 {offsets = [8, 0], sizes = [8, 128], strides = [1, 1]} : vector<16x128xf32> to vector<8x128xf32>
    %514 = tpu.concatenate %512, %513 in 1 : vector<8x128xf32>, vector<8x128xf32> -> vector<8x256xf32>
    %515 = arith.truncf %514 : vector<8x256xf32> to vector<8x256xbf16>
    %c0_200 = arith.constant 0 : index
    %c0_201 = arith.constant 0 : index
    %516 = vector.load %arg26[%c0_200, %c0_201] : memref<256x768xbf16, #tpu.memory_space<vmem>>, vector<256x768xbf16>
    %cst_202 = arith.constant dense<0.000000e+00> : vector<8x768xf32>
    %517 = tpu.matmul %515, %516, %cst_202 {dimension_numbers = #tpu.dot_dimension_numbers<[1], [0], [0], [1], [0, 0, 1, 1], [], []>} : vector<8x256xbf16>, vector<256x768xbf16>, vector<8x768xf32> -> vector<8x768xf32>
    %c0_203 = arith.constant 0 : index
    %c0_204 = arith.constant 0 : index
    %518 = vector.load %arg27[%c0_203, %c0_204] : memref<1x768xf32, #tpu.memory_space<vmem>>, vector<1x768xf32>
    %519 = vector.broadcast %518 : vector<1x768xf32> to vector<8x768xf32>
    %520 = arith.addf %517, %519 : vector<8x768xf32>
    %521 = arith.truncf %507 : vector<8x128xf32> to vector<8x128xbf16>
    %522 = arith.truncf %511 : vector<8x128xf32> to vector<8x128xbf16>
    %523 = tpu.concatenate %521, %522 in 1 : vector<8x128xbf16>, vector<8x128xbf16> -> vector<8x256xbf16>
    %c0_205 = arith.constant 0 : index
    %c0_206 = arith.constant 0 : index
    %524 = vector.load %arg10[%c0_205, %c0_206] : memref<256x128xbf16, #tpu.memory_space<vmem>>, vector<256x128xbf16>
    %cst_207 = arith.constant dense<0.000000e+00> : vector<8x128xf32>
    %525 = tpu.matmul %523, %524, %cst_207 {dimension_numbers = #tpu.dot_dimension_numbers<[1], [0], [0], [1], [0, 0, 1, 1], [], []>} : vector<8x256xbf16>, vector<256x128xbf16>, vector<8x128xf32> -> vector<8x128xf32>
    %c0_208 = arith.constant 0 : index
    %c0_209 = arith.constant 0 : index
    %526 = vector.load %arg11[%c0_208, %c0_209] : memref<1x128xf32, #tpu.memory_space<vmem>>, vector<1x128xf32>
    %527 = vector.broadcast %526 : vector<1x128xf32> to vector<8x128xf32>
    %528 = arith.addf %525, %527 : vector<8x128xf32>
    %cst_210 = arith.constant 0.000000e+00 : f32
    %529 = vector.broadcast %cst_210 : f32 to vector<8x128xf32>
    %530 = arith.maximumf %528, %529 : vector<8x128xf32>
    %531 = arith.truncf %503 : vector<16x128xf32> to vector<16x128xbf16>
    %c0_211 = arith.constant 0 : index
    %c0_212 = arith.constant 0 : index
    %532 = vector.load %arg12[%c0_211, %c0_212] : memref<128x128xbf16, #tpu.memory_space<vmem>>, vector<128x128xbf16>
    %cst_213 = arith.constant dense<0.000000e+00> : vector<16x128xf32>
    %533 = tpu.matmul %531, %532, %cst_213 {dimension_numbers = #tpu.dot_dimension_numbers<[1], [0], [0], [1], [0, 0, 1, 1], [], []>} : vector<16x128xbf16>, vector<128x128xbf16>, vector<16x128xf32> -> vector<16x128xf32>
    %c0_214 = arith.constant 0 : index
    %c0_215 = arith.constant 0 : index
    %534 = vector.load %arg13[%c0_214, %c0_215] : memref<1x128xf32, #tpu.memory_space<vmem>>, vector<1x128xf32>
    %535 = vector.broadcast %534 : vector<1x128xf32> to vector<16x128xf32>
    %536 = arith.addf %533, %535 : vector<16x128xf32>
    %cst_216 = arith.constant 0.000000e+00 : f32
    %537 = vector.broadcast %cst_216 : f32 to vector<16x128xf32>
    %538 = arith.maximumf %536, %537 : vector<16x128xf32>
    %539 = tpu.concatenate %530, %538 in 0 : vector<8x128xf32>, vector<16x128xf32> -> vector<24x128xf32>
    %540 = arith.truncf %539 : vector<24x128xf32> to vector<24x128xbf16>
    %c0_217 = arith.constant 0 : index
    %c0_218 = arith.constant 0 : index
    %541 = vector.load %arg8[%c0_217, %c0_218] : memref<128x32xbf16, #tpu.memory_space<vmem>>, vector<128x32xbf16>
    %cst_219 = arith.constant dense<0.000000e+00> : vector<24x32xf32>
    %542 = tpu.matmul %540, %541, %cst_219 {dimension_numbers = #tpu.dot_dimension_numbers<[1], [0], [0], [1], [0, 0, 1, 1], [], []>} : vector<24x128xbf16>, vector<128x32xbf16>, vector<24x32xf32> -> vector<24x32xf32>
    %c0_220 = arith.constant 0 : index
    %c0_221 = arith.constant 0 : index
    %543 = vector.load %arg9[%c0_220, %c0_221] : memref<1x32xf32, #tpu.memory_space<vmem>>, vector<1x32xf32>
    %544 = vector.broadcast %543 : vector<1x32xf32> to vector<24x32xf32>
    %545 = arith.addf %542, %544 : vector<24x32xf32>
    %546 = vector.extract_strided_slice %545 {offsets = [0, 0], sizes = [8, 32], strides = [1, 1]} : vector<24x32xf32> to vector<8x32xf32>
    %547 = vector.extract_strided_slice %545 {offsets = [8, 0], sizes = [16, 32], strides = [1, 1]} : vector<24x32xf32> to vector<16x32xf32>
    %cst_222 = arith.constant 2.000000e+01 : f32
    %548 = vector.broadcast %cst_222 : f32 to vector<8x32xf32>
    %549 = arith.cmpf ogt, %546, %548 : vector<8x32xf32>
    %cst_223 = arith.constant 2.000000e+01 : f32
    %550 = vector.broadcast %cst_223 : f32 to vector<8x32xf32>
    %551 = arith.minimumf %546, %550 : vector<8x32xf32>
    %552 = math.exp %551 : vector<8x32xf32>
    %553 = math.log1p %552 : vector<8x32xf32>
    %554 = arith.select %549, %546, %553 : vector<8x32xi1>, vector<8x32xf32>
    %cst_224 = arith.constant 2.000000e+01 : f32
    %555 = vector.broadcast %cst_224 : f32 to vector<16x32xf32>
    %556 = arith.cmpf ogt, %547, %555 : vector<16x32xf32>
    %cst_225 = arith.constant 2.000000e+01 : f32
    %557 = vector.broadcast %cst_225 : f32 to vector<16x32xf32>
    %558 = arith.minimumf %547, %557 : vector<16x32xf32>
    %559 = math.exp %558 : vector<16x32xf32>
    %560 = math.log1p %559 : vector<16x32xf32>
    %561 = arith.select %556, %547, %560 : vector<16x32xi1>, vector<16x32xf32>
    %562 = tpu.concatenate %546, %546 in 0 : vector<8x32xf32>, vector<8x32xf32> -> vector<16x32xf32>
    %563 = tpu.concatenate %554, %554 in 0 : vector<8x32xf32>, vector<8x32xf32> -> vector<16x32xf32>
    %564 = arith.subf %562, %547 : vector<16x32xf32>
    %565 = tpu.reciprocal %561 {approx = true} : vector<16x32xf32> -> vector<16x32xf32>
    %566 = arith.mulf %563, %565 : vector<16x32xf32>
    %567 = math.log %566 : vector<16x32xf32>
    %cst_226 = arith.constant -2.000000e+00 : f32
    %568 = vector.broadcast %cst_226 : f32 to vector<16x32xf32>
    %569 = arith.mulf %568, %567 : vector<16x32xf32>
    %570 = arith.mulf %563, %563 : vector<16x32xf32>
    %571 = arith.mulf %564, %564 : vector<16x32xf32>
    %572 = arith.addf %570, %571 : vector<16x32xf32>
    %573 = arith.mulf %565, %565 : vector<16x32xf32>
    %574 = arith.mulf %572, %573 : vector<16x32xf32>
    %575 = arith.addf %569, %574 : vector<16x32xf32>
    %cst_227 = arith.constant 1.000000e+00 : f32
    %576 = vector.broadcast %cst_227 : f32 to vector<16x32xf32>
    %577 = arith.subf %575, %576 : vector<16x32xf32>
    %578 = arith.addf %414, %577 : vector<16x32xf32>
    %579 = arith.mulf %510, %554 : vector<8x32xf32>
    %580 = arith.addf %579, %546 : vector<8x32xf32>
    %581 = arith.truncf %580 : vector<8x32xf32> to vector<8x32xbf16>
    %c0_228 = arith.constant 0 : index
    %c0_229 = arith.constant 0 : index
    %582 = vector.load %arg14[%c0_228, %c0_229] : memref<32x128xbf16, #tpu.memory_space<vmem>>, vector<32x128xbf16>
    %cst_230 = arith.constant dense<0.000000e+00> : vector<8x128xf32>
    %583 = tpu.matmul %581, %582, %cst_230 {dimension_numbers = #tpu.dot_dimension_numbers<[1], [0], [0], [1], [0, 0, 1, 1], [], []>} : vector<8x32xbf16>, vector<32x128xbf16>, vector<8x128xf32> -> vector<8x128xf32>
    %c0_231 = arith.constant 0 : index
    %c0_232 = arith.constant 0 : index
    %584 = vector.load %arg15[%c0_231, %c0_232] : memref<1x128xf32, #tpu.memory_space<vmem>>, vector<1x128xf32>
    %585 = vector.broadcast %584 : vector<1x128xf32> to vector<8x128xf32>
    %586 = arith.addf %583, %585 : vector<8x128xf32>
    %cst_233 = arith.constant 0.000000e+00 : f32
    %587 = vector.broadcast %cst_233 : f32 to vector<8x128xf32>
    %588 = arith.maximumf %586, %587 : vector<8x128xf32>
    %589 = vector.extract_strided_slice %503 {offsets = [0, 0], sizes = [8, 128], strides = [1, 1]} : vector<16x128xf32> to vector<8x128xf32>
    %590 = arith.truncf %507 : vector<8x128xf32> to vector<8x128xbf16>
    %591 = arith.truncf %588 : vector<8x128xf32> to vector<8x128xbf16>
    %592 = tpu.concatenate %590, %591 in 1 : vector<8x128xbf16>, vector<8x128xbf16> -> vector<8x256xbf16>
    %c0_234 = arith.constant 0 : index
    %c0_235 = arith.constant 0 : index
    %593 = vector.load %arg22[%c0_234, %c0_235] : memref<256x384xbf16, #tpu.memory_space<vmem>>, vector<256x384xbf16>
    %cst_236 = arith.constant dense<0.000000e+00> : vector<8x384xf32>
    %594 = tpu.matmul %592, %593, %cst_236 {dimension_numbers = #tpu.dot_dimension_numbers<[1], [0], [0], [1], [0, 0, 1, 1], [], []>} : vector<8x256xbf16>, vector<256x384xbf16>, vector<8x384xf32> -> vector<8x384xf32>
    %c0_237 = arith.constant 0 : index
    %c0_238 = arith.constant 0 : index
    %595 = vector.load %arg23[%c0_237, %c0_238] : memref<1x384xf32, #tpu.memory_space<vmem>>, vector<1x384xf32>
    %596 = vector.broadcast %595 : vector<1x384xf32> to vector<8x384xf32>
    %597 = arith.addf %594, %596 : vector<8x384xf32>
    %598 = vector.extract_strided_slice %520 {offsets = [0, 0], sizes = [8, 384], strides = [1, 1]} : vector<8x768xf32> to vector<8x384xf32>
    %599 = vector.extract_strided_slice %597 {offsets = [0, 0], sizes = [8, 128], strides = [1, 1]} : vector<8x384xf32> to vector<8x128xf32>
    %600 = vector.extract_strided_slice %598 {offsets = [0, 0], sizes = [8, 128], strides = [1, 1]} : vector<8x384xf32> to vector<8x128xf32>
    %601 = arith.addf %599, %600 : vector<8x128xf32>
    %cst_239 = arith.constant 5.000000e-01 : f32
    %602 = vector.broadcast %cst_239 : f32 to vector<8x128xf32>
    %603 = arith.mulf %602, %601 : vector<8x128xf32>
    %604 = math.tanh %603 : vector<8x128xf32>
    %cst_240 = arith.constant 1.000000e+00 : f32
    %605 = vector.broadcast %cst_240 : f32 to vector<8x128xf32>
    %606 = arith.addf %604, %605 : vector<8x128xf32>
    %cst_241 = arith.constant 5.000000e-01 : f32
    %607 = vector.broadcast %cst_241 : f32 to vector<8x128xf32>
    %608 = arith.mulf %607, %606 : vector<8x128xf32>
    %609 = vector.extract_strided_slice %597 {offsets = [0, 128], sizes = [8, 128], strides = [1, 1]} : vector<8x384xf32> to vector<8x128xf32>
    %610 = vector.extract_strided_slice %598 {offsets = [0, 128], sizes = [8, 128], strides = [1, 1]} : vector<8x384xf32> to vector<8x128xf32>
    %611 = arith.addf %609, %610 : vector<8x128xf32>
    %cst_242 = arith.constant 5.000000e-01 : f32
    %612 = vector.broadcast %cst_242 : f32 to vector<8x128xf32>
    %613 = arith.mulf %612, %611 : vector<8x128xf32>
    %614 = math.tanh %613 : vector<8x128xf32>
    %cst_243 = arith.constant 1.000000e+00 : f32
    %615 = vector.broadcast %cst_243 : f32 to vector<8x128xf32>
    %616 = arith.addf %614, %615 : vector<8x128xf32>
    %cst_244 = arith.constant 5.000000e-01 : f32
    %617 = vector.broadcast %cst_244 : f32 to vector<8x128xf32>
    %618 = arith.mulf %617, %616 : vector<8x128xf32>
    %619 = vector.extract_strided_slice %597 {offsets = [0, 256], sizes = [8, 128], strides = [1, 1]} : vector<8x384xf32> to vector<8x128xf32>
    %620 = vector.extract_strided_slice %598 {offsets = [0, 256], sizes = [8, 128], strides = [1, 1]} : vector<8x384xf32> to vector<8x128xf32>
    %621 = arith.mulf %608, %620 : vector<8x128xf32>
    %622 = arith.addf %619, %621 : vector<8x128xf32>
    %623 = math.tanh %622 : vector<8x128xf32>
    %cst_245 = arith.constant 1.000000e+00 : f32
    %624 = vector.broadcast %cst_245 : f32 to vector<8x128xf32>
    %625 = arith.subf %624, %618 : vector<8x128xf32>
    %626 = arith.mulf %625, %623 : vector<8x128xf32>
    %627 = arith.mulf %618, %589 : vector<8x128xf32>
    %628 = arith.addf %626, %627 : vector<8x128xf32>
    %629 = vector.extract_strided_slice %503 {offsets = [8, 0], sizes = [8, 128], strides = [1, 1]} : vector<16x128xf32> to vector<8x128xf32>
    %630 = arith.truncf %628 : vector<8x128xf32> to vector<8x128xbf16>
    %c0_246 = arith.constant 0 : index
    %c0_247 = arith.constant 0 : index
    %631 = vector.load %arg24[%c0_246, %c0_247] : memref<128x384xbf16, #tpu.memory_space<vmem>>, vector<128x384xbf16>
    %cst_248 = arith.constant dense<0.000000e+00> : vector<8x384xf32>
    %632 = tpu.matmul %630, %631, %cst_248 {dimension_numbers = #tpu.dot_dimension_numbers<[1], [0], [0], [1], [0, 0, 1, 1], [], []>} : vector<8x128xbf16>, vector<128x384xbf16>, vector<8x384xf32> -> vector<8x384xf32>
    %c0_249 = arith.constant 0 : index
    %c0_250 = arith.constant 0 : index
    %633 = vector.load %arg25[%c0_249, %c0_250] : memref<1x384xf32, #tpu.memory_space<vmem>>, vector<1x384xf32>
    %634 = vector.broadcast %633 : vector<1x384xf32> to vector<8x384xf32>
    %635 = arith.addf %632, %634 : vector<8x384xf32>
    %636 = vector.extract_strided_slice %520 {offsets = [0, 384], sizes = [8, 384], strides = [1, 1]} : vector<8x768xf32> to vector<8x384xf32>
    %637 = vector.extract_strided_slice %635 {offsets = [0, 0], sizes = [8, 128], strides = [1, 1]} : vector<8x384xf32> to vector<8x128xf32>
    %638 = vector.extract_strided_slice %636 {offsets = [0, 0], sizes = [8, 128], strides = [1, 1]} : vector<8x384xf32> to vector<8x128xf32>
    %639 = arith.addf %637, %638 : vector<8x128xf32>
    %cst_251 = arith.constant 5.000000e-01 : f32
    %640 = vector.broadcast %cst_251 : f32 to vector<8x128xf32>
    %641 = arith.mulf %640, %639 : vector<8x128xf32>
    %642 = math.tanh %641 : vector<8x128xf32>
    %cst_252 = arith.constant 1.000000e+00 : f32
    %643 = vector.broadcast %cst_252 : f32 to vector<8x128xf32>
    %644 = arith.addf %642, %643 : vector<8x128xf32>
    %cst_253 = arith.constant 5.000000e-01 : f32
    %645 = vector.broadcast %cst_253 : f32 to vector<8x128xf32>
    %646 = arith.mulf %645, %644 : vector<8x128xf32>
    %647 = vector.extract_strided_slice %635 {offsets = [0, 128], sizes = [8, 128], strides = [1, 1]} : vector<8x384xf32> to vector<8x128xf32>
    %648 = vector.extract_strided_slice %636 {offsets = [0, 128], sizes = [8, 128], strides = [1, 1]} : vector<8x384xf32> to vector<8x128xf32>
    %649 = arith.addf %647, %648 : vector<8x128xf32>
    %cst_254 = arith.constant 5.000000e-01 : f32
    %650 = vector.broadcast %cst_254 : f32 to vector<8x128xf32>
    %651 = arith.mulf %650, %649 : vector<8x128xf32>
    %652 = math.tanh %651 : vector<8x128xf32>
    %cst_255 = arith.constant 1.000000e+00 : f32
    %653 = vector.broadcast %cst_255 : f32 to vector<8x128xf32>
    %654 = arith.addf %652, %653 : vector<8x128xf32>
    %cst_256 = arith.constant 5.000000e-01 : f32
    %655 = vector.broadcast %cst_256 : f32 to vector<8x128xf32>
    %656 = arith.mulf %655, %654 : vector<8x128xf32>
    %657 = vector.extract_strided_slice %635 {offsets = [0, 256], sizes = [8, 128], strides = [1, 1]} : vector<8x384xf32> to vector<8x128xf32>
    %658 = vector.extract_strided_slice %636 {offsets = [0, 256], sizes = [8, 128], strides = [1, 1]} : vector<8x384xf32> to vector<8x128xf32>
    %659 = arith.mulf %646, %658 : vector<8x128xf32>
    %660 = arith.addf %657, %659 : vector<8x128xf32>
    %661 = math.tanh %660 : vector<8x128xf32>
    %cst_257 = arith.constant 1.000000e+00 : f32
    %662 = vector.broadcast %cst_257 : f32 to vector<8x128xf32>
    %663 = arith.subf %662, %656 : vector<8x128xf32>
    %664 = arith.mulf %663, %661 : vector<8x128xf32>
    %665 = arith.mulf %656, %629 : vector<8x128xf32>
    %666 = arith.addf %664, %665 : vector<8x128xf32>
    %667 = tpu.concatenate %628, %666 in 0 : vector<8x128xf32>, vector<8x128xf32> -> vector<16x128xf32>
    %c4_i32 = arith.constant 4 : i32
    %c8_i32_258 = arith.constant 8 : i32
    %668 = arith.muli %c4_i32, %c8_i32_258 : i32
    %669 = tpu.assume_multiple %668, 8 : i32
    %670 = arith.index_cast %669 : i32 to index
    %c0_259 = arith.constant 0 : index
    %671 = vector.load %arg32[%670, %c0_259] : memref<48x128xf32, #tpu.memory_space<vmem>>, vector<8x128xf32>
    %672 = arith.index_cast %c4_i32 : i32 to index
    %c0_260 = arith.constant 0 : index
    %c0_261 = arith.constant 0 : index
    %673 = vector.load %arg1[%672, %c0_260, %c0_261] : memref<6x8x32xf32, #tpu.memory_space<vmem>>, vector<1x8x32xf32>
    %674 = vector.shape_cast %673 : vector<1x8x32xf32> to vector<8x32xf32>
    %675 = vector.extract_strided_slice %667 {offsets = [8, 0], sizes = [8, 128], strides = [1, 1]} : vector<16x128xf32> to vector<8x128xf32>
    %676 = vector.extract_strided_slice %667 {offsets = [0, 0], sizes = [8, 128], strides = [1, 1]} : vector<16x128xf32> to vector<8x128xf32>
    %677 = vector.extract_strided_slice %667 {offsets = [8, 0], sizes = [8, 128], strides = [1, 1]} : vector<16x128xf32> to vector<8x128xf32>
    %678 = tpu.concatenate %676, %677 in 1 : vector<8x128xf32>, vector<8x128xf32> -> vector<8x256xf32>
    %679 = arith.truncf %678 : vector<8x256xf32> to vector<8x256xbf16>
    %c0_262 = arith.constant 0 : index
    %c0_263 = arith.constant 0 : index
    %680 = vector.load %arg26[%c0_262, %c0_263] : memref<256x768xbf16, #tpu.memory_space<vmem>>, vector<256x768xbf16>
    %cst_264 = arith.constant dense<0.000000e+00> : vector<8x768xf32>
    %681 = tpu.matmul %679, %680, %cst_264 {dimension_numbers = #tpu.dot_dimension_numbers<[1], [0], [0], [1], [0, 0, 1, 1], [], []>} : vector<8x256xbf16>, vector<256x768xbf16>, vector<8x768xf32> -> vector<8x768xf32>
    %c0_265 = arith.constant 0 : index
    %c0_266 = arith.constant 0 : index
    %682 = vector.load %arg27[%c0_265, %c0_266] : memref<1x768xf32, #tpu.memory_space<vmem>>, vector<1x768xf32>
    %683 = vector.broadcast %682 : vector<1x768xf32> to vector<8x768xf32>
    %684 = arith.addf %681, %683 : vector<8x768xf32>
    %685 = arith.truncf %671 : vector<8x128xf32> to vector<8x128xbf16>
    %686 = arith.truncf %675 : vector<8x128xf32> to vector<8x128xbf16>
    %687 = tpu.concatenate %685, %686 in 1 : vector<8x128xbf16>, vector<8x128xbf16> -> vector<8x256xbf16>
    %c0_267 = arith.constant 0 : index
    %c0_268 = arith.constant 0 : index
    %688 = vector.load %arg10[%c0_267, %c0_268] : memref<256x128xbf16, #tpu.memory_space<vmem>>, vector<256x128xbf16>
    %cst_269 = arith.constant dense<0.000000e+00> : vector<8x128xf32>
    %689 = tpu.matmul %687, %688, %cst_269 {dimension_numbers = #tpu.dot_dimension_numbers<[1], [0], [0], [1], [0, 0, 1, 1], [], []>} : vector<8x256xbf16>, vector<256x128xbf16>, vector<8x128xf32> -> vector<8x128xf32>
    %c0_270 = arith.constant 0 : index
    %c0_271 = arith.constant 0 : index
    %690 = vector.load %arg11[%c0_270, %c0_271] : memref<1x128xf32, #tpu.memory_space<vmem>>, vector<1x128xf32>
    %691 = vector.broadcast %690 : vector<1x128xf32> to vector<8x128xf32>
    %692 = arith.addf %689, %691 : vector<8x128xf32>
    %cst_272 = arith.constant 0.000000e+00 : f32
    %693 = vector.broadcast %cst_272 : f32 to vector<8x128xf32>
    %694 = arith.maximumf %692, %693 : vector<8x128xf32>
    %695 = arith.truncf %667 : vector<16x128xf32> to vector<16x128xbf16>
    %c0_273 = arith.constant 0 : index
    %c0_274 = arith.constant 0 : index
    %696 = vector.load %arg12[%c0_273, %c0_274] : memref<128x128xbf16, #tpu.memory_space<vmem>>, vector<128x128xbf16>
    %cst_275 = arith.constant dense<0.000000e+00> : vector<16x128xf32>
    %697 = tpu.matmul %695, %696, %cst_275 {dimension_numbers = #tpu.dot_dimension_numbers<[1], [0], [0], [1], [0, 0, 1, 1], [], []>} : vector<16x128xbf16>, vector<128x128xbf16>, vector<16x128xf32> -> vector<16x128xf32>
    %c0_276 = arith.constant 0 : index
    %c0_277 = arith.constant 0 : index
    %698 = vector.load %arg13[%c0_276, %c0_277] : memref<1x128xf32, #tpu.memory_space<vmem>>, vector<1x128xf32>
    %699 = vector.broadcast %698 : vector<1x128xf32> to vector<16x128xf32>
    %700 = arith.addf %697, %699 : vector<16x128xf32>
    %cst_278 = arith.constant 0.000000e+00 : f32
    %701 = vector.broadcast %cst_278 : f32 to vector<16x128xf32>
    %702 = arith.maximumf %700, %701 : vector<16x128xf32>
    %703 = tpu.concatenate %694, %702 in 0 : vector<8x128xf32>, vector<16x128xf32> -> vector<24x128xf32>
    %704 = arith.truncf %703 : vector<24x128xf32> to vector<24x128xbf16>
    %c0_279 = arith.constant 0 : index
    %c0_280 = arith.constant 0 : index
    %705 = vector.load %arg8[%c0_279, %c0_280] : memref<128x32xbf16, #tpu.memory_space<vmem>>, vector<128x32xbf16>
    %cst_281 = arith.constant dense<0.000000e+00> : vector<24x32xf32>
    %706 = tpu.matmul %704, %705, %cst_281 {dimension_numbers = #tpu.dot_dimension_numbers<[1], [0], [0], [1], [0, 0, 1, 1], [], []>} : vector<24x128xbf16>, vector<128x32xbf16>, vector<24x32xf32> -> vector<24x32xf32>
    %c0_282 = arith.constant 0 : index
    %c0_283 = arith.constant 0 : index
    %707 = vector.load %arg9[%c0_282, %c0_283] : memref<1x32xf32, #tpu.memory_space<vmem>>, vector<1x32xf32>
    %708 = vector.broadcast %707 : vector<1x32xf32> to vector<24x32xf32>
    %709 = arith.addf %706, %708 : vector<24x32xf32>
    %710 = vector.extract_strided_slice %709 {offsets = [0, 0], sizes = [8, 32], strides = [1, 1]} : vector<24x32xf32> to vector<8x32xf32>
    %711 = vector.extract_strided_slice %709 {offsets = [8, 0], sizes = [16, 32], strides = [1, 1]} : vector<24x32xf32> to vector<16x32xf32>
    %cst_284 = arith.constant 2.000000e+01 : f32
    %712 = vector.broadcast %cst_284 : f32 to vector<8x32xf32>
    %713 = arith.cmpf ogt, %710, %712 : vector<8x32xf32>
    %cst_285 = arith.constant 2.000000e+01 : f32
    %714 = vector.broadcast %cst_285 : f32 to vector<8x32xf32>
    %715 = arith.minimumf %710, %714 : vector<8x32xf32>
    %716 = math.exp %715 : vector<8x32xf32>
    %717 = math.log1p %716 : vector<8x32xf32>
    %718 = arith.select %713, %710, %717 : vector<8x32xi1>, vector<8x32xf32>
    %cst_286 = arith.constant 2.000000e+01 : f32
    %719 = vector.broadcast %cst_286 : f32 to vector<16x32xf32>
    %720 = arith.cmpf ogt, %711, %719 : vector<16x32xf32>
    %cst_287 = arith.constant 2.000000e+01 : f32
    %721 = vector.broadcast %cst_287 : f32 to vector<16x32xf32>
    %722 = arith.minimumf %711, %721 : vector<16x32xf32>
    %723 = math.exp %722 : vector<16x32xf32>
    %724 = math.log1p %723 : vector<16x32xf32>
    %725 = arith.select %720, %711, %724 : vector<16x32xi1>, vector<16x32xf32>
    %726 = tpu.concatenate %710, %710 in 0 : vector<8x32xf32>, vector<8x32xf32> -> vector<16x32xf32>
    %727 = tpu.concatenate %718, %718 in 0 : vector<8x32xf32>, vector<8x32xf32> -> vector<16x32xf32>
    %728 = arith.subf %726, %711 : vector<16x32xf32>
    %729 = tpu.reciprocal %725 {approx = true} : vector<16x32xf32> -> vector<16x32xf32>
    %730 = arith.mulf %727, %729 : vector<16x32xf32>
    %731 = math.log %730 : vector<16x32xf32>
    %cst_288 = arith.constant -2.000000e+00 : f32
    %732 = vector.broadcast %cst_288 : f32 to vector<16x32xf32>
    %733 = arith.mulf %732, %731 : vector<16x32xf32>
    %734 = arith.mulf %727, %727 : vector<16x32xf32>
    %735 = arith.mulf %728, %728 : vector<16x32xf32>
    %736 = arith.addf %734, %735 : vector<16x32xf32>
    %737 = arith.mulf %729, %729 : vector<16x32xf32>
    %738 = arith.mulf %736, %737 : vector<16x32xf32>
    %739 = arith.addf %733, %738 : vector<16x32xf32>
    %cst_289 = arith.constant 1.000000e+00 : f32
    %740 = vector.broadcast %cst_289 : f32 to vector<16x32xf32>
    %741 = arith.subf %739, %740 : vector<16x32xf32>
    %742 = arith.addf %578, %741 : vector<16x32xf32>
    %743 = arith.mulf %674, %718 : vector<8x32xf32>
    %744 = arith.addf %743, %710 : vector<8x32xf32>
    %745 = arith.truncf %744 : vector<8x32xf32> to vector<8x32xbf16>
    %c0_290 = arith.constant 0 : index
    %c0_291 = arith.constant 0 : index
    %746 = vector.load %arg14[%c0_290, %c0_291] : memref<32x128xbf16, #tpu.memory_space<vmem>>, vector<32x128xbf16>
    %cst_292 = arith.constant dense<0.000000e+00> : vector<8x128xf32>
    %747 = tpu.matmul %745, %746, %cst_292 {dimension_numbers = #tpu.dot_dimension_numbers<[1], [0], [0], [1], [0, 0, 1, 1], [], []>} : vector<8x32xbf16>, vector<32x128xbf16>, vector<8x128xf32> -> vector<8x128xf32>
    %c0_293 = arith.constant 0 : index
    %c0_294 = arith.constant 0 : index
    %748 = vector.load %arg15[%c0_293, %c0_294] : memref<1x128xf32, #tpu.memory_space<vmem>>, vector<1x128xf32>
    %749 = vector.broadcast %748 : vector<1x128xf32> to vector<8x128xf32>
    %750 = arith.addf %747, %749 : vector<8x128xf32>
    %cst_295 = arith.constant 0.000000e+00 : f32
    %751 = vector.broadcast %cst_295 : f32 to vector<8x128xf32>
    %752 = arith.maximumf %750, %751 : vector<8x128xf32>
    %753 = vector.extract_strided_slice %667 {offsets = [0, 0], sizes = [8, 128], strides = [1, 1]} : vector<16x128xf32> to vector<8x128xf32>
    %754 = arith.truncf %671 : vector<8x128xf32> to vector<8x128xbf16>
    %755 = arith.truncf %752 : vector<8x128xf32> to vector<8x128xbf16>
    %756 = tpu.concatenate %754, %755 in 1 : vector<8x128xbf16>, vector<8x128xbf16> -> vector<8x256xbf16>
    %c0_296 = arith.constant 0 : index
    %c0_297 = arith.constant 0 : index
    %757 = vector.load %arg22[%c0_296, %c0_297] : memref<256x384xbf16, #tpu.memory_space<vmem>>, vector<256x384xbf16>
    %cst_298 = arith.constant dense<0.000000e+00> : vector<8x384xf32>
    %758 = tpu.matmul %756, %757, %cst_298 {dimension_numbers = #tpu.dot_dimension_numbers<[1], [0], [0], [1], [0, 0, 1, 1], [], []>} : vector<8x256xbf16>, vector<256x384xbf16>, vector<8x384xf32> -> vector<8x384xf32>
    %c0_299 = arith.constant 0 : index
    %c0_300 = arith.constant 0 : index
    %759 = vector.load %arg23[%c0_299, %c0_300] : memref<1x384xf32, #tpu.memory_space<vmem>>, vector<1x384xf32>
    %760 = vector.broadcast %759 : vector<1x384xf32> to vector<8x384xf32>
    %761 = arith.addf %758, %760 : vector<8x384xf32>
    %762 = vector.extract_strided_slice %684 {offsets = [0, 0], sizes = [8, 384], strides = [1, 1]} : vector<8x768xf32> to vector<8x384xf32>
    %763 = vector.extract_strided_slice %761 {offsets = [0, 0], sizes = [8, 128], strides = [1, 1]} : vector<8x384xf32> to vector<8x128xf32>
    %764 = vector.extract_strided_slice %762 {offsets = [0, 0], sizes = [8, 128], strides = [1, 1]} : vector<8x384xf32> to vector<8x128xf32>
    %765 = arith.addf %763, %764 : vector<8x128xf32>
    %cst_301 = arith.constant 5.000000e-01 : f32
    %766 = vector.broadcast %cst_301 : f32 to vector<8x128xf32>
    %767 = arith.mulf %766, %765 : vector<8x128xf32>
    %768 = math.tanh %767 : vector<8x128xf32>
    %cst_302 = arith.constant 1.000000e+00 : f32
    %769 = vector.broadcast %cst_302 : f32 to vector<8x128xf32>
    %770 = arith.addf %768, %769 : vector<8x128xf32>
    %cst_303 = arith.constant 5.000000e-01 : f32
    %771 = vector.broadcast %cst_303 : f32 to vector<8x128xf32>
    %772 = arith.mulf %771, %770 : vector<8x128xf32>
    %773 = vector.extract_strided_slice %761 {offsets = [0, 128], sizes = [8, 128], strides = [1, 1]} : vector<8x384xf32> to vector<8x128xf32>
    %774 = vector.extract_strided_slice %762 {offsets = [0, 128], sizes = [8, 128], strides = [1, 1]} : vector<8x384xf32> to vector<8x128xf32>
    %775 = arith.addf %773, %774 : vector<8x128xf32>
    %cst_304 = arith.constant 5.000000e-01 : f32
    %776 = vector.broadcast %cst_304 : f32 to vector<8x128xf32>
    %777 = arith.mulf %776, %775 : vector<8x128xf32>
    %778 = math.tanh %777 : vector<8x128xf32>
    %cst_305 = arith.constant 1.000000e+00 : f32
    %779 = vector.broadcast %cst_305 : f32 to vector<8x128xf32>
    %780 = arith.addf %778, %779 : vector<8x128xf32>
    %cst_306 = arith.constant 5.000000e-01 : f32
    %781 = vector.broadcast %cst_306 : f32 to vector<8x128xf32>
    %782 = arith.mulf %781, %780 : vector<8x128xf32>
    %783 = vector.extract_strided_slice %761 {offsets = [0, 256], sizes = [8, 128], strides = [1, 1]} : vector<8x384xf32> to vector<8x128xf32>
    %784 = vector.extract_strided_slice %762 {offsets = [0, 256], sizes = [8, 128], strides = [1, 1]} : vector<8x384xf32> to vector<8x128xf32>
    %785 = arith.mulf %772, %784 : vector<8x128xf32>
    %786 = arith.addf %783, %785 : vector<8x128xf32>
    %787 = math.tanh %786 : vector<8x128xf32>
    %cst_307 = arith.constant 1.000000e+00 : f32
    %788 = vector.broadcast %cst_307 : f32 to vector<8x128xf32>
    %789 = arith.subf %788, %782 : vector<8x128xf32>
    %790 = arith.mulf %789, %787 : vector<8x128xf32>
    %791 = arith.mulf %782, %753 : vector<8x128xf32>
    %792 = arith.addf %790, %791 : vector<8x128xf32>
    %793 = vector.extract_strided_slice %667 {offsets = [8, 0], sizes = [8, 128], strides = [1, 1]} : vector<16x128xf32> to vector<8x128xf32>
    %794 = arith.truncf %792 : vector<8x128xf32> to vector<8x128xbf16>
    %c0_308 = arith.constant 0 : index
    %c0_309 = arith.constant 0 : index
    %795 = vector.load %arg24[%c0_308, %c0_309] : memref<128x384xbf16, #tpu.memory_space<vmem>>, vector<128x384xbf16>
    %cst_310 = arith.constant dense<0.000000e+00> : vector<8x384xf32>
    %796 = tpu.matmul %794, %795, %cst_310 {dimension_numbers = #tpu.dot_dimension_numbers<[1], [0], [0], [1], [0, 0, 1, 1], [], []>} : vector<8x128xbf16>, vector<128x384xbf16>, vector<8x384xf32> -> vector<8x384xf32>
    %c0_311 = arith.constant 0 : index
    %c0_312 = arith.constant 0 : index
    %797 = vector.load %arg25[%c0_311, %c0_312] : memref<1x384xf32, #tpu.memory_space<vmem>>, vector<1x384xf32>
    %798 = vector.broadcast %797 : vector<1x384xf32> to vector<8x384xf32>
    %799 = arith.addf %796, %798 : vector<8x384xf32>
    %800 = vector.extract_strided_slice %684 {offsets = [0, 384], sizes = [8, 384], strides = [1, 1]} : vector<8x768xf32> to vector<8x384xf32>
    %801 = vector.extract_strided_slice %799 {offsets = [0, 0], sizes = [8, 128], strides = [1, 1]} : vector<8x384xf32> to vector<8x128xf32>
    %802 = vector.extract_strided_slice %800 {offsets = [0, 0], sizes = [8, 128], strides = [1, 1]} : vector<8x384xf32> to vector<8x128xf32>
    %803 = arith.addf %801, %802 : vector<8x128xf32>
    %cst_313 = arith.constant 5.000000e-01 : f32
    %804 = vector.broadcast %cst_313 : f32 to vector<8x128xf32>
    %805 = arith.mulf %804, %803 : vector<8x128xf32>
    %806 = math.tanh %805 : vector<8x128xf32>
    %cst_314 = arith.constant 1.000000e+00 : f32
    %807 = vector.broadcast %cst_314 : f32 to vector<8x128xf32>
    %808 = arith.addf %806, %807 : vector<8x128xf32>
    %cst_315 = arith.constant 5.000000e-01 : f32
    %809 = vector.broadcast %cst_315 : f32 to vector<8x128xf32>
    %810 = arith.mulf %809, %808 : vector<8x128xf32>
    %811 = vector.extract_strided_slice %799 {offsets = [0, 128], sizes = [8, 128], strides = [1, 1]} : vector<8x384xf32> to vector<8x128xf32>
    %812 = vector.extract_strided_slice %800 {offsets = [0, 128], sizes = [8, 128], strides = [1, 1]} : vector<8x384xf32> to vector<8x128xf32>
    %813 = arith.addf %811, %812 : vector<8x128xf32>
    %cst_316 = arith.constant 5.000000e-01 : f32
    %814 = vector.broadcast %cst_316 : f32 to vector<8x128xf32>
    %815 = arith.mulf %814, %813 : vector<8x128xf32>
    %816 = math.tanh %815 : vector<8x128xf32>
    %cst_317 = arith.constant 1.000000e+00 : f32
    %817 = vector.broadcast %cst_317 : f32 to vector<8x128xf32>
    %818 = arith.addf %816, %817 : vector<8x128xf32>
    %cst_318 = arith.constant 5.000000e-01 : f32
    %819 = vector.broadcast %cst_318 : f32 to vector<8x128xf32>
    %820 = arith.mulf %819, %818 : vector<8x128xf32>
    %821 = vector.extract_strided_slice %799 {offsets = [0, 256], sizes = [8, 128], strides = [1, 1]} : vector<8x384xf32> to vector<8x128xf32>
    %822 = vector.extract_strided_slice %800 {offsets = [0, 256], sizes = [8, 128], strides = [1, 1]} : vector<8x384xf32> to vector<8x128xf32>
    %823 = arith.mulf %810, %822 : vector<8x128xf32>
    %824 = arith.addf %821, %823 : vector<8x128xf32>
    %825 = math.tanh %824 : vector<8x128xf32>
    %cst_319 = arith.constant 1.000000e+00 : f32
    %826 = vector.broadcast %cst_319 : f32 to vector<8x128xf32>
    %827 = arith.subf %826, %820 : vector<8x128xf32>
    %828 = arith.mulf %827, %825 : vector<8x128xf32>
    %829 = arith.mulf %820, %793 : vector<8x128xf32>
    %830 = arith.addf %828, %829 : vector<8x128xf32>
    %831 = tpu.concatenate %792, %830 in 0 : vector<8x128xf32>, vector<8x128xf32> -> vector<16x128xf32>
    %c5_i32 = arith.constant 5 : i32
    %c8_i32_320 = arith.constant 8 : i32
    %832 = arith.muli %c5_i32, %c8_i32_320 : i32
    %833 = tpu.assume_multiple %832, 8 : i32
    %834 = arith.index_cast %833 : i32 to index
    %c0_321 = arith.constant 0 : index
    %835 = vector.load %arg32[%834, %c0_321] : memref<48x128xf32, #tpu.memory_space<vmem>>, vector<8x128xf32>
    %836 = arith.index_cast %c5_i32 : i32 to index
    %c0_322 = arith.constant 0 : index
    %c0_323 = arith.constant 0 : index
    %837 = vector.load %arg1[%836, %c0_322, %c0_323] : memref<6x8x32xf32, #tpu.memory_space<vmem>>, vector<1x8x32xf32>
    %838 = vector.shape_cast %837 : vector<1x8x32xf32> to vector<8x32xf32>
    %839 = vector.extract_strided_slice %831 {offsets = [8, 0], sizes = [8, 128], strides = [1, 1]} : vector<16x128xf32> to vector<8x128xf32>
    %840 = vector.extract_strided_slice %831 {offsets = [0, 0], sizes = [8, 128], strides = [1, 1]} : vector<16x128xf32> to vector<8x128xf32>
    %841 = vector.extract_strided_slice %831 {offsets = [8, 0], sizes = [8, 128], strides = [1, 1]} : vector<16x128xf32> to vector<8x128xf32>
    %842 = tpu.concatenate %840, %841 in 1 : vector<8x128xf32>, vector<8x128xf32> -> vector<8x256xf32>
    %843 = arith.truncf %842 : vector<8x256xf32> to vector<8x256xbf16>
    %c0_324 = arith.constant 0 : index
    %c0_325 = arith.constant 0 : index
    %844 = vector.load %arg26[%c0_324, %c0_325] : memref<256x768xbf16, #tpu.memory_space<vmem>>, vector<256x768xbf16>
    %cst_326 = arith.constant dense<0.000000e+00> : vector<8x768xf32>
    %845 = tpu.matmul %843, %844, %cst_326 {dimension_numbers = #tpu.dot_dimension_numbers<[1], [0], [0], [1], [0, 0, 1, 1], [], []>} : vector<8x256xbf16>, vector<256x768xbf16>, vector<8x768xf32> -> vector<8x768xf32>
    %c0_327 = arith.constant 0 : index
    %c0_328 = arith.constant 0 : index
    %846 = vector.load %arg27[%c0_327, %c0_328] : memref<1x768xf32, #tpu.memory_space<vmem>>, vector<1x768xf32>
    %847 = vector.broadcast %846 : vector<1x768xf32> to vector<8x768xf32>
    %848 = arith.addf %845, %847 : vector<8x768xf32>
    %849 = arith.truncf %835 : vector<8x128xf32> to vector<8x128xbf16>
    %850 = arith.truncf %839 : vector<8x128xf32> to vector<8x128xbf16>
    %851 = tpu.concatenate %849, %850 in 1 : vector<8x128xbf16>, vector<8x128xbf16> -> vector<8x256xbf16>
    %c0_329 = arith.constant 0 : index
    %c0_330 = arith.constant 0 : index
    %852 = vector.load %arg10[%c0_329, %c0_330] : memref<256x128xbf16, #tpu.memory_space<vmem>>, vector<256x128xbf16>
    %cst_331 = arith.constant dense<0.000000e+00> : vector<8x128xf32>
    %853 = tpu.matmul %851, %852, %cst_331 {dimension_numbers = #tpu.dot_dimension_numbers<[1], [0], [0], [1], [0, 0, 1, 1], [], []>} : vector<8x256xbf16>, vector<256x128xbf16>, vector<8x128xf32> -> vector<8x128xf32>
    %c0_332 = arith.constant 0 : index
    %c0_333 = arith.constant 0 : index
    %854 = vector.load %arg11[%c0_332, %c0_333] : memref<1x128xf32, #tpu.memory_space<vmem>>, vector<1x128xf32>
    %855 = vector.broadcast %854 : vector<1x128xf32> to vector<8x128xf32>
    %856 = arith.addf %853, %855 : vector<8x128xf32>
    %cst_334 = arith.constant 0.000000e+00 : f32
    %857 = vector.broadcast %cst_334 : f32 to vector<8x128xf32>
    %858 = arith.maximumf %856, %857 : vector<8x128xf32>
    %859 = arith.truncf %831 : vector<16x128xf32> to vector<16x128xbf16>
    %c0_335 = arith.constant 0 : index
    %c0_336 = arith.constant 0 : index
    %860 = vector.load %arg12[%c0_335, %c0_336] : memref<128x128xbf16, #tpu.memory_space<vmem>>, vector<128x128xbf16>
    %cst_337 = arith.constant dense<0.000000e+00> : vector<16x128xf32>
    %861 = tpu.matmul %859, %860, %cst_337 {dimension_numbers = #tpu.dot_dimension_numbers<[1], [0], [0], [1], [0, 0, 1, 1], [], []>} : vector<16x128xbf16>, vector<128x128xbf16>, vector<16x128xf32> -> vector<16x128xf32>
    %c0_338 = arith.constant 0 : index
    %c0_339 = arith.constant 0 : index
    %862 = vector.load %arg13[%c0_338, %c0_339] : memref<1x128xf32, #tpu.memory_space<vmem>>, vector<1x128xf32>
    %863 = vector.broadcast %862 : vector<1x128xf32> to vector<16x128xf32>
    %864 = arith.addf %861, %863 : vector<16x128xf32>
    %cst_340 = arith.constant 0.000000e+00 : f32
    %865 = vector.broadcast %cst_340 : f32 to vector<16x128xf32>
    %866 = arith.maximumf %864, %865 : vector<16x128xf32>
    %867 = tpu.concatenate %858, %866 in 0 : vector<8x128xf32>, vector<16x128xf32> -> vector<24x128xf32>
    %868 = arith.truncf %867 : vector<24x128xf32> to vector<24x128xbf16>
    %c0_341 = arith.constant 0 : index
    %c0_342 = arith.constant 0 : index
    %869 = vector.load %arg8[%c0_341, %c0_342] : memref<128x32xbf16, #tpu.memory_space<vmem>>, vector<128x32xbf16>
    %cst_343 = arith.constant dense<0.000000e+00> : vector<24x32xf32>
    %870 = tpu.matmul %868, %869, %cst_343 {dimension_numbers = #tpu.dot_dimension_numbers<[1], [0], [0], [1], [0, 0, 1, 1], [], []>} : vector<24x128xbf16>, vector<128x32xbf16>, vector<24x32xf32> -> vector<24x32xf32>
    %c0_344 = arith.constant 0 : index
    %c0_345 = arith.constant 0 : index
    %871 = vector.load %arg9[%c0_344, %c0_345] : memref<1x32xf32, #tpu.memory_space<vmem>>, vector<1x32xf32>
    %872 = vector.broadcast %871 : vector<1x32xf32> to vector<24x32xf32>
    %873 = arith.addf %870, %872 : vector<24x32xf32>
    %874 = vector.extract_strided_slice %873 {offsets = [0, 0], sizes = [8, 32], strides = [1, 1]} : vector<24x32xf32> to vector<8x32xf32>
    %875 = vector.extract_strided_slice %873 {offsets = [8, 0], sizes = [16, 32], strides = [1, 1]} : vector<24x32xf32> to vector<16x32xf32>
    %cst_346 = arith.constant 2.000000e+01 : f32
    %876 = vector.broadcast %cst_346 : f32 to vector<8x32xf32>
    %877 = arith.cmpf ogt, %874, %876 : vector<8x32xf32>
    %cst_347 = arith.constant 2.000000e+01 : f32
    %878 = vector.broadcast %cst_347 : f32 to vector<8x32xf32>
    %879 = arith.minimumf %874, %878 : vector<8x32xf32>
    %880 = math.exp %879 : vector<8x32xf32>
    %881 = math.log1p %880 : vector<8x32xf32>
    %882 = arith.select %877, %874, %881 : vector<8x32xi1>, vector<8x32xf32>
    %cst_348 = arith.constant 2.000000e+01 : f32
    %883 = vector.broadcast %cst_348 : f32 to vector<16x32xf32>
    %884 = arith.cmpf ogt, %875, %883 : vector<16x32xf32>
    %cst_349 = arith.constant 2.000000e+01 : f32
    %885 = vector.broadcast %cst_349 : f32 to vector<16x32xf32>
    %886 = arith.minimumf %875, %885 : vector<16x32xf32>
    %887 = math.exp %886 : vector<16x32xf32>
    %888 = math.log1p %887 : vector<16x32xf32>
    %889 = arith.select %884, %875, %888 : vector<16x32xi1>, vector<16x32xf32>
    %890 = tpu.concatenate %874, %874 in 0 : vector<8x32xf32>, vector<8x32xf32> -> vector<16x32xf32>
    %891 = tpu.concatenate %882, %882 in 0 : vector<8x32xf32>, vector<8x32xf32> -> vector<16x32xf32>
    %892 = arith.subf %890, %875 : vector<16x32xf32>
    %893 = tpu.reciprocal %889 {approx = true} : vector<16x32xf32> -> vector<16x32xf32>
    %894 = arith.mulf %891, %893 : vector<16x32xf32>
    %895 = math.log %894 : vector<16x32xf32>
    %cst_350 = arith.constant -2.000000e+00 : f32
    %896 = vector.broadcast %cst_350 : f32 to vector<16x32xf32>
    %897 = arith.mulf %896, %895 : vector<16x32xf32>
    %898 = arith.mulf %891, %891 : vector<16x32xf32>
    %899 = arith.mulf %892, %892 : vector<16x32xf32>
    %900 = arith.addf %898, %899 : vector<16x32xf32>
    %901 = arith.mulf %893, %893 : vector<16x32xf32>
    %902 = arith.mulf %900, %901 : vector<16x32xf32>
    %903 = arith.addf %897, %902 : vector<16x32xf32>
    %cst_351 = arith.constant 1.000000e+00 : f32
    %904 = vector.broadcast %cst_351 : f32 to vector<16x32xf32>
    %905 = arith.subf %903, %904 : vector<16x32xf32>
    %906 = arith.addf %742, %905 : vector<16x32xf32>
    %907 = arith.mulf %838, %882 : vector<8x32xf32>
    %908 = arith.addf %907, %874 : vector<8x32xf32>
    %909 = arith.truncf %908 : vector<8x32xf32> to vector<8x32xbf16>
    %c0_352 = arith.constant 0 : index
    %c0_353 = arith.constant 0 : index
    %910 = vector.load %arg14[%c0_352, %c0_353] : memref<32x128xbf16, #tpu.memory_space<vmem>>, vector<32x128xbf16>
    %cst_354 = arith.constant dense<0.000000e+00> : vector<8x128xf32>
    %911 = tpu.matmul %909, %910, %cst_354 {dimension_numbers = #tpu.dot_dimension_numbers<[1], [0], [0], [1], [0, 0, 1, 1], [], []>} : vector<8x32xbf16>, vector<32x128xbf16>, vector<8x128xf32> -> vector<8x128xf32>
    %c0_355 = arith.constant 0 : index
    %c0_356 = arith.constant 0 : index
    %912 = vector.load %arg15[%c0_355, %c0_356] : memref<1x128xf32, #tpu.memory_space<vmem>>, vector<1x128xf32>
    %913 = vector.broadcast %912 : vector<1x128xf32> to vector<8x128xf32>
    %914 = arith.addf %911, %913 : vector<8x128xf32>
    %cst_357 = arith.constant 0.000000e+00 : f32
    %915 = vector.broadcast %cst_357 : f32 to vector<8x128xf32>
    %916 = arith.maximumf %914, %915 : vector<8x128xf32>
    %917 = vector.extract_strided_slice %831 {offsets = [0, 0], sizes = [8, 128], strides = [1, 1]} : vector<16x128xf32> to vector<8x128xf32>
    %918 = arith.truncf %835 : vector<8x128xf32> to vector<8x128xbf16>
    %919 = arith.truncf %916 : vector<8x128xf32> to vector<8x128xbf16>
    %920 = tpu.concatenate %918, %919 in 1 : vector<8x128xbf16>, vector<8x128xbf16> -> vector<8x256xbf16>
    %c0_358 = arith.constant 0 : index
    %c0_359 = arith.constant 0 : index
    %921 = vector.load %arg22[%c0_358, %c0_359] : memref<256x384xbf16, #tpu.memory_space<vmem>>, vector<256x384xbf16>
    %cst_360 = arith.constant dense<0.000000e+00> : vector<8x384xf32>
    %922 = tpu.matmul %920, %921, %cst_360 {dimension_numbers = #tpu.dot_dimension_numbers<[1], [0], [0], [1], [0, 0, 1, 1], [], []>} : vector<8x256xbf16>, vector<256x384xbf16>, vector<8x384xf32> -> vector<8x384xf32>
    %c0_361 = arith.constant 0 : index
    %c0_362 = arith.constant 0 : index
    %923 = vector.load %arg23[%c0_361, %c0_362] : memref<1x384xf32, #tpu.memory_space<vmem>>, vector<1x384xf32>
    %924 = vector.broadcast %923 : vector<1x384xf32> to vector<8x384xf32>
    %925 = arith.addf %922, %924 : vector<8x384xf32>
    %926 = vector.extract_strided_slice %848 {offsets = [0, 0], sizes = [8, 384], strides = [1, 1]} : vector<8x768xf32> to vector<8x384xf32>
    %927 = vector.extract_strided_slice %925 {offsets = [0, 0], sizes = [8, 128], strides = [1, 1]} : vector<8x384xf32> to vector<8x128xf32>
    %928 = vector.extract_strided_slice %926 {offsets = [0, 0], sizes = [8, 128], strides = [1, 1]} : vector<8x384xf32> to vector<8x128xf32>
    %929 = arith.addf %927, %928 : vector<8x128xf32>
    %cst_363 = arith.constant 5.000000e-01 : f32
    %930 = vector.broadcast %cst_363 : f32 to vector<8x128xf32>
    %931 = arith.mulf %930, %929 : vector<8x128xf32>
    %932 = math.tanh %931 : vector<8x128xf32>
    %cst_364 = arith.constant 1.000000e+00 : f32
    %933 = vector.broadcast %cst_364 : f32 to vector<8x128xf32>
    %934 = arith.addf %932, %933 : vector<8x128xf32>
    %cst_365 = arith.constant 5.000000e-01 : f32
    %935 = vector.broadcast %cst_365 : f32 to vector<8x128xf32>
    %936 = arith.mulf %935, %934 : vector<8x128xf32>
    %937 = vector.extract_strided_slice %925 {offsets = [0, 128], sizes = [8, 128], strides = [1, 1]} : vector<8x384xf32> to vector<8x128xf32>
    %938 = vector.extract_strided_slice %926 {offsets = [0, 128], sizes = [8, 128], strides = [1, 1]} : vector<8x384xf32> to vector<8x128xf32>
    %939 = arith.addf %937, %938 : vector<8x128xf32>
    %cst_366 = arith.constant 5.000000e-01 : f32
    %940 = vector.broadcast %cst_366 : f32 to vector<8x128xf32>
    %941 = arith.mulf %940, %939 : vector<8x128xf32>
    %942 = math.tanh %941 : vector<8x128xf32>
    %cst_367 = arith.constant 1.000000e+00 : f32
    %943 = vector.broadcast %cst_367 : f32 to vector<8x128xf32>
    %944 = arith.addf %942, %943 : vector<8x128xf32>
    %cst_368 = arith.constant 5.000000e-01 : f32
    %945 = vector.broadcast %cst_368 : f32 to vector<8x128xf32>
    %946 = arith.mulf %945, %944 : vector<8x128xf32>
    %947 = vector.extract_strided_slice %925 {offsets = [0, 256], sizes = [8, 128], strides = [1, 1]} : vector<8x384xf32> to vector<8x128xf32>
    %948 = vector.extract_strided_slice %926 {offsets = [0, 256], sizes = [8, 128], strides = [1, 1]} : vector<8x384xf32> to vector<8x128xf32>
    %949 = arith.mulf %936, %948 : vector<8x128xf32>
    %950 = arith.addf %947, %949 : vector<8x128xf32>
    %951 = math.tanh %950 : vector<8x128xf32>
    %cst_369 = arith.constant 1.000000e+00 : f32
    %952 = vector.broadcast %cst_369 : f32 to vector<8x128xf32>
    %953 = arith.subf %952, %946 : vector<8x128xf32>
    %954 = arith.mulf %953, %951 : vector<8x128xf32>
    %955 = arith.mulf %946, %917 : vector<8x128xf32>
    %956 = arith.addf %954, %955 : vector<8x128xf32>
    %957 = vector.extract_strided_slice %831 {offsets = [8, 0], sizes = [8, 128], strides = [1, 1]} : vector<16x128xf32> to vector<8x128xf32>
    %958 = arith.truncf %956 : vector<8x128xf32> to vector<8x128xbf16>
    %c0_370 = arith.constant 0 : index
    %c0_371 = arith.constant 0 : index
    %959 = vector.load %arg24[%c0_370, %c0_371] : memref<128x384xbf16, #tpu.memory_space<vmem>>, vector<128x384xbf16>
    %cst_372 = arith.constant dense<0.000000e+00> : vector<8x384xf32>
    %960 = tpu.matmul %958, %959, %cst_372 {dimension_numbers = #tpu.dot_dimension_numbers<[1], [0], [0], [1], [0, 0, 1, 1], [], []>} : vector<8x128xbf16>, vector<128x384xbf16>, vector<8x384xf32> -> vector<8x384xf32>
    %c0_373 = arith.constant 0 : index
    %c0_374 = arith.constant 0 : index
    %961 = vector.load %arg25[%c0_373, %c0_374] : memref<1x384xf32, #tpu.memory_space<vmem>>, vector<1x384xf32>
    %962 = vector.broadcast %961 : vector<1x384xf32> to vector<8x384xf32>
    %963 = arith.addf %960, %962 : vector<8x384xf32>
    %964 = vector.extract_strided_slice %848 {offsets = [0, 384], sizes = [8, 384], strides = [1, 1]} : vector<8x768xf32> to vector<8x384xf32>
    %965 = vector.extract_strided_slice %963 {offsets = [0, 0], sizes = [8, 128], strides = [1, 1]} : vector<8x384xf32> to vector<8x128xf32>
    %966 = vector.extract_strided_slice %964 {offsets = [0, 0], sizes = [8, 128], strides = [1, 1]} : vector<8x384xf32> to vector<8x128xf32>
    %967 = arith.addf %965, %966 : vector<8x128xf32>
    %cst_375 = arith.constant 5.000000e-01 : f32
    %968 = vector.broadcast %cst_375 : f32 to vector<8x128xf32>
    %969 = arith.mulf %968, %967 : vector<8x128xf32>
    %970 = math.tanh %969 : vector<8x128xf32>
    %cst_376 = arith.constant 1.000000e+00 : f32
    %971 = vector.broadcast %cst_376 : f32 to vector<8x128xf32>
    %972 = arith.addf %970, %971 : vector<8x128xf32>
    %cst_377 = arith.constant 5.000000e-01 : f32
    %973 = vector.broadcast %cst_377 : f32 to vector<8x128xf32>
    %974 = arith.mulf %973, %972 : vector<8x128xf32>
    %975 = vector.extract_strided_slice %963 {offsets = [0, 128], sizes = [8, 128], strides = [1, 1]} : vector<8x384xf32> to vector<8x128xf32>
    %976 = vector.extract_strided_slice %964 {offsets = [0, 128], sizes = [8, 128], strides = [1, 1]} : vector<8x384xf32> to vector<8x128xf32>
    %977 = arith.addf %975, %976 : vector<8x128xf32>
    %cst_378 = arith.constant 5.000000e-01 : f32
    %978 = vector.broadcast %cst_378 : f32 to vector<8x128xf32>
    %979 = arith.mulf %978, %977 : vector<8x128xf32>
    %980 = math.tanh %979 : vector<8x128xf32>
    %cst_379 = arith.constant 1.000000e+00 : f32
    %981 = vector.broadcast %cst_379 : f32 to vector<8x128xf32>
    %982 = arith.addf %980, %981 : vector<8x128xf32>
    %cst_380 = arith.constant 5.000000e-01 : f32
    %983 = vector.broadcast %cst_380 : f32 to vector<8x128xf32>
    %984 = arith.mulf %983, %982 : vector<8x128xf32>
    %985 = vector.extract_strided_slice %963 {offsets = [0, 256], sizes = [8, 128], strides = [1, 1]} : vector<8x384xf32> to vector<8x128xf32>
    %986 = vector.extract_strided_slice %964 {offsets = [0, 256], sizes = [8, 128], strides = [1, 1]} : vector<8x384xf32> to vector<8x128xf32>
    %987 = arith.mulf %974, %986 : vector<8x128xf32>
    %988 = arith.addf %985, %987 : vector<8x128xf32>
    %989 = math.tanh %988 : vector<8x128xf32>
    %cst_381 = arith.constant 1.000000e+00 : f32
    %990 = vector.broadcast %cst_381 : f32 to vector<8x128xf32>
    %991 = arith.subf %990, %984 : vector<8x128xf32>
    %992 = arith.mulf %991, %989 : vector<8x128xf32>
    %993 = arith.mulf %984, %957 : vector<8x128xf32>
    %994 = arith.addf %992, %993 : vector<8x128xf32>
    %995 = tpu.concatenate %956, %994 in 0 : vector<8x128xf32>, vector<8x128xf32> -> vector<16x128xf32>
    %c6_i32 = arith.constant 6 : i32
    %996 = vector.extract_strided_slice %995 {offsets = [8, 0], sizes = [8, 128], strides = [1, 1]} : vector<16x128xf32> to vector<8x128xf32>
    %997 = arith.truncf %996 : vector<8x128xf32> to vector<8x128xbf16>
    %c0_382 = arith.constant 0 : index
    %c0_383 = arith.constant 0 : index
    %998 = vector.load %arg12[%c0_382, %c0_383] : memref<128x128xbf16, #tpu.memory_space<vmem>>, vector<128x128xbf16>
    %cst_384 = arith.constant dense<0.000000e+00> : vector<8x128xf32>
    %999 = tpu.matmul %997, %998, %cst_384 {dimension_numbers = #tpu.dot_dimension_numbers<[1], [0], [0], [1], [0, 0, 1, 1], [], []>} : vector<8x128xbf16>, vector<128x128xbf16>, vector<8x128xf32> -> vector<8x128xf32>
    %c0_385 = arith.constant 0 : index
    %c0_386 = arith.constant 0 : index
    %1000 = vector.load %arg13[%c0_385, %c0_386] : memref<1x128xf32, #tpu.memory_space<vmem>>, vector<1x128xf32>
    %1001 = vector.broadcast %1000 : vector<1x128xf32> to vector<8x128xf32>
    %1002 = arith.addf %999, %1001 : vector<8x128xf32>
    %cst_387 = arith.constant 0.000000e+00 : f32
    %1003 = vector.broadcast %cst_387 : f32 to vector<8x128xf32>
    %1004 = arith.maximumf %1002, %1003 : vector<8x128xf32>
    %1005 = arith.truncf %1004 : vector<8x128xf32> to vector<8x128xbf16>
    %c0_388 = arith.constant 0 : index
    %c0_389 = arith.constant 0 : index
    %1006 = vector.load %arg8[%c0_388, %c0_389] : memref<128x32xbf16, #tpu.memory_space<vmem>>, vector<128x32xbf16>
    %cst_390 = arith.constant dense<0.000000e+00> : vector<8x32xf32>
    %1007 = tpu.matmul %1005, %1006, %cst_390 {dimension_numbers = #tpu.dot_dimension_numbers<[1], [0], [0], [1], [0, 0, 1, 1], [], []>} : vector<8x128xbf16>, vector<128x32xbf16>, vector<8x32xf32> -> vector<8x32xf32>
    %c0_391 = arith.constant 0 : index
    %c0_392 = arith.constant 0 : index
    %1008 = vector.load %arg9[%c0_391, %c0_392] : memref<1x32xf32, #tpu.memory_space<vmem>>, vector<1x32xf32>
    %1009 = vector.broadcast %1008 : vector<1x32xf32> to vector<8x32xf32>
    %1010 = arith.addf %1007, %1009 : vector<8x32xf32>
    %cst_393 = arith.constant 2.000000e+01 : f32
    %1011 = vector.broadcast %cst_393 : f32 to vector<8x32xf32>
    %1012 = arith.cmpf ogt, %1010, %1011 : vector<8x32xf32>
    %cst_394 = arith.constant 2.000000e+01 : f32
    %1013 = vector.broadcast %cst_394 : f32 to vector<8x32xf32>
    %1014 = arith.minimumf %1010, %1013 : vector<8x32xf32>
    %1015 = math.exp %1014 : vector<8x32xf32>
    %1016 = math.log1p %1015 : vector<8x32xf32>
    %1017 = arith.select %1012, %1010, %1016 : vector<8x32xi1>, vector<8x32xf32>
    %c0_395 = arith.constant 0 : index
    %c0_396 = arith.constant 0 : index
    %1018 = vector.load %arg2[%c0_395, %c0_396] : memref<8x32xf32, #tpu.memory_space<vmem>>, vector<8x32xf32>
    %1019 = arith.mulf %1018, %1017 : vector<8x32xf32>
    %1020 = arith.addf %1019, %1010 : vector<8x32xf32>
    %1021 = arith.truncf %1020 : vector<8x32xf32> to vector<8x32xbf16>
    %c0_397 = arith.constant 0 : index
    %c0_398 = arith.constant 0 : index
    %1022 = vector.load %arg14[%c0_397, %c0_398] : memref<32x128xbf16, #tpu.memory_space<vmem>>, vector<32x128xbf16>
    %cst_399 = arith.constant dense<0.000000e+00> : vector<8x128xf32>
    %1023 = tpu.matmul %1021, %1022, %cst_399 {dimension_numbers = #tpu.dot_dimension_numbers<[1], [0], [0], [1], [0, 0, 1, 1], [], []>} : vector<8x32xbf16>, vector<32x128xbf16>, vector<8x128xf32> -> vector<8x128xf32>
    %c0_400 = arith.constant 0 : index
    %c0_401 = arith.constant 0 : index
    %1024 = vector.load %arg15[%c0_400, %c0_401] : memref<1x128xf32, #tpu.memory_space<vmem>>, vector<1x128xf32>
    %1025 = vector.broadcast %1024 : vector<1x128xf32> to vector<8x128xf32>
    %1026 = arith.addf %1023, %1025 : vector<8x128xf32>
    %cst_402 = arith.constant 0.000000e+00 : f32
    %1027 = vector.broadcast %cst_402 : f32 to vector<8x128xf32>
    %1028 = arith.maximumf %1026, %1027 : vector<8x128xf32>
    %1029 = arith.truncf %1028 : vector<8x128xf32> to vector<8x128xbf16>
    %1030 = arith.truncf %996 : vector<8x128xf32> to vector<8x128xbf16>
    %1031 = tpu.concatenate %1029, %1030 in 1 : vector<8x128xbf16>, vector<8x128xbf16> -> vector<8x256xbf16>
    %c0_403 = arith.constant 0 : index
    %c0_404 = arith.constant 0 : index
    %1032 = vector.load %arg16[%c0_403, %c0_404] : memref<256x128xbf16, #tpu.memory_space<vmem>>, vector<256x128xbf16>
    %cst_405 = arith.constant dense<0.000000e+00> : vector<8x128xf32>
    %1033 = tpu.matmul %1031, %1032, %cst_405 {dimension_numbers = #tpu.dot_dimension_numbers<[1], [0], [0], [1], [0, 0, 1, 1], [], []>} : vector<8x256xbf16>, vector<256x128xbf16>, vector<8x128xf32> -> vector<8x128xf32>
    %c0_406 = arith.constant 0 : index
    %c0_407 = arith.constant 0 : index
    %1034 = vector.load %arg17[%c0_406, %c0_407] : memref<1x128xf32, #tpu.memory_space<vmem>>, vector<1x128xf32>
    %1035 = vector.broadcast %1034 : vector<1x128xf32> to vector<8x128xf32>
    %1036 = arith.addf %1033, %1035 : vector<8x128xf32>
    %cst_408 = arith.constant 0.000000e+00 : f32
    %1037 = vector.broadcast %cst_408 : f32 to vector<8x128xf32>
    %1038 = arith.maximumf %1036, %1037 : vector<8x128xf32>
    %1039 = arith.truncf %1038 : vector<8x128xf32> to vector<8x128xbf16>
    %c0_409 = arith.constant 0 : index
    %c0_410 = arith.constant 0 : index
    %1040 = vector.load %arg18[%c0_409, %c0_410] : memref<128x6xbf16, #tpu.memory_space<vmem>>, vector<128x6xbf16>
    %cst_411 = arith.constant dense<0.000000e+00> : vector<8x6xf32>
    %1041 = tpu.matmul %1039, %1040, %cst_411 {dimension_numbers = #tpu.dot_dimension_numbers<[1], [0], [0], [1], [0, 0, 1, 1], [], []>} : vector<8x128xbf16>, vector<128x6xbf16>, vector<8x6xf32> -> vector<8x6xf32>
    %c0_412 = arith.constant 0 : index
    %c0_413 = arith.constant 0 : index
    %1042 = vector.load %arg19[%c0_412, %c0_413] : memref<1x6xf32, #tpu.memory_space<vmem>>, vector<1x6xf32>
    %1043 = vector.broadcast %1042 : vector<1x6xf32> to vector<8x6xf32>
    %1044 = arith.addf %1041, %1043 : vector<8x6xf32>
    %1045 = arith.truncf %1044 : vector<8x6xf32> to vector<8x6xbf16>
    %c0_414 = arith.constant 0 : index
    %c0_415 = arith.constant 0 : index
    %1046 = vector.load %arg6[%c0_414, %c0_415] : memref<6x128xbf16, #tpu.memory_space<vmem>>, vector<6x128xbf16>
    %cst_416 = arith.constant dense<0.000000e+00> : vector<8x128xf32>
    %1047 = tpu.matmul %1045, %1046, %cst_416 {dimension_numbers = #tpu.dot_dimension_numbers<[1], [0], [0], [1], [0, 0, 1, 1], [], []>} : vector<8x6xbf16>, vector<6x128xbf16>, vector<8x128xf32> -> vector<8x128xf32>
    %c0_417 = arith.constant 0 : index
    %c0_418 = arith.constant 0 : index
    %1048 = vector.load %arg7[%c0_417, %c0_418] : memref<1x128xf32, #tpu.memory_space<vmem>>, vector<1x128xf32>
    %1049 = vector.broadcast %1048 : vector<1x128xf32> to vector<8x128xf32>
    %1050 = arith.addf %1047, %1049 : vector<8x128xf32>
    %1051 = arith.truncf %1050 : vector<8x128xf32> to vector<8x128xbf16>
    %1052 = arith.truncf %1038 : vector<8x128xf32> to vector<8x128xbf16>
    %1053 = tpu.concatenate %1051, %1052 in 1 : vector<8x128xbf16>, vector<8x128xbf16> -> vector<8x256xbf16>
    %c0_419 = arith.constant 0 : index
    %c0_420 = arith.constant 0 : index
    %1054 = vector.load %arg20[%c0_419, %c0_420] : memref<256x1xbf16, #tpu.memory_space<vmem>>, vector<256x1xbf16>
    %cst_421 = arith.constant dense<0.000000e+00> : vector<8x1xf32>
    %1055 = tpu.matmul %1053, %1054, %cst_421 {dimension_numbers = #tpu.dot_dimension_numbers<[1], [0], [0], [1], [0, 0, 1, 1], [], []>} : vector<8x256xbf16>, vector<256x1xbf16>, vector<8x1xf32> -> vector<8x1xf32>
    %c0_422 = arith.constant 0 : index
    %c0_423 = arith.constant 0 : index
    %1056 = vector.load %arg21[%c0_422, %c0_423] : memref<1x1xf32, #tpu.memory_space<vmem>>, vector<1x1xf32>
    %1057 = vector.broadcast %1056 : vector<1x1xf32> to vector<8x1xf32>
    %1058 = arith.addf %1055, %1057 : vector<8x1xf32>
    %c0_424 = arith.constant 0 : index
    %c0_425 = arith.constant 0 : index
    %1059 = vector.load %arg28[%c0_424, %c0_425] : memref<8x6xf32, #tpu.memory_space<vmem>>, vector<8x6xf32>
    tpu.vector_store %arg28[%c0_424, %c0_425], %1044 {strides = array<i32>} : memref<8x6xf32, #tpu.memory_space<vmem>>, vector<8x6xf32>,
    %cst_426 = arith.constant 5.000000e-01 : f32
    %1060 = vector.broadcast %cst_426 : f32 to vector<8x1xf32>
    %1061 = arith.mulf %1060, %1058 : vector<8x1xf32>
    %1062 = math.tanh %1061 : vector<8x1xf32>
    %cst_427 = arith.constant 1.000000e+00 : f32
    %1063 = vector.broadcast %cst_427 : f32 to vector<8x1xf32>
    %1064 = arith.addf %1062, %1063 : vector<8x1xf32>
    %cst_428 = arith.constant 5.000000e-01 : f32
    %1065 = vector.broadcast %cst_428 : f32 to vector<8x1xf32>
    %1066 = arith.mulf %1065, %1064 : vector<8x1xf32>
    %c0_429 = arith.constant 0 : index
    %c0_430 = arith.constant 0 : index
    %1067 = vector.load %arg29[%c0_429, %c0_430] : memref<8x1xf32, #tpu.memory_space<vmem>>, vector<8x1xf32>
    tpu.vector_store %arg29[%c0_429, %c0_430], %1066 {strides = array<i32>} : memref<8x1xf32, #tpu.memory_space<vmem>>, vector<8x1xf32>,
    %cst_431 = arith.constant 2.000000e+01 : f32
    %1068 = vector.broadcast %cst_431 : f32 to vector<8x1xf32>
    %1069 = arith.cmpf ogt, %1058, %1068 : vector<8x1xf32>
    %cst_432 = arith.constant 2.000000e+01 : f32
    %1070 = vector.broadcast %cst_432 : f32 to vector<8x1xf32>
    %1071 = arith.minimumf %1058, %1070 : vector<8x1xf32>
    %1072 = math.exp %1071 : vector<8x1xf32>
    %1073 = math.log1p %1072 : vector<8x1xf32>
    %1074 = arith.select %1069, %1058, %1073 : vector<8x1xi1>, vector<8x1xf32>
    %c0_433 = arith.constant 0 : index
    %c0_434 = arith.constant 0 : index
    %1075 = vector.load %arg30[%c0_433, %c0_434] : memref<8x1xf32, #tpu.memory_space<vmem>>, vector<8x1xf32>
    tpu.vector_store %arg30[%c0_433, %c0_434], %1074 {strides = array<i32>} : memref<8x1xf32, #tpu.memory_space<vmem>>, vector<8x1xf32>,
    %cst_435 = arith.constant 0.000000e+00 : f32
    %1076 = vector.broadcast %cst_435 : f32 to vector<1x1xf32>
    %1077 = vector.shape_cast %906 : vector<16x32xf32> to vector<1x16x32xf32>
    %cst_436 = arith.constant dense<0.000000e+00> : vector<1xf32>
    %1078 = vector.multi_reduction <add>, %1077, %cst_436 [1, 2] : vector<1x16x32xf32> to vector<1xf32>
    %1079 = vector.shape_cast %1078 : vector<1xf32> to vector<1x1x1xf32>
    %1080 = vector.extract %1079[0, 0, 0] : f32 from vector<1x1x1xf32>
    %cst_437 = arith.constant 5.000000e-01 : f32
    %1081 = arith.mulf %cst_437, %1080 : f32
    %1082 = vector.broadcast %1081 : f32 to vector<1x1xf32>
    %1083 = arith.addf %1076, %1082 : vector<1x1xf32>
    %c0_438 = arith.constant 0 : index
    %c0_439 = arith.constant 0 : index
    %1084 = vector.load %arg31[%c0_438, %c0_439] : memref<1x1xf32, #tpu.memory_space<vmem>>, vector<1x1xf32>
    tpu.vector_store %arg31[%c0_438, %c0_439], %1083 {strides = array<i32>} : memref<1x1xf32, #tpu.memory_space<vmem>>, vector<1x1xf32>,
    return
  }
}

</mosaic_0001>

<llo_original>
// kernel: tpu_custom_call.1
$region0: #{tpu_custom_call.1}
  #allocation0 [shape = 'u32[]', space=smem, size = 0x4, offset = 0x4, fixed_abs, tag = 'smem constant byte address 0x4 - core index']
  #allocation1 [shape = 'u32[144,128]{1,0:T(1,128)}', space=vmem, size = 0x12000, scoped, tag = 'internal scratch']
  #allocation2 [shape = 'f32[48,128]{1,0:T(8,128)}', space=vmem, size = 0x6000, scoped, tag = 'scratch operand']
  #allocation3 [shape = 'f32[1,1]{1,0:T(1,128)S(1)}', space=vmem, size = 0x200, scoped, tag = 'scoped memory for tpu_custom_call.1']
  %s0 = inlined_call_operand.smem [shape: u32[32], index: -1, kind: input, shape index: {}]
  %s1 = sld [smem:[%s0]]
  %s2 = scalar_lea.smem %s0, 1
  %s3 = sld [smem:[%s2]]
  %s4 = scalar_lea.smem %s0, 2
  %s5 = sld [smem:[%s4]]
  %s6 = scalar_lea.smem %s0, 3
  %s7 = sld [smem:[%s6]]
  %s8 = scalar_lea.smem %s0, 4
  %s9 = sld [smem:[%s8]]
  %s10 = scalar_lea.smem %s0, 5
  %s11 = sld [smem:[%s10]]
  %s12 = scalar_lea.smem %s0, 6
  %s13 = sld [smem:[%s12]]
  %s14 = scalar_lea.smem %s0, 7
  %s15 = sld [smem:[%s14]]
  %s16 = scalar_lea.smem %s0, 8
  %s17 = sld [smem:[%s16]]
  %s18 = scalar_lea.smem %s0, 9
  %s19 = sld [smem:[%s18]]
  %s20 = scalar_lea.smem %s0, 10
  %s21 = sld [smem:[%s20]]
  %s22 = scalar_lea.smem %s0, 11
  %s23 = sld [smem:[%s22]]
  %s24 = scalar_lea.smem %s0, 12
  %s25 = sld [smem:[%s24]]
  %s26 = scalar_lea.smem %s0, 13
  %s27 = sld [smem:[%s26]]
  %s28 = scalar_lea.smem %s0, 14
  %s29 = sld [smem:[%s28]]
  %s30 = scalar_lea.smem %s0, 15
  %s31 = sld [smem:[%s30]]
  %s32 = scalar_lea.smem %s0, 16
  %s33 = sld [smem:[%s32]]
  %s34 = scalar_lea.smem %s0, 17
  %s35 = sld [smem:[%s34]]
  %s36 = scalar_lea.smem %s0, 18
  %s37 = sld [smem:[%s36]]
  %s38 = scalar_lea.smem %s0, 19
  %s39 = sld [smem:[%s38]]
  %s40 = scalar_lea.smem %s0, 20
  %s41 = sld [smem:[%s40]]
  %s42 = scalar_lea.smem %s0, 21
  %s43 = sld [smem:[%s42]]
  %s44 = scalar_lea.smem %s0, 22
  %s45 = sld [smem:[%s44]]
  %s46 = scalar_lea.smem %s0, 23
  %s47 = sld [smem:[%s46]]
  %s48 = scalar_lea.smem %s0, 24
  %s49 = sld [smem:[%s48]]
  %s50 = scalar_lea.smem %s0, 25
  %s51 = sld [smem:[%s50]]
  %s52 = scalar_lea.smem %s0, 26
  %s53 = sld [smem:[%s52]]
  %s54 = scalar_lea.smem %s0, 27
  %s55 = sld [smem:[%s54]]
  %s56 = scalar_lea.smem %s0, 28
  %s57 = sld [smem:[%s56]]
  %s58 = scalar_lea.smem %s0, 29
  %s59 = sld [smem:[%s58]]
  %s60 = scalar_lea.smem %s0, 30
  %s61 = sld [smem:[%s60]]
  %s62 = scalar_lea.smem %s0, 31
  %s63 = sld [smem:[%s62]]
  %64 = xla_tuple %s57, %s59, %s61, %s63
  %s65 = sld [smem:[#allocation0]]
  $region218: #{tpu_custom_call.1} parent=0
    _
  %s67 = ssub.s32 1, %s65
  %s68 = scalar_select 0, %s67, %s65
  %v69 = vstv %s43
  %70 = vst [vmem:[#allocation3] sm:$0x1] %v69
  $region1: #{tpu_custom_call.1} parent=0
    #allocation4 [shape = 'u8[24576]{0}', space=vmem, size = 0x6000, scoped, tag = 'input window, operand 1, single buffered']
    #allocation5 [shape = 's32[1]{0}', space=sflag, size = 0x4, scoped, tag = 'scoped memory for tpu_custom_call.1']
    #allocation6 [shape = 's32[1]{0}', space=sflag, size = 0x4, scoped, tag = 'scoped memory for tpu_custom_call.1']
    #allocation7 [shape = 'u8[4096]{0}', space=vmem, size = 0x1000, scoped, tag = 'input window, operand 2, single buffered']
    #allocation8 [shape = 's32[1]{0}', space=sflag, size = 0x4, scoped, tag = 'scoped memory for tpu_custom_call.1']
    #allocation9 [shape = 'u8[2048]{0}', space=vmem, size = 0x800, scoped, tag = 'input window, operand 4, single buffered']
    #allocation10 [shape = 'u8[2048]{0}', space=vmem, size = 0x800, scoped, tag = 'input window, operand 6, single buffered']
    #allocation11 [shape = 's32[1]{0}', space=sflag, size = 0x4, scoped, tag = 'scoped memory for tpu_custom_call.1']
    #allocation12 [shape = 'u8[512]{0}', space=vmem, size = 0x400, scoped, tag = 'input window, operand 7, single buffered']
    #allocation13 [shape = 'u8[512]{0}', space=vmem, size = 0x400, scoped, tag = 'input window, operand 9, single buffered']
    #allocation14 [shape = 's32[1]{0}', space=sflag, size = 0x4, scoped, tag = 'scoped memory for tpu_custom_call.1']
    #allocation15 [shape = 'u8[65536]{0}', space=vmem, size = 0x10000, scoped, tag = 'input window, operand 10, single buffered']
    #allocation16 [shape = 'u8[512]{0}', space=vmem, size = 0x400, scoped, tag = 'input window, operand 11, single buffered']
    #allocation17 [shape = 's32[1]{0}', space=sflag, size = 0x4, scoped, tag = 'scoped memory for tpu_custom_call.1']
    #allocation18 [shape = 'u8[32768]{0}', space=vmem, size = 0x8000, scoped, tag = 'input window, operand 12, single buffered']
    #allocation19 [shape = 'u8[512]{0}', space=vmem, size = 0x400, scoped, tag = 'input window, operand 13, single buffered']
    #allocation20 [shape = 's32[1]{0}', space=sflag, size = 0x4, scoped, tag = 'scoped memory for tpu_custom_call.1']
    #allocation21 [shape = 'u8[512]{0}', space=vmem, size = 0x400, scoped, tag = 'input window, operand 15, single buffered']
    #allocation22 [shape = 'u8[65536]{0}', space=vmem, size = 0x10000, scoped, tag = 'input window, operand 16, single buffered']
    #allocation23 [shape = 's32[1]{0}', space=sflag, size = 0x4, scoped, tag = 'scoped memory for tpu_custom_call.1']
    #allocation24 [shape = 'u8[512]{0}', space=vmem, size = 0x400, scoped, tag = 'input window, operand 17, single buffered']
    #allocation25 [shape = 'u8[512]{0}', space=vmem, size = 0x400, scoped, tag = 'input window, operand 19, single buffered']
    #allocation26 [shape = 's32[1]{0}', space=sflag, size = 0x4, scoped, tag = 'scoped memory for tpu_custom_call.1']
    #allocation27 [shape = 'u8[1536]{0}', space=vmem, size = 0x800, scoped, tag = 'input window, operand 23, single buffered']
    #allocation28 [shape = 'u8[98304]{0}', space=vmem, size = 0x18000, scoped, tag = 'input window, operand 24, single buffered']
    #allocation29 [shape = 's32[1]{0}', space=sflag, size = 0x4, scoped, tag = 'scoped memory for tpu_custom_call.1']
    #allocation30 [shape = 'u8[1536]{0}', space=vmem, size = 0x800, scoped, tag = 'input window, operand 25, single buffered']
    #allocation31 [shape = 'u8[393216]{0}', space=vmem, size = 0x60000, scoped, tag = 'input window, operand 26, single buffered']
    #allocation32 [shape = 's32[1]{0}', space=sflag, size = 0x4, scoped, tag = 'scoped memory for tpu_custom_call.1']
    #allocation33 [shape = 'u8[4096]{0}', space=vmem, size = 0x1000, scoped, tag = 'output window, operand 0, single buffered']
    #allocation34 [shape = 'u8[512]{0}', space=vmem, size = 0x400, scoped, tag = 'output window, operand 3, single buffered']
    #allocation35 [shape = 's32[1]{0}', space=sflag, size = 0x4, scoped, tag = 'scoped memory for tpu_custom_call.1']
    %71 = vsyncpa [#allocation5], 0
    %72 = vsyncpa [#allocation8], 0
    %73 = vsyncpa [#allocation11], 0
    %74 = vsyncpa [#allocation14], 0
    %75 = vsyncpa [#allocation17], 0
    %76 = vsyncpa [#allocation20], 0
    %77 = vsyncpa [#allocation23], 0
    %78 = vsyncpa [#allocation26], 0
    %79 = vsyncpa [#allocation29], 0
    %80 = vsyncpa [#allocation32], 0
    %81 = vsyncpa [#allocation6], 0
    %82 = vsyncpa [#allocation35], 0
    // Predicated region
    $region2: #{tpu_custom_call.1} parent=1 // pred_check
      _
    $region3: #{tpu_custom_call.1} parent=1 // pred_check_branch
      %84 = sbr.rel (0) target = $region5
    $region4: #{tpu_custom_call.1} parent=1 // pred_region
      _
    $region5: #{tpu_custom_call.1} parent=1 // pred_fallthru
      _
    // Predicated region
    $region6: #{tpu_custom_call.1} parent=1 // pred_check
      _
    $region7: #{tpu_custom_call.1} parent=1 // pred_check_branch
      %86 = sbr.rel (0) target = $region9
    $region8: #{tpu_custom_call.1} parent=1 // pred_region
      %s88 = ssub.s32 768, 768
      %89 = vsyncadd [#allocation5], %s88
      %s90 = sshll.u32 [#allocation4], 4
      %s91 = int_to_ptr.vmem [resolvable:$true] %s90
      %96 = dma.hbm_to_vmem [thread:$0]  %s3, 768, %s91, [#allocation5], 128, 128, 8
    $region9: #{tpu_custom_call.1} parent=1 // pred_fallthru
      _
    // Predicated region
    $region10: #{tpu_custom_call.1} parent=1 // pred_check
      _
    $region11: #{tpu_custom_call.1} parent=1 // pred_check_branch
      %98 = sbr.rel (0) target = $region13
    $region12: #{tpu_custom_call.1} parent=1 // pred_region
      %s100 = ssub.s32 128, 128
      %101 = vsyncadd [#allocation8], %s100
      %s103 = sshll.u32 [#allocation7], 4
      %s104 = int_to_ptr.vmem [resolvable:$true] %s103
      %106 = dma.hbm_to_vmem [thread:$0]  %s5, 128, %s104, [#allocation8]
    $region13: #{tpu_custom_call.1} parent=1 // pred_fallthru
      _
    // Predicated region
    $region14: #{tpu_custom_call.1} parent=1 // pred_check
      _
    $region15: #{tpu_custom_call.1} parent=1 // pred_check_branch
      %108 = sbr.rel (0) target = $region17
    $region16: #{tpu_custom_call.1} parent=1 // pred_region
      _
    $region17: #{tpu_custom_call.1} parent=1 // pred_fallthru
      _
    // Predicated region
    $region18: #{tpu_custom_call.1} parent=1 // pred_check
      _
    $region19: #{tpu_custom_call.1} parent=1 // pred_check_branch
      %110 = sbr.rel (0) target = $region21
    $region20: #{tpu_custom_call.1} parent=1 // pred_region
      %s112 = ssub.s32 64, 64
      %113 = vsyncadd [#allocation8], %s112
      %s115 = sshll.u32 [#allocation9], 4
      %s116 = int_to_ptr.vmem [resolvable:$true] %s115
      %118 = dma.hbm_to_vmem [thread:$0]  %s9, 64, %s116, [#allocation8]
    $region21: #{tpu_custom_call.1} parent=1 // pred_fallthru
      _
    // Predicated region
    $region22: #{tpu_custom_call.1} parent=1 // pred_check
      _
    $region23: #{tpu_custom_call.1} parent=1 // pred_check_branch
      %120 = sbr.rel (0) target = $region25
    $region24: #{tpu_custom_call.1} parent=1 // pred_region
      _
    $region25: #{tpu_custom_call.1} parent=1 // pred_fallthru
      _
    // Predicated region
    $region26: #{tpu_custom_call.1} parent=1 // pred_check
      _
    $region27: #{tpu_custom_call.1} parent=1 // pred_check_branch
      %122 = sbr.rel (0) target = $region29
    $region28: #{tpu_custom_call.1} parent=1 // pred_region
      %s124 = ssub.s32 64, 64
      %125 = vsyncadd [#allocation11], %s124
      %s127 = sshll.u32 [#allocation10], 4
      %s128 = int_to_ptr.vmem [resolvable:$true] %s127
      %130 = dma.hbm_to_vmem [thread:$0]  %s13, 64, %s128, [#allocation11]
    $region29: #{tpu_custom_call.1} parent=1 // pred_fallthru
      _
    // Predicated region
    $region30: #{tpu_custom_call.1} parent=1 // pred_check
      _
    $region31: #{tpu_custom_call.1} parent=1 // pred_check_branch
      %132 = sbr.rel (0) target = $region33
    $region32: #{tpu_custom_call.1} parent=1 // pred_region
      %s134 = ssub.s32 16, 16
      %135 = vsyncadd [#allocation11], %s134
      %s137 = sshll.u32 [#allocation12], 4
      %s138 = int_to_ptr.vmem [resolvable:$true] %s137
      %140 = dma.hbm_to_vmem [thread:$0]  %s15, 16, %s138, [#allocation11]
    $region33: #{tpu_custom_call.1} parent=1 // pred_fallthru
      _
    // Predicated region
    $region34: #{tpu_custom_call.1} parent=1 // pred_check
      _
    $region35: #{tpu_custom_call.1} parent=1 // pred_check_branch
      %142 = sbr.rel (0) target = $region37
    $region36: #{tpu_custom_call.1} parent=1 // pred_region
      _
    $region37: #{tpu_custom_call.1} parent=1 // pred_fallthru
      _
    // Predicated region
    $region38: #{tpu_custom_call.1} parent=1 // pred_check
      _
    $region39: #{tpu_custom_call.1} parent=1 // pred_check_branch
      %144 = sbr.rel (0) target = $region41
    $region40: #{tpu_custom_call.1} parent=1 // pred_region
      %s146 = ssub.s32 16, 16
      %147 = vsyncadd [#allocation14], %s146
      %s149 = sshll.u32 [#allocation13], 4
      %s150 = int_to_ptr.vmem [resolvable:$true] %s149
      %152 = dma.hbm_to_vmem [thread:$0]  %s19, 16, %s150, [#allocation14]
    $region41: #{tpu_custom_call.1} parent=1 // pred_fallthru
      _
    // Predicated region
    $region42: #{tpu_custom_call.1} parent=1 // pred_check
      _
    $region43: #{tpu_custom_call.1} parent=1 // pred_check_branch
      %154 = sbr.rel (0) target = $region45
    $region44: #{tpu_custom_call.1} parent=1 // pred_region
      %s156 = ssub.s32 2048, 2048
      %157 = vsyncadd [#allocation14], %s156
      %s158 = sshll.u32 [#allocation15], 4
      %s159 = int_to_ptr.vmem [resolvable:$true] %s158
      %164 = dma.hbm_to_vmem [thread:$0]  %s21, 2048, %s159, [#allocation14], 64, 64, 4
    $region45: #{tpu_custom_call.1} parent=1 // pred_fallthru
      _
    // Predicated region
    $region46: #{tpu_custom_call.1} parent=1 // pred_check
      _
    $region47: #{tpu_custom_call.1} parent=1 // pred_check_branch
      %166 = sbr.rel (0) target = $region49
    $region48: #{tpu_custom_call.1} parent=1 // pred_region
      %s168 = ssub.s32 16, 16
      %169 = vsyncadd [#allocation17], %s168
      %s171 = sshll.u32 [#allocation16], 4
      %s172 = int_to_ptr.vmem [resolvable:$true] %s171
      %174 = dma.hbm_to_vmem [thread:$0]  %s23, 16, %s172, [#allocation17]
    $region49: #{tpu_custom_call.1} parent=1 // pred_fallthru
      _
    // Predicated region
    $region50: #{tpu_custom_call.1} parent=1 // pred_check
      _
    $region51: #{tpu_custom_call.1} parent=1 // pred_check_branch
      %176 = sbr.rel (0) target = $region53
    $region52: #{tpu_custom_call.1} parent=1 // pred_region
      %s178 = ssub.s32 1024, 1024
      %179 = vsyncadd [#allocation17], %s178
      %s180 = sshll.u32 [#allocation18], 4
      %s181 = int_to_ptr.vmem [resolvable:$true] %s180
      %186 = dma.hbm_to_vmem [thread:$0]  %s25, 1024, %s181, [#allocation17], 64, 64, 4
    $region53: #{tpu_custom_call.1} parent=1 // pred_fallthru
      _
    // Predicated region
    $region54: #{tpu_custom_call.1} parent=1 // pred_check
      _
    $region55: #{tpu_custom_call.1} parent=1 // pred_check_branch
      %188 = sbr.rel (0) target = $region57
    $region56: #{tpu_custom_call.1} parent=1 // pred_region
      %s190 = ssub.s32 16, 16
      %191 = vsyncadd [#allocation20], %s190
      %s193 = sshll.u32 [#allocation19], 4
      %s194 = int_to_ptr.vmem [resolvable:$true] %s193
      %196 = dma.hbm_to_vmem [thread:$0]  %s27, 16, %s194, [#allocation20]
    $region57: #{tpu_custom_call.1} parent=1 // pred_fallthru
      _
    // Predicated region
    $region58: #{tpu_custom_call.1} parent=1 // pred_check
      _
    $region59: #{tpu_custom_call.1} parent=1 // pred_check_branch
      %198 = sbr.rel (0) target = $region61
    $region60: #{tpu_custom_call.1} parent=1 // pred_region
      _
    $region61: #{tpu_custom_call.1} parent=1 // pred_fallthru
      _
    // Predicated region
    $region62: #{tpu_custom_call.1} parent=1 // pred_check
      _
    $region63: #{tpu_custom_call.1} parent=1 // pred_check_branch
      %200 = sbr.rel (0) target = $region65
    $region64: #{tpu_custom_call.1} parent=1 // pred_region
      %s202 = ssub.s32 16, 16
      %203 = vsyncadd [#allocation20], %s202
      %s205 = sshll.u32 [#allocation21], 4
      %s206 = int_to_ptr.vmem [resolvable:$true] %s205
      %208 = dma.hbm_to_vmem [thread:$0]  %s31, 16, %s206, [#allocation20]
    $region65: #{tpu_custom_call.1} parent=1 // pred_fallthru
      _
    // Predicated region
    $region66: #{tpu_custom_call.1} parent=1 // pred_check
      _
    $region67: #{tpu_custom_call.1} parent=1 // pred_check_branch
      %210 = sbr.rel (0) target = $region69
    $region68: #{tpu_custom_call.1} parent=1 // pred_region
      %s212 = ssub.s32 2048, 2048
      %213 = vsyncadd [#allocation23], %s212
      %s214 = sshll.u32 [#allocation22], 4
      %s215 = int_to_ptr.vmem [resolvable:$true] %s214
      %220 = dma.hbm_to_vmem [thread:$0]  %s33, 2048, %s215, [#allocation23], 64, 64, 4
    $region69: #{tpu_custom_call.1} parent=1 // pred_fallthru
      _
    // Predicated region
    $region70: #{tpu_custom_call.1} parent=1 // pred_check
      _
    $region71: #{tpu_custom_call.1} parent=1 // pred_check_branch
      %222 = sbr.rel (0) target = $region73
    $region72: #{tpu_custom_call.1} parent=1 // pred_region
      %s224 = ssub.s32 16, 16
      %225 = vsyncadd [#allocation23], %s224
      %s227 = sshll.u32 [#allocation24], 4
      %s228 = int_to_ptr.vmem [resolvable:$true] %s227
      %230 = dma.hbm_to_vmem [thread:$0]  %s35, 16, %s228, [#allocation23]
    $region73: #{tpu_custom_call.1} parent=1 // pred_fallthru
      _
    // Predicated region
    $region74: #{tpu_custom_call.1} parent=1 // pred_check
      _
    $region75: #{tpu_custom_call.1} parent=1 // pred_check_branch
      %232 = sbr.rel (0) target = $region77
    $region76: #{tpu_custom_call.1} parent=1 // pred_region
      _
    $region77: #{tpu_custom_call.1} parent=1 // pred_fallthru
      _
    // Predicated region
    $region78: #{tpu_custom_call.1} parent=1 // pred_check
      _
    $region79: #{tpu_custom_call.1} parent=1 // pred_check_branch
      %234 = sbr.rel (0) target = $region81
    $region80: #{tpu_custom_call.1} parent=1 // pred_region
      %s236 = ssub.s32 16, 16
      %237 = vsyncadd [#allocation26], %s236
      %s239 = sshll.u32 [#allocation25], 4
      %s240 = int_to_ptr.vmem [resolvable:$true] %s239
      %242 = dma.hbm_to_vmem [thread:$0]  %s39, 16, %s240, [#allocation26]
    $region81: #{tpu_custom_call.1} parent=1 // pred_fallthru
      _
    // Predicated region
    $region82: #{tpu_custom_call.1} parent=1 // pred_check
      _
    $region83: #{tpu_custom_call.1} parent=1 // pred_check_branch
      %244 = sbr.rel (0) target = $region85
    $region84: #{tpu_custom_call.1} parent=1 // pred_region
      _
    $region85: #{tpu_custom_call.1} parent=1 // pred_fallthru
      _
    // Predicated region
    $region86: #{tpu_custom_call.1} parent=1 // pred_check
      _
    $region87: #{tpu_custom_call.1} parent=1 // pred_check_branch
      %246 = sbr.rel (0) target = $region89
    $region88: #{tpu_custom_call.1} parent=1 // pred_region
      _
    $region89: #{tpu_custom_call.1} parent=1 // pred_fallthru
      _
    // Predicated region
    $region90: #{tpu_custom_call.1} parent=1 // pred_check
      _
    $region91: #{tpu_custom_call.1} parent=1 // pred_check_branch
      %248 = sbr.rel (0) target = $region93
    $region92: #{tpu_custom_call.1} parent=1 // pred_region
      _
    $region93: #{tpu_custom_call.1} parent=1 // pred_fallthru
      _
    // Predicated region
    $region94: #{tpu_custom_call.1} parent=1 // pred_check
      _
    $region95: #{tpu_custom_call.1} parent=1 // pred_check_branch
      %250 = sbr.rel (0) target = $region97
    $region96: #{tpu_custom_call.1} parent=1 // pred_region
      %s252 = ssub.s32 48, 48
      %253 = vsyncadd [#allocation26], %s252
      %s255 = sshll.u32 [#allocation27], 4
      %s256 = int_to_ptr.vmem [resolvable:$true] %s255
      %258 = dma.hbm_to_vmem [thread:$0]  %s47, 48, %s256, [#allocation26]
    $region97: #{tpu_custom_call.1} parent=1 // pred_fallthru
      _
    // Predicated region
    $region98: #{tpu_custom_call.1} parent=1 // pred_check
      _
    $region99: #{tpu_custom_call.1} parent=1 // pred_check_branch
      %260 = sbr.rel (0) target = $region101
    $region100: #{tpu_custom_call.1} parent=1 // pred_region
      %s262 = ssub.s32 3072, 3072
      %263 = vsyncadd [#allocation29], %s262
      %s264 = sshll.u32 [#allocation28], 4
      %s265 = int_to_ptr.vmem [resolvable:$true] %s264
      %270 = dma.hbm_to_vmem [thread:$0]  %s49, 3072, %s265, [#allocation29], 192, 192, 12
    $region101: #{tpu_custom_call.1} parent=1 // pred_fallthru
      _
    // Predicated region
    $region102: #{tpu_custom_call.1} parent=1 // pred_check
      _
    $region103: #{tpu_custom_call.1} parent=1 // pred_check_branch
      %272 = sbr.rel (0) target = $region105
    $region104: #{tpu_custom_call.1} parent=1 // pred_region
      %s274 = ssub.s32 48, 48
      %275 = vsyncadd [#allocation29], %s274
      %s277 = sshll.u32 [#allocation30], 4
      %s278 = int_to_ptr.vmem [resolvable:$true] %s277
      %280 = dma.hbm_to_vmem [thread:$0]  %s51, 48, %s278, [#allocation29]
    $region105: #{tpu_custom_call.1} parent=1 // pred_fallthru
      _
    // Predicated region
    $region106: #{tpu_custom_call.1} parent=1 // pred_check
      _
    $region107: #{tpu_custom_call.1} parent=1 // pred_check_branch
      %282 = sbr.rel (0) target = $region109
    $region108: #{tpu_custom_call.1} parent=1 // pred_region
      %s284 = ssub.s32 12288, 12288
      %285 = vsyncadd [#allocation32], %s284
      %s286 = sshll.u32 [#allocation31], 4
      %s287 = int_to_ptr.vmem [resolvable:$true] %s286
      %292 = dma.hbm_to_vmem [thread:$0]  %s53, 12288, %s287, [#allocation32], 384, 384, 24
    $region109: #{tpu_custom_call.1} parent=1 // pred_fallthru
      _
    // Predicated region
    $region110: #{tpu_custom_call.1} parent=1 // pred_check
      _
    $region111: #{tpu_custom_call.1} parent=1 // pred_check_branch
      %294 = sbr.rel (0) target = $region113
    $region112: #{tpu_custom_call.1} parent=1 // pred_region
      _
    $region113: #{tpu_custom_call.1} parent=1 // pred_fallthru
      _
    // Predicated region
    $region114: #{tpu_custom_call.1} parent=1 // pred_check
      _
    $region115: #{tpu_custom_call.1} parent=1 // pred_check_branch
      %296 = sbr.rel (0) target = $region117
    $region116: #{tpu_custom_call.1} parent=1 // pred_region
      %297 = dma.done [#allocation5], 768
    $region117: #{tpu_custom_call.1} parent=1 // pred_fallthru
      _
    // Predicated region
    $region118: #{tpu_custom_call.1} parent=1 // pred_check
      _
    $region119: #{tpu_custom_call.1} parent=1 // pred_check_branch
      %299 = sbr.rel (0) target = $region121
    $region120: #{tpu_custom_call.1} parent=1 // pred_region
      %300 = dma.done [#allocation8], 128
    $region121: #{tpu_custom_call.1} parent=1 // pred_fallthru
      _
    // Predicated region
    $region122: #{tpu_custom_call.1} parent=1 // pred_check
      _
    $region123: #{tpu_custom_call.1} parent=1 // pred_check_branch
      %302 = sbr.rel (0) target = $region125
    $region124: #{tpu_custom_call.1} parent=1 // pred_region
      %303 = dma.done [#allocation8], 64
    $region125: #{tpu_custom_call.1} parent=1 // pred_fallthru
      _
    // Predicated region
    $region126: #{tpu_custom_call.1} parent=1 // pred_check
      _
    $region127: #{tpu_custom_call.1} parent=1 // pred_check_branch
      %305 = sbr.rel (0) target = $region129
    $region128: #{tpu_custom_call.1} parent=1 // pred_region
      %306 = dma.done [#allocation11], 64
    $region129: #{tpu_custom_call.1} parent=1 // pred_fallthru
      _
    // Predicated region
    $region130: #{tpu_custom_call.1} parent=1 // pred_check
      _
    $region131: #{tpu_custom_call.1} parent=1 // pred_check_branch
      %308 = sbr.rel (0) target = $region133
    $region132: #{tpu_custom_call.1} parent=1 // pred_region
      %309 = dma.done [#allocation11], 16
    $region133: #{tpu_custom_call.1} parent=1 // pred_fallthru
      _
    // Predicated region
    $region134: #{tpu_custom_call.1} parent=1 // pred_check
      _
    $region135: #{tpu_custom_call.1} parent=1 // pred_check_branch
      %311 = sbr.rel (0) target = $region137
    $region136: #{tpu_custom_call.1} parent=1 // pred_region
      %312 = dma.done [#allocation14], 16
    $region137: #{tpu_custom_call.1} parent=1 // pred_fallthru
      _
    // Predicated region
    $region138: #{tpu_custom_call.1} parent=1 // pred_check
      _
    $region139: #{tpu_custom_call.1} parent=1 // pred_check_branch
      %314 = sbr.rel (0) target = $region141
    $region140: #{tpu_custom_call.1} parent=1 // pred_region
      %315 = dma.done [#allocation14], 2048
    $region141: #{tpu_custom_call.1} parent=1 // pred_fallthru
      _
    // Predicated region
    $region142: #{tpu_custom_call.1} parent=1 // pred_check
      _
    $region143: #{tpu_custom_call.1} parent=1 // pred_check_branch
      %317 = sbr.rel (0) target = $region145
    $region144: #{tpu_custom_call.1} parent=1 // pred_region
      %318 = dma.done [#allocation17], 16
    $region145: #{tpu_custom_call.1} parent=1 // pred_fallthru
      _
    // Predicated region
    $region146: #{tpu_custom_call.1} parent=1 // pred_check
      _
    $region147: #{tpu_custom_call.1} parent=1 // pred_check_branch
      %320 = sbr.rel (0) target = $region149
    $region148: #{tpu_custom_call.1} parent=1 // pred_region
      %321 = dma.done [#allocation17], 1024
    $region149: #{tpu_custom_call.1} parent=1 // pred_fallthru
      _
    // Predicated region
    $region150: #{tpu_custom_call.1} parent=1 // pred_check
      _
    $region151: #{tpu_custom_call.1} parent=1 // pred_check_branch
      %323 = sbr.rel (0) target = $region153
    $region152: #{tpu_custom_call.1} parent=1 // pred_region
      %324 = dma.done [#allocation20], 16
    $region153: #{tpu_custom_call.1} parent=1 // pred_fallthru
      _
    // Predicated region
    $region154: #{tpu_custom_call.1} parent=1 // pred_check
      _
    $region155: #{tpu_custom_call.1} parent=1 // pred_check_branch
      %326 = sbr.rel (0) target = $region157
    $region156: #{tpu_custom_call.1} parent=1 // pred_region
      %327 = dma.done [#allocation20], 16
    $region157: #{tpu_custom_call.1} parent=1 // pred_fallthru
      _
    // Predicated region
    $region158: #{tpu_custom_call.1} parent=1 // pred_check
      _
    $region159: #{tpu_custom_call.1} parent=1 // pred_check_branch
      %329 = sbr.rel (0) target = $region161
    $region160: #{tpu_custom_call.1} parent=1 // pred_region
      %330 = dma.done [#allocation23], 2048
    $region161: #{tpu_custom_call.1} parent=1 // pred_fallthru
      _
    // Predicated region
    $region162: #{tpu_custom_call.1} parent=1 // pred_check
      _
    $region163: #{tpu_custom_call.1} parent=1 // pred_check_branch
      %332 = sbr.rel (0) target = $region165
    $region164: #{tpu_custom_call.1} parent=1 // pred_region
      %333 = dma.done [#allocation23], 16
    $region165: #{tpu_custom_call.1} parent=1 // pred_fallthru
      _
    // Predicated region
    $region166: #{tpu_custom_call.1} parent=1 // pred_check
      _
    $region167: #{tpu_custom_call.1} parent=1 // pred_check_branch
      %335 = sbr.rel (0) target = $region169
    $region168: #{tpu_custom_call.1} parent=1 // pred_region
      %336 = dma.done [#allocation26], 16
    $region169: #{tpu_custom_call.1} parent=1 // pred_fallthru
      _
    // Predicated region
    $region170: #{tpu_custom_call.1} parent=1 // pred_check
      _
    $region171: #{tpu_custom_call.1} parent=1 // pred_check_branch
      %338 = sbr.rel (0) target = $region173
    $region172: #{tpu_custom_call.1} parent=1 // pred_region
      %339 = dma.done [#allocation26], 48
    $region173: #{tpu_custom_call.1} parent=1 // pred_fallthru
      _
    // Predicated region
    $region174: #{tpu_custom_call.1} parent=1 // pred_check
      _
    $region175: #{tpu_custom_call.1} parent=1 // pred_check_branch
      %341 = sbr.rel (0) target = $region177
    $region176: #{tpu_custom_call.1} parent=1 // pred_region
      %342 = dma.done [#allocation29], 3072
    $region177: #{tpu_custom_call.1} parent=1 // pred_fallthru
      _
    // Predicated region
    $region178: #{tpu_custom_call.1} parent=1 // pred_check
      _
    $region179: #{tpu_custom_call.1} parent=1 // pred_check_branch
      %344 = sbr.rel (0) target = $region181
    $region180: #{tpu_custom_call.1} parent=1 // pred_region
      %345 = dma.done [#allocation29], 48
    $region181: #{tpu_custom_call.1} parent=1 // pred_fallthru
      _
    // Predicated region
    $region182: #{tpu_custom_call.1} parent=1 // pred_check
      _
    $region183: #{tpu_custom_call.1} parent=1 // pred_check_branch
      %347 = sbr.rel (0) target = $region185
    $region184: #{tpu_custom_call.1} parent=1 // pred_region
      %348 = dma.done [#allocation32], 12288
    $region185: #{tpu_custom_call.1} parent=1 // pred_fallthru
      _
    %v350 = vld [vmem:[%s1] sm:$0xff]
    %v351 = vld [vmem:[%s1 + $0x8] sm:$0xff]
    %v352 = vld [vmem:[%s1 + $0x10] sm:$0xff]
    %v353 = vld [vmem:[%s1 + $0x18] sm:$0xff]
    %v354 = vld [vmem:[%s1 + $0x20] sm:$0xff]
    %v355 = vld [vmem:[%s1 + $0x28] sm:$0xff]
    %v356 = vpack.c.bf16 %v351, %v350
    %v357 = vpack.c.bf16 %v353, %v352
    %v358 = vpack.c.bf16 %v355, %v354
    %v359 = vld [vmem:[#allocation9] sm:$0xf]
    %v360 = vld [vmem:[%s11] sm:$0x1]
    %v362 = vlaneseq
    %v363 = vshrl.u32 %v362, 7
    %v364 = vsub.s32 0, %v363
    %v365 = vrot.slane %v360, %v364
    %vm367 = vcmask 56320
    %v369 = vsel %vm367, %v356, 0
    %v372 = vsel %vm367, %v357, 0
    %v375 = vsel %vm367, %v358, 0
    %vm377 = vcmask 1042432
    %vm378 = vcmask 1043456
    %v379 = vsel %vm377, 4294967295, 65535
    %v380 = vsel %vm378, %v379, 0
    %v382 = vand.u32 %v359, %v380
    %384 = vmatprep.subr.bf16.mxu0 0
    %385 = vmatpush1.bf16.msra.mxu0 %v382
    %386 = vmatprep.subr.bf16.mxu0 0
    %387 = vmatpush1.bf16.msra.mxu0 0
    %388 = vmatprep.subr.bf16.mxu0 0
    %389 = vmatpush1.bf16.msra.mxu0 0
    %390 = vmatprep.subr.bf16.mxu0 0
    %391 = vmatpush1.bf16.msra.mxu0 0
    %392 = vmatprep.subr.bf16.mxu0 0
    %393 = vmatpush1.bf16.msra.mxu0 0
    %394 = vmatprep.subr.bf16.mxu0 0
    %395 = vmatpush1.bf16.msra.mxu0 0
    %396 = vmatprep.subr.bf16.mxu0 0
    %397 = vmatpush1.bf16.msra.mxu0 0
    %398 = vmatprep.subr.bf16.mxu0 0
    %399 = vmatpush1.bf16.msra.mxu0 0
    %400 = vmatprep.subr.bf16.mxu0 0
    %401 = vmatpush1.bf16.msra.mxu0 0
    %402 = vmatprep.subr.bf16.mxu0 0
    %403 = vmatpush1.bf16.msra.mxu0 0
    %404 = vmatprep.subr.bf16.mxu0 0
    %405 = vmatpush1.bf16.msra.mxu0 0
    %406 = vmatprep.subr.bf16.mxu0 0
    %407 = vmatpush1.bf16.msra.mxu0 0
    %408 = vmatprep.subr.bf16.mxu0 0
    %409 = vmatpush1.bf16.msra.mxu0 0
    %410 = vmatprep.subr.bf16.mxu0 0
    %411 = vmatpush1.bf16.msra.mxu0 0
    %412 = vmatprep.subr.bf16.mxu0 0
    %413 = vmatpush1.bf16.msra.mxu0 0
    %414 = vmatprep.subr.bf16.mxu0 0
    %415 = vmatpush1.bf16.msra.mxu0 0
    %416 = vmatprep.mubr.bf16.mxu0 0
    %417 = vmatmul.mubr.bf16.gmra.mrb[0].mxu0 %v369
    %v418 = vpop.f32.mrb[0].mxu0
    %v419 = vadd.f32 %v365, %v418
    %v420 = vpop.f32.mrb[0].mxu0
    %v421 = vpop.f32.mrb[0].mxu0
    %v422 = vadd.f32 %v365, %v421
    %v423 = vpop.f32.mrb[0].mxu0
    %424 = vmatprep.mubr.bf16.mxu0 0
    %425 = vmatmul.mubr.bf16.gmra.mrb[0].mxu0 %v372
    %v426 = vpop.f32.mrb[0].mxu0
    %v427 = vadd.f32 %v365, %v426
    %v428 = vpop.f32.mrb[0].mxu0
    %v429 = vpop.f32.mrb[0].mxu0
    %v430 = vadd.f32 %v365, %v429
    %v431 = vpop.f32.mrb[0].mxu0
    %432 = vmatprep.mubr.bf16.mxu0 0
    %433 = vmatmul.mubr.bf16.gmra.mrb[0].mxu0 %v375
    %v434 = vpop.f32.mrb[0].mxu0
    %v435 = vadd.f32 %v365, %v434
    %v436 = vpop.f32.mrb[0].mxu0
    %v437 = vpop.f32.mrb[0].mxu0
    %v438 = vadd.f32 %v365, %v437
    %v439 = vpop.f32.mrb[0].mxu0
    %440 = vdwg.mxu0
    %v441 = vmax.f32 %v419, 0.0
    %v442 = vmax.f32 %v422, 0.0
    %v443 = vmax.f32 %v427, 0.0
    %v444 = vmax.f32 %v430, 0.0
    %v445 = vmax.f32 %v435, 0.0
    %v446 = vmax.f32 %v438, 0.0
    %447 = vst [vmem:[#allocation2] sm:$0xff] %v441
    %448 = vst [vmem:[#allocation2 + $0x8] sm:$0xff] %v442
    %449 = vst [vmem:[#allocation2 + $0x10] sm:$0xff] %v443
    %450 = vst [vmem:[#allocation2 + $0x18] sm:$0xff] %v444
    %451 = vst [vmem:[#allocation2 + $0x20] sm:$0xff] %v445
    %452 = vst [vmem:[#allocation2 + $0x28] sm:$0xff] %v446
    %v453 = vld [vmem:[%s7] sm:$0xff]
    %v454 = vld [vmem:[%s7 + $0x8] sm:$0xff]
    %v455 = vld [vmem:[#allocation2] sm:$0xff]
    %v456 = vld [vmem:[#allocation4] sm:$0xff]
    %v457 = vpack.c.bf16 %v453, %v453
    %v458 = vpack.c.bf16 %v454, %v454
    %v459 = vld [vmem:[#allocation31] sm:$0xff]
    %v460 = vld [vmem:[#allocation31 + $0x8] sm:$0xff]
    %v461 = vld [vmem:[#allocation31 + $0x10] sm:$0xff]
    %v462 = vld [vmem:[#allocation31 + $0x18] sm:$0xff]
    %v463 = vld [vmem:[#allocation31 + $0x20] sm:$0xff]
    %v464 = vld [vmem:[#allocation31 + $0x28] sm:$0xff]
    %v465 = vld [vmem:[#allocation31 + $0x30] sm:$0xff]
    %v466 = vld [vmem:[#allocation31 + $0x38] sm:$0xff]
    %v467 = vld [vmem:[#allocation31 + $0x40] sm:$0xff]
    %v468 = vld [vmem:[#allocation31 + $0x48] sm:$0xff]
    %v469 = vld [vmem:[#allocation31 + $0x50] sm:$0xff]
    %v470 = vld [vmem:[#allocation31 + $0x58] sm:$0xff]
    %v471 = vld [vmem:[#allocation31 + $0x60] sm:$0xff]
    %v472 = vld [vmem:[#allocation31 + $0x68] sm:$0xff]
    %v473 = vld [vmem:[#allocation31 + $0x70] sm:$0xff]
    %v474 = vld [vmem:[#allocation31 + $0x78] sm:$0xff]
    %v475 = vld [vmem:[#allocation31 + $0x80] sm:$0xff]
    %v476 = vld [vmem:[#allocation31 + $0x88] sm:$0xff]
    %v477 = vld [vmem:[#allocation31 + $0x90] sm:$0xff]
    %v478 = vld [vmem:[#allocation31 + $0x98] sm:$0xff]
    %v479 = vld [vmem:[#allocation31 + $0xa0] sm:$0xff]
    %v480 = vld [vmem:[#allocation31 + $0xa8] sm:$0xff]
    %v481 = vld [vmem:[#allocation31 + $0xb0] sm:$0xff]
    %v482 = vld [vmem:[#allocation31 + $0xb8] sm:$0xff]
    %v483 = vld [vmem:[#allocation31 + $0xc0] sm:$0xff]
    %v484 = vld [vmem:[#allocation31 + $0xc8] sm:$0xff]
    %v485 = vld [vmem:[#allocation31 + $0xd0] sm:$0xff]
    %v486 = vld [vmem:[#allocation31 + $0xd8] sm:$0xff]
    %v487 = vld [vmem:[#allocation31 + $0xe0] sm:$0xff]
    %v488 = vld [vmem:[#allocation31 + $0xe8] sm:$0xff]
    %v489 = vld [vmem:[#allocation31 + $0xf0] sm:$0xff]
    %v490 = vld [vmem:[#allocation31 + $0xf8] sm:$0xff]
    %v491 = vld [vmem:[#allocation31 + $0x100] sm:$0xff]
    %v492 = vld [vmem:[#allocation31 + $0x108] sm:$0xff]
    %v493 = vld [vmem:[#allocation31 + $0x110] sm:$0xff]
    %v494 = vld [vmem:[#allocation31 + $0x118] sm:$0xff]
    %v495 = vld [vmem:[#allocation31 + $0x120] sm:$0xff]
    %v496 = vld [vmem:[#allocation31 + $0x128] sm:$0xff]
    %v497 = vld [vmem:[#allocation31 + $0x130] sm:$0xff]
    %v498 = vld [vmem:[#allocation31 + $0x138] sm:$0xff]
    %v499 = vld [vmem:[#allocation31 + $0x140] sm:$0xff]
    %v500 = vld [vmem:[#allocation31 + $0x148] sm:$0xff]
    %v501 = vld [vmem:[#allocation31 + $0x150] sm:$0xff]
    %v502 = vld [vmem:[#allocation31 + $0x158] sm:$0xff]
    %v503 = vld [vmem:[#allocation31 + $0x160] sm:$0xff]
    %v504 = vld [vmem:[#allocation31 + $0x168] sm:$0xff]
    %v505 = vld [vmem:[#allocation31 + $0x170] sm:$0xff]
    %v506 = vld [vmem:[#allocation31 + $0x178] sm:$0xff]
    %v507 = vld [vmem:[#allocation31 + $0x180] sm:$0xff]
    %v508 = vld [vmem:[#allocation31 + $0x188] sm:$0xff]
    %v509 = vld [vmem:[#allocation31 + $0x190] sm:$0xff]
    %v510 = vld [vmem:[#allocation31 + $0x198] sm:$0xff]
    %v511 = vld [vmem:[#allocation31 + $0x1a0] sm:$0xff]
    %v512 = vld [vmem:[#allocation31 + $0x1a8] sm:$0xff]
    %v513 = vld [vmem:[#allocation31 + $0x1b0] sm:$0xff]
    %v514 = vld [vmem:[#allocation31 + $0x1b8] sm:$0xff]
    %v515 = vld [vmem:[#allocation31 + $0x1c0] sm:$0xff]
    %v516 = vld [vmem:[#allocation31 + $0x1c8] sm:$0xff]
    %v517 = vld [vmem:[#allocation31 + $0x1d0] sm:$0xff]
    %v518 = vld [vmem:[#allocation31 + $0x1d8] sm:$0xff]
    %v519 = vld [vmem:[#allocation31 + $0x1e0] sm:$0xff]
    %v520 = vld [vmem:[#allocation31 + $0x1e8] sm:$0xff]
    %v521 = vld [vmem:[#allocation31 + $0x1f0] sm:$0xff]
    %v522 = vld [vmem:[#allocation31 + $0x1f8] sm:$0xff]
    %v523 = vld [vmem:[#allocation31 + $0x200] sm:$0xff]
    %v524 = vld [vmem:[#allocation31 + $0x208] sm:$0xff]
    %v525 = vld [vmem:[#allocation31 + $0x210] sm:$0xff]
    %v526 = vld [vmem:[#allocation31 + $0x218] sm:$0xff]
    %v527 = vld [vmem:[#allocation31 + $0x220] sm:$0xff]
    %v528 = vld [vmem:[#allocation31 + $0x228] sm:$0xff]
    %v529 = vld [vmem:[#allocation31 + $0x230] sm:$0xff]
    %v530 = vld [vmem:[#allocation31 + $0x238] sm:$0xff]
    %v531 = vld [vmem:[#allocation31 + $0x240] sm:$0xff]
    %v532 = vld [vmem:[#allocation31 + $0x248] sm:$0xff]
    %v533 = vld [vmem:[#allocation31 + $0x250] sm:$0xff]
    %v534 = vld [vmem:[#allocation31 + $0x258] sm:$0xff]
    %v535 = vld [vmem:[#allocation31 + $0x260] sm:$0xff]
    %v536 = vld [vmem:[#allocation31 + $0x268] sm:$0xff]
    %v537 = vld [vmem:[#allocation31 + $0x270] sm:$0xff]
    %v538 = vld [vmem:[#allocation31 + $0x278] sm:$0xff]
    %v539 = vld [vmem:[#allocation31 + $0x280] sm:$0xff]
    %v540 = vld [vmem:[#allocation31 + $0x288] sm:$0xff]
    %v541 = vld [vmem:[#allocation31 + $0x290] sm:$0xff]
    %v542 = vld [vmem:[#allocation31 + $0x298] sm:$0xff]
    %v543 = vld [vmem:[#allocation31 + $0x2a0] sm:$0xff]
    %v544 = vld [vmem:[#allocation31 + $0x2a8] sm:$0xff]
    %v545 = vld [vmem:[#allocation31 + $0x2b0] sm:$0xff]
    %v546 = vld [vmem:[#allocation31 + $0x2b8] sm:$0xff]
    %v547 = vld [vmem:[#allocation31 + $0x2c0] sm:$0xff]
    %v548 = vld [vmem:[#allocation31 + $0x2c8] sm:$0xff]
    %v549 = vld [vmem:[#allocation31 + $0x2d0] sm:$0xff]
    %v550 = vld [vmem:[#allocation31 + $0x2d8] sm:$0xff]
    %v551 = vld [vmem:[#allocation31 + $0x2e0] sm:$0xff]
    %v552 = vld [vmem:[#allocation31 + $0x2e8] sm:$0xff]
    %v553 = vld [vmem:[#allocation31 + $0x2f0] sm:$0xff]
    %v554 = vld [vmem:[#allocation31 + $0x2f8] sm:$0xff]
    %v555 = vld [vmem:[%s55] sm:$0x3f]
    %v557 = vlaneseq
    %v558 = vshrl.u32 %v557, 7
    %v559 = vsub.s32 0, %v558
    %v560 = vrot.slane %v555, %v559
    %v561 = vlaneseq
    %v562 = vshrl.u32 %v561, 7
    %v563 = vsub.s32 1, %v562
    %v564 = vrot.slane %v555, %v563
    %v565 = vlaneseq
    %v566 = vshrl.u32 %v565, 7
    %v567 = vsub.s32 2, %v566
    %v568 = vrot.slane %v555, %v567
    %v569 = vlaneseq
    %v570 = vshrl.u32 %v569, 7
    %v571 = vsub.s32 3, %v570
    %v572 = vrot.slane %v555, %v571
    %v573 = vlaneseq
    %v574 = vshrl.u32 %v573, 7
    %v575 = vsub.s32 4, %v574
    %v576 = vrot.slane %v555, %v575
    %v577 = vlaneseq
    %v578 = vshrl.u32 %v577, 7
    %v579 = vsub.s32 5, %v578
    %v580 = vrot.slane %v555, %v579
    %v683 = vunpack.c.l.b16 %v459
    %v684 = vunpack.c.h.b16 %v459
    %v685 = vunpack.c.l.b16 %v460
    %v686 = vunpack.c.h.b16 %v460
    %v687 = vunpack.c.l.b16 %v461
    %v688 = vunpack.c.h.b16 %v461
    %v689 = vunpack.c.l.b16 %v462
    %v690 = vunpack.c.h.b16 %v462
    %v691 = vunpack.c.l.b16 %v463
    %v692 = vunpack.c.h.b16 %v463
    %v693 = vunpack.c.l.b16 %v464
    %v694 = vunpack.c.h.b16 %v464
    %v695 = vunpack.c.l.b16 %v465
    %v696 = vunpack.c.h.b16 %v465
    %v697 = vunpack.c.l.b16 %v466
    %v698 = vunpack.c.h.b16 %v466
    %v699 = vunpack.c.l.b16 %v467
    %v700 = vunpack.c.h.b16 %v467
    %v701 = vunpack.c.l.b16 %v468
    %v702 = vunpack.c.h.b16 %v468
    %v703 = vunpack.c.l.b16 %v469
    %v704 = vunpack.c.h.b16 %v469
    %v705 = vunpack.c.l.b16 %v470
    %v706 = vunpack.c.h.b16 %v470
    %v707 = vunpack.c.l.b16 %v471
    %v708 = vunpack.c.h.b16 %v471
    %v709 = vunpack.c.l.b16 %v472
    %v710 = vunpack.c.h.b16 %v472
    %v711 = vunpack.c.l.b16 %v473
    %v712 = vunpack.c.h.b16 %v473
    %v713 = vunpack.c.l.b16 %v474
    %v714 = vunpack.c.h.b16 %v474
    %v715 = vunpack.c.l.b16 %v475
    %v716 = vunpack.c.h.b16 %v475
    %v717 = vunpack.c.l.b16 %v476
    %v718 = vunpack.c.h.b16 %v476
    %v719 = vunpack.c.l.b16 %v477
    %v720 = vunpack.c.h.b16 %v477
    %v721 = vunpack.c.l.b16 %v478
    %v722 = vunpack.c.h.b16 %v478
    %v723 = vunpack.c.l.b16 %v479
    %v724 = vunpack.c.h.b16 %v479
    %v725 = vunpack.c.l.b16 %v480
    %v726 = vunpack.c.h.b16 %v480
    %v727 = vunpack.c.l.b16 %v481
    %v728 = vunpack.c.h.b16 %v481
    %v729 = vunpack.c.l.b16 %v482
    %v730 = vunpack.c.h.b16 %v482
    %v731 = vunpack.c.l.b16 %v483
    %v732 = vunpack.c.h.b16 %v483
    %v733 = vunpack.c.l.b16 %v484
    %v734 = vunpack.c.h.b16 %v484
    %v735 = vunpack.c.l.b16 %v485
    %v736 = vunpack.c.h.b16 %v485
    %v737 = vunpack.c.l.b16 %v486
    %v738 = vunpack.c.h.b16 %v486
    %v739 = vunpack.c.l.b16 %v487
    %v740 = vunpack.c.h.b16 %v487
    %v741 = vunpack.c.l.b16 %v488
    %v742 = vunpack.c.h.b16 %v488
    %v743 = vunpack.c.l.b16 %v489
    %v744 = vunpack.c.h.b16 %v489
    %v745 = vunpack.c.l.b16 %v490
    %v746 = vunpack.c.h.b16 %v490
    %v747 = vunpack.c.l.b16 %v491
    %v748 = vunpack.c.h.b16 %v491
    %v749 = vunpack.c.l.b16 %v492
    %v750 = vunpack.c.h.b16 %v492
    %v751 = vunpack.c.l.b16 %v493
    %v752 = vunpack.c.h.b16 %v493
    %v753 = vunpack.c.l.b16 %v494
    %v754 = vunpack.c.h.b16 %v494
    %v755 = vunpack.c.l.b16 %v495
    %v756 = vunpack.c.h.b16 %v495
    %v757 = vunpack.c.l.b16 %v496
    %v758 = vunpack.c.h.b16 %v496
    %v759 = vunpack.c.l.b16 %v497
    %v760 = vunpack.c.h.b16 %v497
    %v761 = vunpack.c.l.b16 %v498
    %v762 = vunpack.c.h.b16 %v498
    %v763 = vunpack.c.l.b16 %v499
    %v764 = vunpack.c.h.b16 %v499
    %v765 = vunpack.c.l.b16 %v500
    %v766 = vunpack.c.h.b16 %v500
    %v767 = vunpack.c.l.b16 %v501
    %v768 = vunpack.c.h.b16 %v501
    %v769 = vunpack.c.l.b16 %v502
    %v770 = vunpack.c.h.b16 %v502
    %v771 = vunpack.c.l.b16 %v503
    %v772 = vunpack.c.h.b16 %v503
    %v773 = vunpack.c.l.b16 %v504
    %v774 = vunpack.c.h.b16 %v504
    %v775 = vunpack.c.l.b16 %v505
    %v776 = vunpack.c.h.b16 %v505
    %v777 = vunpack.c.l.b16 %v506
    %v778 = vunpack.c.h.b16 %v506
    %v779 = vunpack.c.l.b16 %v507
    %v780 = vunpack.c.h.b16 %v507
    %v781 = vunpack.c.l.b16 %v508
    %v782 = vunpack.c.h.b16 %v508
    %v783 = vunpack.c.l.b16 %v509
    %v784 = vunpack.c.h.b16 %v509
    %v785 = vunpack.c.l.b16 %v510
    %v786 = vunpack.c.h.b16 %v510
    %v787 = vunpack.c.l.b16 %v511
    %v788 = vunpack.c.h.b16 %v511
    %v789 = vunpack.c.l.b16 %v512
    %v790 = vunpack.c.h.b16 %v512
    %v791 = vunpack.c.l.b16 %v513
    %v792 = vunpack.c.h.b16 %v513
    %v793 = vunpack.c.l.b16 %v514
    %v794 = vunpack.c.h.b16 %v514
    %v795 = vunpack.c.l.b16 %v515
    %v796 = vunpack.c.h.b16 %v515
    %v797 = vunpack.c.l.b16 %v516
    %v798 = vunpack.c.h.b16 %v516
    %v799 = vunpack.c.l.b16 %v517
    %v800 = vunpack.c.h.b16 %v517
    %v801 = vunpack.c.l.b16 %v518
    %v802 = vunpack.c.h.b16 %v518
    %v803 = vunpack.c.l.b16 %v519
    %v804 = vunpack.c.h.b16 %v519
    %v805 = vunpack.c.l.b16 %v520
    %v806 = vunpack.c.h.b16 %v520
    %v807 = vunpack.c.l.b16 %v521
    %v808 = vunpack.c.h.b16 %v521
    %v809 = vunpack.c.l.b16 %v522
    %v810 = vunpack.c.h.b16 %v522
    %v811 = vunpack.c.l.b16 %v523
    %v812 = vunpack.c.h.b16 %v523
    %v813 = vunpack.c.l.b16 %v524
    %v814 = vunpack.c.h.b16 %v524
    %v815 = vunpack.c.l.b16 %v525
    %v816 = vunpack.c.h.b16 %v525
    %v817 = vunpack.c.l.b16 %v526
    %v818 = vunpack.c.h.b16 %v526
    %v819 = vunpack.c.l.b16 %v527
    %v820 = vunpack.c.h.b16 %v527
    %v821 = vunpack.c.l.b16 %v528
    %v822 = vunpack.c.h.b16 %v528
    %v823 = vunpack.c.l.b16 %v529
    %v824 = vunpack.c.h.b16 %v529
    %v825 = vunpack.c.l.b16 %v530
    %v826 = vunpack.c.h.b16 %v530
    %v827 = vunpack.c.l.b16 %v531
    %v828 = vunpack.c.h.b16 %v531
    %v829 = vunpack.c.l.b16 %v532
    %v830 = vunpack.c.h.b16 %v532
    %v831 = vunpack.c.l.b16 %v533
    %v832 = vunpack.c.h.b16 %v533
    %v833 = vunpack.c.l.b16 %v534
    %v834 = vunpack.c.h.b16 %v534
    %v835 = vunpack.c.l.b16 %v535
    %v836 = vunpack.c.h.b16 %v535
    %v837 = vunpack.c.l.b16 %v536
    %v838 = vunpack.c.h.b16 %v536
    %v839 = vunpack.c.l.b16 %v537
    %v840 = vunpack.c.h.b16 %v537
    %v841 = vunpack.c.l.b16 %v538
    %v842 = vunpack.c.h.b16 %v538
    %v843 = vunpack.c.l.b16 %v539
    %v844 = vunpack.c.h.b16 %v539
    %v845 = vunpack.c.l.b16 %v540
    %v846 = vunpack.c.h.b16 %v540
    %v847 = vunpack.c.l.b16 %v541
    %v848 = vunpack.c.h.b16 %v541
    %v849 = vunpack.c.l.b16 %v542
    %v850 = vunpack.c.h.b16 %v542
    %v851 = vunpack.c.l.b16 %v543
    %v852 = vunpack.c.h.b16 %v543
    %v853 = vunpack.c.l.b16 %v544
    %v854 = vunpack.c.h.b16 %v544
    %v855 = vunpack.c.l.b16 %v545
    %v856 = vunpack.c.h.b16 %v545
    %v857 = vunpack.c.l.b16 %v546
    %v858 = vunpack.c.h.b16 %v546
    %v859 = vunpack.c.l.b16 %v547
    %v860 = vunpack.c.h.b16 %v547
    %v861 = vunpack.c.l.b16 %v548
    %v862 = vunpack.c.h.b16 %v548
    %v863 = vunpack.c.l.b16 %v549
    %v864 = vunpack.c.h.b16 %v549
    %v865 = vunpack.c.l.b16 %v550
    %v866 = vunpack.c.h.b16 %v550
    %v867 = vunpack.c.l.b16 %v551
    %v868 = vunpack.c.h.b16 %v551
    %v869 = vunpack.c.l.b16 %v552
    %v870 = vunpack.c.h.b16 %v552
    %v871 = vunpack.c.l.b16 %v553
    %v872 = vunpack.c.h.b16 %v553
    %v873 = vunpack.c.l.b16 %v554
    %v874 = vunpack.c.h.b16 %v554
    %v875 = vpack.c.b16 %v689, %v683
    %v876 = vpack.c.b16 %v690, %v684
    %v877 = vpack.c.b16 %v691, %v685
    %v878 = vpack.c.b16 %v692, %v686
    %v879 = vpack.c.b16 %v693, %v687
    %v880 = vpack.c.b16 %v694, %v688
    %v881 = vpack.c.b16 %v701, %v695
    %v882 = vpack.c.b16 %v702, %v696
    %v883 = vpack.c.b16 %v703, %v697
    %v884 = vpack.c.b16 %v704, %v698
    %v885 = vpack.c.b16 %v705, %v699
    %v886 = vpack.c.b16 %v706, %v700
    %v887 = vpack.c.b16 %v713, %v707
    %v888 = vpack.c.b16 %v714, %v708
    %v889 = vpack.c.b16 %v715, %v709
    %v890 = vpack.c.b16 %v716, %v710
    %v891 = vpack.c.b16 %v717, %v711
    %v892 = vpack.c.b16 %v718, %v712
    %v893 = vpack.c.b16 %v725, %v719
    %v894 = vpack.c.b16 %v726, %v720
    %v895 = vpack.c.b16 %v727, %v721
    %v896 = vpack.c.b16 %v728, %v722
    %v897 = vpack.c.b16 %v729, %v723
    %v898 = vpack.c.b16 %v730, %v724
    %v899 = vpack.c.b16 %v737, %v731
    %v900 = vpack.c.b16 %v738, %v732
    %v901 = vpack.c.b16 %v739, %v733
    %v902 = vpack.c.b16 %v740, %v734
    %v903 = vpack.c.b16 %v741, %v735
    %v904 = vpack.c.b16 %v742, %v736
    %v905 = vpack.c.b16 %v749, %v743
    %v906 = vpack.c.b16 %v750, %v744
    %v907 = vpack.c.b16 %v751, %v745
    %v908 = vpack.c.b16 %v752, %v746
    %v909 = vpack.c.b16 %v753, %v747
    %v910 = vpack.c.b16 %v754, %v748
    %v911 = vpack.c.b16 %v761, %v755
    %v912 = vpack.c.b16 %v762, %v756
    %v913 = vpack.c.b16 %v763, %v757
    %v914 = vpack.c.b16 %v764, %v758
    %v915 = vpack.c.b16 %v765, %v759
    %v916 = vpack.c.b16 %v766, %v760
    %v917 = vpack.c.b16 %v773, %v767
    %v918 = vpack.c.b16 %v774, %v768
    %v919 = vpack.c.b16 %v775, %v769
    %v920 = vpack.c.b16 %v776, %v770
    %v921 = vpack.c.b16 %v777, %v771
    %v922 = vpack.c.b16 %v778, %v772
    %v923 = vpack.c.b16 %v785, %v779
    %v924 = vpack.c.b16 %v786, %v780
    %v925 = vpack.c.b16 %v787, %v781
    %v926 = vpack.c.b16 %v788, %v782
    %v927 = vpack.c.b16 %v789, %v783
    %v928 = vpack.c.b16 %v790, %v784
    %v929 = vpack.c.b16 %v797, %v791
    %v930 = vpack.c.b16 %v798, %v792
    %v931 = vpack.c.b16 %v799, %v793
    %v932 = vpack.c.b16 %v800, %v794
    %v933 = vpack.c.b16 %v801, %v795
    %v934 = vpack.c.b16 %v802, %v796
    %v935 = vpack.c.b16 %v809, %v803
    %v936 = vpack.c.b16 %v810, %v804
    %v937 = vpack.c.b16 %v811, %v805
    %v938 = vpack.c.b16 %v812, %v806
    %v939 = vpack.c.b16 %v813, %v807
    %v940 = vpack.c.b16 %v814, %v808
    %v941 = vpack.c.b16 %v821, %v815
    %v942 = vpack.c.b16 %v822, %v816
    %v943 = vpack.c.b16 %v823, %v817
    %v944 = vpack.c.b16 %v824, %v818
    %v945 = vpack.c.b16 %v825, %v819
    %v946 = vpack.c.b16 %v826, %v820
    %v947 = vpack.c.b16 %v833, %v827
    %v948 = vpack.c.b16 %v834, %v828
    %v949 = vpack.c.b16 %v835, %v829
    %v950 = vpack.c.b16 %v836, %v830
    %v951 = vpack.c.b16 %v837, %v831
    %v952 = vpack.c.b16 %v838, %v832
    %v953 = vpack.c.b16 %v845, %v839
    %v954 = vpack.c.b16 %v846, %v840
    %v955 = vpack.c.b16 %v847, %v841
    %v956 = vpack.c.b16 %v848, %v842
    %v957 = vpack.c.b16 %v849, %v843
    %v958 = vpack.c.b16 %v850, %v844
    %v959 = vpack.c.b16 %v857, %v851
    %v960 = vpack.c.b16 %v858, %v852
    %v961 = vpack.c.b16 %v859, %v853
    %v962 = vpack.c.b16 %v860, %v854
    %v963 = vpack.c.b16 %v861, %v855
    %v964 = vpack.c.b16 %v862, %v856
    %v965 = vpack.c.b16 %v869, %v863
    %v966 = vpack.c.b16 %v870, %v864
    %v967 = vpack.c.b16 %v871, %v865
    %v968 = vpack.c.b16 %v872, %v866
    %v969 = vpack.c.b16 %v873, %v867
    %v970 = vpack.c.b16 %v874, %v868
    %1067 = vmatprep.subr.bf16.mxu0 %v876
    %1068 = vmatpush1.bf16.msra.mxu0 %v875
    %1069 = vmatprep.subr.bf16.mxu0 %v882
    %1070 = vmatpush1.bf16.msra.mxu0 %v881
    %1071 = vmatprep.subr.bf16.mxu0 %v888
    %1072 = vmatpush1.bf16.msra.mxu0 %v887
    %1073 = vmatprep.subr.bf16.mxu0 %v894
    %1074 = vmatpush1.bf16.msra.mxu0 %v893
    %1075 = vmatprep.subr.bf16.mxu0 %v900
    %1076 = vmatpush1.bf16.msra.mxu0 %v899
    %1077 = vmatprep.subr.bf16.mxu0 %v906
    %1078 = vmatpush1.bf16.msra.mxu0 %v905
    %1079 = vmatprep.subr.bf16.mxu0 %v912
    %1080 = vmatpush1.bf16.msra.mxu0 %v911
    %1081 = vmatprep.subr.bf16.mxu0 %v918
    %1082 = vmatpush1.bf16.msra.mxu0 %v917
    %1083 = vmatprep.subr.bf16.mxu0 %v924
    %1084 = vmatpush1.bf16.msra.mxu0 %v923
    %1085 = vmatprep.subr.bf16.mxu0 %v930
    %1086 = vmatpush1.bf16.msra.mxu0 %v929
    %1087 = vmatprep.subr.bf16.mxu0 %v936
    %1088 = vmatpush1.bf16.msra.mxu0 %v935
    %1089 = vmatprep.subr.bf16.mxu0 %v942
    %1090 = vmatpush1.bf16.msra.mxu0 %v941
    %1091 = vmatprep.subr.bf16.mxu0 %v948
    %1092 = vmatpush1.bf16.msra.mxu0 %v947
    %1093 = vmatprep.subr.bf16.mxu0 %v954
    %1094 = vmatpush1.bf16.msra.mxu0 %v953
    %1095 = vmatprep.subr.bf16.mxu0 %v960
    %1096 = vmatpush1.bf16.msra.mxu0 %v959
    %1097 = vmatprep.subr.bf16.mxu0 %v966
    %1098 = vmatpush1.bf16.msra.mxu0 %v965
    %1099 = vmatprep.mubr.bf16.mxu0 %v458
    %1100 = vmatmul.mubr.bf16.gmra.mrb[0].mxu0 %v457
    %v1101 = vpop.f32.mrb[0].mxu0
    %v1102 = vadd.f32 %v560, %v1101
    %v1103 = vpop.f32.mrb[0].mxu0
    %v1104 = vadd.f32 %v564, %v1103
    %v1105 = vpop.f32.mrb[0].mxu0
    %v1106 = vpop.f32.mrb[0].mxu0
    %1107 = vdwg.mxu0
    %1108 = vmatprep.subr.bf16.mxu0 %v878
    %1109 = vmatpush1.bf16.msra.mxu0 %v877
    %1110 = vmatprep.subr.bf16.mxu0 %v884
    %1111 = vmatpush1.bf16.msra.mxu0 %v883
    %1112 = vmatprep.subr.bf16.mxu0 %v890
    %1113 = vmatpush1.bf16.msra.mxu0 %v889
    %1114 = vmatprep.subr.bf16.mxu0 %v896
    %1115 = vmatpush1.bf16.msra.mxu0 %v895
    %1116 = vmatprep.subr.bf16.mxu0 %v902
    %1117 = vmatpush1.bf16.msra.mxu0 %v901
    %1118 = vmatprep.subr.bf16.mxu0 %v908
    %1119 = vmatpush1.bf16.msra.mxu0 %v907
    %1120 = vmatprep.subr.bf16.mxu0 %v914
    %1121 = vmatpush1.bf16.msra.mxu0 %v913
    %1122 = vmatprep.subr.bf16.mxu0 %v920
    %1123 = vmatpush1.bf16.msra.mxu0 %v919
    %1124 = vmatprep.subr.bf16.mxu0 %v926
    %1125 = vmatpush1.bf16.msra.mxu0 %v925
    %1126 = vmatprep.subr.bf16.mxu0 %v932
    %1127 = vmatpush1.bf16.msra.mxu0 %v931
    %1128 = vmatprep.subr.bf16.mxu0 %v938
    %1129 = vmatpush1.bf16.msra.mxu0 %v937
    %1130 = vmatprep.subr.bf16.mxu0 %v944
    %1131 = vmatpush1.bf16.msra.mxu0 %v943
    %1132 = vmatprep.subr.bf16.mxu0 %v950
    %1133 = vmatpush1.bf16.msra.mxu0 %v949
    %1134 = vmatprep.subr.bf16.mxu0 %v956
    %1135 = vmatpush1.bf16.msra.mxu0 %v955
    %1136 = vmatprep.subr.bf16.mxu0 %v962
    %1137 = vmatpush1.bf16.msra.mxu0 %v961
    %1138 = vmatprep.subr.bf16.mxu0 %v968
    %1139 = vmatpush1.bf16.msra.mxu0 %v967
    %1140 = vmatprep.mubr.bf16.mxu0 %v458
    %1141 = vmatmul.mubr.bf16.gmra.mrb[0].mxu0 %v457
    %v1142 = vpop.f32.mrb[0].mxu0
    %v1143 = vadd.f32 %v568, %v1142
    %v1144 = vpop.f32.mrb[0].mxu0
    %v1145 = vadd.f32 %v572, %v1144
    %v1146 = vpop.f32.mrb[0].mxu0
    %v1147 = vpop.f32.mrb[0].mxu0
    %1148 = vdwg.mxu0
    %1149 = vmatprep.subr.bf16.mxu0 %v880
    %1150 = vmatpush1.bf16.msra.mxu0 %v879
    %1151 = vmatprep.subr.bf16.mxu0 %v886
    %1152 = vmatpush1.bf16.msra.mxu0 %v885
    %1153 = vmatprep.subr.bf16.mxu0 %v892
    %1154 = vmatpush1.bf16.msra.mxu0 %v891
    %1155 = vmatprep.subr.bf16.mxu0 %v898
    %1156 = vmatpush1.bf16.msra.mxu0 %v897
    %1157 = vmatprep.subr.bf16.mxu0 %v904
    %1158 = vmatpush1.bf16.msra.mxu0 %v903
    %1159 = vmatprep.subr.bf16.mxu0 %v910
    %1160 = vmatpush1.bf16.msra.mxu0 %v909
    %1161 = vmatprep.subr.bf16.mxu0 %v916
    %1162 = vmatpush1.bf16.msra.mxu0 %v915
    %1163 = vmatprep.subr.bf16.mxu0 %v922
    %1164 = vmatpush1.bf16.msra.mxu0 %v921
    %1165 = vmatprep.subr.bf16.mxu0 %v928
    %1166 = vmatpush1.bf16.msra.mxu0 %v927
    %1167 = vmatprep.subr.bf16.mxu0 %v934
    %1168 = vmatpush1.bf16.msra.mxu0 %v933
    %1169 = vmatprep.subr.bf16.mxu0 %v940
    %1170 = vmatpush1.bf16.msra.mxu0 %v939
    %1171 = vmatprep.subr.bf16.mxu0 %v946
    %1172 = vmatpush1.bf16.msra.mxu0 %v945
    %1173 = vmatprep.subr.bf16.mxu0 %v952
    %1174 = vmatpush1.bf16.msra.mxu0 %v951
    %1175 = vmatprep.subr.bf16.mxu0 %v958
    %1176 = vmatpush1.bf16.msra.mxu0 %v957
    %1177 = vmatprep.subr.bf16.mxu0 %v964
    %1178 = vmatpush1.bf16.msra.mxu0 %v963
    %1179 = vmatprep.subr.bf16.mxu0 %v970
    %1180 = vmatpush1.bf16.msra.mxu0 %v969
    %1181 = vmatprep.mubr.bf16.mxu0 %v458
    %1182 = vmatmul.mubr.bf16.gmra.mrb[0].mxu0 %v457
    %v1183 = vpop.f32.mrb[0].mxu0
    %v1184 = vadd.f32 %v576, %v1183
    %v1185 = vpop.f32.mrb[0].mxu0
    %v1186 = vadd.f32 %v580, %v1185
    %v1187 = vpop.f32.mrb[0].mxu0
    %v1188 = vpop.f32.mrb[0].mxu0
    %1189 = vdwg.mxu0
    %v1190 = vpack.c.bf16 %v455, %v455
    %v1191 = vld [vmem:[#allocation15] sm:$0xf]
    %v1192 = vld [vmem:[#allocation15 + $0x4] sm:$0xf]
    %v1193 = vld [vmem:[#allocation15 + $0x8] sm:$0xf]
    %v1194 = vld [vmem:[#allocation15 + $0xc] sm:$0xf]
    %v1195 = vld [vmem:[#allocation15 + $0x10] sm:$0xf]
    %v1196 = vld [vmem:[#allocation15 + $0x14] sm:$0xf]
    %v1197 = vld [vmem:[#allocation15 + $0x18] sm:$0xf]
    %v1198 = vld [vmem:[#allocation15 + $0x1c] sm:$0xf]
    %v1199 = vld [vmem:[#allocation15 + $0x20] sm:$0xf]
    %v1200 = vld [vmem:[#allocation15 + $0x24] sm:$0xf]
    %v1201 = vld [vmem:[#allocation15 + $0x28] sm:$0xf]
    %v1202 = vld [vmem:[#allocation15 + $0x2c] sm:$0xf]
    %v1203 = vld [vmem:[#allocation15 + $0x30] sm:$0xf]
    %v1204 = vld [vmem:[#allocation15 + $0x34] sm:$0xf]
    %v1205 = vld [vmem:[#allocation15 + $0x38] sm:$0xf]
    %v1206 = vld [vmem:[#allocation15 + $0x3c] sm:$0xf]
    %v1207 = vld [vmem:[#allocation15 + $0x40] sm:$0xf]
    %v1208 = vld [vmem:[#allocation15 + $0x44] sm:$0xf]
    %v1209 = vld [vmem:[#allocation15 + $0x48] sm:$0xf]
    %v1210 = vld [vmem:[#allocation15 + $0x4c] sm:$0xf]
    %v1211 = vld [vmem:[#allocation15 + $0x50] sm:$0xf]
    %v1212 = vld [vmem:[#allocation15 + $0x54] sm:$0xf]
    %v1213 = vld [vmem:[#allocation15 + $0x58] sm:$0xf]
    %v1214 = vld [vmem:[#allocation15 + $0x5c] sm:$0xf]
    %v1215 = vld [vmem:[#allocation15 + $0x60] sm:$0xf]
    %v1216 = vld [vmem:[#allocation15 + $0x64] sm:$0xf]
    %v1217 = vld [vmem:[#allocation15 + $0x68] sm:$0xf]
    %v1218 = vld [vmem:[#allocation15 + $0x6c] sm:$0xf]
    %v1219 = vld [vmem:[#allocation15 + $0x70] sm:$0xf]
    %v1220 = vld [vmem:[#allocation15 + $0x74] sm:$0xf]
    %v1221 = vld [vmem:[#allocation15 + $0x78] sm:$0xf]
    %v1222 = vld [vmem:[#allocation15 + $0x7c] sm:$0xf]
    %v1223 = vld [vmem:[#allocation16] sm:$0x1]
    %v1225 = vlaneseq
    %v1226 = vshrl.u32 %v1225, 7
    %v1227 = vsub.s32 0, %v1226
    %v1228 = vrot.slane %v1223, %v1227
    %v1262 = vunpack.c.l.b16 %v1191
    %v1263 = vunpack.c.l.b16 %v1192
    %v1264 = vunpack.c.l.b16 %v1193
    %v1265 = vunpack.c.l.b16 %v1194
    %v1266 = vunpack.c.l.b16 %v1195
    %v1267 = vunpack.c.l.b16 %v1196
    %v1268 = vunpack.c.l.b16 %v1197
    %v1269 = vunpack.c.l.b16 %v1198
    %v1270 = vunpack.c.l.b16 %v1199
    %v1271 = vunpack.c.l.b16 %v1200
    %v1272 = vunpack.c.l.b16 %v1201
    %v1273 = vunpack.c.l.b16 %v1202
    %v1274 = vunpack.c.l.b16 %v1203
    %v1275 = vunpack.c.l.b16 %v1204
    %v1276 = vunpack.c.l.b16 %v1205
    %v1277 = vunpack.c.l.b16 %v1206
    %v1278 = vunpack.c.l.b16 %v1207
    %v1279 = vunpack.c.l.b16 %v1208
    %v1280 = vunpack.c.l.b16 %v1209
    %v1281 = vunpack.c.l.b16 %v1210
    %v1282 = vunpack.c.l.b16 %v1211
    %v1283 = vunpack.c.l.b16 %v1212
    %v1284 = vunpack.c.l.b16 %v1213
    %v1285 = vunpack.c.l.b16 %v1214
    %v1286 = vunpack.c.l.b16 %v1215
    %v1287 = vunpack.c.l.b16 %v1216
    %v1288 = vunpack.c.l.b16 %v1217
    %v1289 = vunpack.c.l.b16 %v1218
    %v1290 = vunpack.c.l.b16 %v1219
    %v1291 = vunpack.c.l.b16 %v1220
    %v1292 = vunpack.c.l.b16 %v1221
    %v1293 = vunpack.c.l.b16 %v1222
    %v1294 = vpack.c.b16 %v1263, %v1262
    %v1295 = vpack.c.b16 %v1265, %v1264
    %v1296 = vpack.c.b16 %v1267, %v1266
    %v1297 = vpack.c.b16 %v1269, %v1268
    %v1298 = vpack.c.b16 %v1271, %v1270
    %v1299 = vpack.c.b16 %v1273, %v1272
    %v1300 = vpack.c.b16 %v1275, %v1274
    %v1301 = vpack.c.b16 %v1277, %v1276
    %v1302 = vpack.c.b16 %v1279, %v1278
    %v1303 = vpack.c.b16 %v1281, %v1280
    %v1304 = vpack.c.b16 %v1283, %v1282
    %v1305 = vpack.c.b16 %v1285, %v1284
    %v1306 = vpack.c.b16 %v1287, %v1286
    %v1307 = vpack.c.b16 %v1289, %v1288
    %v1308 = vpack.c.b16 %v1291, %v1290
    %v1309 = vpack.c.b16 %v1293, %v1292
    %1326 = vmatprep.subr.bf16.mxu0 0
    %1327 = vmatpush1.bf16.msra.mxu0 %v1294
    %1328 = vmatprep.subr.bf16.mxu0 0
    %1329 = vmatpush1.bf16.msra.mxu0 %v1295
    %1330 = vmatprep.subr.bf16.mxu0 0
    %1331 = vmatpush1.bf16.msra.mxu0 %v1296
    %1332 = vmatprep.subr.bf16.mxu0 0
    %1333 = vmatpush1.bf16.msra.mxu0 %v1297
    %1334 = vmatprep.subr.bf16.mxu0 0
    %1335 = vmatpush1.bf16.msra.mxu0 %v1298
    %1336 = vmatprep.subr.bf16.mxu0 0
    %1337 = vmatpush1.bf16.msra.mxu0 %v1299
    %1338 = vmatprep.subr.bf16.mxu0 0
    %1339 = vmatpush1.bf16.msra.mxu0 %v1300
    %1340 = vmatprep.subr.bf16.mxu0 0
    %1341 = vmatpush1.bf16.msra.mxu0 %v1301
    %1342 = vmatprep.subr.bf16.mxu0 0
    %1343 = vmatpush1.bf16.msra.mxu0 %v1302
    %1344 = vmatprep.subr.bf16.mxu0 0
    %1345 = vmatpush1.bf16.msra.mxu0 %v1303
    %1346 = vmatprep.subr.bf16.mxu0 0
    %1347 = vmatpush1.bf16.msra.mxu0 %v1304
    %1348 = vmatprep.subr.bf16.mxu0 0
    %1349 = vmatpush1.bf16.msra.mxu0 %v1305
    %1350 = vmatprep.subr.bf16.mxu0 0
    %1351 = vmatpush1.bf16.msra.mxu0 %v1306
    %1352 = vmatprep.subr.bf16.mxu0 0
    %1353 = vmatpush1.bf16.msra.mxu0 %v1307
    %1354 = vmatprep.subr.bf16.mxu0 0
    %1355 = vmatpush1.bf16.msra.mxu0 %v1308
    %1356 = vmatprep.subr.bf16.mxu0 0
    %1357 = vmatpush1.bf16.msra.mxu0 %v1309
    %1358 = vmatprep.mubr.bf16.mxu0 %v458
    %1359 = vmatmul.mubr.bf16.gmra.mrb[0].mxu0 %v1190
    %v1360 = vpop.f32.mrb[0].mxu0
    %v1361 = vadd.f32 %v1228, %v1360
    %v1362 = vpop.f32.mrb[0].mxu0
    %v1363 = vpop.f32.mrb[0].mxu0
    %v1364 = vpop.f32.mrb[0].mxu0
    %1365 = vdwg.mxu0
    %v1366 = vmax.f32 %v1361, 0.0
    %v1367 = vpack.c.bf16 %v454, %v453
    %v1368 = vld [vmem:[#allocation18] sm:$0xf]
    %v1369 = vld [vmem:[#allocation18 + $0x4] sm:$0xf]
    %v1370 = vld [vmem:[#allocation18 + $0x8] sm:$0xf]
    %v1371 = vld [vmem:[#allocation18 + $0xc] sm:$0xf]
    %v1372 = vld [vmem:[#allocation18 + $0x10] sm:$0xf]
    %v1373 = vld [vmem:[#allocation18 + $0x14] sm:$0xf]
    %v1374 = vld [vmem:[#allocation18 + $0x18] sm:$0xf]
    %v1375 = vld [vmem:[#allocation18 + $0x1c] sm:$0xf]
    %v1376 = vld [vmem:[#allocation18 + $0x20] sm:$0xf]
    %v1377 = vld [vmem:[#allocation18 + $0x24] sm:$0xf]
    %v1378 = vld [vmem:[#allocation18 + $0x28] sm:$0xf]
    %v1379 = vld [vmem:[#allocation18 + $0x2c] sm:$0xf]
    %v1380 = vld [vmem:[#allocation18 + $0x30] sm:$0xf]
    %v1381 = vld [vmem:[#allocation18 + $0x34] sm:$0xf]
    %v1382 = vld [vmem:[#allocation18 + $0x38] sm:$0xf]
    %v1383 = vld [vmem:[#allocation18 + $0x3c] sm:$0xf]
    %v1384 = vld [vmem:[#allocation19] sm:$0x1]
    %v1386 = vlaneseq
    %v1387 = vshrl.u32 %v1386, 7
    %v1388 = vsub.s32 0, %v1387
    %v1389 = vrot.slane %v1384, %v1388
    %v1407 = vunpack.c.l.b16 %v1368
    %v1408 = vunpack.c.l.b16 %v1369
    %v1409 = vunpack.c.l.b16 %v1370
    %v1410 = vunpack.c.l.b16 %v1371
    %v1411 = vunpack.c.l.b16 %v1372
    %v1412 = vunpack.c.l.b16 %v1373
    %v1413 = vunpack.c.l.b16 %v1374
    %v1414 = vunpack.c.l.b16 %v1375
    %v1415 = vunpack.c.l.b16 %v1376
    %v1416 = vunpack.c.l.b16 %v1377
    %v1417 = vunpack.c.l.b16 %v1378
    %v1418 = vunpack.c.l.b16 %v1379
    %v1419 = vunpack.c.l.b16 %v1380
    %v1420 = vunpack.c.l.b16 %v1381
    %v1421 = vunpack.c.l.b16 %v1382
    %v1422 = vunpack.c.l.b16 %v1383
    %v1423 = vpack.c.b16 %v1408, %v1407
    %v1424 = vpack.c.b16 %v1410, %v1409
    %v1425 = vpack.c.b16 %v1412, %v1411
    %v1426 = vpack.c.b16 %v1414, %v1413
    %v1427 = vpack.c.b16 %v1416, %v1415
    %v1428 = vpack.c.b16 %v1418, %v1417
    %v1429 = vpack.c.b16 %v1420, %v1419
    %v1430 = vpack.c.b16 %v1422, %v1421
    %1439 = vmatprep.subr.bf16.mxu0 0
    %1440 = vmatpush1.bf16.msra.mxu0 %v1423
    %1441 = vmatprep.subr.bf16.mxu0 0
    %1442 = vmatpush1.bf16.msra.mxu0 %v1424
    %1443 = vmatprep.subr.bf16.mxu0 0
    %1444 = vmatpush1.bf16.msra.mxu0 %v1425
    %1445 = vmatprep.subr.bf16.mxu0 0
    %1446 = vmatpush1.bf16.msra.mxu0 %v1426
    %1447 = vmatprep.subr.bf16.mxu0 0
    %1448 = vmatpush1.bf16.msra.mxu0 %v1427
    %1449 = vmatprep.subr.bf16.mxu0 0
    %1450 = vmatpush1.bf16.msra.mxu0 %v1428
    %1451 = vmatprep.subr.bf16.mxu0 0
    %1452 = vmatpush1.bf16.msra.mxu0 %v1429
    %1453 = vmatprep.subr.bf16.mxu0 0
    %1454 = vmatpush1.bf16.msra.mxu0 %v1430
    %1455 = vmatprep.subr.bf16.mxu0 0
    %1456 = vmatpush1.bf16.msra.mxu0 0
    %1457 = vmatprep.subr.bf16.mxu0 0
    %1458 = vmatpush1.bf16.msra.mxu0 0
    %1459 = vmatprep.subr.bf16.mxu0 0
    %1460 = vmatpush1.bf16.msra.mxu0 0
    %1461 = vmatprep.subr.bf16.mxu0 0
    %1462 = vmatpush1.bf16.msra.mxu0 0
    %1463 = vmatprep.subr.bf16.mxu0 0
    %1464 = vmatpush1.bf16.msra.mxu0 0
    %1465 = vmatprep.subr.bf16.mxu0 0
    %1466 = vmatpush1.bf16.msra.mxu0 0
    %1467 = vmatprep.subr.bf16.mxu0 0
    %1468 = vmatpush1.bf16.msra.mxu0 0
    %1469 = vmatprep.subr.bf16.mxu0 0
    %1470 = vmatpush1.bf16.msra.mxu0 0
    %1471 = vmatprep.mubr.bf16.mxu0 0
    %1472 = vmatmul.mubr.bf16.gmra.mrb[0].mxu0 %v1367
    %v1473 = vpop.f32.mrb[0].mxu0
    %v1474 = vadd.f32 %v1389, %v1473
    %v1475 = vpop.f32.mrb[0].mxu0
    %v1476 = vpop.f32.mrb[0].mxu0
    %v1477 = vadd.f32 %v1389, %v1476
    %v1478 = vpop.f32.mrb[0].mxu0
    %1479 = vdwg.mxu0
    %v1480 = vmax.f32 %v1474, 0.0
    %v1481 = vmax.f32 %v1477, 0.0
    %v1482 = vpack.c.bf16 %v1480, %v1366
    %v1483 = vpack.c.bf16 %v1481, %v1481
    %v1484 = vld [vmem:[%s17] sm:$0xf]
    %v1485 = vld [vmem:[%s17 + $0x4] sm:$0xf]
    %v1486 = vld [vmem:[%s17 + $0x8] sm:$0xf]
    %v1487 = vld [vmem:[%s17 + $0xc] sm:$0xf]
    %v1488 = vld [vmem:[%s17 + $0x10] sm:$0xf]
    %v1489 = vld [vmem:[%s17 + $0x14] sm:$0xf]
    %v1490 = vld [vmem:[%s17 + $0x18] sm:$0xf]
    %v1491 = vld [vmem:[%s17 + $0x1c] sm:$0xf]
    %v1492 = vld [vmem:[%s17 + $0x20] sm:$0xf]
    %v1493 = vld [vmem:[%s17 + $0x24] sm:$0xf]
    %v1494 = vld [vmem:[%s17 + $0x28] sm:$0xf]
    %v1495 = vld [vmem:[%s17 + $0x2c] sm:$0xf]
    %v1496 = vld [vmem:[%s17 + $0x30] sm:$0xf]
    %v1497 = vld [vmem:[%s17 + $0x34] sm:$0xf]
    %v1498 = vld [vmem:[%s17 + $0x38] sm:$0xf]
    %v1499 = vld [vmem:[%s17 + $0x3c] sm:$0xf]
    %v1500 = vld [vmem:[#allocation13] sm:$0x1]
    %v1502 = vlaneseq
    %v1503 = vshrl.u32 %v1502, 7
    %v1504 = vsub.s32 0, %v1503
    %v1505 = vrot.slane %v1500, %v1504
    %v1523 = vunpack.c.l.b16 %v1484
    %v1524 = vunpack.c.l.b16 %v1485
    %v1525 = vunpack.c.l.b16 %v1486
    %v1526 = vunpack.c.l.b16 %v1487
    %v1527 = vunpack.c.l.b16 %v1488
    %v1528 = vunpack.c.l.b16 %v1489
    %v1529 = vunpack.c.l.b16 %v1490
    %v1530 = vunpack.c.l.b16 %v1491
    %v1531 = vunpack.c.l.b16 %v1492
    %v1532 = vunpack.c.l.b16 %v1493
    %v1533 = vunpack.c.l.b16 %v1494
    %v1534 = vunpack.c.l.b16 %v1495
    %v1535 = vunpack.c.l.b16 %v1496
    %v1536 = vunpack.c.l.b16 %v1497
    %v1537 = vunpack.c.l.b16 %v1498
    %v1538 = vunpack.c.l.b16 %v1499
    %v1539 = vpack.c.b16 %v1524, %v1523
    %v1540 = vpack.c.b16 %v1526, %v1525
    %v1541 = vpack.c.b16 %v1528, %v1527
    %v1542 = vpack.c.b16 %v1530, %v1529
    %v1543 = vpack.c.b16 %v1532, %v1531
    %v1544 = vpack.c.b16 %v1534, %v1533
    %v1545 = vpack.c.b16 %v1536, %v1535
    %v1546 = vpack.c.b16 %v1538, %v1537
    %1555 = vmatprep.subr.bf16.mxu0 0
    %1556 = vmatpush1.bf16.msra.mxu0 %v1539
    %1557 = vmatprep.subr.bf16.mxu0 0
    %1558 = vmatpush1.bf16.msra.mxu0 %v1540
    %1559 = vmatprep.subr.bf16.mxu0 0
    %1560 = vmatpush1.bf16.msra.mxu0 %v1541
    %1561 = vmatprep.subr.bf16.mxu0 0
    %1562 = vmatpush1.bf16.msra.mxu0 %v1542
    %1563 = vmatprep.subr.bf16.mxu0 0
    %1564 = vmatpush1.bf16.msra.mxu0 %v1543
    %1565 = vmatprep.subr.bf16.mxu0 0
    %1566 = vmatpush1.bf16.msra.mxu0 %v1544
    %1567 = vmatprep.subr.bf16.mxu0 0
    %1568 = vmatpush1.bf16.msra.mxu0 %v1545
    %1569 = vmatprep.subr.bf16.mxu0 0
    %1570 = vmatpush1.bf16.msra.mxu0 %v1546
    %1571 = vmatprep.subr.bf16.mxu0 0
    %1572 = vmatpush1.bf16.msra.mxu0 0
    %1573 = vmatprep.subr.bf16.mxu0 0
    %1574 = vmatpush1.bf16.msra.mxu0 0
    %1575 = vmatprep.subr.bf16.mxu0 0
    %1576 = vmatpush1.bf16.msra.mxu0 0
    %1577 = vmatprep.subr.bf16.mxu0 0
    %1578 = vmatpush1.bf16.msra.mxu0 0
    %1579 = vmatprep.subr.bf16.mxu0 0
    %1580 = vmatpush1.bf16.msra.mxu0 0
    %1581 = vmatprep.subr.bf16.mxu0 0
    %1582 = vmatpush1.bf16.msra.mxu0 0
    %1583 = vmatprep.subr.bf16.mxu0 0
    %1584 = vmatpush1.bf16.msra.mxu0 0
    %1585 = vmatprep.subr.bf16.mxu0 0
    %1586 = vmatpush1.bf16.msra.mxu0 0
    %1587 = vmatprep.mubr.bf16.mxu0 0
    %1588 = vmatmul.mubr.bf16.gmra.mrb[0].mxu0 %v1482
    %v1589 = vpop.f32.mrb[0].mxu0
    %v1590 = vadd.f32 %v1505, %v1589
    %v1591 = vpop.f32.mrb[0].mxu0
    %v1592 = vpop.f32.mrb[0].mxu0
    %v1593 = vadd.f32 %v1505, %v1592
    %v1594 = vpop.f32.mrb[0].mxu0
    %1595 = vmatprep.mubr.bf16.mxu0 0
    %1596 = vmatmul.mubr.bf16.gmra.mrb[0].mxu0 %v1483
    %v1597 = vpop.f32.mrb[0].mxu0
    %v1598 = vadd.f32 %v1505, %v1597
    %v1599 = vpop.f32.mrb[0].mxu0
    %v1600 = vpop.f32.mrb[0].mxu0
    %v1601 = vpop.f32.mrb[0].mxu0
    %1602 = vdwg.mxu0
    %vm1603 = vcmp.gt.f32.partialorder %v1590, 20.0
    %v1604 = vmin.f32 %v1590, 20.0
    %v1605 = vmul.f32 %v1604, 1.442695
    %v1606 = vpow.pop %v1605
    %v1607 = vadd.f32 %v1606, 1.0
    %v1608 = vlog2.pop %v1607
    %v1609 = vmul.f32 %v1608, 0.6931472
    %v1610 = vmul.f32 -0.5, %v1606
    %v1611 = vadd.f32 %v1610, 1.0
    %v1612 = vmul.f32 %v1611, %v1606
    %v1613 = vand.u32 2147483647, %v1606
    %vm1614 = vcmp.lt.f32.partialorder %v1613, 0.0004427343
    %v1615 = vsel %vm1614, %v1612, %v1609
    %v1616 = vsel %vm1603, %v1590, %v1615
    %vm1617 = vcmp.gt.f32.partialorder %v1593, 20.0
    %vm1618 = vcmp.gt.f32.partialorder %v1598, 20.0
    %v1619 = vmin.f32 %v1593, 20.0
    %v1620 = vmin.f32 %v1598, 20.0
    %v1621 = vmul.f32 %v1619, 1.442695
    %v1622 = vpow.pop %v1621
    %v1623 = vmul.f32 %v1620, 1.442695
    %v1624 = vpow.pop %v1623
    %v1625 = vadd.f32 %v1622, 1.0
    %v1626 = vlog2.pop %v1625
    %v1627 = vmul.f32 %v1626, 0.6931472
    %v1628 = vmul.f32 -0.5, %v1622
    %v1629 = vadd.f32 %v1628, 1.0
    %v1630 = vmul.f32 %v1629, %v1622
    %v1631 = vand.u32 2147483647, %v1622
    %vm1632 = vcmp.lt.f32.partialorder %v1631, 0.0004427343
    %v1633 = vsel %vm1632, %v1630, %v1627
    %v1634 = vadd.f32 %v1624, 1.0
    %v1635 = vlog2.pop %v1634
    %v1636 = vmul.f32 %v1635, 0.6931472
    %v1637 = vmul.f32 -0.5, %v1624
    %v1638 = vadd.f32 %v1637, 1.0
    %v1639 = vmul.f32 %v1638, %v1624
    %v1640 = vand.u32 2147483647, %v1624
    %vm1641 = vcmp.lt.f32.partialorder %v1640, 0.0004427343
    %v1642 = vsel %vm1641, %v1639, %v1636
    %v1643 = vsel %vm1617, %v1593, %v1633
    %v1644 = vsel %vm1618, %v1598, %v1642
    %v1645 = vsub.f32 %v1590, %v1593
    %v1646 = vsub.f32 %v1590, %v1598
    %v1647 = vrcp.pop %v1643
    %v1648 = vrcp.pop %v1644
    %v1649 = vmul.f32 %v1616, %v1647
    %v1650 = vmul.f32 %v1616, %v1648
    %v1651 = vlog2.pop %v1649
    %v1652 = vmul.f32 %v1651, 0.6931472
    %v1653 = vlog2.pop %v1650
    %v1654 = vmul.f32 %v1653, 0.6931472
    %v1655 = vmul.f32 %v1652, -2.0
    %v1656 = vmul.f32 %v1654, -2.0
    %v1657 = vmul.f32 %v1616, %v1616
    %v1658 = vmul.f32 %v1645, %v1645
    %v1659 = vmul.f32 %v1646, %v1646
    %v1660 = vadd.f32 %v1657, %v1658
    %v1661 = vadd.f32 %v1657, %v1659
    %v1662 = vmul.f32 %v1647, %v1647
    %v1663 = vmul.f32 %v1648, %v1648
    %v1664 = vmul.f32 %v1660, %v1662
    %v1665 = vmul.f32 %v1661, %v1663
    %v1666 = vadd.f32 %v1655, %v1664
    %v1667 = vadd.f32 %v1656, %v1665
    %v1668 = vsub.f32 %v1666, 1.0
    %v1669 = vsub.f32 %v1667, 1.0
    %v1670 = vadd.f32 %v1668, 0.0
    %v1671 = vadd.f32 %v1669, 0.0
    %v1672 = vmul.f32 %v456, %v1616
    %v1673 = vadd.f32 %v1672, %v1590
    %v1674 = vpack.c.bf16 %v1673, %v1673
    %v1675 = vld [vmem:[%s29] sm:$0xf]
    %v1676 = vld [vmem:[%s29 + $0x4] sm:$0xf]
    %v1677 = vld [vmem:[%s29 + $0x8] sm:$0xf]
    %v1678 = vld [vmem:[%s29 + $0xc] sm:$0xf]
    %v1679 = vld [vmem:[#allocation21] sm:$0x1]
    %v1681 = vlaneseq
    %v1682 = vshrl.u32 %v1681, 7
    %v1683 = vsub.s32 0, %v1682
    %v1684 = vrot.slane %v1679, %v1683
    %v1690 = vunpack.c.l.b16 %v1675
    %v1691 = vunpack.c.l.b16 %v1676
    %v1692 = vunpack.c.l.b16 %v1677
    %v1693 = vunpack.c.l.b16 %v1678
    %v1694 = vpack.c.b16 %v1691, %v1690
    %v1695 = vpack.c.b16 %v1693, %v1692
    %vm1698 = vcmask 261120
    %v1700 = vsel %vm1698, %v1674, 0
    %1702 = vmatprep.subr.bf16.mxu0 0
    %1703 = vmatpush1.bf16.msra.mxu0 %v1694
    %1704 = vmatprep.subr.bf16.mxu0 0
    %1705 = vmatpush1.bf16.msra.mxu0 %v1695
    %1706 = vmatprep.subr.bf16.mxu0 0
    %1707 = vmatpush1.bf16.msra.mxu0 0
    %1708 = vmatprep.subr.bf16.mxu0 0
    %1709 = vmatpush1.bf16.msra.mxu0 0
    %1710 = vmatprep.subr.bf16.mxu0 0
    %1711 = vmatpush1.bf16.msra.mxu0 0
    %1712 = vmatprep.subr.bf16.mxu0 0
    %1713 = vmatpush1.bf16.msra.mxu0 0
    %1714 = vmatprep.subr.bf16.mxu0 0
    %1715 = vmatpush1.bf16.msra.mxu0 0
    %1716 = vmatprep.subr.bf16.mxu0 0
    %1717 = vmatpush1.bf16.msra.mxu0 0
    %1718 = vmatprep.subr.bf16.mxu0 0
    %1719 = vmatpush1.bf16.msra.mxu0 0
    %1720 = vmatprep.subr.bf16.mxu0 0
    %1721 = vmatpush1.bf16.msra.mxu0 0
    %1722 = vmatprep.subr.bf16.mxu0 0
    %1723 = vmatpush1.bf16.msra.mxu0 0
    %1724 = vmatprep.subr.bf16.mxu0 0
    %1725 = vmatpush1.bf16.msra.mxu0 0
    %1726 = vmatprep.subr.bf16.mxu0 0
    %1727 = vmatpush1.bf16.msra.mxu0 0
    %1728 = vmatprep.subr.bf16.mxu0 0
    %1729 = vmatpush1.bf16.msra.mxu0 0
    %1730 = vmatprep.subr.bf16.mxu0 0
    %1731 = vmatpush1.bf16.msra.mxu0 0
    %1732 = vmatprep.subr.bf16.mxu0 0
    %1733 = vmatpush1.bf16.msra.mxu0 0
    %1734 = vmatprep.mubr.bf16.mxu0 0
    %1735 = vmatmul.mubr.bf16.gmra.mrb[0].mxu0 %v1700
    %v1736 = vpop.f32.mrb[0].mxu0
    %v1737 = vadd.f32 %v1684, %v1736
    %v1738 = vpop.f32.mrb[0].mxu0
    %v1739 = vpop.f32.mrb[0].mxu0
    %v1740 = vpop.f32.mrb[0].mxu0
    %1741 = vdwg.mxu0
    %v1742 = vmax.f32 %v1737, 0.0
    %v1743 = vpack.c.bf16 %v1742, %v1742
    %v1744 = vld [vmem:[%s45] sm:$0xff]
    %v1745 = vld [vmem:[%s45 + $0x8] sm:$0xf]
    %v1746 = vld [vmem:[%s45 + $0xc] sm:$0xff]
    %v1747 = vld [vmem:[%s45 + $0x14] sm:$0xf]
    %v1748 = vld [vmem:[%s45 + $0x18] sm:$0xff]
    %v1749 = vld [vmem:[%s45 + $0x20] sm:$0xf]
    %v1750 = vld [vmem:[%s45 + $0x24] sm:$0xff]
    %v1751 = vld [vmem:[%s45 + $0x2c] sm:$0xf]
    %v1752 = vld [vmem:[%s45 + $0x30] sm:$0xff]
    %v1753 = vld [vmem:[%s45 + $0x38] sm:$0xf]
    %v1754 = vld [vmem:[%s45 + $0x3c] sm:$0xff]
    %v1755 = vld [vmem:[%s45 + $0x44] sm:$0xf]
    %v1756 = vld [vmem:[%s45 + $0x48] sm:$0xff]
    %v1757 = vld [vmem:[%s45 + $0x50] sm:$0xf]
    %v1758 = vld [vmem:[%s45 + $0x54] sm:$0xff]
    %v1759 = vld [vmem:[%s45 + $0x5c] sm:$0xf]
    %v1760 = vld [vmem:[%s45 + $0x60] sm:$0xff]
    %v1761 = vld [vmem:[%s45 + $0x68] sm:$0xf]
    %v1762 = vld [vmem:[%s45 + $0x6c] sm:$0xff]
    %v1763 = vld [vmem:[%s45 + $0x74] sm:$0xf]
    %v1764 = vld [vmem:[%s45 + $0x78] sm:$0xff]
    %v1765 = vld [vmem:[%s45 + $0x80] sm:$0xf]
    %v1766 = vld [vmem:[%s45 + $0x84] sm:$0xff]
    %v1767 = vld [vmem:[%s45 + $0x8c] sm:$0xf]
    %v1768 = vld [vmem:[%s45 + $0x90] sm:$0xff]
    %v1769 = vld [vmem:[%s45 + $0x98] sm:$0xf]
    %v1770 = vld [vmem:[%s45 + $0x9c] sm:$0xff]
    %v1771 = vld [vmem:[%s45 + $0xa4] sm:$0xf]
    %v1772 = vld [vmem:[%s45 + $0xa8] sm:$0xff]
    %v1773 = vld [vmem:[%s45 + $0xb0] sm:$0xf]
    %v1774 = vld [vmem:[%s45 + $0xb4] sm:$0xff]
    %v1775 = vld [vmem:[%s45 + $0xbc] sm:$0xf]
    %v1776 = vld [vmem:[%s45 + $0xc0] sm:$0xff]
    %v1777 = vld [vmem:[%s45 + $0xc8] sm:$0xf]
    %v1778 = vld [vmem:[%s45 + $0xcc] sm:$0xff]
    %v1779 = vld [vmem:[%s45 + $0xd4] sm:$0xf]
    %v1780 = vld [vmem:[%s45 + $0xd8] sm:$0xff]
    %v1781 = vld [vmem:[%s45 + $0xe0] sm:$0xf]
    %v1782 = vld [vmem:[%s45 + $0xe4] sm:$0xff]
    %v1783 = vld [vmem:[%s45 + $0xec] sm:$0xf]
    %v1784 = vld [vmem:[%s45 + $0xf0] sm:$0xff]
    %v1785 = vld [vmem:[%s45 + $0xf8] sm:$0xf]
    %v1786 = vld [vmem:[%s45 + $0xfc] sm:$0xff]
    %v1787 = vld [vmem:[%s45 + $0x104] sm:$0xf]
    %v1788 = vld [vmem:[%s45 + $0x108] sm:$0xff]
    %v1789 = vld [vmem:[%s45 + $0x110] sm:$0xf]
    %v1790 = vld [vmem:[%s45 + $0x114] sm:$0xff]
    %v1791 = vld [vmem:[%s45 + $0x11c] sm:$0xf]
    %v1792 = vld [vmem:[%s45 + $0x120] sm:$0xff]
    %v1793 = vld [vmem:[%s45 + $0x128] sm:$0xf]
    %v1794 = vld [vmem:[%s45 + $0x12c] sm:$0xff]
    %v1795 = vld [vmem:[%s45 + $0x134] sm:$0xf]
    %v1796 = vld [vmem:[%s45 + $0x138] sm:$0xff]
    %v1797 = vld [vmem:[%s45 + $0x140] sm:$0xf]
    %v1798 = vld [vmem:[%s45 + $0x144] sm:$0xff]
    %v1799 = vld [vmem:[%s45 + $0x14c] sm:$0xf]
    %v1800 = vld [vmem:[%s45 + $0x150] sm:$0xff]
    %v1801 = vld [vmem:[%s45 + $0x158] sm:$0xf]
    %v1802 = vld [vmem:[%s45 + $0x15c] sm:$0xff]
    %v1803 = vld [vmem:[%s45 + $0x164] sm:$0xf]
    %v1804 = vld [vmem:[%s45 + $0x168] sm:$0xff]
    %v1805 = vld [vmem:[%s45 + $0x170] sm:$0xf]
    %v1806 = vld [vmem:[%s45 + $0x174] sm:$0xff]
    %v1807 = vld [vmem:[%s45 + $0x17c] sm:$0xf]
    %v1808 = vld [vmem:[#allocation27] sm:$0x7]
    %v1810 = vlaneseq
    %v1811 = vshrl.u32 %v1810, 7
    %v1812 = vsub.s32 0, %v1811
    %v1813 = vrot.slane %v1808, %v1812
    %v1814 = vlaneseq
    %v1815 = vshrl.u32 %v1814, 7
    %v1816 = vsub.s32 1, %v1815
    %v1817 = vrot.slane %v1808, %v1816
    %v1818 = vlaneseq
    %v1819 = vshrl.u32 %v1818, 7
    %v1820 = vsub.s32 2, %v1819
    %v1821 = vrot.slane %v1808, %v1820
    %v1889 = vunpack.c.l.b16 %v1744
    %v1890 = vunpack.c.h.b16 %v1744
    %v1891 = vunpack.c.l.b16 %v1745
    %v1892 = vunpack.c.l.b16 %v1746
    %v1893 = vunpack.c.h.b16 %v1746
    %v1894 = vunpack.c.l.b16 %v1747
    %v1895 = vunpack.c.l.b16 %v1748
    %v1896 = vunpack.c.h.b16 %v1748
    %v1897 = vunpack.c.l.b16 %v1749
    %v1898 = vunpack.c.l.b16 %v1750
    %v1899 = vunpack.c.h.b16 %v1750
    %v1900 = vunpack.c.l.b16 %v1751
    %v1901 = vunpack.c.l.b16 %v1752
    %v1902 = vunpack.c.h.b16 %v1752
    %v1903 = vunpack.c.l.b16 %v1753
    %v1904 = vunpack.c.l.b16 %v1754
    %v1905 = vunpack.c.h.b16 %v1754
    %v1906 = vunpack.c.l.b16 %v1755
    %v1907 = vunpack.c.l.b16 %v1756
    %v1908 = vunpack.c.h.b16 %v1756
    %v1909 = vunpack.c.l.b16 %v1757
    %v1910 = vunpack.c.l.b16 %v1758
    %v1911 = vunpack.c.h.b16 %v1758
    %v1912 = vunpack.c.l.b16 %v1759
    %v1913 = vunpack.c.l.b16 %v1760
    %v1914 = vunpack.c.h.b16 %v1760
    %v1915 = vunpack.c.l.b16 %v1761
    %v1916 = vunpack.c.l.b16 %v1762
    %v1917 = vunpack.c.h.b16 %v1762
    %v1918 = vunpack.c.l.b16 %v1763
    %v1919 = vunpack.c.l.b16 %v1764
    %v1920 = vunpack.c.h.b16 %v1764
    %v1921 = vunpack.c.l.b16 %v1765
    %v1922 = vunpack.c.l.b16 %v1766
    %v1923 = vunpack.c.h.b16 %v1766
    %v1924 = vunpack.c.l.b16 %v1767
    %v1925 = vunpack.c.l.b16 %v1768
    %v1926 = vunpack.c.h.b16 %v1768
    %v1927 = vunpack.c.l.b16 %v1769
    %v1928 = vunpack.c.l.b16 %v1770
    %v1929 = vunpack.c.h.b16 %v1770
    %v1930 = vunpack.c.l.b16 %v1771
    %v1931 = vunpack.c.l.b16 %v1772
    %v1932 = vunpack.c.h.b16 %v1772
    %v1933 = vunpack.c.l.b16 %v1773
    %v1934 = vunpack.c.l.b16 %v1774
    %v1935 = vunpack.c.h.b16 %v1774
    %v1936 = vunpack.c.l.b16 %v1775
    %v1937 = vunpack.c.l.b16 %v1776
    %v1938 = vunpack.c.h.b16 %v1776
    %v1939 = vunpack.c.l.b16 %v1777
    %v1940 = vunpack.c.l.b16 %v1778
    %v1941 = vunpack.c.h.b16 %v1778
    %v1942 = vunpack.c.l.b16 %v1779
    %v1943 = vunpack.c.l.b16 %v1780
    %v1944 = vunpack.c.h.b16 %v1780
    %v1945 = vunpack.c.l.b16 %v1781
    %v1946 = vunpack.c.l.b16 %v1782
    %v1947 = vunpack.c.h.b16 %v1782
    %v1948 = vunpack.c.l.b16 %v1783
    %v1949 = vunpack.c.l.b16 %v1784
    %v1950 = vunpack.c.h.b16 %v1784
    %v1951 = vunpack.c.l.b16 %v1785
    %v1952 = vunpack.c.l.b16 %v1786
    %v1953 = vunpack.c.h.b16 %v1786
    %v1954 = vunpack.c.l.b16 %v1787
    %v1955 = vunpack.c.l.b16 %v1788
    %v1956 = vunpack.c.h.b16 %v1788
    %v1957 = vunpack.c.l.b16 %v1789
    %v1958 = vunpack.c.l.b16 %v1790
    %v1959 = vunpack.c.h.b16 %v1790
    %v1960 = vunpack.c.l.b16 %v1791
    %v1961 = vunpack.c.l.b16 %v1792
    %v1962 = vunpack.c.h.b16 %v1792
    %v1963 = vunpack.c.l.b16 %v1793
    %v1964 = vunpack.c.l.b16 %v1794
    %v1965 = vunpack.c.h.b16 %v1794
    %v1966 = vunpack.c.l.b16 %v1795
    %v1967 = vunpack.c.l.b16 %v1796
    %v1968 = vunpack.c.h.b16 %v1796
    %v1969 = vunpack.c.l.b16 %v1797
    %v1970 = vunpack.c.l.b16 %v1798
    %v1971 = vunpack.c.h.b16 %v1798
    %v1972 = vunpack.c.l.b16 %v1799
    %v1973 = vunpack.c.l.b16 %v1800
    %v1974 = vunpack.c.h.b16 %v1800
    %v1975 = vunpack.c.l.b16 %v1801
    %v1976 = vunpack.c.l.b16 %v1802
    %v1977 = vunpack.c.h.b16 %v1802
    %v1978 = vunpack.c.l.b16 %v1803
    %v1979 = vunpack.c.l.b16 %v1804
    %v1980 = vunpack.c.h.b16 %v1804
    %v1981 = vunpack.c.l.b16 %v1805
    %v1982 = vunpack.c.l.b16 %v1806
    %v1983 = vunpack.c.h.b16 %v1806
    %v1984 = vunpack.c.l.b16 %v1807
    %v1985 = vpack.c.b16 %v1892, %v1889
    %v1986 = vpack.c.b16 %v1893, %v1890
    %v1987 = vpack.c.b16 %v1894, %v1891
    %v1988 = vpack.c.b16 %v1898, %v1895
    %v1989 = vpack.c.b16 %v1899, %v1896
    %v1990 = vpack.c.b16 %v1900, %v1897
    %v1991 = vpack.c.b16 %v1904, %v1901
    %v1992 = vpack.c.b16 %v1905, %v1902
    %v1993 = vpack.c.b16 %v1906, %v1903
    %v1994 = vpack.c.b16 %v1910, %v1907
    %v1995 = vpack.c.b16 %v1911, %v1908
    %v1996 = vpack.c.b16 %v1912, %v1909
    %v1997 = vpack.c.b16 %v1916, %v1913
    %v1998 = vpack.c.b16 %v1917, %v1914
    %v1999 = vpack.c.b16 %v1918, %v1915
    %v2000 = vpack.c.b16 %v1922, %v1919
    %v2001 = vpack.c.b16 %v1923, %v1920
    %v2002 = vpack.c.b16 %v1924, %v1921
    %v2003 = vpack.c.b16 %v1928, %v1925
    %v2004 = vpack.c.b16 %v1929, %v1926
    %v2005 = vpack.c.b16 %v1930, %v1927
    %v2006 = vpack.c.b16 %v1934, %v1931
    %v2007 = vpack.c.b16 %v1935, %v1932
    %v2008 = vpack.c.b16 %v1936, %v1933
    %v2009 = vpack.c.b16 %v1940, %v1937
    %v2010 = vpack.c.b16 %v1941, %v1938
    %v2011 = vpack.c.b16 %v1942, %v1939
    %v2012 = vpack.c.b16 %v1946, %v1943
    %v2013 = vpack.c.b16 %v1947, %v1944
    %v2014 = vpack.c.b16 %v1948, %v1945
    %v2015 = vpack.c.b16 %v1952, %v1949
    %v2016 = vpack.c.b16 %v1953, %v1950
    %v2017 = vpack.c.b16 %v1954, %v1951
    %v2018 = vpack.c.b16 %v1958, %v1955
    %v2019 = vpack.c.b16 %v1959, %v1956
    %v2020 = vpack.c.b16 %v1960, %v1957
    %v2021 = vpack.c.b16 %v1964, %v1961
    %v2022 = vpack.c.b16 %v1965, %v1962
    %v2023 = vpack.c.b16 %v1966, %v1963
    %v2024 = vpack.c.b16 %v1970, %v1967
    %v2025 = vpack.c.b16 %v1971, %v1968
    %v2026 = vpack.c.b16 %v1972, %v1969
    %v2027 = vpack.c.b16 %v1976, %v1973
    %v2028 = vpack.c.b16 %v1977, %v1974
    %v2029 = vpack.c.b16 %v1978, %v1975
    %v2030 = vpack.c.b16 %v1982, %v1979
    %v2031 = vpack.c.b16 %v1983, %v1980
    %v2032 = vpack.c.b16 %v1984, %v1981
    %2081 = vmatprep.subr.bf16.mxu0 %v1986
    %2082 = vmatpush1.bf16.msra.mxu0 %v1985
    %2083 = vmatprep.subr.bf16.mxu0 %v1989
    %2084 = vmatpush1.bf16.msra.mxu0 %v1988
    %2085 = vmatprep.subr.bf16.mxu0 %v1992
    %2086 = vmatpush1.bf16.msra.mxu0 %v1991
    %2087 = vmatprep.subr.bf16.mxu0 %v1995
    %2088 = vmatpush1.bf16.msra.mxu0 %v1994
    %2089 = vmatprep.subr.bf16.mxu0 %v1998
    %2090 = vmatpush1.bf16.msra.mxu0 %v1997
    %2091 = vmatprep.subr.bf16.mxu0 %v2001
    %2092 = vmatpush1.bf16.msra.mxu0 %v2000
    %2093 = vmatprep.subr.bf16.mxu0 %v2004
    %2094 = vmatpush1.bf16.msra.mxu0 %v2003
    %2095 = vmatprep.subr.bf16.mxu0 %v2007
    %2096 = vmatpush1.bf16.msra.mxu0 %v2006
    %2097 = vmatprep.subr.bf16.mxu0 %v2010
    %2098 = vmatpush1.bf16.msra.mxu0 %v2009
    %2099 = vmatprep.subr.bf16.mxu0 %v2013
    %2100 = vmatpush1.bf16.msra.mxu0 %v2012
    %2101 = vmatprep.subr.bf16.mxu0 %v2016
    %2102 = vmatpush1.bf16.msra.mxu0 %v2015
    %2103 = vmatprep.subr.bf16.mxu0 %v2019
    %2104 = vmatpush1.bf16.msra.mxu0 %v2018
    %2105 = vmatprep.subr.bf16.mxu0 %v2022
    %2106 = vmatpush1.bf16.msra.mxu0 %v2021
    %2107 = vmatprep.subr.bf16.mxu0 %v2025
    %2108 = vmatpush1.bf16.msra.mxu0 %v2024
    %2109 = vmatprep.subr.bf16.mxu0 %v2028
    %2110 = vmatpush1.bf16.msra.mxu0 %v2027
    %2111 = vmatprep.subr.bf16.mxu0 %v2031
    %2112 = vmatpush1.bf16.msra.mxu0 %v2030
    %2113 = vmatprep.mubr.bf16.mxu0 %v1743
    %2114 = vmatmul.mubr.bf16.gmra.mrb[0].mxu0 %v1190
    %v2115 = vpop.f32.mrb[0].mxu0
    %v2116 = vadd.f32 %v1813, %v2115
    %v2117 = vpop.f32.mrb[0].mxu0
    %v2118 = vadd.f32 %v1817, %v2117
    %v2119 = vpop.f32.mrb[0].mxu0
    %v2120 = vpop.f32.mrb[0].mxu0
    %2121 = vdwg.mxu0
    %2122 = vmatprep.subr.bf16.mxu0 0
    %2123 = vmatpush1.bf16.msra.mxu0 %v1987
    %2124 = vmatprep.subr.bf16.mxu0 0
    %2125 = vmatpush1.bf16.msra.mxu0 %v1990
    %2126 = vmatprep.subr.bf16.mxu0 0
    %2127 = vmatpush1.bf16.msra.mxu0 %v1993
    %2128 = vmatprep.subr.bf16.mxu0 0
    %2129 = vmatpush1.bf16.msra.mxu0 %v1996
    %2130 = vmatprep.subr.bf16.mxu0 0
    %2131 = vmatpush1.bf16.msra.mxu0 %v1999
    %2132 = vmatprep.subr.bf16.mxu0 0
    %2133 = vmatpush1.bf16.msra.mxu0 %v2002
    %2134 = vmatprep.subr.bf16.mxu0 0
    %2135 = vmatpush1.bf16.msra.mxu0 %v2005
    %2136 = vmatprep.subr.bf16.mxu0 0
    %2137 = vmatpush1.bf16.msra.mxu0 %v2008
    %2138 = vmatprep.subr.bf16.mxu0 0
    %2139 = vmatpush1.bf16.msra.mxu0 %v2011
    %2140 = vmatprep.subr.bf16.mxu0 0
    %2141 = vmatpush1.bf16.msra.mxu0 %v2014
    %2142 = vmatprep.subr.bf16.mxu0 0
    %2143 = vmatpush1.bf16.msra.mxu0 %v2017
    %2144 = vmatprep.subr.bf16.mxu0 0
    %2145 = vmatpush1.bf16.msra.mxu0 %v2020
    %2146 = vmatprep.subr.bf16.mxu0 0
    %2147 = vmatpush1.bf16.msra.mxu0 %v2023
    %2148 = vmatprep.subr.bf16.mxu0 0
    %2149 = vmatpush1.bf16.msra.mxu0 %v2026
    %2150 = vmatprep.subr.bf16.mxu0 0
    %2151 = vmatpush1.bf16.msra.mxu0 %v2029
    %2152 = vmatprep.subr.bf16.mxu0 0
    %2153 = vmatpush1.bf16.msra.mxu0 %v2032
    %2154 = vmatprep.mubr.bf16.mxu0 %v1743
    %2155 = vmatmul.mubr.bf16.gmra.mrb[0].mxu0 %v1190
    %v2156 = vpop.f32.mrb[0].mxu0
    %v2157 = vadd.f32 %v1821, %v2156
    %v2158 = vpop.f32.mrb[0].mxu0
    %v2159 = vpop.f32.mrb[0].mxu0
    %v2160 = vpop.f32.mrb[0].mxu0
    %2161 = vdwg.mxu0
    %v2162 = vadd.f32 %v2116, %v1102
    %v2163 = vmul.f32 %v2162, 0.5
    %v2164 = vtanh.pop %v2163
    %v2165 = vadd.f32 %v2164, 1.0
    %v2166 = vmul.f32 %v2165, 0.5
    %v2167 = vadd.f32 %v2118, %v1104
    %v2168 = vmul.f32 %v2167, 0.5
    %v2169 = vtanh.pop %v2168
    %v2170 = vadd.f32 %v2169, 1.0
    %v2171 = vmul.f32 %v2170, 0.5
    %v2172 = vmul.f32 %v2166, %v1143
    %v2173 = vadd.f32 %v2157, %v2172
    %v2174 = vtanh.pop %v2173
    %v2175 = vsub.f32 1.0, %v2171
    %v2176 = vmul.f32 %v2175, %v2174
    %v2177 = vmul.f32 %v2171, %v453
    %v2178 = vadd.f32 %v2176, %v2177
    %v2179 = vpack.c.bf16 %v2178, %v2178
    %v2180 = vld [vmem:[#allocation28] sm:$0xff]
    %v2181 = vld [vmem:[#allocation28 + $0x8] sm:$0xf]
    %v2182 = vld [vmem:[#allocation28 + $0xc] sm:$0xff]
    %v2183 = vld [vmem:[#allocation28 + $0x14] sm:$0xf]
    %v2184 = vld [vmem:[#allocation28 + $0x18] sm:$0xff]
    %v2185 = vld [vmem:[#allocation28 + $0x20] sm:$0xf]
    %v2186 = vld [vmem:[#allocation28 + $0x24] sm:$0xff]
    %v2187 = vld [vmem:[#allocation28 + $0x2c] sm:$0xf]
    %v2188 = vld [vmem:[#allocation28 + $0x30] sm:$0xff]
    %v2189 = vld [vmem:[#allocation28 + $0x38] sm:$0xf]
    %v2190 = vld [vmem:[#allocation28 + $0x3c] sm:$0xff]
    %v2191 = vld [vmem:[#allocation28 + $0x44] sm:$0xf]
    %v2192 = vld [vmem:[#allocation28 + $0x48] sm:$0xff]
    %v2193 = vld [vmem:[#allocation28 + $0x50] sm:$0xf]
    %v2194 = vld [vmem:[#allocation28 + $0x54] sm:$0xff]
    %v2195 = vld [vmem:[#allocation28 + $0x5c] sm:$0xf]
    %v2196 = vld [vmem:[#allocation28 + $0x60] sm:$0xff]
    %v2197 = vld [vmem:[#allocation28 + $0x68] sm:$0xf]
    %v2198 = vld [vmem:[#allocation28 + $0x6c] sm:$0xff]
    %v2199 = vld [vmem:[#allocation28 + $0x74] sm:$0xf]
    %v2200 = vld [vmem:[#allocation28 + $0x78] sm:$0xff]
    %v2201 = vld [vmem:[#allocation28 + $0x80] sm:$0xf]
    %v2202 = vld [vmem:[#allocation28 + $0x84] sm:$0xff]
    %v2203 = vld [vmem:[#allocation28 + $0x8c] sm:$0xf]
    %v2204 = vld [vmem:[#allocation28 + $0x90] sm:$0xff]
    %v2205 = vld [vmem:[#allocation28 + $0x98] sm:$0xf]
    %v2206 = vld [vmem:[#allocation28 + $0x9c] sm:$0xff]
    %v2207 = vld [vmem:[#allocation28 + $0xa4] sm:$0xf]
    %v2208 = vld [vmem:[#allocation28 + $0xa8] sm:$0xff]
    %v2209 = vld [vmem:[#allocation28 + $0xb0] sm:$0xf]
    %v2210 = vld [vmem:[#allocation28 + $0xb4] sm:$0xff]
    %v2211 = vld [vmem:[#allocation28 + $0xbc] sm:$0xf]
    %v2212 = vld [vmem:[#allocation30] sm:$0x7]
    %v2214 = vlaneseq
    %v2215 = vshrl.u32 %v2214, 7
    %v2216 = vsub.s32 0, %v2215
    %v2217 = vrot.slane %v2212, %v2216
    %v2218 = vlaneseq
    %v2219 = vshrl.u32 %v2218, 7
    %v2220 = vsub.s32 1, %v2219
    %v2221 = vrot.slane %v2212, %v2220
    %v2222 = vlaneseq
    %v2223 = vshrl.u32 %v2222, 7
    %v2224 = vsub.s32 2, %v2223
    %v2225 = vrot.slane %v2212, %v2224
    %v2261 = vunpack.c.l.b16 %v2180
    %v2262 = vunpack.c.h.b16 %v2180
    %v2263 = vunpack.c.l.b16 %v2181
    %v2264 = vunpack.c.l.b16 %v2182
    %v2265 = vunpack.c.h.b16 %v2182
    %v2266 = vunpack.c.l.b16 %v2183
    %v2267 = vunpack.c.l.b16 %v2184
    %v2268 = vunpack.c.h.b16 %v2184
    %v2269 = vunpack.c.l.b16 %v2185
    %v2270 = vunpack.c.l.b16 %v2186
    %v2271 = vunpack.c.h.b16 %v2186
    %v2272 = vunpack.c.l.b16 %v2187
    %v2273 = vunpack.c.l.b16 %v2188
    %v2274 = vunpack.c.h.b16 %v2188
    %v2275 = vunpack.c.l.b16 %v2189
    %v2276 = vunpack.c.l.b16 %v2190
    %v2277 = vunpack.c.h.b16 %v2190
    %v2278 = vunpack.c.l.b16 %v2191
    %v2279 = vunpack.c.l.b16 %v2192
    %v2280 = vunpack.c.h.b16 %v2192
    %v2281 = vunpack.c.l.b16 %v2193
    %v2282 = vunpack.c.l.b16 %v2194
    %v2283 = vunpack.c.h.b16 %v2194
    %v2284 = vunpack.c.l.b16 %v2195
    %v2285 = vunpack.c.l.b16 %v2196
    %v2286 = vunpack.c.h.b16 %v2196
    %v2287 = vunpack.c.l.b16 %v2197
    %v2288 = vunpack.c.l.b16 %v2198
    %v2289 = vunpack.c.h.b16 %v2198
    %v2290 = vunpack.c.l.b16 %v2199
    %v2291 = vunpack.c.l.b16 %v2200
    %v2292 = vunpack.c.h.b16 %v2200
    %v2293 = vunpack.c.l.b16 %v2201
    %v2294 = vunpack.c.l.b16 %v2202
    %v2295 = vunpack.c.h.b16 %v2202
    %v2296 = vunpack.c.l.b16 %v2203
    %v2297 = vunpack.c.l.b16 %v2204
    %v2298 = vunpack.c.h.b16 %v2204
    %v2299 = vunpack.c.l.b16 %v2205
    %v2300 = vunpack.c.l.b16 %v2206
    %v2301 = vunpack.c.h.b16 %v2206
    %v2302 = vunpack.c.l.b16 %v2207
    %v2303 = vunpack.c.l.b16 %v2208
    %v2304 = vunpack.c.h.b16 %v2208
    %v2305 = vunpack.c.l.b16 %v2209
    %v2306 = vunpack.c.l.b16 %v2210
    %v2307 = vunpack.c.h.b16 %v2210
    %v2308 = vunpack.c.l.b16 %v2211
    %v2309 = vpack.c.b16 %v2264, %v2261
    %v2310 = vpack.c.b16 %v2265, %v2262
    %v2311 = vpack.c.b16 %v2266, %v2263
    %v2312 = vpack.c.b16 %v2270, %v2267
    %v2313 = vpack.c.b16 %v2271, %v2268
    %v2314 = vpack.c.b16 %v2272, %v2269
    %v2315 = vpack.c.b16 %v2276, %v2273
    %v2316 = vpack.c.b16 %v2277, %v2274
    %v2317 = vpack.c.b16 %v2278, %v2275
    %v2318 = vpack.c.b16 %v2282, %v2279
    %v2319 = vpack.c.b16 %v2283, %v2280
    %v2320 = vpack.c.b16 %v2284, %v2281
    %v2321 = vpack.c.b16 %v2288, %v2285
    %v2322 = vpack.c.b16 %v2289, %v2286
    %v2323 = vpack.c.b16 %v2290, %v2287
    %v2324 = vpack.c.b16 %v2294, %v2291
    %v2325 = vpack.c.b16 %v2295, %v2292
    %v2326 = vpack.c.b16 %v2296, %v2293
    %v2327 = vpack.c.b16 %v2300, %v2297
    %v2328 = vpack.c.b16 %v2301, %v2298
    %v2329 = vpack.c.b16 %v2302, %v2299
    %v2330 = vpack.c.b16 %v2306, %v2303
    %v2331 = vpack.c.b16 %v2307, %v2304
    %v2332 = vpack.c.b16 %v2308, %v2305
    %2357 = vmatprep.subr.bf16.mxu0 %v2310
    %2358 = vmatpush1.bf16.msra.mxu0 %v2309
    %2359 = vmatprep.subr.bf16.mxu0 %v2313
    %2360 = vmatpush1.bf16.msra.mxu0 %v2312
    %2361 = vmatprep.subr.bf16.mxu0 %v2316
    %2362 = vmatpush1.bf16.msra.mxu0 %v2315
    %2363 = vmatprep.subr.bf16.mxu0 %v2319
    %2364 = vmatpush1.bf16.msra.mxu0 %v2318
    %2365 = vmatprep.subr.bf16.mxu0 %v2322
    %2366 = vmatpush1.bf16.msra.mxu0 %v2321
    %2367 = vmatprep.subr.bf16.mxu0 %v2325
    %2368 = vmatpush1.bf16.msra.mxu0 %v2324
    %2369 = vmatprep.subr.bf16.mxu0 %v2328
    %2370 = vmatpush1.bf16.msra.mxu0 %v2327
    %2371 = vmatprep.subr.bf16.mxu0 %v2331
    %2372 = vmatpush1.bf16.msra.mxu0 %v2330
    %2373 = vmatprep.subr.bf16.mxu0 0
    %2374 = vmatpush1.bf16.msra.mxu0 0
    %2375 = vmatprep.subr.bf16.mxu0 0
    %2376 = vmatpush1.bf16.msra.mxu0 0
    %2377 = vmatprep.subr.bf16.mxu0 0
    %2378 = vmatpush1.bf16.msra.mxu0 0
    %2379 = vmatprep.subr.bf16.mxu0 0
    %2380 = vmatpush1.bf16.msra.mxu0 0
    %2381 = vmatprep.subr.bf16.mxu0 0
    %2382 = vmatpush1.bf16.msra.mxu0 0
    %2383 = vmatprep.subr.bf16.mxu0 0
    %2384 = vmatpush1.bf16.msra.mxu0 0
    %2385 = vmatprep.subr.bf16.mxu0 0
    %2386 = vmatpush1.bf16.msra.mxu0 0
    %2387 = vmatprep.subr.bf16.mxu0 0
    %2388 = vmatpush1.bf16.msra.mxu0 0
    %2389 = vmatprep.mubr.bf16.mxu0 0
    %2390 = vmatmul.mubr.bf16.gmra.mrb[0].mxu0 %v2179
    %v2391 = vpop.f32.mrb[0].mxu0
    %v2392 = vadd.f32 %v2217, %v2391
    %v2393 = vpop.f32.mrb[0].mxu0
    %v2394 = vadd.f32 %v2221, %v2393
    %v2395 = vpop.f32.mrb[0].mxu0
    %v2396 = vpop.f32.mrb[0].mxu0
    %2397 = vdwg.mxu0
    %2398 = vmatprep.subr.bf16.mxu0 0
    %2399 = vmatpush1.bf16.msra.mxu0 %v2311
    %2400 = vmatprep.subr.bf16.mxu0 0
    %2401 = vmatpush1.bf16.msra.mxu0 %v2314
    %2402 = vmatprep.subr.bf16.mxu0 0
    %2403 = vmatpush1.bf16.msra.mxu0 %v2317
    %2404 = vmatprep.subr.bf16.mxu0 0
    %2405 = vmatpush1.bf16.msra.mxu0 %v2320
    %2406 = vmatprep.subr.bf16.mxu0 0
    %2407 = vmatpush1.bf16.msra.mxu0 %v2323
    %2408 = vmatprep.subr.bf16.mxu0 0
    %2409 = vmatpush1.bf16.msra.mxu0 %v2326
    %2410 = vmatprep.subr.bf16.mxu0 0
    %2411 = vmatpush1.bf16.msra.mxu0 %v2329
    %2412 = vmatprep.subr.bf16.mxu0 0
    %2413 = vmatpush1.bf16.msra.mxu0 %v2332
    %2414 = vmatprep.subr.bf16.mxu0 0
    %2415 = vmatpush1.bf16.msra.mxu0 0
    %2416 = vmatprep.subr.bf16.mxu0 0
    %2417 = vmatpush1.bf16.msra.mxu0 0
    %2418 = vmatprep.subr.bf16.mxu0 0
    %2419 = vmatpush1.bf16.msra.mxu0 0
    %2420 = vmatprep.subr.bf16.mxu0 0
    %2421 = vmatpush1.bf16.msra.mxu0 0
    %2422 = vmatprep.subr.bf16.mxu0 0
    %2423 = vmatpush1.bf16.msra.mxu0 0
    %2424 = vmatprep.subr.bf16.mxu0 0
    %2425 = vmatpush1.bf16.msra.mxu0 0
    %2426 = vmatprep.subr.bf16.mxu0 0
    %2427 = vmatpush1.bf16.msra.mxu0 0
    %2428 = vmatprep.subr.bf16.mxu0 0
    %2429 = vmatpush1.bf16.msra.mxu0 0
    %2430 = vmatprep.mubr.bf16.mxu0 0
    %2431 = vmatmul.mubr.bf16.gmra.mrb[0].mxu0 %v2179
    %v2432 = vpop.f32.mrb[0].mxu0
    %v2433 = vadd.f32 %v2225, %v2432
    %v2434 = vpop.f32.mrb[0].mxu0
    %v2435 = vpop.f32.mrb[0].mxu0
    %v2436 = vpop.f32.mrb[0].mxu0
    %2437 = vdwg.mxu0
    %v2438 = vadd.f32 %v2392, %v1145
    %v2439 = vmul.f32 %v2438, 0.5
    %v2440 = vtanh.pop %v2439
    %v2441 = vadd.f32 %v2440, 1.0
    %v2442 = vmul.f32 %v2441, 0.5
    %v2443 = vadd.f32 %v2394, %v1184
    %v2444 = vmul.f32 %v2443, 0.5
    %v2445 = vtanh.pop %v2444
    %v2446 = vadd.f32 %v2445, 1.0
    %v2447 = vmul.f32 %v2446, 0.5
    %v2448 = vmul.f32 %v2442, %v1186
    %v2449 = vadd.f32 %v2433, %v2448
    %v2450 = vtanh.pop %v2449
    %v2451 = vsub.f32 1.0, %v2447
    %v2452 = vmul.f32 %v2451, %v2450
    %v2453 = vmul.f32 %v2447, %v454
    %v2454 = vadd.f32 %v2452, %v2453
    %s2455 = scalar_lea.vmem [#allocation2], 8
    %v2456 = vld [vmem:[%s2455] sm:$0xff]
    %s2457 = scalar_lea.vmem [#allocation4], 8
    %v2458 = vld [vmem:[%s2457] sm:$0xff]
    %v2459 = vpack.c.bf16 %v2454, %v2454
    %2460 = vmatprep.subr.bf16.mxu0 %v876
    %2461 = vmatpush1.bf16.msra.mxu0 %v875
    %2462 = vmatprep.subr.bf16.mxu0 %v882
    %2463 = vmatpush1.bf16.msra.mxu0 %v881
    %2464 = vmatprep.subr.bf16.mxu0 %v888
    %2465 = vmatpush1.bf16.msra.mxu0 %v887
    %2466 = vmatprep.subr.bf16.mxu0 %v894
    %2467 = vmatpush1.bf16.msra.mxu0 %v893
    %2468 = vmatprep.subr.bf16.mxu0 %v900
    %2469 = vmatpush1.bf16.msra.mxu0 %v899
    %2470 = vmatprep.subr.bf16.mxu0 %v906
    %2471 = vmatpush1.bf16.msra.mxu0 %v905
    %2472 = vmatprep.subr.bf16.mxu0 %v912
    %2473 = vmatpush1.bf16.msra.mxu0 %v911
    %2474 = vmatprep.subr.bf16.mxu0 %v918
    %2475 = vmatpush1.bf16.msra.mxu0 %v917
    %2476 = vmatprep.subr.bf16.mxu0 %v924
    %2477 = vmatpush1.bf16.msra.mxu0 %v923
    %2478 = vmatprep.subr.bf16.mxu0 %v930
    %2479 = vmatpush1.bf16.msra.mxu0 %v929
    %2480 = vmatprep.subr.bf16.mxu0 %v936
    %2481 = vmatpush1.bf16.msra.mxu0 %v935
    %2482 = vmatprep.subr.bf16.mxu0 %v942
    %2483 = vmatpush1.bf16.msra.mxu0 %v941
    %2484 = vmatprep.subr.bf16.mxu0 %v948
    %2485 = vmatpush1.bf16.msra.mxu0 %v947
    %2486 = vmatprep.subr.bf16.mxu0 %v954
    %2487 = vmatpush1.bf16.msra.mxu0 %v953
    %2488 = vmatprep.subr.bf16.mxu0 %v960
    %2489 = vmatpush1.bf16.msra.mxu0 %v959
    %2490 = vmatprep.subr.bf16.mxu0 %v966
    %2491 = vmatpush1.bf16.msra.mxu0 %v965
    %2492 = vmatprep.mubr.bf16.mxu0 %v2459
    %2493 = vmatmul.mubr.bf16.gmra.mrb[0].mxu0 %v2179
    %v2494 = vpop.f32.mrb[0].mxu0
    %v2495 = vadd.f32 %v560, %v2494
    %v2496 = vpop.f32.mrb[0].mxu0
    %v2497 = vadd.f32 %v564, %v2496
    %v2498 = vpop.f32.mrb[0].mxu0
    %v2499 = vpop.f32.mrb[0].mxu0
    %2500 = vdwg.mxu0
    %2501 = vmatprep.subr.bf16.mxu0 %v878
    %2502 = vmatpush1.bf16.msra.mxu0 %v877
    %2503 = vmatprep.subr.bf16.mxu0 %v884
    %2504 = vmatpush1.bf16.msra.mxu0 %v883
    %2505 = vmatprep.subr.bf16.mxu0 %v890
    %2506 = vmatpush1.bf16.msra.mxu0 %v889
    %2507 = vmatprep.subr.bf16.mxu0 %v896
    %2508 = vmatpush1.bf16.msra.mxu0 %v895
    %2509 = vmatprep.subr.bf16.mxu0 %v902
    %2510 = vmatpush1.bf16.msra.mxu0 %v901
    %2511 = vmatprep.subr.bf16.mxu0 %v908
    %2512 = vmatpush1.bf16.msra.mxu0 %v907
    %2513 = vmatprep.subr.bf16.mxu0 %v914
    %2514 = vmatpush1.bf16.msra.mxu0 %v913
    %2515 = vmatprep.subr.bf16.mxu0 %v920
    %2516 = vmatpush1.bf16.msra.mxu0 %v919
    %2517 = vmatprep.subr.bf16.mxu0 %v926
    %2518 = vmatpush1.bf16.msra.mxu0 %v925
    %2519 = vmatprep.subr.bf16.mxu0 %v932
    %2520 = vmatpush1.bf16.msra.mxu0 %v931
    %2521 = vmatprep.subr.bf16.mxu0 %v938
    %2522 = vmatpush1.bf16.msra.mxu0 %v937
    %2523 = vmatprep.subr.bf16.mxu0 %v944
    %2524 = vmatpush1.bf16.msra.mxu0 %v943
    %2525 = vmatprep.subr.bf16.mxu0 %v950
    %2526 = vmatpush1.bf16.msra.mxu0 %v949
    %2527 = vmatprep.subr.bf16.mxu0 %v956
    %2528 = vmatpush1.bf16.msra.mxu0 %v955
    %2529 = vmatprep.subr.bf16.mxu0 %v962
    %2530 = vmatpush1.bf16.msra.mxu0 %v961
    %2531 = vmatprep.subr.bf16.mxu0 %v968
    %2532 = vmatpush1.bf16.msra.mxu0 %v967
    %2533 = vmatprep.mubr.bf16.mxu0 %v2459
    %2534 = vmatmul.mubr.bf16.gmra.mrb[0].mxu0 %v2179
    %v2535 = vpop.f32.mrb[0].mxu0
    %v2536 = vadd.f32 %v568, %v2535
    %v2537 = vpop.f32.mrb[0].mxu0
    %v2538 = vadd.f32 %v572, %v2537
    %v2539 = vpop.f32.mrb[0].mxu0
    %v2540 = vpop.f32.mrb[0].mxu0
    %2541 = vdwg.mxu0
    %2542 = vmatprep.subr.bf16.mxu0 %v880
    %2543 = vmatpush1.bf16.msra.mxu0 %v879
    %2544 = vmatprep.subr.bf16.mxu0 %v886
    %2545 = vmatpush1.bf16.msra.mxu0 %v885
    %2546 = vmatprep.subr.bf16.mxu0 %v892
    %2547 = vmatpush1.bf16.msra.mxu0 %v891
    %2548 = vmatprep.subr.bf16.mxu0 %v898
    %2549 = vmatpush1.bf16.msra.mxu0 %v897
    %2550 = vmatprep.subr.bf16.mxu0 %v904
    %2551 = vmatpush1.bf16.msra.mxu0 %v903
    %2552 = vmatprep.subr.bf16.mxu0 %v910
    %2553 = vmatpush1.bf16.msra.mxu0 %v909
    %2554 = vmatprep.subr.bf16.mxu0 %v916
    %2555 = vmatpush1.bf16.msra.mxu0 %v915
    %2556 = vmatprep.subr.bf16.mxu0 %v922
    %2557 = vmatpush1.bf16.msra.mxu0 %v921
    %2558 = vmatprep.subr.bf16.mxu0 %v928
    %2559 = vmatpush1.bf16.msra.mxu0 %v927
    %2560 = vmatprep.subr.bf16.mxu0 %v934
    %2561 = vmatpush1.bf16.msra.mxu0 %v933
    %2562 = vmatprep.subr.bf16.mxu0 %v940
    %2563 = vmatpush1.bf16.msra.mxu0 %v939
    %2564 = vmatprep.subr.bf16.mxu0 %v946
    %2565 = vmatpush1.bf16.msra.mxu0 %v945
    %2566 = vmatprep.subr.bf16.mxu0 %v952
    %2567 = vmatpush1.bf16.msra.mxu0 %v951
    %2568 = vmatprep.subr.bf16.mxu0 %v958
    %2569 = vmatpush1.bf16.msra.mxu0 %v957
    %2570 = vmatprep.subr.bf16.mxu0 %v964
    %2571 = vmatpush1.bf16.msra.mxu0 %v963
    %2572 = vmatprep.subr.bf16.mxu0 %v970
    %2573 = vmatpush1.bf16.msra.mxu0 %v969
    %2574 = vmatprep.mubr.bf16.mxu0 %v2459
    %2575 = vmatmul.mubr.bf16.gmra.mrb[0].mxu0 %v2179
    %v2576 = vpop.f32.mrb[0].mxu0
    %v2577 = vadd.f32 %v576, %v2576
    %v2578 = vpop.f32.mrb[0].mxu0
    %v2579 = vadd.f32 %v580, %v2578
    %v2580 = vpop.f32.mrb[0].mxu0
    %v2581 = vpop.f32.mrb[0].mxu0
    %2582 = vdwg.mxu0
    %v2583 = vpack.c.bf16 %v2456, %v2456
    %2584 = vmatprep.subr.bf16.mxu0 0
    %2585 = vmatpush1.bf16.msra.mxu0 %v1294
    %2586 = vmatprep.subr.bf16.mxu0 0
    %2587 = vmatpush1.bf16.msra.mxu0 %v1295
    %2588 = vmatprep.subr.bf16.mxu0 0
    %2589 = vmatpush1.bf16.msra.mxu0 %v1296
    %2590 = vmatprep.subr.bf16.mxu0 0
    %2591 = vmatpush1.bf16.msra.mxu0 %v1297
    %2592 = vmatprep.subr.bf16.mxu0 0
    %2593 = vmatpush1.bf16.msra.mxu0 %v1298
    %2594 = vmatprep.subr.bf16.mxu0 0
    %2595 = vmatpush1.bf16.msra.mxu0 %v1299
    %2596 = vmatprep.subr.bf16.mxu0 0
    %2597 = vmatpush1.bf16.msra.mxu0 %v1300
    %2598 = vmatprep.subr.bf16.mxu0 0
    %2599 = vmatpush1.bf16.msra.mxu0 %v1301
    %2600 = vmatprep.subr.bf16.mxu0 0
    %2601 = vmatpush1.bf16.msra.mxu0 %v1302
    %2602 = vmatprep.subr.bf16.mxu0 0
    %2603 = vmatpush1.bf16.msra.mxu0 %v1303
    %2604 = vmatprep.subr.bf16.mxu0 0
    %2605 = vmatpush1.bf16.msra.mxu0 %v1304
    %2606 = vmatprep.subr.bf16.mxu0 0
    %2607 = vmatpush1.bf16.msra.mxu0 %v1305
    %2608 = vmatprep.subr.bf16.mxu0 0
    %2609 = vmatpush1.bf16.msra.mxu0 %v1306
    %2610 = vmatprep.subr.bf16.mxu0 0
    %2611 = vmatpush1.bf16.msra.mxu0 %v1307
    %2612 = vmatprep.subr.bf16.mxu0 0
    %2613 = vmatpush1.bf16.msra.mxu0 %v1308
    %2614 = vmatprep.subr.bf16.mxu0 0
    %2615 = vmatpush1.bf16.msra.mxu0 %v1309
    %2616 = vmatprep.mubr.bf16.mxu0 %v2459
    %2617 = vmatmul.mubr.bf16.gmra.mrb[0].mxu0 %v2583
    %v2618 = vpop.f32.mrb[0].mxu0
    %v2619 = vadd.f32 %v1228, %v2618
    %v2620 = vpop.f32.mrb[0].mxu0
    %v2621 = vpop.f32.mrb[0].mxu0
    %v2622 = vpop.f32.mrb[0].mxu0
    %2623 = vdwg.mxu0
    %v2624 = vmax.f32 %v2619, 0.0
    %v2625 = vpack.c.bf16 %v2454, %v2178
    %2626 = vmatprep.subr.bf16.mxu0 0
    %2627 = vmatpush1.bf16.msra.mxu0 %v1423
    %2628 = vmatprep.subr.bf16.mxu0 0
    %2629 = vmatpush1.bf16.msra.mxu0 %v1424
    %2630 = vmatprep.subr.bf16.mxu0 0
    %2631 = vmatpush1.bf16.msra.mxu0 %v1425
    %2632 = vmatprep.subr.bf16.mxu0 0
    %2633 = vmatpush1.bf16.msra.mxu0 %v1426
    %2634 = vmatprep.subr.bf16.mxu0 0
    %2635 = vmatpush1.bf16.msra.mxu0 %v1427
    %2636 = vmatprep.subr.bf16.mxu0 0
    %2637 = vmatpush1.bf16.msra.mxu0 %v1428
    %2638 = vmatprep.subr.bf16.mxu0 0
    %2639 = vmatpush1.bf16.msra.mxu0 %v1429
    %2640 = vmatprep.subr.bf16.mxu0 0
    %2641 = vmatpush1.bf16.msra.mxu0 %v1430
    %2642 = vmatprep.subr.bf16.mxu0 0
    %2643 = vmatpush1.bf16.msra.mxu0 0
    %2644 = vmatprep.subr.bf16.mxu0 0
    %2645 = vmatpush1.bf16.msra.mxu0 0
    %2646 = vmatprep.subr.bf16.mxu0 0
    %2647 = vmatpush1.bf16.msra.mxu0 0
    %2648 = vmatprep.subr.bf16.mxu0 0
    %2649 = vmatpush1.bf16.msra.mxu0 0
    %2650 = vmatprep.subr.bf16.mxu0 0
    %2651 = vmatpush1.bf16.msra.mxu0 0
    %2652 = vmatprep.subr.bf16.mxu0 0
    %2653 = vmatpush1.bf16.msra.mxu0 0
    %2654 = vmatprep.subr.bf16.mxu0 0
    %2655 = vmatpush1.bf16.msra.mxu0 0
    %2656 = vmatprep.subr.bf16.mxu0 0
    %2657 = vmatpush1.bf16.msra.mxu0 0
    %2658 = vmatprep.mubr.bf16.mxu0 0
    %2659 = vmatmul.mubr.bf16.gmra.mrb[0].mxu0 %v2625
    %v2660 = vpop.f32.mrb[0].mxu0
    %v2661 = vadd.f32 %v1389, %v2660
    %v2662 = vpop.f32.mrb[0].mxu0
    %v2663 = vpop.f32.mrb[0].mxu0
    %v2664 = vadd.f32 %v1389, %v2663
    %v2665 = vpop.f32.mrb[0].mxu0
    %2666 = vdwg.mxu0
    %v2667 = vmax.f32 %v2661, 0.0
    %v2668 = vmax.f32 %v2664, 0.0
    %v2669 = vpack.c.bf16 %v2667, %v2624
    %v2670 = vpack.c.bf16 %v2668, %v2668
    %2671 = vmatprep.subr.bf16.mxu0 0
    %2672 = vmatpush1.bf16.msra.mxu0 %v1539
    %2673 = vmatprep.subr.bf16.mxu0 0
    %2674 = vmatpush1.bf16.msra.mxu0 %v1540
    %2675 = vmatprep.subr.bf16.mxu0 0
    %2676 = vmatpush1.bf16.msra.mxu0 %v1541
    %2677 = vmatprep.subr.bf16.mxu0 0
    %2678 = vmatpush1.bf16.msra.mxu0 %v1542
    %2679 = vmatprep.subr.bf16.mxu0 0
    %2680 = vmatpush1.bf16.msra.mxu0 %v1543
    %2681 = vmatprep.subr.bf16.mxu0 0
    %2682 = vmatpush1.bf16.msra.mxu0 %v1544
    %2683 = vmatprep.subr.bf16.mxu0 0
    %2684 = vmatpush1.bf16.msra.mxu0 %v1545
    %2685 = vmatprep.subr.bf16.mxu0 0
    %2686 = vmatpush1.bf16.msra.mxu0 %v1546
    %2687 = vmatprep.subr.bf16.mxu0 0
    %2688 = vmatpush1.bf16.msra.mxu0 0
    %2689 = vmatprep.subr.bf16.mxu0 0
    %2690 = vmatpush1.bf16.msra.mxu0 0
    %2691 = vmatprep.subr.bf16.mxu0 0
    %2692 = vmatpush1.bf16.msra.mxu0 0
    %2693 = vmatprep.subr.bf16.mxu0 0
    %2694 = vmatpush1.bf16.msra.mxu0 0
    %2695 = vmatprep.subr.bf16.mxu0 0
    %2696 = vmatpush1.bf16.msra.mxu0 0
    %2697 = vmatprep.subr.bf16.mxu0 0
    %2698 = vmatpush1.bf16.msra.mxu0 0
    %2699 = vmatprep.subr.bf16.mxu0 0
    %2700 = vmatpush1.bf16.msra.mxu0 0
    %2701 = vmatprep.subr.bf16.mxu0 0
    %2702 = vmatpush1.bf16.msra.mxu0 0
    %2703 = vmatprep.mubr.bf16.mxu0 0
    %2704 = vmatmul.mubr.bf16.gmra.mrb[0].mxu0 %v2669
    %v2705 = vpop.f32.mrb[0].mxu0
    %v2706 = vadd.f32 %v1505, %v2705
    %v2707 = vpop.f32.mrb[0].mxu0
    %v2708 = vpop.f32.mrb[0].mxu0
    %v2709 = vadd.f32 %v1505, %v2708
    %v2710 = vpop.f32.mrb[0].mxu0
    %2711 = vmatprep.mubr.bf16.mxu0 0
    %2712 = vmatmul.mubr.bf16.gmra.mrb[0].mxu0 %v2670
    %v2713 = vpop.f32.mrb[0].mxu0
    %v2714 = vadd.f32 %v1505, %v2713
    %v2715 = vpop.f32.mrb[0].mxu0
    %v2716 = vpop.f32.mrb[0].mxu0
    %v2717 = vpop.f32.mrb[0].mxu0
    %2718 = vdwg.mxu0
    %vm2719 = vcmp.gt.f32.partialorder %v2706, 20.0
    %v2720 = vmin.f32 %v2706, 20.0
    %v2721 = vmul.f32 %v2720, 1.442695
    %v2722 = vpow.pop %v2721
    %v2723 = vadd.f32 %v2722, 1.0
    %v2724 = vlog2.pop %v2723
    %v2725 = vmul.f32 %v2724, 0.6931472
    %v2726 = vmul.f32 -0.5, %v2722
    %v2727 = vadd.f32 %v2726, 1.0
    %v2728 = vmul.f32 %v2727, %v2722
    %v2729 = vand.u32 2147483647, %v2722
    %vm2730 = vcmp.lt.f32.partialorder %v2729, 0.0004427343
    %v2731 = vsel %vm2730, %v2728, %v2725
    %v2732 = vsel %vm2719, %v2706, %v2731
    %vm2733 = vcmp.gt.f32.partialorder %v2709, 20.0
    %vm2734 = vcmp.gt.f32.partialorder %v2714, 20.0
    %v2735 = vmin.f32 %v2709, 20.0
    %v2736 = vmin.f32 %v2714, 20.0
    %v2737 = vmul.f32 %v2735, 1.442695
    %v2738 = vpow.pop %v2737
    %v2739 = vmul.f32 %v2736, 1.442695
    %v2740 = vpow.pop %v2739
    %v2741 = vadd.f32 %v2738, 1.0
    %v2742 = vlog2.pop %v2741
    %v2743 = vmul.f32 %v2742, 0.6931472
    %v2744 = vmul.f32 -0.5, %v2738
    %v2745 = vadd.f32 %v2744, 1.0
    %v2746 = vmul.f32 %v2745, %v2738
    %v2747 = vand.u32 2147483647, %v2738
    %vm2748 = vcmp.lt.f32.partialorder %v2747, 0.0004427343
    %v2749 = vsel %vm2748, %v2746, %v2743
    %v2750 = vadd.f32 %v2740, 1.0
    %v2751 = vlog2.pop %v2750
    %v2752 = vmul.f32 %v2751, 0.6931472
    %v2753 = vmul.f32 -0.5, %v2740
    %v2754 = vadd.f32 %v2753, 1.0
    %v2755 = vmul.f32 %v2754, %v2740
    %v2756 = vand.u32 2147483647, %v2740
    %vm2757 = vcmp.lt.f32.partialorder %v2756, 0.0004427343
    %v2758 = vsel %vm2757, %v2755, %v2752
    %v2759 = vsel %vm2733, %v2709, %v2749
    %v2760 = vsel %vm2734, %v2714, %v2758
    %v2761 = vsub.f32 %v2706, %v2709
    %v2762 = vsub.f32 %v2706, %v2714
    %v2763 = vrcp.pop %v2759
    %v2764 = vrcp.pop %v2760
    %v2765 = vmul.f32 %v2732, %v2763
    %v2766 = vmul.f32 %v2732, %v2764
    %v2767 = vlog2.pop %v2765
    %v2768 = vmul.f32 %v2767, 0.6931472
    %v2769 = vlog2.pop %v2766
    %v2770 = vmul.f32 %v2769, 0.6931472
    %v2771 = vmul.f32 %v2768, -2.0
    %v2772 = vmul.f32 %v2770, -2.0
    %v2773 = vmul.f32 %v2732, %v2732
    %v2774 = vmul.f32 %v2761, %v2761
    %v2775 = vmul.f32 %v2762, %v2762
    %v2776 = vadd.f32 %v2773, %v2774
    %v2777 = vadd.f32 %v2773, %v2775
    %v2778 = vmul.f32 %v2763, %v2763
    %v2779 = vmul.f32 %v2764, %v2764
    %v2780 = vmul.f32 %v2776, %v2778
    %v2781 = vmul.f32 %v2777, %v2779
    %v2782 = vadd.f32 %v2771, %v2780
    %v2783 = vadd.f32 %v2772, %v2781
    %v2784 = vsub.f32 %v2782, 1.0
    %v2785 = vsub.f32 %v2783, 1.0
    %v2786 = vadd.f32 %v1670, %v2784
    %v2787 = vadd.f32 %v1671, %v2785
    %v2788 = vmul.f32 %v2458, %v2732
    %v2789 = vadd.f32 %v2788, %v2706
    %v2790 = vpack.c.bf16 %v2789, %v2789
    %v2792 = vsel %vm1698, %v2790, 0
    %2794 = vmatprep.subr.bf16.mxu0 0
    %2795 = vmatpush1.bf16.msra.mxu0 %v1694
    %2796 = vmatprep.subr.bf16.mxu0 0
    %2797 = vmatpush1.bf16.msra.mxu0 %v1695
    %2798 = vmatprep.subr.bf16.mxu0 0
    %2799 = vmatpush1.bf16.msra.mxu0 0
    %2800 = vmatprep.subr.bf16.mxu0 0
    %2801 = vmatpush1.bf16.msra.mxu0 0
    %2802 = vmatprep.subr.bf16.mxu0 0
    %2803 = vmatpush1.bf16.msra.mxu0 0
    %2804 = vmatprep.subr.bf16.mxu0 0
    %2805 = vmatpush1.bf16.msra.mxu0 0
    %2806 = vmatprep.subr.bf16.mxu0 0
    %2807 = vmatpush1.bf16.msra.mxu0 0
    %2808 = vmatprep.subr.bf16.mxu0 0
    %2809 = vmatpush1.bf16.msra.mxu0 0
    %2810 = vmatprep.subr.bf16.mxu0 0
    %2811 = vmatpush1.bf16.msra.mxu0 0
    %2812 = vmatprep.subr.bf16.mxu0 0
    %2813 = vmatpush1.bf16.msra.mxu0 0
    %2814 = vmatprep.subr.bf16.mxu0 0
    %2815 = vmatpush1.bf16.msra.mxu0 0
    %2816 = vmatprep.subr.bf16.mxu0 0
    %2817 = vmatpush1.bf16.msra.mxu0 0
    %2818 = vmatprep.subr.bf16.mxu0 0
    %2819 = vmatpush1.bf16.msra.mxu0 0
    %2820 = vmatprep.subr.bf16.mxu0 0
    %2821 = vmatpush1.bf16.msra.mxu0 0
    %2822 = vmatprep.subr.bf16.mxu0 0
    %2823 = vmatpush1.bf16.msra.mxu0 0
    %2824 = vmatprep.subr.bf16.mxu0 0
    %2825 = vmatpush1.bf16.msra.mxu0 0
    %2826 = vmatprep.mubr.bf16.mxu0 0
    %2827 = vmatmul.mubr.bf16.gmra.mrb[0].mxu0 %v2792
    %v2828 = vpop.f32.mrb[0].mxu0
    %v2829 = vadd.f32 %v1684, %v2828
    %v2830 = vpop.f32.mrb[0].mxu0
    %v2831 = vpop.f32.mrb[0].mxu0
    %v2832 = vpop.f32.mrb[0].mxu0
    %2833 = vdwg.mxu0
    %v2834 = vmax.f32 %v2829, 0.0
    %v2835 = vpack.c.bf16 %v2834, %v2834
    %2836 = vmatprep.subr.bf16.mxu0 %v1986
    %2837 = vmatpush1.bf16.msra.mxu0 %v1985
    %2838 = vmatprep.subr.bf16.mxu0 %v1989
    %2839 = vmatpush1.bf16.msra.mxu0 %v1988
    %2840 = vmatprep.subr.bf16.mxu0 %v1992
    %2841 = vmatpush1.bf16.msra.mxu0 %v1991
    %2842 = vmatprep.subr.bf16.mxu0 %v1995
    %2843 = vmatpush1.bf16.msra.mxu0 %v1994
    %2844 = vmatprep.subr.bf16.mxu0 %v1998
    %2845 = vmatpush1.bf16.msra.mxu0 %v1997
    %2846 = vmatprep.subr.bf16.mxu0 %v2001
    %2847 = vmatpush1.bf16.msra.mxu0 %v2000
    %2848 = vmatprep.subr.bf16.mxu0 %v2004
    %2849 = vmatpush1.bf16.msra.mxu0 %v2003
    %2850 = vmatprep.subr.bf16.mxu0 %v2007
    %2851 = vmatpush1.bf16.msra.mxu0 %v2006
    %2852 = vmatprep.subr.bf16.mxu0 %v2010
    %2853 = vmatpush1.bf16.msra.mxu0 %v2009
    %2854 = vmatprep.subr.bf16.mxu0 %v2013
    %2855 = vmatpush1.bf16.msra.mxu0 %v2012
    %2856 = vmatprep.subr.bf16.mxu0 %v2016
    %2857 = vmatpush1.bf16.msra.mxu0 %v2015
    %2858 = vmatprep.subr.bf16.mxu0 %v2019
    %2859 = vmatpush1.bf16.msra.mxu0 %v2018
    %2860 = vmatprep.subr.bf16.mxu0 %v2022
    %2861 = vmatpush1.bf16.msra.mxu0 %v2021
    %2862 = vmatprep.subr.bf16.mxu0 %v2025
    %2863 = vmatpush1.bf16.msra.mxu0 %v2024
    %2864 = vmatprep.subr.bf16.mxu0 %v2028
    %2865 = vmatpush1.bf16.msra.mxu0 %v2027
    %2866 = vmatprep.subr.bf16.mxu0 %v2031
    %2867 = vmatpush1.bf16.msra.mxu0 %v2030
    %2868 = vmatprep.mubr.bf16.mxu0 %v2835
    %2869 = vmatmul.mubr.bf16.gmra.mrb[0].mxu0 %v2583
    %v2870 = vpop.f32.mrb[0].mxu0
    %v2871 = vadd.f32 %v1813, %v2870
    %v2872 = vpop.f32.mrb[0].mxu0
    %v2873 = vadd.f32 %v1817, %v2872
    %v2874 = vpop.f32.mrb[0].mxu0
    %v2875 = vpop.f32.mrb[0].mxu0
    %2876 = vdwg.mxu0
    %2877 = vmatprep.subr.bf16.mxu0 0
    %2878 = vmatpush1.bf16.msra.mxu0 %v1987
    %2879 = vmatprep.subr.bf16.mxu0 0
    %2880 = vmatpush1.bf16.msra.mxu0 %v1990
    %2881 = vmatprep.subr.bf16.mxu0 0
    %2882 = vmatpush1.bf16.msra.mxu0 %v1993
    %2883 = vmatprep.subr.bf16.mxu0 0
    %2884 = vmatpush1.bf16.msra.mxu0 %v1996
    %2885 = vmatprep.subr.bf16.mxu0 0
    %2886 = vmatpush1.bf16.msra.mxu0 %v1999
    %2887 = vmatprep.subr.bf16.mxu0 0
    %2888 = vmatpush1.bf16.msra.mxu0 %v2002
    %2889 = vmatprep.subr.bf16.mxu0 0
    %2890 = vmatpush1.bf16.msra.mxu0 %v2005
    %2891 = vmatprep.subr.bf16.mxu0 0
    %2892 = vmatpush1.bf16.msra.mxu0 %v2008
    %2893 = vmatprep.subr.bf16.mxu0 0
    %2894 = vmatpush1.bf16.msra.mxu0 %v2011
    %2895 = vmatprep.subr.bf16.mxu0 0
    %2896 = vmatpush1.bf16.msra.mxu0 %v2014
    %2897 = vmatprep.subr.bf16.mxu0 0
    %2898 = vmatpush1.bf16.msra.mxu0 %v2017
    %2899 = vmatprep.subr.bf16.mxu0 0
    %2900 = vmatpush1.bf16.msra.mxu0 %v2020
    %2901 = vmatprep.subr.bf16.mxu0 0
    %2902 = vmatpush1.bf16.msra.mxu0 %v2023
    %2903 = vmatprep.subr.bf16.mxu0 0
    %2904 = vmatpush1.bf16.msra.mxu0 %v2026
    %2905 = vmatprep.subr.bf16.mxu0 0
    %2906 = vmatpush1.bf16.msra.mxu0 %v2029
    %2907 = vmatprep.subr.bf16.mxu0 0
    %2908 = vmatpush1.bf16.msra.mxu0 %v2032
    %2909 = vmatprep.mubr.bf16.mxu0 %v2835
    %2910 = vmatmul.mubr.bf16.gmra.mrb[0].mxu0 %v2583
    %v2911 = vpop.f32.mrb[0].mxu0
    %v2912 = vadd.f32 %v1821, %v2911
    %v2913 = vpop.f32.mrb[0].mxu0
    %v2914 = vpop.f32.mrb[0].mxu0
    %v2915 = vpop.f32.mrb[0].mxu0
    %2916 = vdwg.mxu0
    %v2917 = vadd.f32 %v2871, %v2495
    %v2918 = vmul.f32 %v2917, 0.5
    %v2919 = vtanh.pop %v2918
    %v2920 = vadd.f32 %v2919, 1.0
    %v2921 = vmul.f32 %v2920, 0.5
    %v2922 = vadd.f32 %v2873, %v2497
    %v2923 = vmul.f32 %v2922, 0.5
    %v2924 = vtanh.pop %v2923
    %v2925 = vadd.f32 %v2924, 1.0
    %v2926 = vmul.f32 %v2925, 0.5
    %v2927 = vmul.f32 %v2921, %v2536
    %v2928 = vadd.f32 %v2912, %v2927
    %v2929 = vtanh.pop %v2928
    %v2930 = vsub.f32 1.0, %v2926
    %v2931 = vmul.f32 %v2930, %v2929
    %v2932 = vmul.f32 %v2926, %v2178
    %v2933 = vadd.f32 %v2931, %v2932
    %v2934 = vpack.c.bf16 %v2933, %v2933
    %2935 = vmatprep.subr.bf16.mxu0 %v2310
    %2936 = vmatpush1.bf16.msra.mxu0 %v2309
    %2937 = vmatprep.subr.bf16.mxu0 %v2313
    %2938 = vmatpush1.bf16.msra.mxu0 %v2312
    %2939 = vmatprep.subr.bf16.mxu0 %v2316
    %2940 = vmatpush1.bf16.msra.mxu0 %v2315
    %2941 = vmatprep.subr.bf16.mxu0 %v2319
    %2942 = vmatpush1.bf16.msra.mxu0 %v2318
    %2943 = vmatprep.subr.bf16.mxu0 %v2322
    %2944 = vmatpush1.bf16.msra.mxu0 %v2321
    %2945 = vmatprep.subr.bf16.mxu0 %v2325
    %2946 = vmatpush1.bf16.msra.mxu0 %v2324
    %2947 = vmatprep.subr.bf16.mxu0 %v2328
    %2948 = vmatpush1.bf16.msra.mxu0 %v2327
    %2949 = vmatprep.subr.bf16.mxu0 %v2331
    %2950 = vmatpush1.bf16.msra.mxu0 %v2330
    %2951 = vmatprep.subr.bf16.mxu0 0
    %2952 = vmatpush1.bf16.msra.mxu0 0
    %2953 = vmatprep.subr.bf16.mxu0 0
    %2954 = vmatpush1.bf16.msra.mxu0 0
    %2955 = vmatprep.subr.bf16.mxu0 0
    %2956 = vmatpush1.bf16.msra.mxu0 0
    %2957 = vmatprep.subr.bf16.mxu0 0
    %2958 = vmatpush1.bf16.msra.mxu0 0
    %2959 = vmatprep.subr.bf16.mxu0 0
    %2960 = vmatpush1.bf16.msra.mxu0 0
    %2961 = vmatprep.subr.bf16.mxu0 0
    %2962 = vmatpush1.bf16.msra.mxu0 0
    %2963 = vmatprep.subr.bf16.mxu0 0
    %2964 = vmatpush1.bf16.msra.mxu0 0
    %2965 = vmatprep.subr.bf16.mxu0 0
    %2966 = vmatpush1.bf16.msra.mxu0 0
    %2967 = vmatprep.mubr.bf16.mxu0 0
    %2968 = vmatmul.mubr.bf16.gmra.mrb[0].mxu0 %v2934
    %v2969 = vpop.f32.mrb[0].mxu0
    %v2970 = vadd.f32 %v2217, %v2969
    %v2971 = vpop.f32.mrb[0].mxu0
    %v2972 = vadd.f32 %v2221, %v2971
    %v2973 = vpop.f32.mrb[0].mxu0
    %v2974 = vpop.f32.mrb[0].mxu0
    %2975 = vdwg.mxu0
    %2976 = vmatprep.subr.bf16.mxu0 0
    %2977 = vmatpush1.bf16.msra.mxu0 %v2311
    %2978 = vmatprep.subr.bf16.mxu0 0
    %2979 = vmatpush1.bf16.msra.mxu0 %v2314
    %2980 = vmatprep.subr.bf16.mxu0 0
    %2981 = vmatpush1.bf16.msra.mxu0 %v2317
    %2982 = vmatprep.subr.bf16.mxu0 0
    %2983 = vmatpush1.bf16.msra.mxu0 %v2320
    %2984 = vmatprep.subr.bf16.mxu0 0
    %2985 = vmatpush1.bf16.msra.mxu0 %v2323
    %2986 = vmatprep.subr.bf16.mxu0 0
    %2987 = vmatpush1.bf16.msra.mxu0 %v2326
    %2988 = vmatprep.subr.bf16.mxu0 0
    %2989 = vmatpush1.bf16.msra.mxu0 %v2329
    %2990 = vmatprep.subr.bf16.mxu0 0
    %2991 = vmatpush1.bf16.msra.mxu0 %v2332
    %2992 = vmatprep.subr.bf16.mxu0 0
    %2993 = vmatpush1.bf16.msra.mxu0 0
    %2994 = vmatprep.subr.bf16.mxu0 0
    %2995 = vmatpush1.bf16.msra.mxu0 0
    %2996 = vmatprep.subr.bf16.mxu0 0
    %2997 = vmatpush1.bf16.msra.mxu0 0
    %2998 = vmatprep.subr.bf16.mxu0 0
    %2999 = vmatpush1.bf16.msra.mxu0 0
    %3000 = vmatprep.subr.bf16.mxu0 0
    %3001 = vmatpush1.bf16.msra.mxu0 0
    %3002 = vmatprep.subr.bf16.mxu0 0
    %3003 = vmatpush1.bf16.msra.mxu0 0
    %3004 = vmatprep.subr.bf16.mxu0 0
    %3005 = vmatpush1.bf16.msra.mxu0 0
    %3006 = vmatprep.subr.bf16.mxu0 0
    %3007 = vmatpush1.bf16.msra.mxu0 0
    %3008 = vmatprep.mubr.bf16.mxu0 0
    %3009 = vmatmul.mubr.bf16.gmra.mrb[0].mxu0 %v2934
    %v3010 = vpop.f32.mrb[0].mxu0
    %v3011 = vadd.f32 %v2225, %v3010
    %v3012 = vpop.f32.mrb[0].mxu0
    %v3013 = vpop.f32.mrb[0].mxu0
    %v3014 = vpop.f32.mrb[0].mxu0
    %3015 = vdwg.mxu0
    %v3016 = vadd.f32 %v2970, %v2538
    %v3017 = vmul.f32 %v3016, 0.5
    %v3018 = vtanh.pop %v3017
    %v3019 = vadd.f32 %v3018, 1.0
    %v3020 = vmul.f32 %v3019, 0.5
    %v3021 = vadd.f32 %v2972, %v2577
    %v3022 = vmul.f32 %v3021, 0.5
    %v3023 = vtanh.pop %v3022
    %v3024 = vadd.f32 %v3023, 1.0
    %v3025 = vmul.f32 %v3024, 0.5
    %v3026 = vmul.f32 %v3020, %v2579
    %v3027 = vadd.f32 %v3011, %v3026
    %v3028 = vtanh.pop %v3027
    %v3029 = vsub.f32 1.0, %v3025
    %v3030 = vmul.f32 %v3029, %v3028
    %v3031 = vmul.f32 %v3025, %v2454
    %v3032 = vadd.f32 %v3030, %v3031
    %s3033 = scalar_lea.vmem [#allocation2], 16
    %v3034 = vld [vmem:[%s3033] sm:$0xff]
    %s3035 = scalar_lea.vmem [#allocation4], 16
    %v3036 = vld [vmem:[%s3035] sm:$0xff]
    %v3037 = vpack.c.bf16 %v3032, %v3032
    %3038 = vmatprep.subr.bf16.mxu0 %v876
    %3039 = vmatpush1.bf16.msra.mxu0 %v875
    %3040 = vmatprep.subr.bf16.mxu0 %v882
    %3041 = vmatpush1.bf16.msra.mxu0 %v881
    %3042 = vmatprep.subr.bf16.mxu0 %v888
    %3043 = vmatpush1.bf16.msra.mxu0 %v887
    %3044 = vmatprep.subr.bf16.mxu0 %v894
    %3045 = vmatpush1.bf16.msra.mxu0 %v893
    %3046 = vmatprep.subr.bf16.mxu0 %v900
    %3047 = vmatpush1.bf16.msra.mxu0 %v899
    %3048 = vmatprep.subr.bf16.mxu0 %v906
    %3049 = vmatpush1.bf16.msra.mxu0 %v905
    %3050 = vmatprep.subr.bf16.mxu0 %v912
    %3051 = vmatpush1.bf16.msra.mxu0 %v911
    %3052 = vmatprep.subr.bf16.mxu0 %v918
    %3053 = vmatpush1.bf16.msra.mxu0 %v917
    %3054 = vmatprep.subr.bf16.mxu0 %v924
    %3055 = vmatpush1.bf16.msra.mxu0 %v923
    %3056 = vmatprep.subr.bf16.mxu0 %v930
    %3057 = vmatpush1.bf16.msra.mxu0 %v929
    %3058 = vmatprep.subr.bf16.mxu0 %v936
    %3059 = vmatpush1.bf16.msra.mxu0 %v935
    %3060 = vmatprep.subr.bf16.mxu0 %v942
    %3061 = vmatpush1.bf16.msra.mxu0 %v941
    %3062 = vmatprep.subr.bf16.mxu0 %v948
    %3063 = vmatpush1.bf16.msra.mxu0 %v947
    %3064 = vmatprep.subr.bf16.mxu0 %v954
    %3065 = vmatpush1.bf16.msra.mxu0 %v953
    %3066 = vmatprep.subr.bf16.mxu0 %v960
    %3067 = vmatpush1.bf16.msra.mxu0 %v959
    %3068 = vmatprep.subr.bf16.mxu0 %v966
    %3069 = vmatpush1.bf16.msra.mxu0 %v965
    %3070 = vmatprep.mubr.bf16.mxu0 %v3037
    %3071 = vmatmul.mubr.bf16.gmra.mrb[0].mxu0 %v2934
    %v3072 = vpop.f32.mrb[0].mxu0
    %v3073 = vadd.f32 %v560, %v3072
    %v3074 = vpop.f32.mrb[0].mxu0
    %v3075 = vadd.f32 %v564, %v3074
    %v3076 = vpop.f32.mrb[0].mxu0
    %v3077 = vpop.f32.mrb[0].mxu0
    %3078 = vdwg.mxu0
    %3079 = vmatprep.subr.bf16.mxu0 %v878
    %3080 = vmatpush1.bf16.msra.mxu0 %v877
    %3081 = vmatprep.subr.bf16.mxu0 %v884
    %3082 = vmatpush1.bf16.msra.mxu0 %v883
    %3083 = vmatprep.subr.bf16.mxu0 %v890
    %3084 = vmatpush1.bf16.msra.mxu0 %v889
    %3085 = vmatprep.subr.bf16.mxu0 %v896
    %3086 = vmatpush1.bf16.msra.mxu0 %v895
    %3087 = vmatprep.subr.bf16.mxu0 %v902
    %3088 = vmatpush1.bf16.msra.mxu0 %v901
    %3089 = vmatprep.subr.bf16.mxu0 %v908
    %3090 = vmatpush1.bf16.msra.mxu0 %v907
    %3091 = vmatprep.subr.bf16.mxu0 %v914
    %3092 = vmatpush1.bf16.msra.mxu0 %v913
    %3093 = vmatprep.subr.bf16.mxu0 %v920
    %3094 = vmatpush1.bf16.msra.mxu0 %v919
    %3095 = vmatprep.subr.bf16.mxu0 %v926
    %3096 = vmatpush1.bf16.msra.mxu0 %v925
    %3097 = vmatprep.subr.bf16.mxu0 %v932
    %3098 = vmatpush1.bf16.msra.mxu0 %v931
    %3099 = vmatprep.subr.bf16.mxu0 %v938
    %3100 = vmatpush1.bf16.msra.mxu0 %v937
    %3101 = vmatprep.subr.bf16.mxu0 %v944
    %3102 = vmatpush1.bf16.msra.mxu0 %v943
    %3103 = vmatprep.subr.bf16.mxu0 %v950
    %3104 = vmatpush1.bf16.msra.mxu0 %v949
    %3105 = vmatprep.subr.bf16.mxu0 %v956
    %3106 = vmatpush1.bf16.msra.mxu0 %v955
    %3107 = vmatprep.subr.bf16.mxu0 %v962
    %3108 = vmatpush1.bf16.msra.mxu0 %v961
    %3109 = vmatprep.subr.bf16.mxu0 %v968
    %3110 = vmatpush1.bf16.msra.mxu0 %v967
    %3111 = vmatprep.mubr.bf16.mxu0 %v3037
    %3112 = vmatmul.mubr.bf16.gmra.mrb[0].mxu0 %v2934
    %v3113 = vpop.f32.mrb[0].mxu0
    %v3114 = vadd.f32 %v568, %v3113
    %v3115 = vpop.f32.mrb[0].mxu0
    %v3116 = vadd.f32 %v572, %v3115
    %v3117 = vpop.f32.mrb[0].mxu0
    %v3118 = vpop.f32.mrb[0].mxu0
    %3119 = vdwg.mxu0
    %3120 = vmatprep.subr.bf16.mxu0 %v880
    %3121 = vmatpush1.bf16.msra.mxu0 %v879
    %3122 = vmatprep.subr.bf16.mxu0 %v886
    %3123 = vmatpush1.bf16.msra.mxu0 %v885
    %3124 = vmatprep.subr.bf16.mxu0 %v892
    %3125 = vmatpush1.bf16.msra.mxu0 %v891
    %3126 = vmatprep.subr.bf16.mxu0 %v898
    %3127 = vmatpush1.bf16.msra.mxu0 %v897
    %3128 = vmatprep.subr.bf16.mxu0 %v904
    %3129 = vmatpush1.bf16.msra.mxu0 %v903
    %3130 = vmatprep.subr.bf16.mxu0 %v910
    %3131 = vmatpush1.bf16.msra.mxu0 %v909
    %3132 = vmatprep.subr.bf16.mxu0 %v916
    %3133 = vmatpush1.bf16.msra.mxu0 %v915
    %3134 = vmatprep.subr.bf16.mxu0 %v922
    %3135 = vmatpush1.bf16.msra.mxu0 %v921
    %3136 = vmatprep.subr.bf16.mxu0 %v928
    %3137 = vmatpush1.bf16.msra.mxu0 %v927
    %3138 = vmatprep.subr.bf16.mxu0 %v934
    %3139 = vmatpush1.bf16.msra.mxu0 %v933
    %3140 = vmatprep.subr.bf16.mxu0 %v940
    %3141 = vmatpush1.bf16.msra.mxu0 %v939
    %3142 = vmatprep.subr.bf16.mxu0 %v946
    %3143 = vmatpush1.bf16.msra.mxu0 %v945
    %3144 = vmatprep.subr.bf16.mxu0 %v952
    %3145 = vmatpush1.bf16.msra.mxu0 %v951
    %3146 = vmatprep.subr.bf16.mxu0 %v958
    %3147 = vmatpush1.bf16.msra.mxu0 %v957
    %3148 = vmatprep.subr.bf16.mxu0 %v964
    %3149 = vmatpush1.bf16.msra.mxu0 %v963
    %3150 = vmatprep.subr.bf16.mxu0 %v970
    %3151 = vmatpush1.bf16.msra.mxu0 %v969
    %3152 = vmatprep.mubr.bf16.mxu0 %v3037
    %3153 = vmatmul.mubr.bf16.gmra.mrb[0].mxu0 %v2934
    %v3154 = vpop.f32.mrb[0].mxu0
    %v3155 = vadd.f32 %v576, %v3154
    %v3156 = vpop.f32.mrb[0].mxu0
    %v3157 = vadd.f32 %v580, %v3156
    %v3158 = vpop.f32.mrb[0].mxu0
    %v3159 = vpop.f32.mrb[0].mxu0
    %3160 = vdwg.mxu0
    %v3161 = vpack.c.bf16 %v3034, %v3034
    %3162 = vmatprep.subr.bf16.mxu0 0
    %3163 = vmatpush1.bf16.msra.mxu0 %v1294
    %3164 = vmatprep.subr.bf16.mxu0 0
    %3165 = vmatpush1.bf16.msra.mxu0 %v1295
    %3166 = vmatprep.subr.bf16.mxu0 0
    %3167 = vmatpush1.bf16.msra.mxu0 %v1296
    %3168 = vmatprep.subr.bf16.mxu0 0
    %3169 = vmatpush1.bf16.msra.mxu0 %v1297
    %3170 = vmatprep.subr.bf16.mxu0 0
    %3171 = vmatpush1.bf16.msra.mxu0 %v1298
    %3172 = vmatprep.subr.bf16.mxu0 0
    %3173 = vmatpush1.bf16.msra.mxu0 %v1299
    %3174 = vmatprep.subr.bf16.mxu0 0
    %3175 = vmatpush1.bf16.msra.mxu0 %v1300
    %3176 = vmatprep.subr.bf16.mxu0 0
    %3177 = vmatpush1.bf16.msra.mxu0 %v1301
    %3178 = vmatprep.subr.bf16.mxu0 0
    %3179 = vmatpush1.bf16.msra.mxu0 %v1302
    %3180 = vmatprep.subr.bf16.mxu0 0
    %3181 = vmatpush1.bf16.msra.mxu0 %v1303
    %3182 = vmatprep.subr.bf16.mxu0 0
    %3183 = vmatpush1.bf16.msra.mxu0 %v1304
    %3184 = vmatprep.subr.bf16.mxu0 0
    %3185 = vmatpush1.bf16.msra.mxu0 %v1305
    %3186 = vmatprep.subr.bf16.mxu0 0
    %3187 = vmatpush1.bf16.msra.mxu0 %v1306
    %3188 = vmatprep.subr.bf16.mxu0 0
    %3189 = vmatpush1.bf16.msra.mxu0 %v1307
    %3190 = vmatprep.subr.bf16.mxu0 0
    %3191 = vmatpush1.bf16.msra.mxu0 %v1308
    %3192 = vmatprep.subr.bf16.mxu0 0
    %3193 = vmatpush1.bf16.msra.mxu0 %v1309
    %3194 = vmatprep.mubr.bf16.mxu0 %v3037
    %3195 = vmatmul.mubr.bf16.gmra.mrb[0].mxu0 %v3161
    %v3196 = vpop.f32.mrb[0].mxu0
    %v3197 = vadd.f32 %v1228, %v3196
    %v3198 = vpop.f32.mrb[0].mxu0
    %v3199 = vpop.f32.mrb[0].mxu0
    %v3200 = vpop.f32.mrb[0].mxu0
    %3201 = vdwg.mxu0
    %v3202 = vmax.f32 %v3197, 0.0
    %v3203 = vpack.c.bf16 %v3032, %v2933
    %3204 = vmatprep.subr.bf16.mxu0 0
    %3205 = vmatpush1.bf16.msra.mxu0 %v1423
    %3206 = vmatprep.subr.bf16.mxu0 0
    %3207 = vmatpush1.bf16.msra.mxu0 %v1424
    %3208 = vmatprep.subr.bf16.mxu0 0
    %3209 = vmatpush1.bf16.msra.mxu0 %v1425
    %3210 = vmatprep.subr.bf16.mxu0 0
    %3211 = vmatpush1.bf16.msra.mxu0 %v1426
    %3212 = vmatprep.subr.bf16.mxu0 0
    %3213 = vmatpush1.bf16.msra.mxu0 %v1427
    %3214 = vmatprep.subr.bf16.mxu0 0
    %3215 = vmatpush1.bf16.msra.mxu0 %v1428
    %3216 = vmatprep.subr.bf16.mxu0 0
    %3217 = vmatpush1.bf16.msra.mxu0 %v1429
    %3218 = vmatprep.subr.bf16.mxu0 0
    %3219 = vmatpush1.bf16.msra.mxu0 %v1430
    %3220 = vmatprep.subr.bf16.mxu0 0
    %3221 = vmatpush1.bf16.msra.mxu0 0
    %3222 = vmatprep.subr.bf16.mxu0 0
    %3223 = vmatpush1.bf16.msra.mxu0 0
    %3224 = vmatprep.subr.bf16.mxu0 0
    %3225 = vmatpush1.bf16.msra.mxu0 0
    %3226 = vmatprep.subr.bf16.mxu0 0
    %3227 = vmatpush1.bf16.msra.mxu0 0
    %3228 = vmatprep.subr.bf16.mxu0 0
    %3229 = vmatpush1.bf16.msra.mxu0 0
    %3230 = vmatprep.subr.bf16.mxu0 0
    %3231 = vmatpush1.bf16.msra.mxu0 0
    %3232 = vmatprep.subr.bf16.mxu0 0
    %3233 = vmatpush1.bf16.msra.mxu0 0
    %3234 = vmatprep.subr.bf16.mxu0 0
    %3235 = vmatpush1.bf16.msra.mxu0 0
    %3236 = vmatprep.mubr.bf16.mxu0 0
    %3237 = vmatmul.mubr.bf16.gmra.mrb[0].mxu0 %v3203
    %v3238 = vpop.f32.mrb[0].mxu0
    %v3239 = vadd.f32 %v1389, %v3238
    %v3240 = vpop.f32.mrb[0].mxu0
    %v3241 = vpop.f32.mrb[0].mxu0
    %v3242 = vadd.f32 %v1389, %v3241
    %v3243 = vpop.f32.mrb[0].mxu0
    %3244 = vdwg.mxu0
    %v3245 = vmax.f32 %v3239, 0.0
    %v3246 = vmax.f32 %v3242, 0.0
    %v3247 = vpack.c.bf16 %v3245, %v3202
    %v3248 = vpack.c.bf16 %v3246, %v3246
    %3249 = vmatprep.subr.bf16.mxu0 0
    %3250 = vmatpush1.bf16.msra.mxu0 %v1539
    %3251 = vmatprep.subr.bf16.mxu0 0
    %3252 = vmatpush1.bf16.msra.mxu0 %v1540
    %3253 = vmatprep.subr.bf16.mxu0 0
    %3254 = vmatpush1.bf16.msra.mxu0 %v1541
    %3255 = vmatprep.subr.bf16.mxu0 0
    %3256 = vmatpush1.bf16.msra.mxu0 %v1542
    %3257 = vmatprep.subr.bf16.mxu0 0
    %3258 = vmatpush1.bf16.msra.mxu0 %v1543
    %3259 = vmatprep.subr.bf16.mxu0 0
    %3260 = vmatpush1.bf16.msra.mxu0 %v1544
    %3261 = vmatprep.subr.bf16.mxu0 0
    %3262 = vmatpush1.bf16.msra.mxu0 %v1545
    %3263 = vmatprep.subr.bf16.mxu0 0
    %3264 = vmatpush1.bf16.msra.mxu0 %v1546
    %3265 = vmatprep.subr.bf16.mxu0 0
    %3266 = vmatpush1.bf16.msra.mxu0 0
    %3267 = vmatprep.subr.bf16.mxu0 0
    %3268 = vmatpush1.bf16.msra.mxu0 0
    %3269 = vmatprep.subr.bf16.mxu0 0
    %3270 = vmatpush1.bf16.msra.mxu0 0
    %3271 = vmatprep.subr.bf16.mxu0 0
    %3272 = vmatpush1.bf16.msra.mxu0 0
    %3273 = vmatprep.subr.bf16.mxu0 0
    %3274 = vmatpush1.bf16.msra.mxu0 0
    %3275 = vmatprep.subr.bf16.mxu0 0
    %3276 = vmatpush1.bf16.msra.mxu0 0
    %3277 = vmatprep.subr.bf16.mxu0 0
    %3278 = vmatpush1.bf16.msra.mxu0 0
    %3279 = vmatprep.subr.bf16.mxu0 0
    %3280 = vmatpush1.bf16.msra.mxu0 0
    %3281 = vmatprep.mubr.bf16.mxu0 0
    %3282 = vmatmul.mubr.bf16.gmra.mrb[0].mxu0 %v3247
    %v3283 = vpop.f32.mrb[0].mxu0
    %v3284 = vadd.f32 %v1505, %v3283
    %v3285 = vpop.f32.mrb[0].mxu0
    %v3286 = vpop.f32.mrb[0].mxu0
    %v3287 = vadd.f32 %v1505, %v3286
    %v3288 = vpop.f32.mrb[0].mxu0
    %3289 = vmatprep.mubr.bf16.mxu0 0
    %3290 = vmatmul.mubr.bf16.gmra.mrb[0].mxu0 %v3248
    %v3291 = vpop.f32.mrb[0].mxu0
    %v3292 = vadd.f32 %v1505, %v3291
    %v3293 = vpop.f32.mrb[0].mxu0
    %v3294 = vpop.f32.mrb[0].mxu0
    %v3295 = vpop.f32.mrb[0].mxu0
    %3296 = vdwg.mxu0
    %vm3297 = vcmp.gt.f32.partialorder %v3284, 20.0
    %v3298 = vmin.f32 %v3284, 20.0
    %v3299 = vmul.f32 %v3298, 1.442695
    %v3300 = vpow.pop %v3299
    %v3301 = vadd.f32 %v3300, 1.0
    %v3302 = vlog2.pop %v3301
    %v3303 = vmul.f32 %v3302, 0.6931472
    %v3304 = vmul.f32 -0.5, %v3300
    %v3305 = vadd.f32 %v3304, 1.0
    %v3306 = vmul.f32 %v3305, %v3300
    %v3307 = vand.u32 2147483647, %v3300
    %vm3308 = vcmp.lt.f32.partialorder %v3307, 0.0004427343
    %v3309 = vsel %vm3308, %v3306, %v3303
    %v3310 = vsel %vm3297, %v3284, %v3309
    %vm3311 = vcmp.gt.f32.partialorder %v3287, 20.0
    %vm3312 = vcmp.gt.f32.partialorder %v3292, 20.0
    %v3313 = vmin.f32 %v3287, 20.0
    %v3314 = vmin.f32 %v3292, 20.0
    %v3315 = vmul.f32 %v3313, 1.442695
    %v3316 = vpow.pop %v3315
    %v3317 = vmul.f32 %v3314, 1.442695
    %v3318 = vpow.pop %v3317
    %v3319 = vadd.f32 %v3316, 1.0
    %v3320 = vlog2.pop %v3319
    %v3321 = vmul.f32 %v3320, 0.6931472
    %v3322 = vmul.f32 -0.5, %v3316
    %v3323 = vadd.f32 %v3322, 1.0
    %v3324 = vmul.f32 %v3323, %v3316
    %v3325 = vand.u32 2147483647, %v3316
    %vm3326 = vcmp.lt.f32.partialorder %v3325, 0.0004427343
    %v3327 = vsel %vm3326, %v3324, %v3321
    %v3328 = vadd.f32 %v3318, 1.0
    %v3329 = vlog2.pop %v3328
    %v3330 = vmul.f32 %v3329, 0.6931472
    %v3331 = vmul.f32 -0.5, %v3318
    %v3332 = vadd.f32 %v3331, 1.0
    %v3333 = vmul.f32 %v3332, %v3318
    %v3334 = vand.u32 2147483647, %v3318
    %vm3335 = vcmp.lt.f32.partialorder %v3334, 0.0004427343
    %v3336 = vsel %vm3335, %v3333, %v3330
    %v3337 = vsel %vm3311, %v3287, %v3327
    %v3338 = vsel %vm3312, %v3292, %v3336
    %v3339 = vsub.f32 %v3284, %v3287
    %v3340 = vsub.f32 %v3284, %v3292
    %v3341 = vrcp.pop %v3337
    %v3342 = vrcp.pop %v3338
    %v3343 = vmul.f32 %v3310, %v3341
    %v3344 = vmul.f32 %v3310, %v3342
    %v3345 = vlog2.pop %v3343
    %v3346 = vmul.f32 %v3345, 0.6931472
    %v3347 = vlog2.pop %v3344
    %v3348 = vmul.f32 %v3347, 0.6931472
    %v3349 = vmul.f32 %v3346, -2.0
    %v3350 = vmul.f32 %v3348, -2.0
    %v3351 = vmul.f32 %v3310, %v3310
    %v3352 = vmul.f32 %v3339, %v3339
    %v3353 = vmul.f32 %v3340, %v3340
    %v3354 = vadd.f32 %v3351, %v3352
    %v3355 = vadd.f32 %v3351, %v3353
    %v3356 = vmul.f32 %v3341, %v3341
    %v3357 = vmul.f32 %v3342, %v3342
    %v3358 = vmul.f32 %v3354, %v3356
    %v3359 = vmul.f32 %v3355, %v3357
    %v3360 = vadd.f32 %v3349, %v3358
    %v3361 = vadd.f32 %v3350, %v3359
    %v3362 = vsub.f32 %v3360, 1.0
    %v3363 = vsub.f32 %v3361, 1.0
    %v3364 = vadd.f32 %v2786, %v3362
    %v3365 = vadd.f32 %v2787, %v3363
    %v3366 = vmul.f32 %v3036, %v3310
    %v3367 = vadd.f32 %v3366, %v3284
    %v3368 = vpack.c.bf16 %v3367, %v3367
    %v3370 = vsel %vm1698, %v3368, 0
    %3372 = vmatprep.subr.bf16.mxu0 0
    %3373 = vmatpush1.bf16.msra.mxu0 %v1694
    %3374 = vmatprep.subr.bf16.mxu0 0
    %3375 = vmatpush1.bf16.msra.mxu0 %v1695
    %3376 = vmatprep.subr.bf16.mxu0 0
    %3377 = vmatpush1.bf16.msra.mxu0 0
    %3378 = vmatprep.subr.bf16.mxu0 0
    %3379 = vmatpush1.bf16.msra.mxu0 0
    %3380 = vmatprep.subr.bf16.mxu0 0
    %3381 = vmatpush1.bf16.msra.mxu0 0
    %3382 = vmatprep.subr.bf16.mxu0 0
    %3383 = vmatpush1.bf16.msra.mxu0 0
    %3384 = vmatprep.subr.bf16.mxu0 0
    %3385 = vmatpush1.bf16.msra.mxu0 0
    %3386 = vmatprep.subr.bf16.mxu0 0
    %3387 = vmatpush1.bf16.msra.mxu0 0
    %3388 = vmatprep.subr.bf16.mxu0 0
    %3389 = vmatpush1.bf16.msra.mxu0 0
    %3390 = vmatprep.subr.bf16.mxu0 0
    %3391 = vmatpush1.bf16.msra.mxu0 0
    %3392 = vmatprep.subr.bf16.mxu0 0
    %3393 = vmatpush1.bf16.msra.mxu0 0
    %3394 = vmatprep.subr.bf16.mxu0 0
    %3395 = vmatpush1.bf16.msra.mxu0 0
    %3396 = vmatprep.subr.bf16.mxu0 0
    %3397 = vmatpush1.bf16.msra.mxu0 0
    %3398 = vmatprep.subr.bf16.mxu0 0
    %3399 = vmatpush1.bf16.msra.mxu0 0
    %3400 = vmatprep.subr.bf16.mxu0 0
    %3401 = vmatpush1.bf16.msra.mxu0 0
    %3402 = vmatprep.subr.bf16.mxu0 0
    %3403 = vmatpush1.bf16.msra.mxu0 0
    %3404 = vmatprep.mubr.bf16.mxu0 0
    %3405 = vmatmul.mubr.bf16.gmra.mrb[0].mxu0 %v3370
    %v3406 = vpop.f32.mrb[0].mxu0
    %v3407 = vadd.f32 %v1684, %v3406
    %v3408 = vpop.f32.mrb[0].mxu0
    %v3409 = vpop.f32.mrb[0].mxu0
    %v3410 = vpop.f32.mrb[0].mxu0
    %3411 = vdwg.mxu0
    %v3412 = vmax.f32 %v3407, 0.0
    %v3413 = vpack.c.bf16 %v3412, %v3412
    %3414 = vmatprep.subr.bf16.mxu0 %v1986
    %3415 = vmatpush1.bf16.msra.mxu0 %v1985
    %3416 = vmatprep.subr.bf16.mxu0 %v1989
    %3417 = vmatpush1.bf16.msra.mxu0 %v1988
    %3418 = vmatprep.subr.bf16.mxu0 %v1992
    %3419 = vmatpush1.bf16.msra.mxu0 %v1991
    %3420 = vmatprep.subr.bf16.mxu0 %v1995
    %3421 = vmatpush1.bf16.msra.mxu0 %v1994
    %3422 = vmatprep.subr.bf16.mxu0 %v1998
    %3423 = vmatpush1.bf16.msra.mxu0 %v1997
    %3424 = vmatprep.subr.bf16.mxu0 %v2001
    %3425 = vmatpush1.bf16.msra.mxu0 %v2000
    %3426 = vmatprep.subr.bf16.mxu0 %v2004
    %3427 = vmatpush1.bf16.msra.mxu0 %v2003
    %3428 = vmatprep.subr.bf16.mxu0 %v2007
    %3429 = vmatpush1.bf16.msra.mxu0 %v2006
    %3430 = vmatprep.subr.bf16.mxu0 %v2010
    %3431 = vmatpush1.bf16.msra.mxu0 %v2009
    %3432 = vmatprep.subr.bf16.mxu0 %v2013
    %3433 = vmatpush1.bf16.msra.mxu0 %v2012
    %3434 = vmatprep.subr.bf16.mxu0 %v2016
    %3435 = vmatpush1.bf16.msra.mxu0 %v2015
    %3436 = vmatprep.subr.bf16.mxu0 %v2019
    %3437 = vmatpush1.bf16.msra.mxu0 %v2018
    %3438 = vmatprep.subr.bf16.mxu0 %v2022
    %3439 = vmatpush1.bf16.msra.mxu0 %v2021
    %3440 = vmatprep.subr.bf16.mxu0 %v2025
    %3441 = vmatpush1.bf16.msra.mxu0 %v2024
    %3442 = vmatprep.subr.bf16.mxu0 %v2028
    %3443 = vmatpush1.bf16.msra.mxu0 %v2027
    %3444 = vmatprep.subr.bf16.mxu0 %v2031
    %3445 = vmatpush1.bf16.msra.mxu0 %v2030
    %3446 = vmatprep.mubr.bf16.mxu0 %v3413
    %3447 = vmatmul.mubr.bf16.gmra.mrb[0].mxu0 %v3161
    %v3448 = vpop.f32.mrb[0].mxu0
    %v3449 = vadd.f32 %v1813, %v3448
    %v3450 = vpop.f32.mrb[0].mxu0
    %v3451 = vadd.f32 %v1817, %v3450
    %v3452 = vpop.f32.mrb[0].mxu0
    %v3453 = vpop.f32.mrb[0].mxu0
    %3454 = vdwg.mxu0
    %3455 = vmatprep.subr.bf16.mxu0 0
    %3456 = vmatpush1.bf16.msra.mxu0 %v1987
    %3457 = vmatprep.subr.bf16.mxu0 0
    %3458 = vmatpush1.bf16.msra.mxu0 %v1990
    %3459 = vmatprep.subr.bf16.mxu0 0
    %3460 = vmatpush1.bf16.msra.mxu0 %v1993
    %3461 = vmatprep.subr.bf16.mxu0 0
    %3462 = vmatpush1.bf16.msra.mxu0 %v1996
    %3463 = vmatprep.subr.bf16.mxu0 0
    %3464 = vmatpush1.bf16.msra.mxu0 %v1999
    %3465 = vmatprep.subr.bf16.mxu0 0
    %3466 = vmatpush1.bf16.msra.mxu0 %v2002
    %3467 = vmatprep.subr.bf16.mxu0 0
    %3468 = vmatpush1.bf16.msra.mxu0 %v2005
    %3469 = vmatprep.subr.bf16.mxu0 0
    %3470 = vmatpush1.bf16.msra.mxu0 %v2008
    %3471 = vmatprep.subr.bf16.mxu0 0
    %3472 = vmatpush1.bf16.msra.mxu0 %v2011
    %3473 = vmatprep.subr.bf16.mxu0 0
    %3474 = vmatpush1.bf16.msra.mxu0 %v2014
    %3475 = vmatprep.subr.bf16.mxu0 0
    %3476 = vmatpush1.bf16.msra.mxu0 %v2017
    %3477 = vmatprep.subr.bf16.mxu0 0
    %3478 = vmatpush1.bf16.msra.mxu0 %v2020
    %3479 = vmatprep.subr.bf16.mxu0 0
    %3480 = vmatpush1.bf16.msra.mxu0 %v2023
    %3481 = vmatprep.subr.bf16.mxu0 0
    %3482 = vmatpush1.bf16.msra.mxu0 %v2026
    %3483 = vmatprep.subr.bf16.mxu0 0
    %3484 = vmatpush1.bf16.msra.mxu0 %v2029
    %3485 = vmatprep.subr.bf16.mxu0 0
    %3486 = vmatpush1.bf16.msra.mxu0 %v2032
    %3487 = vmatprep.mubr.bf16.mxu0 %v3413
    %3488 = vmatmul.mubr.bf16.gmra.mrb[0].mxu0 %v3161
    %v3489 = vpop.f32.mrb[0].mxu0
    %v3490 = vadd.f32 %v1821, %v3489
    %v3491 = vpop.f32.mrb[0].mxu0
    %v3492 = vpop.f32.mrb[0].mxu0
    %v3493 = vpop.f32.mrb[0].mxu0
    %3494 = vdwg.mxu0
    %v3495 = vadd.f32 %v3449, %v3073
    %v3496 = vmul.f32 %v3495, 0.5
    %v3497 = vtanh.pop %v3496
    %v3498 = vadd.f32 %v3497, 1.0
    %v3499 = vmul.f32 %v3498, 0.5
    %v3500 = vadd.f32 %v3451, %v3075
    %v3501 = vmul.f32 %v3500, 0.5
    %v3502 = vtanh.pop %v3501
    %v3503 = vadd.f32 %v3502, 1.0
    %v3504 = vmul.f32 %v3503, 0.5
    %v3505 = vmul.f32 %v3499, %v3114
    %v3506 = vadd.f32 %v3490, %v3505
    %v3507 = vtanh.pop %v3506
    %v3508 = vsub.f32 1.0, %v3504
    %v3509 = vmul.f32 %v3508, %v3507
    %v3510 = vmul.f32 %v3504, %v2933
    %v3511 = vadd.f32 %v3509, %v3510
    %v3512 = vpack.c.bf16 %v3511, %v3511
    %3513 = vmatprep.subr.bf16.mxu0 %v2310
    %3514 = vmatpush1.bf16.msra.mxu0 %v2309
    %3515 = vmatprep.subr.bf16.mxu0 %v2313
    %3516 = vmatpush1.bf16.msra.mxu0 %v2312
    %3517 = vmatprep.subr.bf16.mxu0 %v2316
    %3518 = vmatpush1.bf16.msra.mxu0 %v2315
    %3519 = vmatprep.subr.bf16.mxu0 %v2319
    %3520 = vmatpush1.bf16.msra.mxu0 %v2318
    %3521 = vmatprep.subr.bf16.mxu0 %v2322
    %3522 = vmatpush1.bf16.msra.mxu0 %v2321
    %3523 = vmatprep.subr.bf16.mxu0 %v2325
    %3524 = vmatpush1.bf16.msra.mxu0 %v2324
    %3525 = vmatprep.subr.bf16.mxu0 %v2328
    %3526 = vmatpush1.bf16.msra.mxu0 %v2327
    %3527 = vmatprep.subr.bf16.mxu0 %v2331
    %3528 = vmatpush1.bf16.msra.mxu0 %v2330
    %3529 = vmatprep.subr.bf16.mxu0 0
    %3530 = vmatpush1.bf16.msra.mxu0 0
    %3531 = vmatprep.subr.bf16.mxu0 0
    %3532 = vmatpush1.bf16.msra.mxu0 0
    %3533 = vmatprep.subr.bf16.mxu0 0
    %3534 = vmatpush1.bf16.msra.mxu0 0
    %3535 = vmatprep.subr.bf16.mxu0 0
    %3536 = vmatpush1.bf16.msra.mxu0 0
    %3537 = vmatprep.subr.bf16.mxu0 0
    %3538 = vmatpush1.bf16.msra.mxu0 0
    %3539 = vmatprep.subr.bf16.mxu0 0
    %3540 = vmatpush1.bf16.msra.mxu0 0
    %3541 = vmatprep.subr.bf16.mxu0 0
    %3542 = vmatpush1.bf16.msra.mxu0 0
    %3543 = vmatprep.subr.bf16.mxu0 0
    %3544 = vmatpush1.bf16.msra.mxu0 0
    %3545 = vmatprep.mubr.bf16.mxu0 0
    %3546 = vmatmul.mubr.bf16.gmra.mrb[0].mxu0 %v3512
    %v3547 = vpop.f32.mrb[0].mxu0
    %v3548 = vadd.f32 %v2217, %v3547
    %v3549 = vpop.f32.mrb[0].mxu0
    %v3550 = vadd.f32 %v2221, %v3549
    %v3551 = vpop.f32.mrb[0].mxu0
    %v3552 = vpop.f32.mrb[0].mxu0
    %3553 = vdwg.mxu0
    %3554 = vmatprep.subr.bf16.mxu0 0
    %3555 = vmatpush1.bf16.msra.mxu0 %v2311
    %3556 = vmatprep.subr.bf16.mxu0 0
    %3557 = vmatpush1.bf16.msra.mxu0 %v2314
    %3558 = vmatprep.subr.bf16.mxu0 0
    %3559 = vmatpush1.bf16.msra.mxu0 %v2317
    %3560 = vmatprep.subr.bf16.mxu0 0
    %3561 = vmatpush1.bf16.msra.mxu0 %v2320
    %3562 = vmatprep.subr.bf16.mxu0 0
    %3563 = vmatpush1.bf16.msra.mxu0 %v2323
    %3564 = vmatprep.subr.bf16.mxu0 0
    %3565 = vmatpush1.bf16.msra.mxu0 %v2326
    %3566 = vmatprep.subr.bf16.mxu0 0
    %3567 = vmatpush1.bf16.msra.mxu0 %v2329
    %3568 = vmatprep.subr.bf16.mxu0 0
    %3569 = vmatpush1.bf16.msra.mxu0 %v2332
    %3570 = vmatprep.subr.bf16.mxu0 0
    %3571 = vmatpush1.bf16.msra.mxu0 0
    %3572 = vmatprep.subr.bf16.mxu0 0
    %3573 = vmatpush1.bf16.msra.mxu0 0
    %3574 = vmatprep.subr.bf16.mxu0 0
    %3575 = vmatpush1.bf16.msra.mxu0 0
    %3576 = vmatprep.subr.bf16.mxu0 0
    %3577 = vmatpush1.bf16.msra.mxu0 0
    %3578 = vmatprep.subr.bf16.mxu0 0
    %3579 = vmatpush1.bf16.msra.mxu0 0
    %3580 = vmatprep.subr.bf16.mxu0 0
    %3581 = vmatpush1.bf16.msra.mxu0 0
    %3582 = vmatprep.subr.bf16.mxu0 0
    %3583 = vmatpush1.bf16.msra.mxu0 0
    %3584 = vmatprep.subr.bf16.mxu0 0
    %3585 = vmatpush1.bf16.msra.mxu0 0
    %3586 = vmatprep.mubr.bf16.mxu0 0
    %3587 = vmatmul.mubr.bf16.gmra.mrb[0].mxu0 %v3512
    %v3588 = vpop.f32.mrb[0].mxu0
    %v3589 = vadd.f32 %v2225, %v3588
    %v3590 = vpop.f32.mrb[0].mxu0
    %v3591 = vpop.f32.mrb[0].mxu0
    %v3592 = vpop.f32.mrb[0].mxu0
    %3593 = vdwg.mxu0
    %v3594 = vadd.f32 %v3548, %v3116
    %v3595 = vmul.f32 %v3594, 0.5
    %v3596 = vtanh.pop %v3595
    %v3597 = vadd.f32 %v3596, 1.0
    %v3598 = vmul.f32 %v3597, 0.5
    %v3599 = vadd.f32 %v3550, %v3155
    %v3600 = vmul.f32 %v3599, 0.5
    %v3601 = vtanh.pop %v3600
    %v3602 = vadd.f32 %v3601, 1.0
    %v3603 = vmul.f32 %v3602, 0.5
    %v3604 = vmul.f32 %v3598, %v3157
    %v3605 = vadd.f32 %v3589, %v3604
    %v3606 = vtanh.pop %v3605
    %v3607 = vsub.f32 1.0, %v3603
    %v3608 = vmul.f32 %v3607, %v3606
    %v3609 = vmul.f32 %v3603, %v3032
    %v3610 = vadd.f32 %v3608, %v3609
    %s3611 = scalar_lea.vmem [#allocation2], 24
    %v3612 = vld [vmem:[%s3611] sm:$0xff]
    %s3613 = scalar_lea.vmem [#allocation4], 24
    %v3614 = vld [vmem:[%s3613] sm:$0xff]
    %v3615 = vpack.c.bf16 %v3610, %v3610
    %3616 = vmatprep.subr.bf16.mxu0 %v876
    %3617 = vmatpush1.bf16.msra.mxu0 %v875
    %3618 = vmatprep.subr.bf16.mxu0 %v882
    %3619 = vmatpush1.bf16.msra.mxu0 %v881
    %3620 = vmatprep.subr.bf16.mxu0 %v888
    %3621 = vmatpush1.bf16.msra.mxu0 %v887
    %3622 = vmatprep.subr.bf16.mxu0 %v894
    %3623 = vmatpush1.bf16.msra.mxu0 %v893
    %3624 = vmatprep.subr.bf16.mxu0 %v900
    %3625 = vmatpush1.bf16.msra.mxu0 %v899
    %3626 = vmatprep.subr.bf16.mxu0 %v906
    %3627 = vmatpush1.bf16.msra.mxu0 %v905
    %3628 = vmatprep.subr.bf16.mxu0 %v912
    %3629 = vmatpush1.bf16.msra.mxu0 %v911
    %3630 = vmatprep.subr.bf16.mxu0 %v918
    %3631 = vmatpush1.bf16.msra.mxu0 %v917
    %3632 = vmatprep.subr.bf16.mxu0 %v924
    %3633 = vmatpush1.bf16.msra.mxu0 %v923
    %3634 = vmatprep.subr.bf16.mxu0 %v930
    %3635 = vmatpush1.bf16.msra.mxu0 %v929
    %3636 = vmatprep.subr.bf16.mxu0 %v936
    %3637 = vmatpush1.bf16.msra.mxu0 %v935
    %3638 = vmatprep.subr.bf16.mxu0 %v942
    %3639 = vmatpush1.bf16.msra.mxu0 %v941
    %3640 = vmatprep.subr.bf16.mxu0 %v948
    %3641 = vmatpush1.bf16.msra.mxu0 %v947
    %3642 = vmatprep.subr.bf16.mxu0 %v954
    %3643 = vmatpush1.bf16.msra.mxu0 %v953
    %3644 = vmatprep.subr.bf16.mxu0 %v960
    %3645 = vmatpush1.bf16.msra.mxu0 %v959
    %3646 = vmatprep.subr.bf16.mxu0 %v966
    %3647 = vmatpush1.bf16.msra.mxu0 %v965
    %3648 = vmatprep.mubr.bf16.mxu0 %v3615
    %3649 = vmatmul.mubr.bf16.gmra.mrb[0].mxu0 %v3512
    %v3650 = vpop.f32.mrb[0].mxu0
    %v3651 = vadd.f32 %v560, %v3650
    %v3652 = vpop.f32.mrb[0].mxu0
    %v3653 = vadd.f32 %v564, %v3652
    %v3654 = vpop.f32.mrb[0].mxu0
    %v3655 = vpop.f32.mrb[0].mxu0
    %3656 = vdwg.mxu0
    %3657 = vmatprep.subr.bf16.mxu0 %v878
    %3658 = vmatpush1.bf16.msra.mxu0 %v877
    %3659 = vmatprep.subr.bf16.mxu0 %v884
    %3660 = vmatpush1.bf16.msra.mxu0 %v883
    %3661 = vmatprep.subr.bf16.mxu0 %v890
    %3662 = vmatpush1.bf16.msra.mxu0 %v889
    %3663 = vmatprep.subr.bf16.mxu0 %v896
    %3664 = vmatpush1.bf16.msra.mxu0 %v895
    %3665 = vmatprep.subr.bf16.mxu0 %v902
    %3666 = vmatpush1.bf16.msra.mxu0 %v901
    %3667 = vmatprep.subr.bf16.mxu0 %v908
    %3668 = vmatpush1.bf16.msra.mxu0 %v907
    %3669 = vmatprep.subr.bf16.mxu0 %v914
    %3670 = vmatpush1.bf16.msra.mxu0 %v913
    %3671 = vmatprep.subr.bf16.mxu0 %v920
    %3672 = vmatpush1.bf16.msra.mxu0 %v919
    %3673 = vmatprep.subr.bf16.mxu0 %v926
    %3674 = vmatpush1.bf16.msra.mxu0 %v925
    %3675 = vmatprep.subr.bf16.mxu0 %v932
    %3676 = vmatpush1.bf16.msra.mxu0 %v931
    %3677 = vmatprep.subr.bf16.mxu0 %v938
    %3678 = vmatpush1.bf16.msra.mxu0 %v937
    %3679 = vmatprep.subr.bf16.mxu0 %v944
    %3680 = vmatpush1.bf16.msra.mxu0 %v943
    %3681 = vmatprep.subr.bf16.mxu0 %v950
    %3682 = vmatpush1.bf16.msra.mxu0 %v949
    %3683 = vmatprep.subr.bf16.mxu0 %v956
    %3684 = vmatpush1.bf16.msra.mxu0 %v955
    %3685 = vmatprep.subr.bf16.mxu0 %v962
    %3686 = vmatpush1.bf16.msra.mxu0 %v961
    %3687 = vmatprep.subr.bf16.mxu0 %v968
    %3688 = vmatpush1.bf16.msra.mxu0 %v967
    %3689 = vmatprep.mubr.bf16.mxu0 %v3615
    %3690 = vmatmul.mubr.bf16.gmra.mrb[0].mxu0 %v3512
    %v3691 = vpop.f32.mrb[0].mxu0
    %v3692 = vadd.f32 %v568, %v3691
    %v3693 = vpop.f32.mrb[0].mxu0
    %v3694 = vadd.f32 %v572, %v3693
    %v3695 = vpop.f32.mrb[0].mxu0
    %v3696 = vpop.f32.mrb[0].mxu0
    %3697 = vdwg.mxu0
    %3698 = vmatprep.subr.bf16.mxu0 %v880
    %3699 = vmatpush1.bf16.msra.mxu0 %v879
    %3700 = vmatprep.subr.bf16.mxu0 %v886
    %3701 = vmatpush1.bf16.msra.mxu0 %v885
    %3702 = vmatprep.subr.bf16.mxu0 %v892
    %3703 = vmatpush1.bf16.msra.mxu0 %v891
    %3704 = vmatprep.subr.bf16.mxu0 %v898
    %3705 = vmatpush1.bf16.msra.mxu0 %v897
    %3706 = vmatprep.subr.bf16.mxu0 %v904
    %3707 = vmatpush1.bf16.msra.mxu0 %v903
    %3708 = vmatprep.subr.bf16.mxu0 %v910
    %3709 = vmatpush1.bf16.msra.mxu0 %v909
    %3710 = vmatprep.subr.bf16.mxu0 %v916
    %3711 = vmatpush1.bf16.msra.mxu0 %v915
    %3712 = vmatprep.subr.bf16.mxu0 %v922
    %3713 = vmatpush1.bf16.msra.mxu0 %v921
    %3714 = vmatprep.subr.bf16.mxu0 %v928
    %3715 = vmatpush1.bf16.msra.mxu0 %v927
    %3716 = vmatprep.subr.bf16.mxu0 %v934
    %3717 = vmatpush1.bf16.msra.mxu0 %v933
    %3718 = vmatprep.subr.bf16.mxu0 %v940
    %3719 = vmatpush1.bf16.msra.mxu0 %v939
    %3720 = vmatprep.subr.bf16.mxu0 %v946
    %3721 = vmatpush1.bf16.msra.mxu0 %v945
    %3722 = vmatprep.subr.bf16.mxu0 %v952
    %3723 = vmatpush1.bf16.msra.mxu0 %v951
    %3724 = vmatprep.subr.bf16.mxu0 %v958
    %3725 = vmatpush1.bf16.msra.mxu0 %v957
    %3726 = vmatprep.subr.bf16.mxu0 %v964
    %3727 = vmatpush1.bf16.msra.mxu0 %v963
    %3728 = vmatprep.subr.bf16.mxu0 %v970
    %3729 = vmatpush1.bf16.msra.mxu0 %v969
    %3730 = vmatprep.mubr.bf16.mxu0 %v3615
    %3731 = vmatmul.mubr.bf16.gmra.mrb[0].mxu0 %v3512
    %v3732 = vpop.f32.mrb[0].mxu0
    %v3733 = vadd.f32 %v576, %v3732
    %v3734 = vpop.f32.mrb[0].mxu0
    %v3735 = vadd.f32 %v580, %v3734
    %v3736 = vpop.f32.mrb[0].mxu0
    %v3737 = vpop.f32.mrb[0].mxu0
    %3738 = vdwg.mxu0
    %v3739 = vpack.c.bf16 %v3612, %v3612
    %3740 = vmatprep.subr.bf16.mxu0 0
    %3741 = vmatpush1.bf16.msra.mxu0 %v1294
    %3742 = vmatprep.subr.bf16.mxu0 0
    %3743 = vmatpush1.bf16.msra.mxu0 %v1295
    %3744 = vmatprep.subr.bf16.mxu0 0
    %3745 = vmatpush1.bf16.msra.mxu0 %v1296
    %3746 = vmatprep.subr.bf16.mxu0 0
    %3747 = vmatpush1.bf16.msra.mxu0 %v1297
    %3748 = vmatprep.subr.bf16.mxu0 0
    %3749 = vmatpush1.bf16.msra.mxu0 %v1298
    %3750 = vmatprep.subr.bf16.mxu0 0
    %3751 = vmatpush1.bf16.msra.mxu0 %v1299
    %3752 = vmatprep.subr.bf16.mxu0 0
    %3753 = vmatpush1.bf16.msra.mxu0 %v1300
    %3754 = vmatprep.subr.bf16.mxu0 0
    %3755 = vmatpush1.bf16.msra.mxu0 %v1301
    %3756 = vmatprep.subr.bf16.mxu0 0
    %3757 = vmatpush1.bf16.msra.mxu0 %v1302
    %3758 = vmatprep.subr.bf16.mxu0 0
    %3759 = vmatpush1.bf16.msra.mxu0 %v1303
    %3760 = vmatprep.subr.bf16.mxu0 0
    %3761 = vmatpush1.bf16.msra.mxu0 %v1304
    %3762 = vmatprep.subr.bf16.mxu0 0
    %3763 = vmatpush1.bf16.msra.mxu0 %v1305
    %3764 = vmatprep.subr.bf16.mxu0 0
    %3765 = vmatpush1.bf16.msra.mxu0 %v1306
    %3766 = vmatprep.subr.bf16.mxu0 0
    %3767 = vmatpush1.bf16.msra.mxu0 %v1307
    %3768 = vmatprep.subr.bf16.mxu0 0
    %3769 = vmatpush1.bf16.msra.mxu0 %v1308
    %3770 = vmatprep.subr.bf16.mxu0 0
    %3771 = vmatpush1.bf16.msra.mxu0 %v1309
    %3772 = vmatprep.mubr.bf16.mxu0 %v3615
    %3773 = vmatmul.mubr.bf16.gmra.mrb[0].mxu0 %v3739
    %v3774 = vpop.f32.mrb[0].mxu0
    %v3775 = vadd.f32 %v1228, %v3774
    %v3776 = vpop.f32.mrb[0].mxu0
    %v3777 = vpop.f32.mrb[0].mxu0
    %v3778 = vpop.f32.mrb[0].mxu0
    %3779 = vdwg.mxu0
    %v3780 = vmax.f32 %v3775, 0.0
    %v3781 = vpack.c.bf16 %v3610, %v3511
    %3782 = vmatprep.subr.bf16.mxu0 0
    %3783 = vmatpush1.bf16.msra.mxu0 %v1423
    %3784 = vmatprep.subr.bf16.mxu0 0
    %3785 = vmatpush1.bf16.msra.mxu0 %v1424
    %3786 = vmatprep.subr.bf16.mxu0 0
    %3787 = vmatpush1.bf16.msra.mxu0 %v1425
    %3788 = vmatprep.subr.bf16.mxu0 0
    %3789 = vmatpush1.bf16.msra.mxu0 %v1426
    %3790 = vmatprep.subr.bf16.mxu0 0
    %3791 = vmatpush1.bf16.msra.mxu0 %v1427
    %3792 = vmatprep.subr.bf16.mxu0 0
    %3793 = vmatpush1.bf16.msra.mxu0 %v1428
    %3794 = vmatprep.subr.bf16.mxu0 0
    %3795 = vmatpush1.bf16.msra.mxu0 %v1429
    %3796 = vmatprep.subr.bf16.mxu0 0
    %3797 = vmatpush1.bf16.msra.mxu0 %v1430
    %3798 = vmatprep.subr.bf16.mxu0 0
    %3799 = vmatpush1.bf16.msra.mxu0 0
    %3800 = vmatprep.subr.bf16.mxu0 0
    %3801 = vmatpush1.bf16.msra.mxu0 0
    %3802 = vmatprep.subr.bf16.mxu0 0
    %3803 = vmatpush1.bf16.msra.mxu0 0
    %3804 = vmatprep.subr.bf16.mxu0 0
    %3805 = vmatpush1.bf16.msra.mxu0 0
    %3806 = vmatprep.subr.bf16.mxu0 0
    %3807 = vmatpush1.bf16.msra.mxu0 0
    %3808 = vmatprep.subr.bf16.mxu0 0
    %3809 = vmatpush1.bf16.msra.mxu0 0
    %3810 = vmatprep.subr.bf16.mxu0 0
    %3811 = vmatpush1.bf16.msra.mxu0 0
    %3812 = vmatprep.subr.bf16.mxu0 0
    %3813 = vmatpush1.bf16.msra.mxu0 0
    %3814 = vmatprep.mubr.bf16.mxu0 0
    %3815 = vmatmul.mubr.bf16.gmra.mrb[0].mxu0 %v3781
    %v3816 = vpop.f32.mrb[0].mxu0
    %v3817 = vadd.f32 %v1389, %v3816
    %v3818 = vpop.f32.mrb[0].mxu0
    %v3819 = vpop.f32.mrb[0].mxu0
    %v3820 = vadd.f32 %v1389, %v3819
    %v3821 = vpop.f32.mrb[0].mxu0
    %3822 = vdwg.mxu0
    %v3823 = vmax.f32 %v3817, 0.0
    %v3824 = vmax.f32 %v3820, 0.0
    %v3825 = vpack.c.bf16 %v3823, %v3780
    %v3826 = vpack.c.bf16 %v3824, %v3824
    %3827 = vmatprep.subr.bf16.mxu0 0
    %3828 = vmatpush1.bf16.msra.mxu0 %v1539
    %3829 = vmatprep.subr.bf16.mxu0 0
    %3830 = vmatpush1.bf16.msra.mxu0 %v1540
    %3831 = vmatprep.subr.bf16.mxu0 0
    %3832 = vmatpush1.bf16.msra.mxu0 %v1541
    %3833 = vmatprep.subr.bf16.mxu0 0
    %3834 = vmatpush1.bf16.msra.mxu0 %v1542
    %3835 = vmatprep.subr.bf16.mxu0 0
    %3836 = vmatpush1.bf16.msra.mxu0 %v1543
    %3837 = vmatprep.subr.bf16.mxu0 0
    %3838 = vmatpush1.bf16.msra.mxu0 %v1544
    %3839 = vmatprep.subr.bf16.mxu0 0
    %3840 = vmatpush1.bf16.msra.mxu0 %v1545
    %3841 = vmatprep.subr.bf16.mxu0 0
    %3842 = vmatpush1.bf16.msra.mxu0 %v1546
    %3843 = vmatprep.subr.bf16.mxu0 0
    %3844 = vmatpush1.bf16.msra.mxu0 0
    %3845 = vmatprep.subr.bf16.mxu0 0
    %3846 = vmatpush1.bf16.msra.mxu0 0
    %3847 = vmatprep.subr.bf16.mxu0 0
    %3848 = vmatpush1.bf16.msra.mxu0 0
    %3849 = vmatprep.subr.bf16.mxu0 0
    %3850 = vmatpush1.bf16.msra.mxu0 0
    %3851 = vmatprep.subr.bf16.mxu0 0
    %3852 = vmatpush1.bf16.msra.mxu0 0
    %3853 = vmatprep.subr.bf16.mxu0 0
    %3854 = vmatpush1.bf16.msra.mxu0 0
    %3855 = vmatprep.subr.bf16.mxu0 0
    %3856 = vmatpush1.bf16.msra.mxu0 0
    %3857 = vmatprep.subr.bf16.mxu0 0
    %3858 = vmatpush1.bf16.msra.mxu0 0
    %3859 = vmatprep.mubr.bf16.mxu0 0
    %3860 = vmatmul.mubr.bf16.gmra.mrb[0].mxu0 %v3825
    %v3861 = vpop.f32.mrb[0].mxu0
    %v3862 = vadd.f32 %v1505, %v3861
    %v3863 = vpop.f32.mrb[0].mxu0
    %v3864 = vpop.f32.mrb[0].mxu0
    %v3865 = vadd.f32 %v1505, %v3864
    %v3866 = vpop.f32.mrb[0].mxu0
    %3867 = vmatprep.mubr.bf16.mxu0 0
    %3868 = vmatmul.mubr.bf16.gmra.mrb[0].mxu0 %v3826
    %v3869 = vpop.f32.mrb[0].mxu0
    %v3870 = vadd.f32 %v1505, %v3869
    %v3871 = vpop.f32.mrb[0].mxu0
    %v3872 = vpop.f32.mrb[0].mxu0
    %v3873 = vpop.f32.mrb[0].mxu0
    %3874 = vdwg.mxu0
    %vm3875 = vcmp.gt.f32.partialorder %v3862, 20.0
    %v3876 = vmin.f32 %v3862, 20.0
    %v3877 = vmul.f32 %v3876, 1.442695
    %v3878 = vpow.pop %v3877
    %v3879 = vadd.f32 %v3878, 1.0
    %v3880 = vlog2.pop %v3879
    %v3881 = vmul.f32 %v3880, 0.6931472
    %v3882 = vmul.f32 -0.5, %v3878
    %v3883 = vadd.f32 %v3882, 1.0
    %v3884 = vmul.f32 %v3883, %v3878
    %v3885 = vand.u32 2147483647, %v3878
    %vm3886 = vcmp.lt.f32.partialorder %v3885, 0.0004427343
    %v3887 = vsel %vm3886, %v3884, %v3881
    %v3888 = vsel %vm3875, %v3862, %v3887
    %vm3889 = vcmp.gt.f32.partialorder %v3865, 20.0
    %vm3890 = vcmp.gt.f32.partialorder %v3870, 20.0
    %v3891 = vmin.f32 %v3865, 20.0
    %v3892 = vmin.f32 %v3870, 20.0
    %v3893 = vmul.f32 %v3891, 1.442695
    %v3894 = vpow.pop %v3893
    %v3895 = vmul.f32 %v3892, 1.442695
    %v3896 = vpow.pop %v3895
    %v3897 = vadd.f32 %v3894, 1.0
    %v3898 = vlog2.pop %v3897
    %v3899 = vmul.f32 %v3898, 0.6931472
    %v3900 = vmul.f32 -0.5, %v3894
    %v3901 = vadd.f32 %v3900, 1.0
    %v3902 = vmul.f32 %v3901, %v3894
    %v3903 = vand.u32 2147483647, %v3894
    %vm3904 = vcmp.lt.f32.partialorder %v3903, 0.0004427343
    %v3905 = vsel %vm3904, %v3902, %v3899
    %v3906 = vadd.f32 %v3896, 1.0
    %v3907 = vlog2.pop %v3906
    %v3908 = vmul.f32 %v3907, 0.6931472
    %v3909 = vmul.f32 -0.5, %v3896
    %v3910 = vadd.f32 %v3909, 1.0
    %v3911 = vmul.f32 %v3910, %v3896
    %v3912 = vand.u32 2147483647, %v3896
    %vm3913 = vcmp.lt.f32.partialorder %v3912, 0.0004427343
    %v3914 = vsel %vm3913, %v3911, %v3908
    %v3915 = vsel %vm3889, %v3865, %v3905
    %v3916 = vsel %vm3890, %v3870, %v3914
    %v3917 = vsub.f32 %v3862, %v3865
    %v3918 = vsub.f32 %v3862, %v3870
    %v3919 = vrcp.pop %v3915
    %v3920 = vrcp.pop %v3916
    %v3921 = vmul.f32 %v3888, %v3919
    %v3922 = vmul.f32 %v3888, %v3920
    %v3923 = vlog2.pop %v3921
    %v3924 = vmul.f32 %v3923, 0.6931472
    %v3925 = vlog2.pop %v3922
    %v3926 = vmul.f32 %v3925, 0.6931472
    %v3927 = vmul.f32 %v3924, -2.0
    %v3928 = vmul.f32 %v3926, -2.0
    %v3929 = vmul.f32 %v3888, %v3888
    %v3930 = vmul.f32 %v3917, %v3917
    %v3931 = vmul.f32 %v3918, %v3918
    %v3932 = vadd.f32 %v3929, %v3930
    %v3933 = vadd.f32 %v3929, %v3931
    %v3934 = vmul.f32 %v3919, %v3919
    %v3935 = vmul.f32 %v3920, %v3920
    %v3936 = vmul.f32 %v3932, %v3934
    %v3937 = vmul.f32 %v3933, %v3935
    %v3938 = vadd.f32 %v3927, %v3936
    %v3939 = vadd.f32 %v3928, %v3937
    %v3940 = vsub.f32 %v3938, 1.0
    %v3941 = vsub.f32 %v3939, 1.0
    %v3942 = vadd.f32 %v3364, %v3940
    %v3943 = vadd.f32 %v3365, %v3941
    %v3944 = vmul.f32 %v3614, %v3888
    %v3945 = vadd.f32 %v3944, %v3862
    %v3946 = vpack.c.bf16 %v3945, %v3945
    %v3948 = vsel %vm1698, %v3946, 0
    %3950 = vmatprep.subr.bf16.mxu0 0
    %3951 = vmatpush1.bf16.msra.mxu0 %v1694
    %3952 = vmatprep.subr.bf16.mxu0 0
    %3953 = vmatpush1.bf16.msra.mxu0 %v1695
    %3954 = vmatprep.subr.bf16.mxu0 0
    %3955 = vmatpush1.bf16.msra.mxu0 0
    %3956 = vmatprep.subr.bf16.mxu0 0
    %3957 = vmatpush1.bf16.msra.mxu0 0
    %3958 = vmatprep.subr.bf16.mxu0 0
    %3959 = vmatpush1.bf16.msra.mxu0 0
    %3960 = vmatprep.subr.bf16.mxu0 0
    %3961 = vmatpush1.bf16.msra.mxu0 0
    %3962 = vmatprep.subr.bf16.mxu0 0
    %3963 = vmatpush1.bf16.msra.mxu0 0
    %3964 = vmatprep.subr.bf16.mxu0 0
    %3965 = vmatpush1.bf16.msra.mxu0 0
    %3966 = vmatprep.subr.bf16.mxu0 0
    %3967 = vmatpush1.bf16.msra.mxu0 0
    %3968 = vmatprep.subr.bf16.mxu0 0
    %3969 = vmatpush1.bf16.msra.mxu0 0
    %3970 = vmatprep.subr.bf16.mxu0 0
    %3971 = vmatpush1.bf16.msra.mxu0 0
    %3972 = vmatprep.subr.bf16.mxu0 0
    %3973 = vmatpush1.bf16.msra.mxu0 0
    %3974 = vmatprep.subr.bf16.mxu0 0
    %3975 = vmatpush1.bf16.msra.mxu0 0
    %3976 = vmatprep.subr.bf16.mxu0 0
    %3977 = vmatpush1.bf16.msra.mxu0 0
    %3978 = vmatprep.subr.bf16.mxu0 0
    %3979 = vmatpush1.bf16.msra.mxu0 0
    %3980 = vmatprep.subr.bf16.mxu0 0
    %3981 = vmatpush1.bf16.msra.mxu0 0
    %3982 = vmatprep.mubr.bf16.mxu0 0
    %3983 = vmatmul.mubr.bf16.gmra.mrb[0].mxu0 %v3948
    %v3984 = vpop.f32.mrb[0].mxu0
    %v3985 = vadd.f32 %v1684, %v3984
    %v3986 = vpop.f32.mrb[0].mxu0
    %v3987 = vpop.f32.mrb[0].mxu0
    %v3988 = vpop.f32.mrb[0].mxu0
    %3989 = vdwg.mxu0
    %v3990 = vmax.f32 %v3985, 0.0
    %v3991 = vpack.c.bf16 %v3990, %v3990
    %3992 = vmatprep.subr.bf16.mxu0 %v1986
    %3993 = vmatpush1.bf16.msra.mxu0 %v1985
    %3994 = vmatprep.subr.bf16.mxu0 %v1989
    %3995 = vmatpush1.bf16.msra.mxu0 %v1988
    %3996 = vmatprep.subr.bf16.mxu0 %v1992
    %3997 = vmatpush1.bf16.msra.mxu0 %v1991
    %3998 = vmatprep.subr.bf16.mxu0 %v1995
    %3999 = vmatpush1.bf16.msra.mxu0 %v1994
    %4000 = vmatprep.subr.bf16.mxu0 %v1998
    %4001 = vmatpush1.bf16.msra.mxu0 %v1997
    %4002 = vmatprep.subr.bf16.mxu0 %v2001
    %4003 = vmatpush1.bf16.msra.mxu0 %v2000
    %4004 = vmatprep.subr.bf16.mxu0 %v2004
    %4005 = vmatpush1.bf16.msra.mxu0 %v2003
    %4006 = vmatprep.subr.bf16.mxu0 %v2007
    %4007 = vmatpush1.bf16.msra.mxu0 %v2006
    %4008 = vmatprep.subr.bf16.mxu0 %v2010
    %4009 = vmatpush1.bf16.msra.mxu0 %v2009
    %4010 = vmatprep.subr.bf16.mxu0 %v2013
    %4011 = vmatpush1.bf16.msra.mxu0 %v2012
    %4012 = vmatprep.subr.bf16.mxu0 %v2016
    %4013 = vmatpush1.bf16.msra.mxu0 %v2015
    %4014 = vmatprep.subr.bf16.mxu0 %v2019
    %4015 = vmatpush1.bf16.msra.mxu0 %v2018
    %4016 = vmatprep.subr.bf16.mxu0 %v2022
    %4017 = vmatpush1.bf16.msra.mxu0 %v2021
    %4018 = vmatprep.subr.bf16.mxu0 %v2025
    %4019 = vmatpush1.bf16.msra.mxu0 %v2024
    %4020 = vmatprep.subr.bf16.mxu0 %v2028
    %4021 = vmatpush1.bf16.msra.mxu0 %v2027
    %4022 = vmatprep.subr.bf16.mxu0 %v2031
    %4023 = vmatpush1.bf16.msra.mxu0 %v2030
    %4024 = vmatprep.mubr.bf16.mxu0 %v3991
    %4025 = vmatmul.mubr.bf16.gmra.mrb[0].mxu0 %v3739
    %v4026 = vpop.f32.mrb[0].mxu0
    %v4027 = vadd.f32 %v1813, %v4026
    %v4028 = vpop.f32.mrb[0].mxu0
    %v4029 = vadd.f32 %v1817, %v4028
    %v4030 = vpop.f32.mrb[0].mxu0
    %v4031 = vpop.f32.mrb[0].mxu0
    %4032 = vdwg.mxu0
    %4033 = vmatprep.subr.bf16.mxu0 0
    %4034 = vmatpush1.bf16.msra.mxu0 %v1987
    %4035 = vmatprep.subr.bf16.mxu0 0
    %4036 = vmatpush1.bf16.msra.mxu0 %v1990
    %4037 = vmatprep.subr.bf16.mxu0 0
    %4038 = vmatpush1.bf16.msra.mxu0 %v1993
    %4039 = vmatprep.subr.bf16.mxu0 0
    %4040 = vmatpush1.bf16.msra.mxu0 %v1996
    %4041 = vmatprep.subr.bf16.mxu0 0
    %4042 = vmatpush1.bf16.msra.mxu0 %v1999
    %4043 = vmatprep.subr.bf16.mxu0 0
    %4044 = vmatpush1.bf16.msra.mxu0 %v2002
    %4045 = vmatprep.subr.bf16.mxu0 0
    %4046 = vmatpush1.bf16.msra.mxu0 %v2005
    %4047 = vmatprep.subr.bf16.mxu0 0
    %4048 = vmatpush1.bf16.msra.mxu0 %v2008
    %4049 = vmatprep.subr.bf16.mxu0 0
    %4050 = vmatpush1.bf16.msra.mxu0 %v2011
    %4051 = vmatprep.subr.bf16.mxu0 0
    %4052 = vmatpush1.bf16.msra.mxu0 %v2014
    %4053 = vmatprep.subr.bf16.mxu0 0
    %4054 = vmatpush1.bf16.msra.mxu0 %v2017
    %4055 = vmatprep.subr.bf16.mxu0 0
    %4056 = vmatpush1.bf16.msra.mxu0 %v2020
    %4057 = vmatprep.subr.bf16.mxu0 0
    %4058 = vmatpush1.bf16.msra.mxu0 %v2023
    %4059 = vmatprep.subr.bf16.mxu0 0
    %4060 = vmatpush1.bf16.msra.mxu0 %v2026
    %4061 = vmatprep.subr.bf16.mxu0 0
    %4062 = vmatpush1.bf16.msra.mxu0 %v2029
    %4063 = vmatprep.subr.bf16.mxu0 0
    %4064 = vmatpush1.bf16.msra.mxu0 %v2032
    %4065 = vmatprep.mubr.bf16.mxu0 %v3991
    %4066 = vmatmul.mubr.bf16.gmra.mrb[0].mxu0 %v3739
    %v4067 = vpop.f32.mrb[0].mxu0
    %v4068 = vadd.f32 %v1821, %v4067
    %v4069 = vpop.f32.mrb[0].mxu0
    %v4070 = vpop.f32.mrb[0].mxu0
    %v4071 = vpop.f32.mrb[0].mxu0
    %4072 = vdwg.mxu0
    %v4073 = vadd.f32 %v4027, %v3651
    %v4074 = vmul.f32 %v4073, 0.5
    %v4075 = vtanh.pop %v4074
    %v4076 = vadd.f32 %v4075, 1.0
    %v4077 = vmul.f32 %v4076, 0.5
    %v4078 = vadd.f32 %v4029, %v3653
    %v4079 = vmul.f32 %v4078, 0.5
    %v4080 = vtanh.pop %v4079
    %v4081 = vadd.f32 %v4080, 1.0
    %v4082 = vmul.f32 %v4081, 0.5
    %v4083 = vmul.f32 %v4077, %v3692
    %v4084 = vadd.f32 %v4068, %v4083
    %v4085 = vtanh.pop %v4084
    %v4086 = vsub.f32 1.0, %v4082
    %v4087 = vmul.f32 %v4086, %v4085
    %v4088 = vmul.f32 %v4082, %v3511
    %v4089 = vadd.f32 %v4087, %v4088
    %v4090 = vpack.c.bf16 %v4089, %v4089
    %4091 = vmatprep.subr.bf16.mxu0 %v2310
    %4092 = vmatpush1.bf16.msra.mxu0 %v2309
    %4093 = vmatprep.subr.bf16.mxu0 %v2313
    %4094 = vmatpush1.bf16.msra.mxu0 %v2312
    %4095 = vmatprep.subr.bf16.mxu0 %v2316
    %4096 = vmatpush1.bf16.msra.mxu0 %v2315
    %4097 = vmatprep.subr.bf16.mxu0 %v2319
    %4098 = vmatpush1.bf16.msra.mxu0 %v2318
    %4099 = vmatprep.subr.bf16.mxu0 %v2322
    %4100 = vmatpush1.bf16.msra.mxu0 %v2321
    %4101 = vmatprep.subr.bf16.mxu0 %v2325
    %4102 = vmatpush1.bf16.msra.mxu0 %v2324
    %4103 = vmatprep.subr.bf16.mxu0 %v2328
    %4104 = vmatpush1.bf16.msra.mxu0 %v2327
    %4105 = vmatprep.subr.bf16.mxu0 %v2331
    %4106 = vmatpush1.bf16.msra.mxu0 %v2330
    %4107 = vmatprep.subr.bf16.mxu0 0
    %4108 = vmatpush1.bf16.msra.mxu0 0
    %4109 = vmatprep.subr.bf16.mxu0 0
    %4110 = vmatpush1.bf16.msra.mxu0 0
    %4111 = vmatprep.subr.bf16.mxu0 0
    %4112 = vmatpush1.bf16.msra.mxu0 0
    %4113 = vmatprep.subr.bf16.mxu0 0
    %4114 = vmatpush1.bf16.msra.mxu0 0
    %4115 = vmatprep.subr.bf16.mxu0 0
    %4116 = vmatpush1.bf16.msra.mxu0 0
    %4117 = vmatprep.subr.bf16.mxu0 0
    %4118 = vmatpush1.bf16.msra.mxu0 0
    %4119 = vmatprep.subr.bf16.mxu0 0
    %4120 = vmatpush1.bf16.msra.mxu0 0
    %4121 = vmatprep.subr.bf16.mxu0 0
    %4122 = vmatpush1.bf16.msra.mxu0 0
    %4123 = vmatprep.mubr.bf16.mxu0 0
    %4124 = vmatmul.mubr.bf16.gmra.mrb[0].mxu0 %v4090
    %v4125 = vpop.f32.mrb[0].mxu0
    %v4126 = vadd.f32 %v2217, %v4125
    %v4127 = vpop.f32.mrb[0].mxu0
    %v4128 = vadd.f32 %v2221, %v4127
    %v4129 = vpop.f32.mrb[0].mxu0
    %v4130 = vpop.f32.mrb[0].mxu0
    %4131 = vdwg.mxu0
    %4132 = vmatprep.subr.bf16.mxu0 0
    %4133 = vmatpush1.bf16.msra.mxu0 %v2311
    %4134 = vmatprep.subr.bf16.mxu0 0
    %4135 = vmatpush1.bf16.msra.mxu0 %v2314
    %4136 = vmatprep.subr.bf16.mxu0 0
    %4137 = vmatpush1.bf16.msra.mxu0 %v2317
    %4138 = vmatprep.subr.bf16.mxu0 0
    %4139 = vmatpush1.bf16.msra.mxu0 %v2320
    %4140 = vmatprep.subr.bf16.mxu0 0
    %4141 = vmatpush1.bf16.msra.mxu0 %v2323
    %4142 = vmatprep.subr.bf16.mxu0 0
    %4143 = vmatpush1.bf16.msra.mxu0 %v2326
    %4144 = vmatprep.subr.bf16.mxu0 0
    %4145 = vmatpush1.bf16.msra.mxu0 %v2329
    %4146 = vmatprep.subr.bf16.mxu0 0
    %4147 = vmatpush1.bf16.msra.mxu0 %v2332
    %4148 = vmatprep.subr.bf16.mxu0 0
    %4149 = vmatpush1.bf16.msra.mxu0 0
    %4150 = vmatprep.subr.bf16.mxu0 0
    %4151 = vmatpush1.bf16.msra.mxu0 0
    %4152 = vmatprep.subr.bf16.mxu0 0
    %4153 = vmatpush1.bf16.msra.mxu0 0
    %4154 = vmatprep.subr.bf16.mxu0 0
    %4155 = vmatpush1.bf16.msra.mxu0 0
    %4156 = vmatprep.subr.bf16.mxu0 0
    %4157 = vmatpush1.bf16.msra.mxu0 0
    %4158 = vmatprep.subr.bf16.mxu0 0
    %4159 = vmatpush1.bf16.msra.mxu0 0
    %4160 = vmatprep.subr.bf16.mxu0 0
    %4161 = vmatpush1.bf16.msra.mxu0 0
    %4162 = vmatprep.subr.bf16.mxu0 0
    %4163 = vmatpush1.bf16.msra.mxu0 0
    %4164 = vmatprep.mubr.bf16.mxu0 0
    %4165 = vmatmul.mubr.bf16.gmra.mrb[0].mxu0 %v4090
    %v4166 = vpop.f32.mrb[0].mxu0
    %v4167 = vadd.f32 %v2225, %v4166
    %v4168 = vpop.f32.mrb[0].mxu0
    %v4169 = vpop.f32.mrb[0].mxu0
    %v4170 = vpop.f32.mrb[0].mxu0
    %4171 = vdwg.mxu0
    %v4172 = vadd.f32 %v4126, %v3694
    %v4173 = vmul.f32 %v4172, 0.5
    %v4174 = vtanh.pop %v4173
    %v4175 = vadd.f32 %v4174, 1.0
    %v4176 = vmul.f32 %v4175, 0.5
    %v4177 = vadd.f32 %v4128, %v3733
    %v4178 = vmul.f32 %v4177, 0.5
    %v4179 = vtanh.pop %v4178
    %v4180 = vadd.f32 %v4179, 1.0
    %v4181 = vmul.f32 %v4180, 0.5
    %v4182 = vmul.f32 %v4176, %v3735
    %v4183 = vadd.f32 %v4167, %v4182
    %v4184 = vtanh.pop %v4183
    %v4185 = vsub.f32 1.0, %v4181
    %v4186 = vmul.f32 %v4185, %v4184
    %v4187 = vmul.f32 %v4181, %v3610
    %v4188 = vadd.f32 %v4186, %v4187
    %s4189 = scalar_lea.vmem [#allocation2], 32
    %v4190 = vld [vmem:[%s4189] sm:$0xff]
    %s4191 = scalar_lea.vmem [#allocation4], 32
    %v4192 = vld [vmem:[%s4191] sm:$0xff]
    %v4193 = vpack.c.bf16 %v4188, %v4188
    %4194 = vmatprep.subr.bf16.mxu0 %v876
    %4195 = vmatpush1.bf16.msra.mxu0 %v875
    %4196 = vmatprep.subr.bf16.mxu0 %v882
    %4197 = vmatpush1.bf16.msra.mxu0 %v881
    %4198 = vmatprep.subr.bf16.mxu0 %v888
    %4199 = vmatpush1.bf16.msra.mxu0 %v887
    %4200 = vmatprep.subr.bf16.mxu0 %v894
    %4201 = vmatpush1.bf16.msra.mxu0 %v893
    %4202 = vmatprep.subr.bf16.mxu0 %v900
    %4203 = vmatpush1.bf16.msra.mxu0 %v899
    %4204 = vmatprep.subr.bf16.mxu0 %v906
    %4205 = vmatpush1.bf16.msra.mxu0 %v905
    %4206 = vmatprep.subr.bf16.mxu0 %v912
    %4207 = vmatpush1.bf16.msra.mxu0 %v911
    %4208 = vmatprep.subr.bf16.mxu0 %v918
    %4209 = vmatpush1.bf16.msra.mxu0 %v917
    %4210 = vmatprep.subr.bf16.mxu0 %v924
    %4211 = vmatpush1.bf16.msra.mxu0 %v923
    %4212 = vmatprep.subr.bf16.mxu0 %v930
    %4213 = vmatpush1.bf16.msra.mxu0 %v929
    %4214 = vmatprep.subr.bf16.mxu0 %v936
    %4215 = vmatpush1.bf16.msra.mxu0 %v935
    %4216 = vmatprep.subr.bf16.mxu0 %v942
    %4217 = vmatpush1.bf16.msra.mxu0 %v941
    %4218 = vmatprep.subr.bf16.mxu0 %v948
    %4219 = vmatpush1.bf16.msra.mxu0 %v947
    %4220 = vmatprep.subr.bf16.mxu0 %v954
    %4221 = vmatpush1.bf16.msra.mxu0 %v953
    %4222 = vmatprep.subr.bf16.mxu0 %v960
    %4223 = vmatpush1.bf16.msra.mxu0 %v959
    %4224 = vmatprep.subr.bf16.mxu0 %v966
    %4225 = vmatpush1.bf16.msra.mxu0 %v965
    %4226 = vmatprep.mubr.bf16.mxu0 %v4193
    %4227 = vmatmul.mubr.bf16.gmra.mrb[0].mxu0 %v4090
    %v4228 = vpop.f32.mrb[0].mxu0
    %v4229 = vadd.f32 %v560, %v4228
    %v4230 = vpop.f32.mrb[0].mxu0
    %v4231 = vadd.f32 %v564, %v4230
    %v4232 = vpop.f32.mrb[0].mxu0
    %v4233 = vpop.f32.mrb[0].mxu0
    %4234 = vdwg.mxu0
    %4235 = vmatprep.subr.bf16.mxu0 %v878
    %4236 = vmatpush1.bf16.msra.mxu0 %v877
    %4237 = vmatprep.subr.bf16.mxu0 %v884
    %4238 = vmatpush1.bf16.msra.mxu0 %v883
    %4239 = vmatprep.subr.bf16.mxu0 %v890
    %4240 = vmatpush1.bf16.msra.mxu0 %v889
    %4241 = vmatprep.subr.bf16.mxu0 %v896
    %4242 = vmatpush1.bf16.msra.mxu0 %v895
    %4243 = vmatprep.subr.bf16.mxu0 %v902
    %4244 = vmatpush1.bf16.msra.mxu0 %v901
    %4245 = vmatprep.subr.bf16.mxu0 %v908
    %4246 = vmatpush1.bf16.msra.mxu0 %v907
    %4247 = vmatprep.subr.bf16.mxu0 %v914
    %4248 = vmatpush1.bf16.msra.mxu0 %v913
    %4249 = vmatprep.subr.bf16.mxu0 %v920
    %4250 = vmatpush1.bf16.msra.mxu0 %v919
    %4251 = vmatprep.subr.bf16.mxu0 %v926
    %4252 = vmatpush1.bf16.msra.mxu0 %v925
    %4253 = vmatprep.subr.bf16.mxu0 %v932
    %4254 = vmatpush1.bf16.msra.mxu0 %v931
    %4255 = vmatprep.subr.bf16.mxu0 %v938
    %4256 = vmatpush1.bf16.msra.mxu0 %v937
    %4257 = vmatprep.subr.bf16.mxu0 %v944
    %4258 = vmatpush1.bf16.msra.mxu0 %v943
    %4259 = vmatprep.subr.bf16.mxu0 %v950
    %4260 = vmatpush1.bf16.msra.mxu0 %v949
    %4261 = vmatprep.subr.bf16.mxu0 %v956
    %4262 = vmatpush1.bf16.msra.mxu0 %v955
    %4263 = vmatprep.subr.bf16.mxu0 %v962
    %4264 = vmatpush1.bf16.msra.mxu0 %v961
    %4265 = vmatprep.subr.bf16.mxu0 %v968
    %4266 = vmatpush1.bf16.msra.mxu0 %v967
    %4267 = vmatprep.mubr.bf16.mxu0 %v4193
    %4268 = vmatmul.mubr.bf16.gmra.mrb[0].mxu0 %v4090
    %v4269 = vpop.f32.mrb[0].mxu0
    %v4270 = vadd.f32 %v568, %v4269
    %v4271 = vpop.f32.mrb[0].mxu0
    %v4272 = vadd.f32 %v572, %v4271
    %v4273 = vpop.f32.mrb[0].mxu0
    %v4274 = vpop.f32.mrb[0].mxu0
    %4275 = vdwg.mxu0
    %4276 = vmatprep.subr.bf16.mxu0 %v880
    %4277 = vmatpush1.bf16.msra.mxu0 %v879
    %4278 = vmatprep.subr.bf16.mxu0 %v886
    %4279 = vmatpush1.bf16.msra.mxu0 %v885
    %4280 = vmatprep.subr.bf16.mxu0 %v892
    %4281 = vmatpush1.bf16.msra.mxu0 %v891
    %4282 = vmatprep.subr.bf16.mxu0 %v898
    %4283 = vmatpush1.bf16.msra.mxu0 %v897
    %4284 = vmatprep.subr.bf16.mxu0 %v904
    %4285 = vmatpush1.bf16.msra.mxu0 %v903
    %4286 = vmatprep.subr.bf16.mxu0 %v910
    %4287 = vmatpush1.bf16.msra.mxu0 %v909
    %4288 = vmatprep.subr.bf16.mxu0 %v916
    %4289 = vmatpush1.bf16.msra.mxu0 %v915
    %4290 = vmatprep.subr.bf16.mxu0 %v922
    %4291 = vmatpush1.bf16.msra.mxu0 %v921
    %4292 = vmatprep.subr.bf16.mxu0 %v928
    %4293 = vmatpush1.bf16.msra.mxu0 %v927
    %4294 = vmatprep.subr.bf16.mxu0 %v934
    %4295 = vmatpush1.bf16.msra.mxu0 %v933
    %4296 = vmatprep.subr.bf16.mxu0 %v940
    %4297 = vmatpush1.bf16.msra.mxu0 %v939
    %4298 = vmatprep.subr.bf16.mxu0 %v946
    %4299 = vmatpush1.bf16.msra.mxu0 %v945
    %4300 = vmatprep.subr.bf16.mxu0 %v952
    %4301 = vmatpush1.bf16.msra.mxu0 %v951
    %4302 = vmatprep.subr.bf16.mxu0 %v958
    %4303 = vmatpush1.bf16.msra.mxu0 %v957
    %4304 = vmatprep.subr.bf16.mxu0 %v964
    %4305 = vmatpush1.bf16.msra.mxu0 %v963
    %4306 = vmatprep.subr.bf16.mxu0 %v970
    %4307 = vmatpush1.bf16.msra.mxu0 %v969
    %4308 = vmatprep.mubr.bf16.mxu0 %v4193
    %4309 = vmatmul.mubr.bf16.gmra.mrb[0].mxu0 %v4090
    %v4310 = vpop.f32.mrb[0].mxu0
    %v4311 = vadd.f32 %v576, %v4310
    %v4312 = vpop.f32.mrb[0].mxu0
    %v4313 = vadd.f32 %v580, %v4312
    %v4314 = vpop.f32.mrb[0].mxu0
    %v4315 = vpop.f32.mrb[0].mxu0
    %4316 = vdwg.mxu0
    %v4317 = vpack.c.bf16 %v4190, %v4190
    %4318 = vmatprep.subr.bf16.mxu0 0
    %4319 = vmatpush1.bf16.msra.mxu0 %v1294
    %4320 = vmatprep.subr.bf16.mxu0 0
    %4321 = vmatpush1.bf16.msra.mxu0 %v1295
    %4322 = vmatprep.subr.bf16.mxu0 0
    %4323 = vmatpush1.bf16.msra.mxu0 %v1296
    %4324 = vmatprep.subr.bf16.mxu0 0
    %4325 = vmatpush1.bf16.msra.mxu0 %v1297
    %4326 = vmatprep.subr.bf16.mxu0 0
    %4327 = vmatpush1.bf16.msra.mxu0 %v1298
    %4328 = vmatprep.subr.bf16.mxu0 0
    %4329 = vmatpush1.bf16.msra.mxu0 %v1299
    %4330 = vmatprep.subr.bf16.mxu0 0
    %4331 = vmatpush1.bf16.msra.mxu0 %v1300
    %4332 = vmatprep.subr.bf16.mxu0 0
    %4333 = vmatpush1.bf16.msra.mxu0 %v1301
    %4334 = vmatprep.subr.bf16.mxu0 0
    %4335 = vmatpush1.bf16.msra.mxu0 %v1302
    %4336 = vmatprep.subr.bf16.mxu0 0
    %4337 = vmatpush1.bf16.msra.mxu0 %v1303
    %4338 = vmatprep.subr.bf16.mxu0 0
    %4339 = vmatpush1.bf16.msra.mxu0 %v1304
    %4340 = vmatprep.subr.bf16.mxu0 0
    %4341 = vmatpush1.bf16.msra.mxu0 %v1305
    %4342 = vmatprep.subr.bf16.mxu0 0
    %4343 = vmatpush1.bf16.msra.mxu0 %v1306
    %4344 = vmatprep.subr.bf16.mxu0 0
    %4345 = vmatpush1.bf16.msra.mxu0 %v1307
    %4346 = vmatprep.subr.bf16.mxu0 0
    %4347 = vmatpush1.bf16.msra.mxu0 %v1308
    %4348 = vmatprep.subr.bf16.mxu0 0
    %4349 = vmatpush1.bf16.msra.mxu0 %v1309
    %4350 = vmatprep.mubr.bf16.mxu0 %v4193
    %4351 = vmatmul.mubr.bf16.gmra.mrb[0].mxu0 %v4317
    %v4352 = vpop.f32.mrb[0].mxu0
    %v4353 = vadd.f32 %v1228, %v4352
    %v4354 = vpop.f32.mrb[0].mxu0
    %v4355 = vpop.f32.mrb[0].mxu0
    %v4356 = vpop.f32.mrb[0].mxu0
    %4357 = vdwg.mxu0
    %v4358 = vmax.f32 %v4353, 0.0
    %v4359 = vpack.c.bf16 %v4188, %v4089
    %4360 = vmatprep.subr.bf16.mxu0 0
    %4361 = vmatpush1.bf16.msra.mxu0 %v1423
    %4362 = vmatprep.subr.bf16.mxu0 0
    %4363 = vmatpush1.bf16.msra.mxu0 %v1424
    %4364 = vmatprep.subr.bf16.mxu0 0
    %4365 = vmatpush1.bf16.msra.mxu0 %v1425
    %4366 = vmatprep.subr.bf16.mxu0 0
    %4367 = vmatpush1.bf16.msra.mxu0 %v1426
    %4368 = vmatprep.subr.bf16.mxu0 0
    %4369 = vmatpush1.bf16.msra.mxu0 %v1427
    %4370 = vmatprep.subr.bf16.mxu0 0
    %4371 = vmatpush1.bf16.msra.mxu0 %v1428
    %4372 = vmatprep.subr.bf16.mxu0 0
    %4373 = vmatpush1.bf16.msra.mxu0 %v1429
    %4374 = vmatprep.subr.bf16.mxu0 0
    %4375 = vmatpush1.bf16.msra.mxu0 %v1430
    %4376 = vmatprep.subr.bf16.mxu0 0
    %4377 = vmatpush1.bf16.msra.mxu0 0
    %4378 = vmatprep.subr.bf16.mxu0 0
    %4379 = vmatpush1.bf16.msra.mxu0 0
    %4380 = vmatprep.subr.bf16.mxu0 0
    %4381 = vmatpush1.bf16.msra.mxu0 0
    %4382 = vmatprep.subr.bf16.mxu0 0
    %4383 = vmatpush1.bf16.msra.mxu0 0
    %4384 = vmatprep.subr.bf16.mxu0 0
    %4385 = vmatpush1.bf16.msra.mxu0 0
    %4386 = vmatprep.subr.bf16.mxu0 0
    %4387 = vmatpush1.bf16.msra.mxu0 0
    %4388 = vmatprep.subr.bf16.mxu0 0
    %4389 = vmatpush1.bf16.msra.mxu0 0
    %4390 = vmatprep.subr.bf16.mxu0 0
    %4391 = vmatpush1.bf16.msra.mxu0 0
    %4392 = vmatprep.mubr.bf16.mxu0 0
    %4393 = vmatmul.mubr.bf16.gmra.mrb[0].mxu0 %v4359
    %v4394 = vpop.f32.mrb[0].mxu0
    %v4395 = vadd.f32 %v1389, %v4394
    %v4396 = vpop.f32.mrb[0].mxu0
    %v4397 = vpop.f32.mrb[0].mxu0
    %v4398 = vadd.f32 %v1389, %v4397
    %v4399 = vpop.f32.mrb[0].mxu0
    %4400 = vdwg.mxu0
    %v4401 = vmax.f32 %v4395, 0.0
    %v4402 = vmax.f32 %v4398, 0.0
    %v4403 = vpack.c.bf16 %v4401, %v4358
    %v4404 = vpack.c.bf16 %v4402, %v4402
    %4405 = vmatprep.subr.bf16.mxu0 0
    %4406 = vmatpush1.bf16.msra.mxu0 %v1539
    %4407 = vmatprep.subr.bf16.mxu0 0
    %4408 = vmatpush1.bf16.msra.mxu0 %v1540
    %4409 = vmatprep.subr.bf16.mxu0 0
    %4410 = vmatpush1.bf16.msra.mxu0 %v1541
    %4411 = vmatprep.subr.bf16.mxu0 0
    %4412 = vmatpush1.bf16.msra.mxu0 %v1542
    %4413 = vmatprep.subr.bf16.mxu0 0
    %4414 = vmatpush1.bf16.msra.mxu0 %v1543
    %4415 = vmatprep.subr.bf16.mxu0 0
    %4416 = vmatpush1.bf16.msra.mxu0 %v1544
    %4417 = vmatprep.subr.bf16.mxu0 0
    %4418 = vmatpush1.bf16.msra.mxu0 %v1545
    %4419 = vmatprep.subr.bf16.mxu0 0
    %4420 = vmatpush1.bf16.msra.mxu0 %v1546
    %4421 = vmatprep.subr.bf16.mxu0 0
    %4422 = vmatpush1.bf16.msra.mxu0 0
    %4423 = vmatprep.subr.bf16.mxu0 0
    %4424 = vmatpush1.bf16.msra.mxu0 0
    %4425 = vmatprep.subr.bf16.mxu0 0
    %4426 = vmatpush1.bf16.msra.mxu0 0
    %4427 = vmatprep.subr.bf16.mxu0 0
    %4428 = vmatpush1.bf16.msra.mxu0 0
    %4429 = vmatprep.subr.bf16.mxu0 0
    %4430 = vmatpush1.bf16.msra.mxu0 0
    %4431 = vmatprep.subr.bf16.mxu0 0
    %4432 = vmatpush1.bf16.msra.mxu0 0
    %4433 = vmatprep.subr.bf16.mxu0 0
    %4434 = vmatpush1.bf16.msra.mxu0 0
    %4435 = vmatprep.subr.bf16.mxu0 0
    %4436 = vmatpush1.bf16.msra.mxu0 0
    %4437 = vmatprep.mubr.bf16.mxu0 0
    %4438 = vmatmul.mubr.bf16.gmra.mrb[0].mxu0 %v4403
    %v4439 = vpop.f32.mrb[0].mxu0
    %v4440 = vadd.f32 %v1505, %v4439
    %v4441 = vpop.f32.mrb[0].mxu0
    %v4442 = vpop.f32.mrb[0].mxu0
    %v4443 = vadd.f32 %v1505, %v4442
    %v4444 = vpop.f32.mrb[0].mxu0
    %4445 = vmatprep.mubr.bf16.mxu0 0
    %4446 = vmatmul.mubr.bf16.gmra.mrb[0].mxu0 %v4404
    %v4447 = vpop.f32.mrb[0].mxu0
    %v4448 = vadd.f32 %v1505, %v4447
    %v4449 = vpop.f32.mrb[0].mxu0
    %v4450 = vpop.f32.mrb[0].mxu0
    %v4451 = vpop.f32.mrb[0].mxu0
    %4452 = vdwg.mxu0
    %vm4453 = vcmp.gt.f32.partialorder %v4440, 20.0
    %v4454 = vmin.f32 %v4440, 20.0
    %v4455 = vmul.f32 %v4454, 1.442695
    %v4456 = vpow.pop %v4455
    %v4457 = vadd.f32 %v4456, 1.0
    %v4458 = vlog2.pop %v4457
    %v4459 = vmul.f32 %v4458, 0.6931472
    %v4460 = vmul.f32 -0.5, %v4456
    %v4461 = vadd.f32 %v4460, 1.0
    %v4462 = vmul.f32 %v4461, %v4456
    %v4463 = vand.u32 2147483647, %v4456
    %vm4464 = vcmp.lt.f32.partialorder %v4463, 0.0004427343
    %v4465 = vsel %vm4464, %v4462, %v4459
    %v4466 = vsel %vm4453, %v4440, %v4465
    %vm4467 = vcmp.gt.f32.partialorder %v4443, 20.0
    %vm4468 = vcmp.gt.f32.partialorder %v4448, 20.0
    %v4469 = vmin.f32 %v4443, 20.0
    %v4470 = vmin.f32 %v4448, 20.0
    %v4471 = vmul.f32 %v4469, 1.442695
    %v4472 = vpow.pop %v4471
    %v4473 = vmul.f32 %v4470, 1.442695
    %v4474 = vpow.pop %v4473
    %v4475 = vadd.f32 %v4472, 1.0
    %v4476 = vlog2.pop %v4475
    %v4477 = vmul.f32 %v4476, 0.6931472
    %v4478 = vmul.f32 -0.5, %v4472
    %v4479 = vadd.f32 %v4478, 1.0
    %v4480 = vmul.f32 %v4479, %v4472
    %v4481 = vand.u32 2147483647, %v4472
    %vm4482 = vcmp.lt.f32.partialorder %v4481, 0.0004427343
    %v4483 = vsel %vm4482, %v4480, %v4477
    %v4484 = vadd.f32 %v4474, 1.0
    %v4485 = vlog2.pop %v4484
    %v4486 = vmul.f32 %v4485, 0.6931472
    %v4487 = vmul.f32 -0.5, %v4474
    %v4488 = vadd.f32 %v4487, 1.0
    %v4489 = vmul.f32 %v4488, %v4474
    %v4490 = vand.u32 2147483647, %v4474
    %vm4491 = vcmp.lt.f32.partialorder %v4490, 0.0004427343
    %v4492 = vsel %vm4491, %v4489, %v4486
    %v4493 = vsel %vm4467, %v4443, %v4483
    %v4494 = vsel %vm4468, %v4448, %v4492
    %v4495 = vsub.f32 %v4440, %v4443
    %v4496 = vsub.f32 %v4440, %v4448
    %v4497 = vrcp.pop %v4493
    %v4498 = vrcp.pop %v4494
    %v4499 = vmul.f32 %v4466, %v4497
    %v4500 = vmul.f32 %v4466, %v4498
    %v4501 = vlog2.pop %v4499
    %v4502 = vmul.f32 %v4501, 0.6931472
    %v4503 = vlog2.pop %v4500
    %v4504 = vmul.f32 %v4503, 0.6931472
    %v4505 = vmul.f32 %v4502, -2.0
    %v4506 = vmul.f32 %v4504, -2.0
    %v4507 = vmul.f32 %v4466, %v4466
    %v4508 = vmul.f32 %v4495, %v4495
    %v4509 = vmul.f32 %v4496, %v4496
    %v4510 = vadd.f32 %v4507, %v4508
    %v4511 = vadd.f32 %v4507, %v4509
    %v4512 = vmul.f32 %v4497, %v4497
    %v4513 = vmul.f32 %v4498, %v4498
    %v4514 = vmul.f32 %v4510, %v4512
    %v4515 = vmul.f32 %v4511, %v4513
    %v4516 = vadd.f32 %v4505, %v4514
    %v4517 = vadd.f32 %v4506, %v4515
    %v4518 = vsub.f32 %v4516, 1.0
    %v4519 = vsub.f32 %v4517, 1.0
    %v4520 = vadd.f32 %v3942, %v4518
    %v4521 = vadd.f32 %v3943, %v4519
    %v4522 = vmul.f32 %v4192, %v4466
    %v4523 = vadd.f32 %v4522, %v4440
    %v4524 = vpack.c.bf16 %v4523, %v4523
    %v4526 = vsel %vm1698, %v4524, 0
    %4528 = vmatprep.subr.bf16.mxu0 0
    %4529 = vmatpush1.bf16.msra.mxu0 %v1694
    %4530 = vmatprep.subr.bf16.mxu0 0
    %4531 = vmatpush1.bf16.msra.mxu0 %v1695
    %4532 = vmatprep.subr.bf16.mxu0 0
    %4533 = vmatpush1.bf16.msra.mxu0 0
    %4534 = vmatprep.subr.bf16.mxu0 0
    %4535 = vmatpush1.bf16.msra.mxu0 0
    %4536 = vmatprep.subr.bf16.mxu0 0
    %4537 = vmatpush1.bf16.msra.mxu0 0
    %4538 = vmatprep.subr.bf16.mxu0 0
    %4539 = vmatpush1.bf16.msra.mxu0 0
    %4540 = vmatprep.subr.bf16.mxu0 0
    %4541 = vmatpush1.bf16.msra.mxu0 0
    %4542 = vmatprep.subr.bf16.mxu0 0
    %4543 = vmatpush1.bf16.msra.mxu0 0
    %4544 = vmatprep.subr.bf16.mxu0 0
    %4545 = vmatpush1.bf16.msra.mxu0 0
    %4546 = vmatprep.subr.bf16.mxu0 0
    %4547 = vmatpush1.bf16.msra.mxu0 0
    %4548 = vmatprep.subr.bf16.mxu0 0
    %4549 = vmatpush1.bf16.msra.mxu0 0
    %4550 = vmatprep.subr.bf16.mxu0 0
    %4551 = vmatpush1.bf16.msra.mxu0 0
    %4552 = vmatprep.subr.bf16.mxu0 0
    %4553 = vmatpush1.bf16.msra.mxu0 0
    %4554 = vmatprep.subr.bf16.mxu0 0
    %4555 = vmatpush1.bf16.msra.mxu0 0
    %4556 = vmatprep.subr.bf16.mxu0 0
    %4557 = vmatpush1.bf16.msra.mxu0 0
    %4558 = vmatprep.subr.bf16.mxu0 0
    %4559 = vmatpush1.bf16.msra.mxu0 0
    %4560 = vmatprep.mubr.bf16.mxu0 0
    %4561 = vmatmul.mubr.bf16.gmra.mrb[0].mxu0 %v4526
    %v4562 = vpop.f32.mrb[0].mxu0
    %v4563 = vadd.f32 %v1684, %v4562
    %v4564 = vpop.f32.mrb[0].mxu0
    %v4565 = vpop.f32.mrb[0].mxu0
    %v4566 = vpop.f32.mrb[0].mxu0
    %4567 = vdwg.mxu0
    %v4568 = vmax.f32 %v4563, 0.0
    %v4569 = vpack.c.bf16 %v4568, %v4568
    %4570 = vmatprep.subr.bf16.mxu0 %v1986
    %4571 = vmatpush1.bf16.msra.mxu0 %v1985
    %4572 = vmatprep.subr.bf16.mxu0 %v1989
    %4573 = vmatpush1.bf16.msra.mxu0 %v1988
    %4574 = vmatprep.subr.bf16.mxu0 %v1992
    %4575 = vmatpush1.bf16.msra.mxu0 %v1991
    %4576 = vmatprep.subr.bf16.mxu0 %v1995
    %4577 = vmatpush1.bf16.msra.mxu0 %v1994
    %4578 = vmatprep.subr.bf16.mxu0 %v1998
    %4579 = vmatpush1.bf16.msra.mxu0 %v1997
    %4580 = vmatprep.subr.bf16.mxu0 %v2001
    %4581 = vmatpush1.bf16.msra.mxu0 %v2000
    %4582 = vmatprep.subr.bf16.mxu0 %v2004
    %4583 = vmatpush1.bf16.msra.mxu0 %v2003
    %4584 = vmatprep.subr.bf16.mxu0 %v2007
    %4585 = vmatpush1.bf16.msra.mxu0 %v2006
    %4586 = vmatprep.subr.bf16.mxu0 %v2010
    %4587 = vmatpush1.bf16.msra.mxu0 %v2009
    %4588 = vmatprep.subr.bf16.mxu0 %v2013
    %4589 = vmatpush1.bf16.msra.mxu0 %v2012
    %4590 = vmatprep.subr.bf16.mxu0 %v2016
    %4591 = vmatpush1.bf16.msra.mxu0 %v2015
    %4592 = vmatprep.subr.bf16.mxu0 %v2019
    %4593 = vmatpush1.bf16.msra.mxu0 %v2018
    %4594 = vmatprep.subr.bf16.mxu0 %v2022
    %4595 = vmatpush1.bf16.msra.mxu0 %v2021
    %4596 = vmatprep.subr.bf16.mxu0 %v2025
    %4597 = vmatpush1.bf16.msra.mxu0 %v2024
    %4598 = vmatprep.subr.bf16.mxu0 %v2028
    %4599 = vmatpush1.bf16.msra.mxu0 %v2027
    %4600 = vmatprep.subr.bf16.mxu0 %v2031
    %4601 = vmatpush1.bf16.msra.mxu0 %v2030
    %4602 = vmatprep.mubr.bf16.mxu0 %v4569
    %4603 = vmatmul.mubr.bf16.gmra.mrb[0].mxu0 %v4317
    %v4604 = vpop.f32.mrb[0].mxu0
    %v4605 = vadd.f32 %v1813, %v4604
    %v4606 = vpop.f32.mrb[0].mxu0
    %v4607 = vadd.f32 %v1817, %v4606
    %v4608 = vpop.f32.mrb[0].mxu0
    %v4609 = vpop.f32.mrb[0].mxu0
    %4610 = vdwg.mxu0
    %4611 = vmatprep.subr.bf16.mxu0 0
    %4612 = vmatpush1.bf16.msra.mxu0 %v1987
    %4613 = vmatprep.subr.bf16.mxu0 0
    %4614 = vmatpush1.bf16.msra.mxu0 %v1990
    %4615 = vmatprep.subr.bf16.mxu0 0
    %4616 = vmatpush1.bf16.msra.mxu0 %v1993
    %4617 = vmatprep.subr.bf16.mxu0 0
    %4618 = vmatpush1.bf16.msra.mxu0 %v1996
    %4619 = vmatprep.subr.bf16.mxu0 0
    %4620 = vmatpush1.bf16.msra.mxu0 %v1999
    %4621 = vmatprep.subr.bf16.mxu0 0
    %4622 = vmatpush1.bf16.msra.mxu0 %v2002
    %4623 = vmatprep.subr.bf16.mxu0 0
    %4624 = vmatpush1.bf16.msra.mxu0 %v2005
    %4625 = vmatprep.subr.bf16.mxu0 0
    %4626 = vmatpush1.bf16.msra.mxu0 %v2008
    %4627 = vmatprep.subr.bf16.mxu0 0
    %4628 = vmatpush1.bf16.msra.mxu0 %v2011
    %4629 = vmatprep.subr.bf16.mxu0 0
    %4630 = vmatpush1.bf16.msra.mxu0 %v2014
    %4631 = vmatprep.subr.bf16.mxu0 0
    %4632 = vmatpush1.bf16.msra.mxu0 %v2017
    %4633 = vmatprep.subr.bf16.mxu0 0
    %4634 = vmatpush1.bf16.msra.mxu0 %v2020
    %4635 = vmatprep.subr.bf16.mxu0 0
    %4636 = vmatpush1.bf16.msra.mxu0 %v2023
    %4637 = vmatprep.subr.bf16.mxu0 0
    %4638 = vmatpush1.bf16.msra.mxu0 %v2026
    %4639 = vmatprep.subr.bf16.mxu0 0
    %4640 = vmatpush1.bf16.msra.mxu0 %v2029
    %4641 = vmatprep.subr.bf16.mxu0 0
    %4642 = vmatpush1.bf16.msra.mxu0 %v2032
    %4643 = vmatprep.mubr.bf16.mxu0 %v4569
    %4644 = vmatmul.mubr.bf16.gmra.mrb[0].mxu0 %v4317
    %v4645 = vpop.f32.mrb[0].mxu0
    %v4646 = vadd.f32 %v1821, %v4645
    %v4647 = vpop.f32.mrb[0].mxu0
    %v4648 = vpop.f32.mrb[0].mxu0
    %v4649 = vpop.f32.mrb[0].mxu0
    %4650 = vdwg.mxu0
    %v4651 = vadd.f32 %v4605, %v4229
    %v4652 = vmul.f32 %v4651, 0.5
    %v4653 = vtanh.pop %v4652
    %v4654 = vadd.f32 %v4653, 1.0
    %v4655 = vmul.f32 %v4654, 0.5
    %v4656 = vadd.f32 %v4607, %v4231
    %v4657 = vmul.f32 %v4656, 0.5
    %v4658 = vtanh.pop %v4657
    %v4659 = vadd.f32 %v4658, 1.0
    %v4660 = vmul.f32 %v4659, 0.5
    %v4661 = vmul.f32 %v4655, %v4270
    %v4662 = vadd.f32 %v4646, %v4661
    %v4663 = vtanh.pop %v4662
    %v4664 = vsub.f32 1.0, %v4660
    %v4665 = vmul.f32 %v4664, %v4663
    %v4666 = vmul.f32 %v4660, %v4089
    %v4667 = vadd.f32 %v4665, %v4666
    %v4668 = vpack.c.bf16 %v4667, %v4667
    %4669 = vmatprep.subr.bf16.mxu0 %v2310
    %4670 = vmatpush1.bf16.msra.mxu0 %v2309
    %4671 = vmatprep.subr.bf16.mxu0 %v2313
    %4672 = vmatpush1.bf16.msra.mxu0 %v2312
    %4673 = vmatprep.subr.bf16.mxu0 %v2316
    %4674 = vmatpush1.bf16.msra.mxu0 %v2315
    %4675 = vmatprep.subr.bf16.mxu0 %v2319
    %4676 = vmatpush1.bf16.msra.mxu0 %v2318
    %4677 = vmatprep.subr.bf16.mxu0 %v2322
    %4678 = vmatpush1.bf16.msra.mxu0 %v2321
    %4679 = vmatprep.subr.bf16.mxu0 %v2325
    %4680 = vmatpush1.bf16.msra.mxu0 %v2324
    %4681 = vmatprep.subr.bf16.mxu0 %v2328
    %4682 = vmatpush1.bf16.msra.mxu0 %v2327
    %4683 = vmatprep.subr.bf16.mxu0 %v2331
    %4684 = vmatpush1.bf16.msra.mxu0 %v2330
    %4685 = vmatprep.subr.bf16.mxu0 0
    %4686 = vmatpush1.bf16.msra.mxu0 0
    %4687 = vmatprep.subr.bf16.mxu0 0
    %4688 = vmatpush1.bf16.msra.mxu0 0
    %4689 = vmatprep.subr.bf16.mxu0 0
    %4690 = vmatpush1.bf16.msra.mxu0 0
    %4691 = vmatprep.subr.bf16.mxu0 0
    %4692 = vmatpush1.bf16.msra.mxu0 0
    %4693 = vmatprep.subr.bf16.mxu0 0
    %4694 = vmatpush1.bf16.msra.mxu0 0
    %4695 = vmatprep.subr.bf16.mxu0 0
    %4696 = vmatpush1.bf16.msra.mxu0 0
    %4697 = vmatprep.subr.bf16.mxu0 0
    %4698 = vmatpush1.bf16.msra.mxu0 0
    %4699 = vmatprep.subr.bf16.mxu0 0
    %4700 = vmatpush1.bf16.msra.mxu0 0
    %4701 = vmatprep.mubr.bf16.mxu0 0
    %4702 = vmatmul.mubr.bf16.gmra.mrb[0].mxu0 %v4668
    %v4703 = vpop.f32.mrb[0].mxu0
    %v4704 = vadd.f32 %v2217, %v4703
    %v4705 = vpop.f32.mrb[0].mxu0
    %v4706 = vadd.f32 %v2221, %v4705
    %v4707 = vpop.f32.mrb[0].mxu0
    %v4708 = vpop.f32.mrb[0].mxu0
    %4709 = vdwg.mxu0
    %4710 = vmatprep.subr.bf16.mxu0 0
    %4711 = vmatpush1.bf16.msra.mxu0 %v2311
    %4712 = vmatprep.subr.bf16.mxu0 0
    %4713 = vmatpush1.bf16.msra.mxu0 %v2314
    %4714 = vmatprep.subr.bf16.mxu0 0
    %4715 = vmatpush1.bf16.msra.mxu0 %v2317
    %4716 = vmatprep.subr.bf16.mxu0 0
    %4717 = vmatpush1.bf16.msra.mxu0 %v2320
    %4718 = vmatprep.subr.bf16.mxu0 0
    %4719 = vmatpush1.bf16.msra.mxu0 %v2323
    %4720 = vmatprep.subr.bf16.mxu0 0
    %4721 = vmatpush1.bf16.msra.mxu0 %v2326
    %4722 = vmatprep.subr.bf16.mxu0 0
    %4723 = vmatpush1.bf16.msra.mxu0 %v2329
    %4724 = vmatprep.subr.bf16.mxu0 0
    %4725 = vmatpush1.bf16.msra.mxu0 %v2332
    %4726 = vmatprep.subr.bf16.mxu0 0
    %4727 = vmatpush1.bf16.msra.mxu0 0
    %4728 = vmatprep.subr.bf16.mxu0 0
    %4729 = vmatpush1.bf16.msra.mxu0 0
    %4730 = vmatprep.subr.bf16.mxu0 0
    %4731 = vmatpush1.bf16.msra.mxu0 0
    %4732 = vmatprep.subr.bf16.mxu0 0
    %4733 = vmatpush1.bf16.msra.mxu0 0
    %4734 = vmatprep.subr.bf16.mxu0 0
    %4735 = vmatpush1.bf16.msra.mxu0 0
    %4736 = vmatprep.subr.bf16.mxu0 0
    %4737 = vmatpush1.bf16.msra.mxu0 0
    %4738 = vmatprep.subr.bf16.mxu0 0
    %4739 = vmatpush1.bf16.msra.mxu0 0
    %4740 = vmatprep.subr.bf16.mxu0 0
    %4741 = vmatpush1.bf16.msra.mxu0 0
    %4742 = vmatprep.mubr.bf16.mxu0 0
    %4743 = vmatmul.mubr.bf16.gmra.mrb[0].mxu0 %v4668
    %v4744 = vpop.f32.mrb[0].mxu0
    %v4745 = vadd.f32 %v2225, %v4744
    %v4746 = vpop.f32.mrb[0].mxu0
    %v4747 = vpop.f32.mrb[0].mxu0
    %v4748 = vpop.f32.mrb[0].mxu0
    %4749 = vdwg.mxu0
    %v4750 = vadd.f32 %v4704, %v4272
    %v4751 = vmul.f32 %v4750, 0.5
    %v4752 = vtanh.pop %v4751
    %v4753 = vadd.f32 %v4752, 1.0
    %v4754 = vmul.f32 %v4753, 0.5
    %v4755 = vadd.f32 %v4706, %v4311
    %v4756 = vmul.f32 %v4755, 0.5
    %v4757 = vtanh.pop %v4756
    %v4758 = vadd.f32 %v4757, 1.0
    %v4759 = vmul.f32 %v4758, 0.5
    %v4760 = vmul.f32 %v4754, %v4313
    %v4761 = vadd.f32 %v4745, %v4760
    %v4762 = vtanh.pop %v4761
    %v4763 = vsub.f32 1.0, %v4759
    %v4764 = vmul.f32 %v4763, %v4762
    %v4765 = vmul.f32 %v4759, %v4188
    %v4766 = vadd.f32 %v4764, %v4765
    %s4767 = scalar_lea.vmem [#allocation2], 40
    %v4768 = vld [vmem:[%s4767] sm:$0xff]
    %s4769 = scalar_lea.vmem [#allocation4], 40
    %v4770 = vld [vmem:[%s4769] sm:$0xff]
    %v4771 = vpack.c.bf16 %v4766, %v4766
    %4772 = vmatprep.subr.bf16.mxu0 %v876
    %4773 = vmatpush1.bf16.msra.mxu0 %v875
    %4774 = vmatprep.subr.bf16.mxu0 %v882
    %4775 = vmatpush1.bf16.msra.mxu0 %v881
    %4776 = vmatprep.subr.bf16.mxu0 %v888
    %4777 = vmatpush1.bf16.msra.mxu0 %v887
    %4778 = vmatprep.subr.bf16.mxu0 %v894
    %4779 = vmatpush1.bf16.msra.mxu0 %v893
    %4780 = vmatprep.subr.bf16.mxu0 %v900
    %4781 = vmatpush1.bf16.msra.mxu0 %v899
    %4782 = vmatprep.subr.bf16.mxu0 %v906
    %4783 = vmatpush1.bf16.msra.mxu0 %v905
    %4784 = vmatprep.subr.bf16.mxu0 %v912
    %4785 = vmatpush1.bf16.msra.mxu0 %v911
    %4786 = vmatprep.subr.bf16.mxu0 %v918
    %4787 = vmatpush1.bf16.msra.mxu0 %v917
    %4788 = vmatprep.subr.bf16.mxu0 %v924
    %4789 = vmatpush1.bf16.msra.mxu0 %v923
    %4790 = vmatprep.subr.bf16.mxu0 %v930
    %4791 = vmatpush1.bf16.msra.mxu0 %v929
    %4792 = vmatprep.subr.bf16.mxu0 %v936
    %4793 = vmatpush1.bf16.msra.mxu0 %v935
    %4794 = vmatprep.subr.bf16.mxu0 %v942
    %4795 = vmatpush1.bf16.msra.mxu0 %v941
    %4796 = vmatprep.subr.bf16.mxu0 %v948
    %4797 = vmatpush1.bf16.msra.mxu0 %v947
    %4798 = vmatprep.subr.bf16.mxu0 %v954
    %4799 = vmatpush1.bf16.msra.mxu0 %v953
    %4800 = vmatprep.subr.bf16.mxu0 %v960
    %4801 = vmatpush1.bf16.msra.mxu0 %v959
    %4802 = vmatprep.subr.bf16.mxu0 %v966
    %4803 = vmatpush1.bf16.msra.mxu0 %v965
    %4804 = vmatprep.mubr.bf16.mxu0 %v4771
    %4805 = vmatmul.mubr.bf16.gmra.mrb[0].mxu0 %v4668
    %v4806 = vpop.f32.mrb[0].mxu0
    %v4807 = vadd.f32 %v560, %v4806
    %v4808 = vpop.f32.mrb[0].mxu0
    %v4809 = vadd.f32 %v564, %v4808
    %v4810 = vpop.f32.mrb[0].mxu0
    %v4811 = vpop.f32.mrb[0].mxu0
    %4812 = vdwg.mxu0
    %4813 = vmatprep.subr.bf16.mxu0 %v878
    %4814 = vmatpush1.bf16.msra.mxu0 %v877
    %4815 = vmatprep.subr.bf16.mxu0 %v884
    %4816 = vmatpush1.bf16.msra.mxu0 %v883
    %4817 = vmatprep.subr.bf16.mxu0 %v890
    %4818 = vmatpush1.bf16.msra.mxu0 %v889
    %4819 = vmatprep.subr.bf16.mxu0 %v896
    %4820 = vmatpush1.bf16.msra.mxu0 %v895
    %4821 = vmatprep.subr.bf16.mxu0 %v902
    %4822 = vmatpush1.bf16.msra.mxu0 %v901
    %4823 = vmatprep.subr.bf16.mxu0 %v908
    %4824 = vmatpush1.bf16.msra.mxu0 %v907
    %4825 = vmatprep.subr.bf16.mxu0 %v914
    %4826 = vmatpush1.bf16.msra.mxu0 %v913
    %4827 = vmatprep.subr.bf16.mxu0 %v920
    %4828 = vmatpush1.bf16.msra.mxu0 %v919
    %4829 = vmatprep.subr.bf16.mxu0 %v926
    %4830 = vmatpush1.bf16.msra.mxu0 %v925
    %4831 = vmatprep.subr.bf16.mxu0 %v932
    %4832 = vmatpush1.bf16.msra.mxu0 %v931
    %4833 = vmatprep.subr.bf16.mxu0 %v938
    %4834 = vmatpush1.bf16.msra.mxu0 %v937
    %4835 = vmatprep.subr.bf16.mxu0 %v944
    %4836 = vmatpush1.bf16.msra.mxu0 %v943
    %4837 = vmatprep.subr.bf16.mxu0 %v950
    %4838 = vmatpush1.bf16.msra.mxu0 %v949
    %4839 = vmatprep.subr.bf16.mxu0 %v956
    %4840 = vmatpush1.bf16.msra.mxu0 %v955
    %4841 = vmatprep.subr.bf16.mxu0 %v962
    %4842 = vmatpush1.bf16.msra.mxu0 %v961
    %4843 = vmatprep.subr.bf16.mxu0 %v968
    %4844 = vmatpush1.bf16.msra.mxu0 %v967
    %4845 = vmatprep.mubr.bf16.mxu0 %v4771
    %4846 = vmatmul.mubr.bf16.gmra.mrb[0].mxu0 %v4668
    %v4847 = vpop.f32.mrb[0].mxu0
    %v4848 = vadd.f32 %v568, %v4847
    %v4849 = vpop.f32.mrb[0].mxu0
    %v4850 = vadd.f32 %v572, %v4849
    %v4851 = vpop.f32.mrb[0].mxu0
    %v4852 = vpop.f32.mrb[0].mxu0
    %4853 = vdwg.mxu0
    %4854 = vmatprep.subr.bf16.mxu0 %v880
    %4855 = vmatpush1.bf16.msra.mxu0 %v879
    %4856 = vmatprep.subr.bf16.mxu0 %v886
    %4857 = vmatpush1.bf16.msra.mxu0 %v885
    %4858 = vmatprep.subr.bf16.mxu0 %v892
    %4859 = vmatpush1.bf16.msra.mxu0 %v891
    %4860 = vmatprep.subr.bf16.mxu0 %v898
    %4861 = vmatpush1.bf16.msra.mxu0 %v897
    %4862 = vmatprep.subr.bf16.mxu0 %v904
    %4863 = vmatpush1.bf16.msra.mxu0 %v903
    %4864 = vmatprep.subr.bf16.mxu0 %v910
    %4865 = vmatpush1.bf16.msra.mxu0 %v909
    %4866 = vmatprep.subr.bf16.mxu0 %v916
    %4867 = vmatpush1.bf16.msra.mxu0 %v915
    %4868 = vmatprep.subr.bf16.mxu0 %v922
    %4869 = vmatpush1.bf16.msra.mxu0 %v921
    %4870 = vmatprep.subr.bf16.mxu0 %v928
    %4871 = vmatpush1.bf16.msra.mxu0 %v927
    %4872 = vmatprep.subr.bf16.mxu0 %v934
    %4873 = vmatpush1.bf16.msra.mxu0 %v933
    %4874 = vmatprep.subr.bf16.mxu0 %v940
    %4875 = vmatpush1.bf16.msra.mxu0 %v939
    %4876 = vmatprep.subr.bf16.mxu0 %v946
    %4877 = vmatpush1.bf16.msra.mxu0 %v945
    %4878 = vmatprep.subr.bf16.mxu0 %v952
    %4879 = vmatpush1.bf16.msra.mxu0 %v951
    %4880 = vmatprep.subr.bf16.mxu0 %v958
    %4881 = vmatpush1.bf16.msra.mxu0 %v957
    %4882 = vmatprep.subr.bf16.mxu0 %v964
    %4883 = vmatpush1.bf16.msra.mxu0 %v963
    %4884 = vmatprep.subr.bf16.mxu0 %v970
    %4885 = vmatpush1.bf16.msra.mxu0 %v969
    %4886 = vmatprep.mubr.bf16.mxu0 %v4771
    %4887 = vmatmul.mubr.bf16.gmra.mrb[0].mxu0 %v4668
    %v4888 = vpop.f32.mrb[0].mxu0
    %v4889 = vadd.f32 %v576, %v4888
    %v4890 = vpop.f32.mrb[0].mxu0
    %v4891 = vadd.f32 %v580, %v4890
    %v4892 = vpop.f32.mrb[0].mxu0
    %v4893 = vpop.f32.mrb[0].mxu0
    %4894 = vdwg.mxu0
    %v4895 = vpack.c.bf16 %v4768, %v4768
    %4896 = vmatprep.subr.bf16.mxu0 0
    %4897 = vmatpush1.bf16.msra.mxu0 %v1294
    %4898 = vmatprep.subr.bf16.mxu0 0
    %4899 = vmatpush1.bf16.msra.mxu0 %v1295
    %4900 = vmatprep.subr.bf16.mxu0 0
    %4901 = vmatpush1.bf16.msra.mxu0 %v1296
    %4902 = vmatprep.subr.bf16.mxu0 0
    %4903 = vmatpush1.bf16.msra.mxu0 %v1297
    %4904 = vmatprep.subr.bf16.mxu0 0
    %4905 = vmatpush1.bf16.msra.mxu0 %v1298
    %4906 = vmatprep.subr.bf16.mxu0 0
    %4907 = vmatpush1.bf16.msra.mxu0 %v1299
    %4908 = vmatprep.subr.bf16.mxu0 0
    %4909 = vmatpush1.bf16.msra.mxu0 %v1300
    %4910 = vmatprep.subr.bf16.mxu0 0
    %4911 = vmatpush1.bf16.msra.mxu0 %v1301
    %4912 = vmatprep.subr.bf16.mxu0 0
    %4913 = vmatpush1.bf16.msra.mxu0 %v1302
    %4914 = vmatprep.subr.bf16.mxu0 0
    %4915 = vmatpush1.bf16.msra.mxu0 %v1303
    %4916 = vmatprep.subr.bf16.mxu0 0
    %4917 = vmatpush1.bf16.msra.mxu0 %v1304
    %4918 = vmatprep.subr.bf16.mxu0 0
    %4919 = vmatpush1.bf16.msra.mxu0 %v1305
    %4920 = vmatprep.subr.bf16.mxu0 0
    %4921 = vmatpush1.bf16.msra.mxu0 %v1306
    %4922 = vmatprep.subr.bf16.mxu0 0
    %4923 = vmatpush1.bf16.msra.mxu0 %v1307
    %4924 = vmatprep.subr.bf16.mxu0 0
    %4925 = vmatpush1.bf16.msra.mxu0 %v1308
    %4926 = vmatprep.subr.bf16.mxu0 0
    %4927 = vmatpush1.bf16.msra.mxu0 %v1309
    %4928 = vmatprep.mubr.bf16.mxu0 %v4771
    %4929 = vmatmul.mubr.bf16.gmra.mrb[0].mxu0 %v4895
    %v4930 = vpop.f32.mrb[0].mxu0
    %v4931 = vadd.f32 %v1228, %v4930
    %v4932 = vpop.f32.mrb[0].mxu0
    %v4933 = vpop.f32.mrb[0].mxu0
    %v4934 = vpop.f32.mrb[0].mxu0
    %4935 = vdwg.mxu0
    %v4936 = vmax.f32 %v4931, 0.0
    %v4937 = vpack.c.bf16 %v4766, %v4667
    %4938 = vmatprep.subr.bf16.mxu0 0
    %4939 = vmatpush1.bf16.msra.mxu0 %v1423
    %4940 = vmatprep.subr.bf16.mxu0 0
    %4941 = vmatpush1.bf16.msra.mxu0 %v1424
    %4942 = vmatprep.subr.bf16.mxu0 0
    %4943 = vmatpush1.bf16.msra.mxu0 %v1425
    %4944 = vmatprep.subr.bf16.mxu0 0
    %4945 = vmatpush1.bf16.msra.mxu0 %v1426
    %4946 = vmatprep.subr.bf16.mxu0 0
    %4947 = vmatpush1.bf16.msra.mxu0 %v1427
    %4948 = vmatprep.subr.bf16.mxu0 0
    %4949 = vmatpush1.bf16.msra.mxu0 %v1428
    %4950 = vmatprep.subr.bf16.mxu0 0
    %4951 = vmatpush1.bf16.msra.mxu0 %v1429
    %4952 = vmatprep.subr.bf16.mxu0 0
    %4953 = vmatpush1.bf16.msra.mxu0 %v1430
    %4954 = vmatprep.subr.bf16.mxu0 0
    %4955 = vmatpush1.bf16.msra.mxu0 0
    %4956 = vmatprep.subr.bf16.mxu0 0
    %4957 = vmatpush1.bf16.msra.mxu0 0
    %4958 = vmatprep.subr.bf16.mxu0 0
    %4959 = vmatpush1.bf16.msra.mxu0 0
    %4960 = vmatprep.subr.bf16.mxu0 0
    %4961 = vmatpush1.bf16.msra.mxu0 0
    %4962 = vmatprep.subr.bf16.mxu0 0
    %4963 = vmatpush1.bf16.msra.mxu0 0
    %4964 = vmatprep.subr.bf16.mxu0 0
    %4965 = vmatpush1.bf16.msra.mxu0 0
    %4966 = vmatprep.subr.bf16.mxu0 0
    %4967 = vmatpush1.bf16.msra.mxu0 0
    %4968 = vmatprep.subr.bf16.mxu0 0
    %4969 = vmatpush1.bf16.msra.mxu0 0
    %4970 = vmatprep.mubr.bf16.mxu0 0
    %4971 = vmatmul.mubr.bf16.gmra.mrb[0].mxu0 %v4937
    %v4972 = vpop.f32.mrb[0].mxu0
    %v4973 = vadd.f32 %v1389, %v4972
    %v4974 = vpop.f32.mrb[0].mxu0
    %v4975 = vpop.f32.mrb[0].mxu0
    %v4976 = vadd.f32 %v1389, %v4975
    %v4977 = vpop.f32.mrb[0].mxu0
    %4978 = vdwg.mxu0
    %v4979 = vmax.f32 %v4973, 0.0
    %v4980 = vmax.f32 %v4976, 0.0
    %v4981 = vpack.c.bf16 %v4979, %v4936
    %v4982 = vpack.c.bf16 %v4980, %v4980
    %4983 = vmatprep.subr.bf16.mxu0 0
    %4984 = vmatpush1.bf16.msra.mxu0 %v1539
    %4985 = vmatprep.subr.bf16.mxu0 0
    %4986 = vmatpush1.bf16.msra.mxu0 %v1540
    %4987 = vmatprep.subr.bf16.mxu0 0
    %4988 = vmatpush1.bf16.msra.mxu0 %v1541
    %4989 = vmatprep.subr.bf16.mxu0 0
    %4990 = vmatpush1.bf16.msra.mxu0 %v1542
    %4991 = vmatprep.subr.bf16.mxu0 0
    %4992 = vmatpush1.bf16.msra.mxu0 %v1543
    %4993 = vmatprep.subr.bf16.mxu0 0
    %4994 = vmatpush1.bf16.msra.mxu0 %v1544
    %4995 = vmatprep.subr.bf16.mxu0 0
    %4996 = vmatpush1.bf16.msra.mxu0 %v1545
    %4997 = vmatprep.subr.bf16.mxu0 0
    %4998 = vmatpush1.bf16.msra.mxu0 %v1546
    %4999 = vmatprep.subr.bf16.mxu0 0
    %5000 = vmatpush1.bf16.msra.mxu0 0
    %5001 = vmatprep.subr.bf16.mxu0 0
    %5002 = vmatpush1.bf16.msra.mxu0 0
    %5003 = vmatprep.subr.bf16.mxu0 0
    %5004 = vmatpush1.bf16.msra.mxu0 0
    %5005 = vmatprep.subr.bf16.mxu0 0
    %5006 = vmatpush1.bf16.msra.mxu0 0
    %5007 = vmatprep.subr.bf16.mxu0 0
    %5008 = vmatpush1.bf16.msra.mxu0 0
    %5009 = vmatprep.subr.bf16.mxu0 0
    %5010 = vmatpush1.bf16.msra.mxu0 0
    %5011 = vmatprep.subr.bf16.mxu0 0
    %5012 = vmatpush1.bf16.msra.mxu0 0
    %5013 = vmatprep.subr.bf16.mxu0 0
    %5014 = vmatpush1.bf16.msra.mxu0 0
    %5015 = vmatprep.mubr.bf16.mxu0 0
    %5016 = vmatmul.mubr.bf16.gmra.mrb[0].mxu0 %v4981
    %v5017 = vpop.f32.mrb[0].mxu0
    %v5018 = vadd.f32 %v1505, %v5017
    %v5019 = vpop.f32.mrb[0].mxu0
    %v5020 = vpop.f32.mrb[0].mxu0
    %v5021 = vadd.f32 %v1505, %v5020
    %v5022 = vpop.f32.mrb[0].mxu0
    %5023 = vmatprep.mubr.bf16.mxu0 0
    %5024 = vmatmul.mubr.bf16.gmra.mrb[0].mxu0 %v4982
    %v5025 = vpop.f32.mrb[0].mxu0
    %v5026 = vadd.f32 %v1505, %v5025
    %v5027 = vpop.f32.mrb[0].mxu0
    %v5028 = vpop.f32.mrb[0].mxu0
    %v5029 = vpop.f32.mrb[0].mxu0
    %5030 = vdwg.mxu0
    %vm5031 = vcmp.gt.f32.partialorder %v5018, 20.0
    %v5032 = vmin.f32 %v5018, 20.0
    %v5033 = vmul.f32 %v5032, 1.442695
    %v5034 = vpow.pop %v5033
    %v5035 = vadd.f32 %v5034, 1.0
    %v5036 = vlog2.pop %v5035
    %v5037 = vmul.f32 %v5036, 0.6931472
    %v5038 = vmul.f32 -0.5, %v5034
    %v5039 = vadd.f32 %v5038, 1.0
    %v5040 = vmul.f32 %v5039, %v5034
    %v5041 = vand.u32 2147483647, %v5034
    %vm5042 = vcmp.lt.f32.partialorder %v5041, 0.0004427343
    %v5043 = vsel %vm5042, %v5040, %v5037
    %v5044 = vsel %vm5031, %v5018, %v5043
    %vm5045 = vcmp.gt.f32.partialorder %v5021, 20.0
    %vm5046 = vcmp.gt.f32.partialorder %v5026, 20.0
    %v5047 = vmin.f32 %v5021, 20.0
    %v5048 = vmin.f32 %v5026, 20.0
    %v5049 = vmul.f32 %v5047, 1.442695
    %v5050 = vpow.pop %v5049
    %v5051 = vmul.f32 %v5048, 1.442695
    %v5052 = vpow.pop %v5051
    %v5053 = vadd.f32 %v5050, 1.0
    %v5054 = vlog2.pop %v5053
    %v5055 = vmul.f32 %v5054, 0.6931472
    %v5056 = vmul.f32 -0.5, %v5050
    %v5057 = vadd.f32 %v5056, 1.0
    %v5058 = vmul.f32 %v5057, %v5050
    %v5059 = vand.u32 2147483647, %v5050
    %vm5060 = vcmp.lt.f32.partialorder %v5059, 0.0004427343
    %v5061 = vsel %vm5060, %v5058, %v5055
    %v5062 = vadd.f32 %v5052, 1.0
    %v5063 = vlog2.pop %v5062
    %v5064 = vmul.f32 %v5063, 0.6931472
    %v5065 = vmul.f32 -0.5, %v5052
    %v5066 = vadd.f32 %v5065, 1.0
    %v5067 = vmul.f32 %v5066, %v5052
    %v5068 = vand.u32 2147483647, %v5052
    %vm5069 = vcmp.lt.f32.partialorder %v5068, 0.0004427343
    %v5070 = vsel %vm5069, %v5067, %v5064
    %v5071 = vsel %vm5045, %v5021, %v5061
    %v5072 = vsel %vm5046, %v5026, %v5070
    %v5073 = vsub.f32 %v5018, %v5021
    %v5074 = vsub.f32 %v5018, %v5026
    %v5075 = vrcp.pop %v5071
    %v5076 = vrcp.pop %v5072
    %v5077 = vmul.f32 %v5044, %v5075
    %v5078 = vmul.f32 %v5044, %v5076
    %v5079 = vlog2.pop %v5077
    %v5080 = vmul.f32 %v5079, 0.6931472
    %v5081 = vlog2.pop %v5078
    %v5082 = vmul.f32 %v5081, 0.6931472
    %v5083 = vmul.f32 %v5080, -2.0
    %v5084 = vmul.f32 %v5082, -2.0
    %v5085 = vmul.f32 %v5044, %v5044
    %v5086 = vmul.f32 %v5073, %v5073
    %v5087 = vmul.f32 %v5074, %v5074
    %v5088 = vadd.f32 %v5085, %v5086
    %v5089 = vadd.f32 %v5085, %v5087
    %v5090 = vmul.f32 %v5075, %v5075
    %v5091 = vmul.f32 %v5076, %v5076
    %v5092 = vmul.f32 %v5088, %v5090
    %v5093 = vmul.f32 %v5089, %v5091
    %v5094 = vadd.f32 %v5083, %v5092
    %v5095 = vadd.f32 %v5084, %v5093
    %v5096 = vsub.f32 %v5094, 1.0
    %v5097 = vsub.f32 %v5095, 1.0
    %v5098 = vadd.f32 %v4520, %v5096
    %v5099 = vadd.f32 %v4521, %v5097
    %v5100 = vmul.f32 %v4770, %v5044
    %v5101 = vadd.f32 %v5100, %v5018
    %v5102 = vpack.c.bf16 %v5101, %v5101
    %v5104 = vsel %vm1698, %v5102, 0
    %5106 = vmatprep.subr.bf16.mxu0 0
    %5107 = vmatpush1.bf16.msra.mxu0 %v1694
    %5108 = vmatprep.subr.bf16.mxu0 0
    %5109 = vmatpush1.bf16.msra.mxu0 %v1695
    %5110 = vmatprep.subr.bf16.mxu0 0
    %5111 = vmatpush1.bf16.msra.mxu0 0
    %5112 = vmatprep.subr.bf16.mxu0 0
    %5113 = vmatpush1.bf16.msra.mxu0 0
    %5114 = vmatprep.subr.bf16.mxu0 0
    %5115 = vmatpush1.bf16.msra.mxu0 0
    %5116 = vmatprep.subr.bf16.mxu0 0
    %5117 = vmatpush1.bf16.msra.mxu0 0
    %5118 = vmatprep.subr.bf16.mxu0 0
    %5119 = vmatpush1.bf16.msra.mxu0 0
    %5120 = vmatprep.subr.bf16.mxu0 0
    %5121 = vmatpush1.bf16.msra.mxu0 0
    %5122 = vmatprep.subr.bf16.mxu0 0
    %5123 = vmatpush1.bf16.msra.mxu0 0
    %5124 = vmatprep.subr.bf16.mxu0 0
    %5125 = vmatpush1.bf16.msra.mxu0 0
    %5126 = vmatprep.subr.bf16.mxu0 0
    %5127 = vmatpush1.bf16.msra.mxu0 0
    %5128 = vmatprep.subr.bf16.mxu0 0
    %5129 = vmatpush1.bf16.msra.mxu0 0
    %5130 = vmatprep.subr.bf16.mxu0 0
    %5131 = vmatpush1.bf16.msra.mxu0 0
    %5132 = vmatprep.subr.bf16.mxu0 0
    %5133 = vmatpush1.bf16.msra.mxu0 0
    %5134 = vmatprep.subr.bf16.mxu0 0
    %5135 = vmatpush1.bf16.msra.mxu0 0
    %5136 = vmatprep.subr.bf16.mxu0 0
    %5137 = vmatpush1.bf16.msra.mxu0 0
    %5138 = vmatprep.mubr.bf16.mxu0 0
    %5139 = vmatmul.mubr.bf16.gmra.mrb[0].mxu0 %v5104
    %v5140 = vpop.f32.mrb[0].mxu0
    %v5141 = vadd.f32 %v1684, %v5140
    %v5142 = vpop.f32.mrb[0].mxu0
    %v5143 = vpop.f32.mrb[0].mxu0
    %v5144 = vpop.f32.mrb[0].mxu0
    %5145 = vdwg.mxu0
    %v5146 = vmax.f32 %v5141, 0.0
    %v5147 = vpack.c.bf16 %v5146, %v5146
    %5148 = vmatprep.subr.bf16.mxu0 %v1986
    %5149 = vmatpush1.bf16.msra.mxu0 %v1985
    %5150 = vmatprep.subr.bf16.mxu0 %v1989
    %5151 = vmatpush1.bf16.msra.mxu0 %v1988
    %5152 = vmatprep.subr.bf16.mxu0 %v1992
    %5153 = vmatpush1.bf16.msra.mxu0 %v1991
    %5154 = vmatprep.subr.bf16.mxu0 %v1995
    %5155 = vmatpush1.bf16.msra.mxu0 %v1994
    %5156 = vmatprep.subr.bf16.mxu0 %v1998
    %5157 = vmatpush1.bf16.msra.mxu0 %v1997
    %5158 = vmatprep.subr.bf16.mxu0 %v2001
    %5159 = vmatpush1.bf16.msra.mxu0 %v2000
    %5160 = vmatprep.subr.bf16.mxu0 %v2004
    %5161 = vmatpush1.bf16.msra.mxu0 %v2003
    %5162 = vmatprep.subr.bf16.mxu0 %v2007
    %5163 = vmatpush1.bf16.msra.mxu0 %v2006
    %5164 = vmatprep.subr.bf16.mxu0 %v2010
    %5165 = vmatpush1.bf16.msra.mxu0 %v2009
    %5166 = vmatprep.subr.bf16.mxu0 %v2013
    %5167 = vmatpush1.bf16.msra.mxu0 %v2012
    %5168 = vmatprep.subr.bf16.mxu0 %v2016
    %5169 = vmatpush1.bf16.msra.mxu0 %v2015
    %5170 = vmatprep.subr.bf16.mxu0 %v2019
    %5171 = vmatpush1.bf16.msra.mxu0 %v2018
    %5172 = vmatprep.subr.bf16.mxu0 %v2022
    %5173 = vmatpush1.bf16.msra.mxu0 %v2021
    %5174 = vmatprep.subr.bf16.mxu0 %v2025
    %5175 = vmatpush1.bf16.msra.mxu0 %v2024
    %5176 = vmatprep.subr.bf16.mxu0 %v2028
    %5177 = vmatpush1.bf16.msra.mxu0 %v2027
    %5178 = vmatprep.subr.bf16.mxu0 %v2031
    %5179 = vmatpush1.bf16.msra.mxu0 %v2030
    %5180 = vmatprep.mubr.bf16.mxu0 %v5147
    %5181 = vmatmul.mubr.bf16.gmra.mrb[0].mxu0 %v4895
    %v5182 = vpop.f32.mrb[0].mxu0
    %v5183 = vadd.f32 %v1813, %v5182
    %v5184 = vpop.f32.mrb[0].mxu0
    %v5185 = vadd.f32 %v1817, %v5184
    %v5186 = vpop.f32.mrb[0].mxu0
    %v5187 = vpop.f32.mrb[0].mxu0
    %5188 = vdwg.mxu0
    %5189 = vmatprep.subr.bf16.mxu0 0
    %5190 = vmatpush1.bf16.msra.mxu0 %v1987
    %5191 = vmatprep.subr.bf16.mxu0 0
    %5192 = vmatpush1.bf16.msra.mxu0 %v1990
    %5193 = vmatprep.subr.bf16.mxu0 0
    %5194 = vmatpush1.bf16.msra.mxu0 %v1993
    %5195 = vmatprep.subr.bf16.mxu0 0
    %5196 = vmatpush1.bf16.msra.mxu0 %v1996
    %5197 = vmatprep.subr.bf16.mxu0 0
    %5198 = vmatpush1.bf16.msra.mxu0 %v1999
    %5199 = vmatprep.subr.bf16.mxu0 0
    %5200 = vmatpush1.bf16.msra.mxu0 %v2002
    %5201 = vmatprep.subr.bf16.mxu0 0
    %5202 = vmatpush1.bf16.msra.mxu0 %v2005
    %5203 = vmatprep.subr.bf16.mxu0 0
    %5204 = vmatpush1.bf16.msra.mxu0 %v2008
    %5205 = vmatprep.subr.bf16.mxu0 0
    %5206 = vmatpush1.bf16.msra.mxu0 %v2011
    %5207 = vmatprep.subr.bf16.mxu0 0
    %5208 = vmatpush1.bf16.msra.mxu0 %v2014
    %5209 = vmatprep.subr.bf16.mxu0 0
    %5210 = vmatpush1.bf16.msra.mxu0 %v2017
    %5211 = vmatprep.subr.bf16.mxu0 0
    %5212 = vmatpush1.bf16.msra.mxu0 %v2020
    %5213 = vmatprep.subr.bf16.mxu0 0
    %5214 = vmatpush1.bf16.msra.mxu0 %v2023
    %5215 = vmatprep.subr.bf16.mxu0 0
    %5216 = vmatpush1.bf16.msra.mxu0 %v2026
    %5217 = vmatprep.subr.bf16.mxu0 0
    %5218 = vmatpush1.bf16.msra.mxu0 %v2029
    %5219 = vmatprep.subr.bf16.mxu0 0
    %5220 = vmatpush1.bf16.msra.mxu0 %v2032
    %5221 = vmatprep.mubr.bf16.mxu0 %v5147
    %5222 = vmatmul.mubr.bf16.gmra.mrb[0].mxu0 %v4895
    %v5223 = vpop.f32.mrb[0].mxu0
    %v5224 = vadd.f32 %v1821, %v5223
    %v5225 = vpop.f32.mrb[0].mxu0
    %v5226 = vpop.f32.mrb[0].mxu0
    %v5227 = vpop.f32.mrb[0].mxu0
    %5228 = vdwg.mxu0
    %v5229 = vadd.f32 %v5183, %v4807
    %v5230 = vmul.f32 %v5229, 0.5
    %v5231 = vtanh.pop %v5230
    %v5232 = vadd.f32 %v5231, 1.0
    %v5233 = vmul.f32 %v5232, 0.5
    %v5234 = vadd.f32 %v5185, %v4809
    %v5235 = vmul.f32 %v5234, 0.5
    %v5236 = vtanh.pop %v5235
    %v5237 = vadd.f32 %v5236, 1.0
    %v5238 = vmul.f32 %v5237, 0.5
    %v5239 = vmul.f32 %v5233, %v4848
    %v5240 = vadd.f32 %v5224, %v5239
    %v5241 = vtanh.pop %v5240
    %v5242 = vsub.f32 1.0, %v5238
    %v5243 = vmul.f32 %v5242, %v5241
    %v5244 = vmul.f32 %v5238, %v4667
    %v5245 = vadd.f32 %v5243, %v5244
    %v5246 = vpack.c.bf16 %v5245, %v5245
    %5247 = vmatprep.subr.bf16.mxu0 %v2310
    %5248 = vmatpush1.bf16.msra.mxu0 %v2309
    %5249 = vmatprep.subr.bf16.mxu0 %v2313
    %5250 = vmatpush1.bf16.msra.mxu0 %v2312
    %5251 = vmatprep.subr.bf16.mxu0 %v2316
    %5252 = vmatpush1.bf16.msra.mxu0 %v2315
    %5253 = vmatprep.subr.bf16.mxu0 %v2319
    %5254 = vmatpush1.bf16.msra.mxu0 %v2318
    %5255 = vmatprep.subr.bf16.mxu0 %v2322
    %5256 = vmatpush1.bf16.msra.mxu0 %v2321
    %5257 = vmatprep.subr.bf16.mxu0 %v2325
    %5258 = vmatpush1.bf16.msra.mxu0 %v2324
    %5259 = vmatprep.subr.bf16.mxu0 %v2328
    %5260 = vmatpush1.bf16.msra.mxu0 %v2327
    %5261 = vmatprep.subr.bf16.mxu0 %v2331
    %5262 = vmatpush1.bf16.msra.mxu0 %v2330
    %5263 = vmatprep.subr.bf16.mxu0 0
    %5264 = vmatpush1.bf16.msra.mxu0 0
    %5265 = vmatprep.subr.bf16.mxu0 0
    %5266 = vmatpush1.bf16.msra.mxu0 0
    %5267 = vmatprep.subr.bf16.mxu0 0
    %5268 = vmatpush1.bf16.msra.mxu0 0
    %5269 = vmatprep.subr.bf16.mxu0 0
    %5270 = vmatpush1.bf16.msra.mxu0 0
    %5271 = vmatprep.subr.bf16.mxu0 0
    %5272 = vmatpush1.bf16.msra.mxu0 0
    %5273 = vmatprep.subr.bf16.mxu0 0
    %5274 = vmatpush1.bf16.msra.mxu0 0
    %5275 = vmatprep.subr.bf16.mxu0 0
    %5276 = vmatpush1.bf16.msra.mxu0 0
    %5277 = vmatprep.subr.bf16.mxu0 0
    %5278 = vmatpush1.bf16.msra.mxu0 0
    %5279 = vmatprep.mubr.bf16.mxu0 0
    %5280 = vmatmul.mubr.bf16.gmra.mrb[0].mxu0 %v5246
    %v5281 = vpop.f32.mrb[0].mxu0
    %v5282 = vadd.f32 %v2217, %v5281
    %v5283 = vpop.f32.mrb[0].mxu0
    %v5284 = vadd.f32 %v2221, %v5283
    %v5285 = vpop.f32.mrb[0].mxu0
    %v5286 = vpop.f32.mrb[0].mxu0
    %5287 = vdwg.mxu0
    %5288 = vmatprep.subr.bf16.mxu0 0
    %5289 = vmatpush1.bf16.msra.mxu0 %v2311
    %5290 = vmatprep.subr.bf16.mxu0 0
    %5291 = vmatpush1.bf16.msra.mxu0 %v2314
    %5292 = vmatprep.subr.bf16.mxu0 0
    %5293 = vmatpush1.bf16.msra.mxu0 %v2317
    %5294 = vmatprep.subr.bf16.mxu0 0
    %5295 = vmatpush1.bf16.msra.mxu0 %v2320
    %5296 = vmatprep.subr.bf16.mxu0 0
    %5297 = vmatpush1.bf16.msra.mxu0 %v2323
    %5298 = vmatprep.subr.bf16.mxu0 0
    %5299 = vmatpush1.bf16.msra.mxu0 %v2326
    %5300 = vmatprep.subr.bf16.mxu0 0
    %5301 = vmatpush1.bf16.msra.mxu0 %v2329
    %5302 = vmatprep.subr.bf16.mxu0 0
    %5303 = vmatpush1.bf16.msra.mxu0 %v2332
    %5304 = vmatprep.subr.bf16.mxu0 0
    %5305 = vmatpush1.bf16.msra.mxu0 0
    %5306 = vmatprep.subr.bf16.mxu0 0
    %5307 = vmatpush1.bf16.msra.mxu0 0
    %5308 = vmatprep.subr.bf16.mxu0 0
    %5309 = vmatpush1.bf16.msra.mxu0 0
    %5310 = vmatprep.subr.bf16.mxu0 0
    %5311 = vmatpush1.bf16.msra.mxu0 0
    %5312 = vmatprep.subr.bf16.mxu0 0
    %5313 = vmatpush1.bf16.msra.mxu0 0
    %5314 = vmatprep.subr.bf16.mxu0 0
    %5315 = vmatpush1.bf16.msra.mxu0 0
    %5316 = vmatprep.subr.bf16.mxu0 0
    %5317 = vmatpush1.bf16.msra.mxu0 0
    %5318 = vmatprep.subr.bf16.mxu0 0
    %5319 = vmatpush1.bf16.msra.mxu0 0
    %5320 = vmatprep.mubr.bf16.mxu0 0
    %5321 = vmatmul.mubr.bf16.gmra.mrb[0].mxu0 %v5246
    %v5322 = vpop.f32.mrb[0].mxu0
    %v5323 = vadd.f32 %v2225, %v5322
    %v5324 = vpop.f32.mrb[0].mxu0
    %v5325 = vpop.f32.mrb[0].mxu0
    %v5326 = vpop.f32.mrb[0].mxu0
    %5327 = vdwg.mxu0
    %v5328 = vadd.f32 %v5282, %v4850
    %v5329 = vmul.f32 %v5328, 0.5
    %v5330 = vtanh.pop %v5329
    %v5331 = vadd.f32 %v5330, 1.0
    %v5332 = vmul.f32 %v5331, 0.5
    %v5333 = vadd.f32 %v5284, %v4889
    %v5334 = vmul.f32 %v5333, 0.5
    %v5335 = vtanh.pop %v5334
    %v5336 = vadd.f32 %v5335, 1.0
    %v5337 = vmul.f32 %v5336, 0.5
    %v5338 = vmul.f32 %v5332, %v4891
    %v5339 = vadd.f32 %v5323, %v5338
    %v5340 = vtanh.pop %v5339
    %v5341 = vsub.f32 1.0, %v5337
    %v5342 = vmul.f32 %v5341, %v5340
    %v5343 = vmul.f32 %v5337, %v4766
    %v5344 = vadd.f32 %v5342, %v5343
    %v5345 = vpack.c.bf16 %v5344, %v5344
    %5346 = vmatprep.subr.bf16.mxu0 0
    %5347 = vmatpush1.bf16.msra.mxu0 %v1423
    %5348 = vmatprep.subr.bf16.mxu0 0
    %5349 = vmatpush1.bf16.msra.mxu0 %v1424
    %5350 = vmatprep.subr.bf16.mxu0 0
    %5351 = vmatpush1.bf16.msra.mxu0 %v1425
    %5352 = vmatprep.subr.bf16.mxu0 0
    %5353 = vmatpush1.bf16.msra.mxu0 %v1426
    %5354 = vmatprep.subr.bf16.mxu0 0
    %5355 = vmatpush1.bf16.msra.mxu0 %v1427
    %5356 = vmatprep.subr.bf16.mxu0 0
    %5357 = vmatpush1.bf16.msra.mxu0 %v1428
    %5358 = vmatprep.subr.bf16.mxu0 0
    %5359 = vmatpush1.bf16.msra.mxu0 %v1429
    %5360 = vmatprep.subr.bf16.mxu0 0
    %5361 = vmatpush1.bf16.msra.mxu0 %v1430
    %5362 = vmatprep.subr.bf16.mxu0 0
    %5363 = vmatpush1.bf16.msra.mxu0 0
    %5364 = vmatprep.subr.bf16.mxu0 0
    %5365 = vmatpush1.bf16.msra.mxu0 0
    %5366 = vmatprep.subr.bf16.mxu0 0
    %5367 = vmatpush1.bf16.msra.mxu0 0
    %5368 = vmatprep.subr.bf16.mxu0 0
    %5369 = vmatpush1.bf16.msra.mxu0 0
    %5370 = vmatprep.subr.bf16.mxu0 0
    %5371 = vmatpush1.bf16.msra.mxu0 0
    %5372 = vmatprep.subr.bf16.mxu0 0
    %5373 = vmatpush1.bf16.msra.mxu0 0
    %5374 = vmatprep.subr.bf16.mxu0 0
    %5375 = vmatpush1.bf16.msra.mxu0 0
    %5376 = vmatprep.subr.bf16.mxu0 0
    %5377 = vmatpush1.bf16.msra.mxu0 0
    %5378 = vmatprep.mubr.bf16.mxu0 0
    %5379 = vmatmul.mubr.bf16.gmra.mrb[0].mxu0 %v5345
    %v5380 = vpop.f32.mrb[0].mxu0
    %v5381 = vadd.f32 %v1389, %v5380
    %v5382 = vpop.f32.mrb[0].mxu0
    %v5383 = vpop.f32.mrb[0].mxu0
    %v5384 = vpop.f32.mrb[0].mxu0
    %5385 = vdwg.mxu0
    %v5386 = vmax.f32 %v5381, 0.0
    %v5387 = vpack.c.bf16 %v5386, %v5386
    %5388 = vmatprep.subr.bf16.mxu0 0
    %5389 = vmatpush1.bf16.msra.mxu0 %v1539
    %5390 = vmatprep.subr.bf16.mxu0 0
    %5391 = vmatpush1.bf16.msra.mxu0 %v1540
    %5392 = vmatprep.subr.bf16.mxu0 0
    %5393 = vmatpush1.bf16.msra.mxu0 %v1541
    %5394 = vmatprep.subr.bf16.mxu0 0
    %5395 = vmatpush1.bf16.msra.mxu0 %v1542
    %5396 = vmatprep.subr.bf16.mxu0 0
    %5397 = vmatpush1.bf16.msra.mxu0 %v1543
    %5398 = vmatprep.subr.bf16.mxu0 0
    %5399 = vmatpush1.bf16.msra.mxu0 %v1544
    %5400 = vmatprep.subr.bf16.mxu0 0
    %5401 = vmatpush1.bf16.msra.mxu0 %v1545
    %5402 = vmatprep.subr.bf16.mxu0 0
    %5403 = vmatpush1.bf16.msra.mxu0 %v1546
    %5404 = vmatprep.subr.bf16.mxu0 0
    %5405 = vmatpush1.bf16.msra.mxu0 0
    %5406 = vmatprep.subr.bf16.mxu0 0
    %5407 = vmatpush1.bf16.msra.mxu0 0
    %5408 = vmatprep.subr.bf16.mxu0 0
    %5409 = vmatpush1.bf16.msra.mxu0 0
    %5410 = vmatprep.subr.bf16.mxu0 0
    %5411 = vmatpush1.bf16.msra.mxu0 0
    %5412 = vmatprep.subr.bf16.mxu0 0
    %5413 = vmatpush1.bf16.msra.mxu0 0
    %5414 = vmatprep.subr.bf16.mxu0 0
    %5415 = vmatpush1.bf16.msra.mxu0 0
    %5416 = vmatprep.subr.bf16.mxu0 0
    %5417 = vmatpush1.bf16.msra.mxu0 0
    %5418 = vmatprep.subr.bf16.mxu0 0
    %5419 = vmatpush1.bf16.msra.mxu0 0
    %5420 = vmatprep.mubr.bf16.mxu0 0
    %5421 = vmatmul.mubr.bf16.gmra.mrb[0].mxu0 %v5387
    %v5422 = vpop.f32.mrb[0].mxu0
    %v5423 = vadd.f32 %v1505, %v5422
    %v5424 = vpop.f32.mrb[0].mxu0
    %v5425 = vpop.f32.mrb[0].mxu0
    %v5426 = vpop.f32.mrb[0].mxu0
    %5427 = vdwg.mxu0
    %vm5428 = vcmp.gt.f32.partialorder %v5423, 20.0
    %v5429 = vmin.f32 %v5423, 20.0
    %v5430 = vmul.f32 %v5429, 1.442695
    %v5431 = vpow.pop %v5430
    %v5432 = vadd.f32 %v5431, 1.0
    %v5433 = vlog2.pop %v5432
    %v5434 = vmul.f32 %v5433, 0.6931472
    %v5435 = vmul.f32 -0.5, %v5431
    %v5436 = vadd.f32 %v5435, 1.0
    %v5437 = vmul.f32 %v5436, %v5431
    %v5438 = vand.u32 2147483647, %v5431
    %vm5439 = vcmp.lt.f32.partialorder %v5438, 0.0004427343
    %v5440 = vsel %vm5439, %v5437, %v5434
    %v5441 = vsel %vm5428, %v5423, %v5440
    %v5442 = vld [vmem:[#allocation7] sm:$0xff]
    %v5443 = vmul.f32 %v5442, %v5441
    %v5444 = vadd.f32 %v5443, %v5423
    %v5445 = vpack.c.bf16 %v5444, %v5444
    %v5447 = vsel %vm1698, %v5445, 0
    %5449 = vmatprep.subr.bf16.mxu0 0
    %5450 = vmatpush1.bf16.msra.mxu0 %v1694
    %5451 = vmatprep.subr.bf16.mxu0 0
    %5452 = vmatpush1.bf16.msra.mxu0 %v1695
    %5453 = vmatprep.subr.bf16.mxu0 0
    %5454 = vmatpush1.bf16.msra.mxu0 0
    %5455 = vmatprep.subr.bf16.mxu0 0
    %5456 = vmatpush1.bf16.msra.mxu0 0
    %5457 = vmatprep.subr.bf16.mxu0 0
    %5458 = vmatpush1.bf16.msra.mxu0 0
    %5459 = vmatprep.subr.bf16.mxu0 0
    %5460 = vmatpush1.bf16.msra.mxu0 0
    %5461 = vmatprep.subr.bf16.mxu0 0
    %5462 = vmatpush1.bf16.msra.mxu0 0
    %5463 = vmatprep.subr.bf16.mxu0 0
    %5464 = vmatpush1.bf16.msra.mxu0 0
    %5465 = vmatprep.subr.bf16.mxu0 0
    %5466 = vmatpush1.bf16.msra.mxu0 0
    %5467 = vmatprep.subr.bf16.mxu0 0
    %5468 = vmatpush1.bf16.msra.mxu0 0
    %5469 = vmatprep.subr.bf16.mxu0 0
    %5470 = vmatpush1.bf16.msra.mxu0 0
    %5471 = vmatprep.subr.bf16.mxu0 0
    %5472 = vmatpush1.bf16.msra.mxu0 0
    %5473 = vmatprep.subr.bf16.mxu0 0
    %5474 = vmatpush1.bf16.msra.mxu0 0
    %5475 = vmatprep.subr.bf16.mxu0 0
    %5476 = vmatpush1.bf16.msra.mxu0 0
    %5477 = vmatprep.subr.bf16.mxu0 0
    %5478 = vmatpush1.bf16.msra.mxu0 0
    %5479 = vmatprep.subr.bf16.mxu0 0
    %5480 = vmatpush1.bf16.msra.mxu0 0
    %5481 = vmatprep.mubr.bf16.mxu0 0
    %5482 = vmatmul.mubr.bf16.gmra.mrb[0].mxu0 %v5447
    %v5483 = vpop.f32.mrb[0].mxu0
    %v5484 = vadd.f32 %v1684, %v5483
    %v5485 = vpop.f32.mrb[0].mxu0
    %v5486 = vpop.f32.mrb[0].mxu0
    %v5487 = vpop.f32.mrb[0].mxu0
    %5488 = vdwg.mxu0
    %v5489 = vmax.f32 %v5484, 0.0
    %v5490 = vpack.c.bf16 %v5489, %v5489
    %v5491 = vld [vmem:[#allocation22] sm:$0xf]
    %v5492 = vld [vmem:[#allocation22 + $0x4] sm:$0xf]
    %v5493 = vld [vmem:[#allocation22 + $0x8] sm:$0xf]
    %v5494 = vld [vmem:[#allocation22 + $0xc] sm:$0xf]
    %v5495 = vld [vmem:[#allocation22 + $0x10] sm:$0xf]
    %v5496 = vld [vmem:[#allocation22 + $0x14] sm:$0xf]
    %v5497 = vld [vmem:[#allocation22 + $0x18] sm:$0xf]
    %v5498 = vld [vmem:[#allocation22 + $0x1c] sm:$0xf]
    %v5499 = vld [vmem:[#allocation22 + $0x20] sm:$0xf]
    %v5500 = vld [vmem:[#allocation22 + $0x24] sm:$0xf]
    %v5501 = vld [vmem:[#allocation22 + $0x28] sm:$0xf]
    %v5502 = vld [vmem:[#allocation22 + $0x2c] sm:$0xf]
    %v5503 = vld [vmem:[#allocation22 + $0x30] sm:$0xf]
    %v5504 = vld [vmem:[#allocation22 + $0x34] sm:$0xf]
    %v5505 = vld [vmem:[#allocation22 + $0x38] sm:$0xf]
    %v5506 = vld [vmem:[#allocation22 + $0x3c] sm:$0xf]
    %v5507 = vld [vmem:[#allocation22 + $0x40] sm:$0xf]
    %v5508 = vld [vmem:[#allocation22 + $0x44] sm:$0xf]
    %v5509 = vld [vmem:[#allocation22 + $0x48] sm:$0xf]
    %v5510 = vld [vmem:[#allocation22 + $0x4c] sm:$0xf]
    %v5511 = vld [vmem:[#allocation22 + $0x50] sm:$0xf]
    %v5512 = vld [vmem:[#allocation22 + $0x54] sm:$0xf]
    %v5513 = vld [vmem:[#allocation22 + $0x58] sm:$0xf]
    %v5514 = vld [vmem:[#allocation22 + $0x5c] sm:$0xf]
    %v5515 = vld [vmem:[#allocation22 + $0x60] sm:$0xf]
    %v5516 = vld [vmem:[#allocation22 + $0x64] sm:$0xf]
    %v5517 = vld [vmem:[#allocation22 + $0x68] sm:$0xf]
    %v5518 = vld [vmem:[#allocation22 + $0x6c] sm:$0xf]
    %v5519 = vld [vmem:[#allocation22 + $0x70] sm:$0xf]
    %v5520 = vld [vmem:[#allocation22 + $0x74] sm:$0xf]
    %v5521 = vld [vmem:[#allocation22 + $0x78] sm:$0xf]
    %v5522 = vld [vmem:[#allocation22 + $0x7c] sm:$0xf]
    %v5523 = vld [vmem:[#allocation24] sm:$0x1]
    %v5525 = vlaneseq
    %v5526 = vshrl.u32 %v5525, 7
    %v5527 = vsub.s32 0, %v5526
    %v5528 = vrot.slane %v5523, %v5527
    %v5562 = vunpack.c.l.b16 %v5491
    %v5563 = vunpack.c.l.b16 %v5492
    %v5564 = vunpack.c.l.b16 %v5493
    %v5565 = vunpack.c.l.b16 %v5494
    %v5566 = vunpack.c.l.b16 %v5495
    %v5567 = vunpack.c.l.b16 %v5496
    %v5568 = vunpack.c.l.b16 %v5497
    %v5569 = vunpack.c.l.b16 %v5498
    %v5570 = vunpack.c.l.b16 %v5499
    %v5571 = vunpack.c.l.b16 %v5500
    %v5572 = vunpack.c.l.b16 %v5501
    %v5573 = vunpack.c.l.b16 %v5502
    %v5574 = vunpack.c.l.b16 %v5503
    %v5575 = vunpack.c.l.b16 %v5504
    %v5576 = vunpack.c.l.b16 %v5505
    %v5577 = vunpack.c.l.b16 %v5506
    %v5578 = vunpack.c.l.b16 %v5507
    %v5579 = vunpack.c.l.b16 %v5508
    %v5580 = vunpack.c.l.b16 %v5509
    %v5581 = vunpack.c.l.b16 %v5510
    %v5582 = vunpack.c.l.b16 %v5511
    %v5583 = vunpack.c.l.b16 %v5512
    %v5584 = vunpack.c.l.b16 %v5513
    %v5585 = vunpack.c.l.b16 %v5514
    %v5586 = vunpack.c.l.b16 %v5515
    %v5587 = vunpack.c.l.b16 %v5516
    %v5588 = vunpack.c.l.b16 %v5517
    %v5589 = vunpack.c.l.b16 %v5518
    %v5590 = vunpack.c.l.b16 %v5519
    %v5591 = vunpack.c.l.b16 %v5520
    %v5592 = vunpack.c.l.b16 %v5521
    %v5593 = vunpack.c.l.b16 %v5522
    %v5594 = vpack.c.b16 %v5563, %v5562
    %v5595 = vpack.c.b16 %v5565, %v5564
    %v5596 = vpack.c.b16 %v5567, %v5566
    %v5597 = vpack.c.b16 %v5569, %v5568
    %v5598 = vpack.c.b16 %v5571, %v5570
    %v5599 = vpack.c.b16 %v5573, %v5572
    %v5600 = vpack.c.b16 %v5575, %v5574
    %v5601 = vpack.c.b16 %v5577, %v5576
    %v5602 = vpack.c.b16 %v5579, %v5578
    %v5603 = vpack.c.b16 %v5581, %v5580
    %v5604 = vpack.c.b16 %v5583, %v5582
    %v5605 = vpack.c.b16 %v5585, %v5584
    %v5606 = vpack.c.b16 %v5587, %v5586
    %v5607 = vpack.c.b16 %v5589, %v5588
    %v5608 = vpack.c.b16 %v5591, %v5590
    %v5609 = vpack.c.b16 %v5593, %v5592
    %5626 = vmatprep.subr.bf16.mxu0 0
    %5627 = vmatpush1.bf16.msra.mxu0 %v5594
    %5628 = vmatprep.subr.bf16.mxu0 0
    %5629 = vmatpush1.bf16.msra.mxu0 %v5595
    %5630 = vmatprep.subr.bf16.mxu0 0
    %5631 = vmatpush1.bf16.msra.mxu0 %v5596
    %5632 = vmatprep.subr.bf16.mxu0 0
    %5633 = vmatpush1.bf16.msra.mxu0 %v5597
    %5634 = vmatprep.subr.bf16.mxu0 0
    %5635 = vmatpush1.bf16.msra.mxu0 %v5598
    %5636 = vmatprep.subr.bf16.mxu0 0
    %5637 = vmatpush1.bf16.msra.mxu0 %v5599
    %5638 = vmatprep.subr.bf16.mxu0 0
    %5639 = vmatpush1.bf16.msra.mxu0 %v5600
    %5640 = vmatprep.subr.bf16.mxu0 0
    %5641 = vmatpush1.bf16.msra.mxu0 %v5601
    %5642 = vmatprep.subr.bf16.mxu0 0
    %5643 = vmatpush1.bf16.msra.mxu0 %v5602
    %5644 = vmatprep.subr.bf16.mxu0 0
    %5645 = vmatpush1.bf16.msra.mxu0 %v5603
    %5646 = vmatprep.subr.bf16.mxu0 0
    %5647 = vmatpush1.bf16.msra.mxu0 %v5604
    %5648 = vmatprep.subr.bf16.mxu0 0
    %5649 = vmatpush1.bf16.msra.mxu0 %v5605
    %5650 = vmatprep.subr.bf16.mxu0 0
    %5651 = vmatpush1.bf16.msra.mxu0 %v5606
    %5652 = vmatprep.subr.bf16.mxu0 0
    %5653 = vmatpush1.bf16.msra.mxu0 %v5607
    %5654 = vmatprep.subr.bf16.mxu0 0
    %5655 = vmatpush1.bf16.msra.mxu0 %v5608
    %5656 = vmatprep.subr.bf16.mxu0 0
    %5657 = vmatpush1.bf16.msra.mxu0 %v5609
    %5658 = vmatprep.mubr.bf16.mxu0 %v5345
    %5659 = vmatmul.mubr.bf16.gmra.mrb[0].mxu0 %v5490
    %v5660 = vpop.f32.mrb[0].mxu0
    %v5661 = vadd.f32 %v5528, %v5660
    %v5662 = vpop.f32.mrb[0].mxu0
    %v5663 = vpop.f32.mrb[0].mxu0
    %v5664 = vpop.f32.mrb[0].mxu0
    %5665 = vdwg.mxu0
    %v5666 = vmax.f32 %v5661, 0.0
    %v5667 = vpack.c.bf16 %v5666, %v5666
    %v5668 = vld [vmem:[%s37] sm:$0xf]
    %v5669 = vld [vmem:[%s37 + $0x4] sm:$0xf]
    %v5670 = vld [vmem:[%s37 + $0x8] sm:$0xf]
    %v5671 = vld [vmem:[%s37 + $0xc] sm:$0xf]
    %v5672 = vld [vmem:[%s37 + $0x10] sm:$0xf]
    %v5673 = vld [vmem:[%s37 + $0x14] sm:$0xf]
    %v5674 = vld [vmem:[%s37 + $0x18] sm:$0xf]
    %v5675 = vld [vmem:[%s37 + $0x1c] sm:$0xf]
    %v5676 = vld [vmem:[%s37 + $0x20] sm:$0xf]
    %v5677 = vld [vmem:[%s37 + $0x24] sm:$0xf]
    %v5678 = vld [vmem:[%s37 + $0x28] sm:$0xf]
    %v5679 = vld [vmem:[%s37 + $0x2c] sm:$0xf]
    %v5680 = vld [vmem:[%s37 + $0x30] sm:$0xf]
    %v5681 = vld [vmem:[%s37 + $0x34] sm:$0xf]
    %v5682 = vld [vmem:[%s37 + $0x38] sm:$0xf]
    %v5683 = vld [vmem:[%s37 + $0x3c] sm:$0xf]
    %v5684 = vld [vmem:[#allocation25] sm:$0x1]
    %v5686 = vlaneseq
    %v5687 = vshrl.u32 %v5686, 7
    %v5688 = vsub.s32 0, %v5687
    %v5689 = vrot.slane %v5684, %v5688
    %v5707 = vunpack.c.l.b16 %v5668
    %v5708 = vunpack.c.l.b16 %v5669
    %v5709 = vunpack.c.l.b16 %v5670
    %v5710 = vunpack.c.l.b16 %v5671
    %v5711 = vunpack.c.l.b16 %v5672
    %v5712 = vunpack.c.l.b16 %v5673
    %v5713 = vunpack.c.l.b16 %v5674
    %v5714 = vunpack.c.l.b16 %v5675
    %v5715 = vunpack.c.l.b16 %v5676
    %v5716 = vunpack.c.l.b16 %v5677
    %v5717 = vunpack.c.l.b16 %v5678
    %v5718 = vunpack.c.l.b16 %v5679
    %v5719 = vunpack.c.l.b16 %v5680
    %v5720 = vunpack.c.l.b16 %v5681
    %v5721 = vunpack.c.l.b16 %v5682
    %v5722 = vunpack.c.l.b16 %v5683
    %v5723 = vpack.c.b16 %v5708, %v5707
    %v5724 = vpack.c.b16 %v5710, %v5709
    %v5725 = vpack.c.b16 %v5712, %v5711
    %v5726 = vpack.c.b16 %v5714, %v5713
    %v5727 = vpack.c.b16 %v5716, %v5715
    %v5728 = vpack.c.b16 %v5718, %v5717
    %v5729 = vpack.c.b16 %v5720, %v5719
    %v5730 = vpack.c.b16 %v5722, %v5721
    %5739 = vmatprep.subr.bf16.mxu0 0
    %5740 = vmatpush1.bf16.msra.mxu0 %v5723
    %5741 = vmatprep.subr.bf16.mxu0 0
    %5742 = vmatpush1.bf16.msra.mxu0 %v5724
    %5743 = vmatprep.subr.bf16.mxu0 0
    %5744 = vmatpush1.bf16.msra.mxu0 %v5725
    %5745 = vmatprep.subr.bf16.mxu0 0
    %5746 = vmatpush1.bf16.msra.mxu0 %v5726
    %5747 = vmatprep.subr.bf16.mxu0 0
    %5748 = vmatpush1.bf16.msra.mxu0 %v5727
    %5749 = vmatprep.subr.bf16.mxu0 0
    %5750 = vmatpush1.bf16.msra.mxu0 %v5728
    %5751 = vmatprep.subr.bf16.mxu0 0
    %5752 = vmatpush1.bf16.msra.mxu0 %v5729
    %5753 = vmatprep.subr.bf16.mxu0 0
    %5754 = vmatpush1.bf16.msra.mxu0 %v5730
    %5755 = vmatprep.subr.bf16.mxu0 0
    %5756 = vmatpush1.bf16.msra.mxu0 0
    %5757 = vmatprep.subr.bf16.mxu0 0
    %5758 = vmatpush1.bf16.msra.mxu0 0
    %5759 = vmatprep.subr.bf16.mxu0 0
    %5760 = vmatpush1.bf16.msra.mxu0 0
    %5761 = vmatprep.subr.bf16.mxu0 0
    %5762 = vmatpush1.bf16.msra.mxu0 0
    %5763 = vmatprep.subr.bf16.mxu0 0
    %5764 = vmatpush1.bf16.msra.mxu0 0
    %5765 = vmatprep.subr.bf16.mxu0 0
    %5766 = vmatpush1.bf16.msra.mxu0 0
    %5767 = vmatprep.subr.bf16.mxu0 0
    %5768 = vmatpush1.bf16.msra.mxu0 0
    %5769 = vmatprep.subr.bf16.mxu0 0
    %5770 = vmatpush1.bf16.msra.mxu0 0
    %5771 = vmatprep.mubr.bf16.mxu0 0
    %5772 = vmatmul.mubr.bf16.gmra.mrb[0].mxu0 %v5667
    %v5773 = vpop.f32.mrb[0].mxu0
    %v5774 = vadd.f32 %v5689, %v5773
    %v5775 = vpop.f32.mrb[0].mxu0
    %v5776 = vpop.f32.mrb[0].mxu0
    %v5777 = vpop.f32.mrb[0].mxu0
    %5778 = vdwg.mxu0
    %v5779 = vpack.c.bf16 %v5774, %v5774
    %v5780 = vld [vmem:[#allocation10] sm:$0x7]
    %v5781 = vld [vmem:[#allocation12] sm:$0x1]
    %v5783 = vlaneseq
    %v5784 = vshrl.u32 %v5783, 7
    %v5785 = vsub.s32 0, %v5784
    %v5786 = vrot.slane %v5781, %v5785
    %vm5788 = vcmask 48128
    %v5790 = vsel %vm5788, %v5779, 0
    %v5793 = vsel %vm377, %v5780, 0
    %5795 = vmatprep.subr.bf16.mxu0 0
    %5796 = vmatpush1.bf16.msra.mxu0 %v5793
    %5797 = vmatprep.subr.bf16.mxu0 0
    %5798 = vmatpush1.bf16.msra.mxu0 0
    %5799 = vmatprep.subr.bf16.mxu0 0
    %5800 = vmatpush1.bf16.msra.mxu0 0
    %5801 = vmatprep.subr.bf16.mxu0 0
    %5802 = vmatpush1.bf16.msra.mxu0 0
    %5803 = vmatprep.subr.bf16.mxu0 0
    %5804 = vmatpush1.bf16.msra.mxu0 0
    %5805 = vmatprep.subr.bf16.mxu0 0
    %5806 = vmatpush1.bf16.msra.mxu0 0
    %5807 = vmatprep.subr.bf16.mxu0 0
    %5808 = vmatpush1.bf16.msra.mxu0 0
    %5809 = vmatprep.subr.bf16.mxu0 0
    %5810 = vmatpush1.bf16.msra.mxu0 0
    %5811 = vmatprep.subr.bf16.mxu0 0
    %5812 = vmatpush1.bf16.msra.mxu0 0
    %5813 = vmatprep.subr.bf16.mxu0 0
    %5814 = vmatpush1.bf16.msra.mxu0 0
    %5815 = vmatprep.subr.bf16.mxu0 0
    %5816 = vmatpush1.bf16.msra.mxu0 0
    %5817 = vmatprep.subr.bf16.mxu0 0
    %5818 = vmatpush1.bf16.msra.mxu0 0
    %5819 = vmatprep.subr.bf16.mxu0 0
    %5820 = vmatpush1.bf16.msra.mxu0 0
    %5821 = vmatprep.subr.bf16.mxu0 0
    %5822 = vmatpush1.bf16.msra.mxu0 0
    %5823 = vmatprep.subr.bf16.mxu0 0
    %5824 = vmatpush1.bf16.msra.mxu0 0
    %5825 = vmatprep.subr.bf16.mxu0 0
    %5826 = vmatpush1.bf16.msra.mxu0 0
    %5827 = vmatprep.mubr.bf16.mxu0 0
    %5828 = vmatmul.mubr.bf16.gmra.mrb[0].mxu0 %v5790
    %v5829 = vpop.f32.mrb[0].mxu0
    %v5830 = vadd.f32 %v5786, %v5829
    %v5831 = vpop.f32.mrb[0].mxu0
    %v5832 = vpop.f32.mrb[0].mxu0
    %v5833 = vpop.f32.mrb[0].mxu0
    %5834 = vdwg.mxu0
    %v5835 = vpack.c.bf16 %v5830, %v5830
    %v5836 = vld [vmem:[%s41] sm:$0xf]
    %v5837 = vld [vmem:[%s41 + $0x4] sm:$0xf]
    %v5838 = vld [vmem:[%s41 + $0x8] sm:$0xf]
    %v5839 = vld [vmem:[%s41 + $0xc] sm:$0xf]
    %v5840 = vld [vmem:[%s41 + $0x10] sm:$0xf]
    %v5841 = vld [vmem:[%s41 + $0x14] sm:$0xf]
    %v5842 = vld [vmem:[%s41 + $0x18] sm:$0xf]
    %v5843 = vld [vmem:[%s41 + $0x1c] sm:$0xf]
    %v5844 = vld [vmem:[%s41 + $0x20] sm:$0xf]
    %v5845 = vld [vmem:[%s41 + $0x24] sm:$0xf]
    %v5846 = vld [vmem:[%s41 + $0x28] sm:$0xf]
    %v5847 = vld [vmem:[%s41 + $0x2c] sm:$0xf]
    %v5848 = vld [vmem:[%s41 + $0x30] sm:$0xf]
    %v5849 = vld [vmem:[%s41 + $0x34] sm:$0xf]
    %v5850 = vld [vmem:[%s41 + $0x38] sm:$0xf]
    %v5851 = vld [vmem:[%s41 + $0x3c] sm:$0xf]
    %v5852 = vld [vmem:[%s41 + $0x40] sm:$0xf]
    %v5853 = vld [vmem:[%s41 + $0x44] sm:$0xf]
    %v5854 = vld [vmem:[%s41 + $0x48] sm:$0xf]
    %v5855 = vld [vmem:[%s41 + $0x4c] sm:$0xf]
    %v5856 = vld [vmem:[%s41 + $0x50] sm:$0xf]
    %v5857 = vld [vmem:[%s41 + $0x54] sm:$0xf]
    %v5858 = vld [vmem:[%s41 + $0x58] sm:$0xf]
    %v5859 = vld [vmem:[%s41 + $0x5c] sm:$0xf]
    %v5860 = vld [vmem:[%s41 + $0x60] sm:$0xf]
    %v5861 = vld [vmem:[%s41 + $0x64] sm:$0xf]
    %v5862 = vld [vmem:[%s41 + $0x68] sm:$0xf]
    %v5863 = vld [vmem:[%s41 + $0x6c] sm:$0xf]
    %v5864 = vld [vmem:[%s41 + $0x70] sm:$0xf]
    %v5865 = vld [vmem:[%s41 + $0x74] sm:$0xf]
    %v5866 = vld [vmem:[%s41 + $0x78] sm:$0xf]
    %v5867 = vld [vmem:[%s41 + $0x7c] sm:$0xf]
    %v5868 = vld [vmem:[#allocation3] sm:$0x1]
    %v5870 = vlaneseq
    %v5871 = vshrl.u32 %v5870, 7
    %v5872 = vsub.s32 0, %v5871
    %v5873 = vrot.slane %v5868, %v5872
    %v5907 = vunpack.c.l.b16 %v5836
    %v5908 = vunpack.c.l.b16 %v5837
    %v5909 = vunpack.c.l.b16 %v5838
    %v5910 = vunpack.c.l.b16 %v5839
    %v5911 = vunpack.c.l.b16 %v5840
    %v5912 = vunpack.c.l.b16 %v5841
    %v5913 = vunpack.c.l.b16 %v5842
    %v5914 = vunpack.c.l.b16 %v5843
    %v5915 = vunpack.c.l.b16 %v5844
    %v5916 = vunpack.c.l.b16 %v5845
    %v5917 = vunpack.c.l.b16 %v5846
    %v5918 = vunpack.c.l.b16 %v5847
    %v5919 = vunpack.c.l.b16 %v5848
    %v5920 = vunpack.c.l.b16 %v5849
    %v5921 = vunpack.c.l.b16 %v5850
    %v5922 = vunpack.c.l.b16 %v5851
    %v5923 = vunpack.c.l.b16 %v5852
    %v5924 = vunpack.c.l.b16 %v5853
    %v5925 = vunpack.c.l.b16 %v5854
    %v5926 = vunpack.c.l.b16 %v5855
    %v5927 = vunpack.c.l.b16 %v5856
    %v5928 = vunpack.c.l.b16 %v5857
    %v5929 = vunpack.c.l.b16 %v5858
    %v5930 = vunpack.c.l.b16 %v5859
    %v5931 = vunpack.c.l.b16 %v5860
    %v5932 = vunpack.c.l.b16 %v5861
    %v5933 = vunpack.c.l.b16 %v5862
    %v5934 = vunpack.c.l.b16 %v5863
    %v5935 = vunpack.c.l.b16 %v5864
    %v5936 = vunpack.c.l.b16 %v5865
    %v5937 = vunpack.c.l.b16 %v5866
    %v5938 = vunpack.c.l.b16 %v5867
    %v5939 = vpack.c.b16 %v5908, %v5907
    %v5940 = vpack.c.b16 %v5910, %v5909
    %v5941 = vpack.c.b16 %v5912, %v5911
    %v5942 = vpack.c.b16 %v5914, %v5913
    %v5943 = vpack.c.b16 %v5916, %v5915
    %v5944 = vpack.c.b16 %v5918, %v5917
    %v5945 = vpack.c.b16 %v5920, %v5919
    %v5946 = vpack.c.b16 %v5922, %v5921
    %v5947 = vpack.c.b16 %v5924, %v5923
    %v5948 = vpack.c.b16 %v5926, %v5925
    %v5949 = vpack.c.b16 %v5928, %v5927
    %v5950 = vpack.c.b16 %v5930, %v5929
    %v5951 = vpack.c.b16 %v5932, %v5931
    %v5952 = vpack.c.b16 %v5934, %v5933
    %v5953 = vpack.c.b16 %v5936, %v5935
    %v5954 = vpack.c.b16 %v5938, %v5937
    %5971 = vmatprep.subr.bf16.mxu0 0
    %5972 = vmatpush1.bf16.msra.mxu0 %v5939
    %5973 = vmatprep.subr.bf16.mxu0 0
    %5974 = vmatpush1.bf16.msra.mxu0 %v5940
    %5975 = vmatprep.subr.bf16.mxu0 0
    %5976 = vmatpush1.bf16.msra.mxu0 %v5941
    %5977 = vmatprep.subr.bf16.mxu0 0
    %5978 = vmatpush1.bf16.msra.mxu0 %v5942
    %5979 = vmatprep.subr.bf16.mxu0 0
    %5980 = vmatpush1.bf16.msra.mxu0 %v5943
    %5981 = vmatprep.subr.bf16.mxu0 0
    %5982 = vmatpush1.bf16.msra.mxu0 %v5944
    %5983 = vmatprep.subr.bf16.mxu0 0
    %5984 = vmatpush1.bf16.msra.mxu0 %v5945
    %5985 = vmatprep.subr.bf16.mxu0 0
    %5986 = vmatpush1.bf16.msra.mxu0 %v5946
    %5987 = vmatprep.subr.bf16.mxu0 0
    %5988 = vmatpush1.bf16.msra.mxu0 %v5947
    %5989 = vmatprep.subr.bf16.mxu0 0
    %5990 = vmatpush1.bf16.msra.mxu0 %v5948
    %5991 = vmatprep.subr.bf16.mxu0 0
    %5992 = vmatpush1.bf16.msra.mxu0 %v5949
    %5993 = vmatprep.subr.bf16.mxu0 0
    %5994 = vmatpush1.bf16.msra.mxu0 %v5950
    %5995 = vmatprep.subr.bf16.mxu0 0
    %5996 = vmatpush1.bf16.msra.mxu0 %v5951
    %5997 = vmatprep.subr.bf16.mxu0 0
    %5998 = vmatpush1.bf16.msra.mxu0 %v5952
    %5999 = vmatprep.subr.bf16.mxu0 0
    %6000 = vmatpush1.bf16.msra.mxu0 %v5953
    %6001 = vmatprep.subr.bf16.mxu0 0
    %6002 = vmatpush1.bf16.msra.mxu0 %v5954
    %6003 = vmatprep.mubr.bf16.mxu0 %v5667
    %6004 = vmatmul.mubr.bf16.gmra.mrb[0].mxu0 %v5835
    %v6005 = vpop.f32.mrb[0].mxu0
    %v6006 = vadd.f32 %v5873, %v6005
    %v6007 = vpop.f32.mrb[0].mxu0
    %v6008 = vpop.f32.mrb[0].mxu0
    %v6009 = vpop.f32.mrb[0].mxu0
    %6010 = vdwg.mxu0
    %6011 = vst.msk [vmem:[#allocation33] sm:$0xff] %vm5788, %v5774
    %v6012 = vmul.f32 %v6006, 0.5
    %v6013 = vtanh.pop %v6012
    %v6014 = vadd.f32 %v6013, 1.0
    %v6015 = vmul.f32 %v6014, 0.5
    %vm6016 = vcmask 7168
    %6017 = vst.msk [vmem:[%s59] sm:$0xff] %vm6016, %v6015
    %vm6018 = vcmp.gt.f32.partialorder %v6006, 20.0
    %v6019 = vmin.f32 %v6006, 20.0
    %v6020 = vmul.f32 %v6019, 1.442695
    %v6021 = vpow.pop %v6020
    %v6022 = vadd.f32 %v6021, 1.0
    %v6023 = vlog2.pop %v6022
    %v6024 = vmul.f32 %v6023, 0.6931472
    %v6025 = vmul.f32 -0.5, %v6021
    %v6026 = vadd.f32 %v6025, 1.0
    %v6027 = vmul.f32 %v6026, %v6021
    %v6028 = vand.u32 2147483647, %v6021
    %vm6029 = vcmp.lt.f32.partialorder %v6028, 0.0004427343
    %v6030 = vsel %vm6029, %v6027, %v6024
    %v6031 = vsel %vm6018, %v6006, %v6030
    %6032 = vst.msk [vmem:[%s61] sm:$0xff] %vm6016, %v6031
    %v6033 = vsel %vm1698, %v5098, 0.0
    %v6034 = vsel %vm1698, %v5099, 0.0
    %v6035 = vadd.f32 %v6033, %v6034
    %6036 = vadd.xlane.f32.xlu0 %v6035
    %v6037 = vpop.xlane.xlu0 %6036
    %v6038 = vrot.slane %v6037, 4
    %v6039 = vadd.f32 %v6037, %v6038
    %v6040 = vrot.slane %v6039, 2
    %v6041 = vadd.f32 %v6039, %v6040
    %v6042 = vrot.slane %v6041, 1
    %v6043 = vadd.f32 %v6041, %v6042
    %s6044 = vtos %v6043
    %s6045 = smul.f32 %s6044, 0.5
    %v6046 = vstv %s6045
    %v6047 = vadd.f32 %v6046, 0.0
    %vm6048 = vcmask 0
    %6049 = vst.msk [vmem:[#allocation34] sm:$0x1] %vm6048, %v6047
    // Predicated region
    $region186: #{tpu_custom_call.1} parent=1 // pred_check
      _
    $region187: #{tpu_custom_call.1} parent=1 // pred_check_branch
      %6051 = sbr.rel (0) target = $region189
    $region188: #{tpu_custom_call.1} parent=1 // pred_region
      %s6053 = ssub.s32 128, 128
      %6054 = vsyncadd [#allocation6], %s6053
      %s6056 = sshll.u32 [#allocation33], 4
      %s6057 = int_to_ptr.vmem [resolvable:$true] %s6056
      %6059 = dma.vmem_to_hbm [thread:$0]  %s6057, 128, %s57, [#allocation6]
    $region189: #{tpu_custom_call.1} parent=1 // pred_fallthru
      _
    // Predicated region
    $region190: #{tpu_custom_call.1} parent=1 // pred_check
      _
    $region191: #{tpu_custom_call.1} parent=1 // pred_check_branch
      %6061 = sbr.rel (0) target = $region193
    $region192: #{tpu_custom_call.1} parent=1 // pred_region
      _
    $region193: #{tpu_custom_call.1} parent=1 // pred_fallthru
      _
    // Predicated region
    $region194: #{tpu_custom_call.1} parent=1 // pred_check
      _
    $region195: #{tpu_custom_call.1} parent=1 // pred_check_branch
      %6063 = sbr.rel (0) target = $region197
    $region196: #{tpu_custom_call.1} parent=1 // pred_region
      _
    $region197: #{tpu_custom_call.1} parent=1 // pred_fallthru
      _
    // Predicated region
    $region198: #{tpu_custom_call.1} parent=1 // pred_check
      _
    $region199: #{tpu_custom_call.1} parent=1 // pred_check_branch
      %6065 = sbr.rel (0) target = $region201
    $region200: #{tpu_custom_call.1} parent=1 // pred_region
      %s6067 = ssub.s32 16, 16
      %6068 = vsyncadd [#allocation35], %s6067
      %s6070 = sshll.u32 [#allocation34], 4
      %s6071 = int_to_ptr.vmem [resolvable:$true] %s6070
      %6073 = dma.vmem_to_hbm [thread:$0]  %s6071, 16, %s63, [#allocation35]
    $region201: #{tpu_custom_call.1} parent=1 // pred_fallthru
      _
    // Predicated region
    $region202: #{tpu_custom_call.1} parent=1 // pred_check
      _
    $region203: #{tpu_custom_call.1} parent=1 // pred_check_branch
      %6075 = sbr.rel (0) target = $region205
    $region204: #{tpu_custom_call.1} parent=1 // pred_region
      %6076 = dma.done [#allocation6], 128
    $region205: #{tpu_custom_call.1} parent=1 // pred_fallthru
      _
    // Predicated region
    $region206: #{tpu_custom_call.1} parent=1 // pred_check
      _
    $region207: #{tpu_custom_call.1} parent=1 // pred_check_branch
      %6078 = sbr.rel (0) target = $region209
    $region208: #{tpu_custom_call.1} parent=1 // pred_region
      _
    $region209: #{tpu_custom_call.1} parent=1 // pred_fallthru
      _
    // Predicated region
    $region210: #{tpu_custom_call.1} parent=1 // pred_check
      _
    $region211: #{tpu_custom_call.1} parent=1 // pred_check_branch
      %6080 = sbr.rel (0) target = $region213
    $region212: #{tpu_custom_call.1} parent=1 // pred_region
      _
    $region213: #{tpu_custom_call.1} parent=1 // pred_fallthru
      _
    // Predicated region
    $region214: #{tpu_custom_call.1} parent=1 // pred_check
      _
    $region215: #{tpu_custom_call.1} parent=1 // pred_check_branch
      %6082 = sbr.rel (0) target = $region217
    $region216: #{tpu_custom_call.1} parent=1 // pred_region
      %6083 = dma.done [#allocation35], 16
    $region217: #{tpu_custom_call.1} parent=1 // pred_fallthru
      _
    %6084 = vsyncpa [#allocation5], 1
    %6085 = vsyncpa [#allocation8], 1
    %6086 = vsyncpa [#allocation11], 1
    %6087 = vsyncpa [#allocation14], 1
    %6088 = vsyncpa [#allocation17], 1
    %6089 = vsyncpa [#allocation20], 1
    %6090 = vsyncpa [#allocation23], 1
    %6091 = vsyncpa [#allocation26], 1
    %6092 = vsyncpa [#allocation29], 1
    %6093 = vsyncpa [#allocation32], 1
    %6094 = vsyncpa [#allocation6], 1
    %6095 = vsyncpa [#allocation35], 1

</llo_original>
